<compile_context>
chip_gen: v5e
topology: v5e:2x2
jax: 0.10.0
libtpu: 0.0.40
codegen_flags: <defaults>
</compile_context>

<pallas_src>
import jax
import jax.numpy as jnp
from jax.experimental import pallas as pl
from jax.experimental.pallas import tpu as pltpu

EPS = 1e-5
_TAPS = tuple((ky, kx) for ky in range(3) for kx in range(3))


def _tap_ranges(k, size):
    """For kernel offset k in {0,1,2} (pad=1): dest range [d0, d1) and src start."""
    d0 = max(0, 1 - k)
    d1 = min(size, size + 1 - k)
    return d0, d1, d0 + (k - 1)


def basic_block_kernel(x_ref, w1_ref, g1_ref, b1_ref, w2_ref, g2_ref, b2_ref,
                       o_ref, col_ref, h_ref):
    """Fused conv3x3 -> BN -> ReLU -> conv3x3 -> BN -> +x -> ReLU (NHWC).

    x_ref   : (N, H, W, C)    f32 input
    w*_ref  : (9*C, P)        bf16 im2col weights, K index = (ky*3+kx)*C + c
    g*/b*   : (1, P)          f32 BN gamma / beta
    o_ref   : (N, H, W, P)    output
    col_ref : (N, H, W, 9*C)  f32 shared im2col scratch (reused by both convs)
    h_ref   : (N, H, W, P)    f32 scratch holding relu(bn1(conv1(x)))
    """
    N, H, W, C = x_ref.shape
    P = o_ref.shape[-1]
    M = N * H * W
    inv_m = 1.0 / float(M)

    # ---- one-time zero of the im2col halo strips (the only positions no tap
    #      ever writes). Tap geometry is identical for conv1 and conv2, so this
    #      is done once instead of zeroing a whole padded buffer twice. ----
    for t, (ky, kx) in enumerate(_TAPS):
        c0, c1 = t * C, (t + 1) * C
        if ky == 0:
            col_ref[:, 0:1, :, c0:c1] = jnp.zeros((N, 1, W, C), col_ref.dtype)
        if ky == 2:
            col_ref[:, H - 1:H, :, c0:c1] = jnp.zeros((N, 1, W, C), col_ref.dtype)
        if kx == 0:
            col_ref[:, :, 0:1, c0:c1] = jnp.zeros((N, H, 1, C), col_ref.dtype)
        if kx == 2:
            col_ref[:, :, W - 1:W, c0:c1] = jnp.zeros((N, H, 1, C), col_ref.dtype)

    def im2col(src_ref):
        # Scatter the 9 shifted taps of src_ref into col_ref (valid interior
        # only; the halo strips stay zero from the one-time init above).
        for t, (ky, kx) in enumerate(_TAPS):
            y0, y1, sy = _tap_ranges(ky, H)
            x0, x1, sx = _tap_ranges(kx, W)
            col_ref[:, y0:y1, x0:x1, t * C:(t + 1) * C] = src_ref[
                :, sy:sy + (y1 - y0), sx:sx + (x1 - x0), :].astype(col_ref.dtype)

    def conv3x3(w_ref):
        # One MXU matmul per conv: (M, 9C) @ (9C, P), bf16 in, f32 accumulate.
        col = col_ref[...].reshape(M, 9 * C).astype(jnp.bfloat16)
        return jnp.dot(col, w_ref[...], preferred_element_type=jnp.float32)

    def batchnorm(acc, g_ref, b_ref):
        # Single-pass training-mode batch statistics: var = E[x^2] - mean^2,
        # applied as one fused scale/shift per element.
        s = jnp.sum(acc, axis=0, keepdims=True)
        ss = jnp.sum(acc * acc, axis=0, keepdims=True)
        mean = s * inv_m
        var = ss * inv_m - mean * mean
        scale = jax.lax.rsqrt(var + EPS) * g_ref[...]
        shift = b_ref[...] - mean * scale
        return acc * scale + shift

    # ---- conv1 -> bn1 -> relu ----
    im2col(x_ref)
    h1 = jnp.maximum(batchnorm(conv3x3(w1_ref), g1_ref, b1_ref), 0.0)
    h_ref[...] = h1.reshape(N, H, W, P)

    # ---- conv2 -> bn2 -> +residual -> relu ----
    im2col(h_ref)
    h2 = batchnorm(conv3x3(w2_ref), g2_ref, b2_ref)
    residual = x_ref[...].astype(jnp.float32).reshape(M, C)   # requires C == P
    out = jnp.maximum(h2 + residual, 0.0)
    o_ref[...] = out.reshape(N, H, W, P).astype(o_ref.dtype)


def prepare_block_params(w1_oihw, g1, b1, w2_oihw, g2, b2):
    """One-time parameter prep, hoisted out of the jitted per-call path.

    Conv weights: OIHW -> (ky, kx, Cin, Cout) -> (9*Cin, Cout), cast to bf16 so
    the in-kernel matmul runs MXU-native.  BN params -> (1, P) f32.
    """
    P, C = w1_oihw.shape[0], w1_oihw.shape[1]
    w1 = jnp.transpose(w1_oihw, (2, 3, 1, 0)).reshape(9 * C, P).astype(jnp.bfloat16)
    w2 = jnp.transpose(w2_oihw, (2, 3, 1, 0)).reshape(9 * P, P).astype(jnp.bfloat16)

    def _bn(a):
        return a.reshape(1, -1).astype(jnp.float32)

    return (w1, _bn(g1), _bn(b1), w2, _bn(g2), _bn(b2))


def _full_spec(shape):
    zeros = (0,) * len(shape)
    return pl.BlockSpec(shape, lambda i, zeros=zeros: zeros)


@jax.jit
def basic_block_forward_nchw(x_nchw, params):
    """BasicBlock forward: NCHW input (PyTorch convention) -> NCHW output."""
    w1, g1, b1, w2, g2, b2 = params
    x = jnp.transpose(x_nchw, (0, 2, 3, 1))            # NCHW -> NHWC
    N, H, W, C = x.shape
    P = w1.shape[-1]
    # downsample=None / stride=1 => residual is the raw input => inplanes == planes.
    assert C == P, "BasicBlock with downsample=None requires inplanes == planes"

    out = pl.pallas_call(
        basic_block_kernel,
        out_shape=jax.ShapeDtypeStruct((N, H, W, P), x.dtype),
        grid=(1,),
        in_specs=[
            _full_spec((N, H, W, C)),
            _full_spec((9 * C, P)),
            _full_spec((1, P)),
            _full_spec((1, P)),
            _full_spec((9 * P, P)),
            _full_spec((1, P)),
            _full_spec((1, P)),
        ],
        out_specs=_full_spec((N, H, W, P)),
        scratch_shapes=[
            pltpu.VMEM((N, H, W, 9 * C), jnp.float32),   # shared im2col buffer
            pltpu.VMEM((N, H, W, P), jnp.float32),       # relu(bn1(conv1(x)))
        ],
        compiler_params=pltpu.CompilerParams(
            dimension_semantics=("arbitrary",)),
    )(x, w1, g1, b1, w2, g2, b2)

    return jnp.transpose(out, (0, 3, 1, 2))             # NHWC -> NCHW


def reference_basic_block(x, w1, g1, b1, w2, g2, b2):
    """Pure-JAX f32 reference (NCHW), training-mode BatchNorm semantics."""
    def conv(a, w):
        return jax.lax.conv_general_dilated(
            a, w, window_strides=(1, 1), padding=((1, 1), (1, 1)),
            dimension_numbers=("NCHW", "OIHW", "NCHW"))

    def bn(a, g, b):
        mean = a.mean(axis=(0, 2, 3), keepdims=True)
        var = ((a - mean) ** 2).mean(axis=(0, 2, 3), keepdims=True)
        return ((a - mean) * jax.lax.rsqrt(var + EPS)
                * g.reshape(1, -1, 1, 1) + b.reshape(1, -1, 1, 1))

    out = jax.nn.relu(bn(conv(x, w1), g1, b1))
    out = bn(conv(out, w2), g2, b2) + x
    return jax.nn.relu(out)


if __name__ == "__main__":
    key = jax.random.PRNGKey(0)
    k_x, k_w1, k_w2, k_g1, k_b1, k_g2, k_b2 = jax.random.split(key, 7)

    # BasicBlock(inplanes=8, planes=8, stride=1, downsample=None)
    N, C, H, W = 2, 8, 16, 16
    P = 8

    x = jax.random.normal(k_x, (N, C, H, W), jnp.float32)
    w1 = jax.random.normal(k_w1, (P, C, 3, 3), jnp.float32) * 0.1   # conv1 (OIHW)
    w2 = jax.random.normal(k_w2, (P, P, 3, 3), jnp.float32) * 0.1   # conv2 (OIHW)
    g1 = 1.0 + 0.1 * jax.random.normal(k_g1, (P,), jnp.float32)     # bn1 gamma
    b1 = 0.1 * jax.random.normal(k_b1, (P,), jnp.float32)           # bn1 beta
    g2 = 1.0 + 0.1 * jax.random.normal(k_g2, (P,), jnp.float32)     # bn2 gamma
    b2 = 0.1 * jax.random.normal(k_b2, (P,), jnp.float32)           # bn2 beta

    params = prepare_block_params(w1, g1, b1, w2, g2, b2)
    out = basic_block_forward_nchw(x, params)
    out = jax.block_until_ready(out)

    ref = reference_basic_block(x, w1, g1, b1, w2, g2, b2)
    max_err = float(jnp.max(jnp.abs(out - ref)))
    assert out.shape == (N, P, H, W), out.shape
    # bf16 MXU operands (f32 accumulation) vs. an f32 reference: a few 1e-3 of
    # absolute error through two convs + two BNs is expected.
    assert max_err < 3e-2, f"mismatch vs reference: max abs err {max_err}"

    print("KERNEL_OK")
</pallas_src>

<mosaic_0001>
module attributes {stable_mosaic.version = 11 : i64} {
  func.func @basic_block_kernel(%arg0: i32, %arg1: memref<2x16x16x8xf32, #tpu.memory_space<vmem>>, %arg2: memref<72x8xbf16, #tpu.memory_space<vmem>>, %arg3: memref<1x8xf32, #tpu.memory_space<vmem>>, %arg4: memref<1x8xf32, #tpu.memory_space<vmem>>, %arg5: memref<72x8xbf16, #tpu.memory_space<vmem>>, %arg6: memref<1x8xf32, #tpu.memory_space<vmem>>, %arg7: memref<1x8xf32, #tpu.memory_space<vmem>>, %arg8: memref<2x16x16x8xf32, #tpu.memory_space<vmem>>, %arg9: memref<2x16x16x72xf32, #tpu.memory_space<vmem>>, %arg10: memref<2x16x16x8xf32, #tpu.memory_space<vmem>>) attributes {dimension_semantics = [#tpu.dimension_semantics<arbitrary>], iteration_bounds = array<i64: 1>, scalar_prefetch = 0 : i64, scratch_operands = 2 : i64, tpu.core_type = #tpu.core_type<tc>, window_params = [{pipeline_mode = #tpu.pipeline_mode<synchronous>, transform_indices = @transform_0, window_bounds = array<i64: 2, 16, 16, 8>}, {pipeline_mode = #tpu.pipeline_mode<synchronous>, transform_indices = @transform_1, window_bounds = array<i64: 72, 8>}, {pipeline_mode = #tpu.pipeline_mode<synchronous>, transform_indices = @transform_2, window_bounds = array<i64: 1, 8>}, {pipeline_mode = #tpu.pipeline_mode<synchronous>, transform_indices = @transform_3, window_bounds = array<i64: 1, 8>}, {pipeline_mode = #tpu.pipeline_mode<synchronous>, transform_indices = @transform_4, window_bounds = array<i64: 72, 8>}, {pipeline_mode = #tpu.pipeline_mode<synchronous>, transform_indices = @transform_5, window_bounds = array<i64: 1, 8>}, {pipeline_mode = #tpu.pipeline_mode<synchronous>, transform_indices = @transform_6, window_bounds = array<i64: 1, 8>}, {pipeline_mode = #tpu.pipeline_mode<synchronous>, transform_indices = @transform_7, window_bounds = array<i64: 2, 16, 16, 8>}]} {
    %cst = arith.constant 0.000000e+00 : f32
    %0 = vector.broadcast %cst : f32 to vector<2x1x16x8xf32>
    %c0 = arith.constant 0 : index
    %c0_0 = arith.constant 0 : index
    %c0_1 = arith.constant 0 : index
    %c0_2 = arith.constant 0 : index
    %1 = vector.load %arg9[%c0, %c0_0, %c0_1, %c0_2] : memref<2x16x16x72xf32, #tpu.memory_space<vmem>>, vector<2x1x16x8xf32>
    tpu.vector_store %arg9[%c0, %c0_0, %c0_1, %c0_2], %0 {strides = array<i32>} : memref<2x16x16x72xf32, #tpu.memory_space<vmem>>, vector<2x1x16x8xf32>,
    %cst_3 = arith.constant 0.000000e+00 : f32
    %2 = vector.broadcast %cst_3 : f32 to vector<2x16x1x8xf32>
    %c0_4 = arith.constant 0 : index
    %c0_5 = arith.constant 0 : index
    %c0_6 = arith.constant 0 : index
    %c0_7 = arith.constant 0 : index
    %3 = vector.load %arg9[%c0_4, %c0_5, %c0_6, %c0_7] : memref<2x16x16x72xf32, #tpu.memory_space<vmem>>, vector<2x16x1x8xf32>
    tpu.vector_store %arg9[%c0_4, %c0_5, %c0_6, %c0_7], %2 {strides = array<i32>} : memref<2x16x16x72xf32, #tpu.memory_space<vmem>>, vector<2x16x1x8xf32>,
    %cst_8 = arith.constant 0.000000e+00 : f32
    %4 = vector.broadcast %cst_8 : f32 to vector<2x1x16x8xf32>
    %c0_9 = arith.constant 0 : index
    %c0_10 = arith.constant 0 : index
    %c0_11 = arith.constant 0 : index
    %c8 = arith.constant 8 : index
    %5 = vector.load %arg9[%c0_9, %c0_10, %c0_11, %c8] : memref<2x16x16x72xf32, #tpu.memory_space<vmem>>, vector<2x1x16x8xf32>
    tpu.vector_store %arg9[%c0_9, %c0_10, %c0_11, %c8], %4 {strides = array<i32>} : memref<2x16x16x72xf32, #tpu.memory_space<vmem>>, vector<2x1x16x8xf32>,
    %cst_12 = arith.constant 0.000000e+00 : f32
    %6 = vector.broadcast %cst_12 : f32 to vector<2x1x16x8xf32>
    %c0_13 = arith.constant 0 : index
    %c0_14 = arith.constant 0 : index
    %c0_15 = arith.constant 0 : index
    %c16 = arith.constant 16 : index
    %7 = vector.load %arg9[%c0_13, %c0_14, %c0_15, %c16] : memref<2x16x16x72xf32, #tpu.memory_space<vmem>>, vector<2x1x16x8xf32>
    tpu.vector_store %arg9[%c0_13, %c0_14, %c0_15, %c16], %6 {strides = array<i32>} : memref<2x16x16x72xf32, #tpu.memory_space<vmem>>, vector<2x1x16x8xf32>,
    %cst_16 = arith.constant 0.000000e+00 : f32
    %8 = vector.broadcast %cst_16 : f32 to vector<2x16x1x8xf32>
    %c0_17 = arith.constant 0 : index
    %c0_18 = arith.constant 0 : index
    %c15 = arith.constant 15 : index
    %c16_19 = arith.constant 16 : index
    %9 = vector.load %arg9[%c0_17, %c0_18, %c15, %c16_19] : memref<2x16x16x72xf32, #tpu.memory_space<vmem>>, vector<2x16x1x8xf32>
    tpu.vector_store %arg9[%c0_17, %c0_18, %c15, %c16_19], %8 {strides = array<i32>} : memref<2x16x16x72xf32, #tpu.memory_space<vmem>>, vector<2x16x1x8xf32>,
    %cst_20 = arith.constant 0.000000e+00 : f32
    %10 = vector.broadcast %cst_20 : f32 to vector<2x16x1x8xf32>
    %c0_21 = arith.constant 0 : index
    %c0_22 = arith.constant 0 : index
    %c0_23 = arith.constant 0 : index
    %c24 = arith.constant 24 : index
    %11 = vector.load %arg9[%c0_21, %c0_22, %c0_23, %c24] : memref<2x16x16x72xf32, #tpu.memory_space<vmem>>, vector<2x16x1x8xf32>
    tpu.vector_store %arg9[%c0_21, %c0_22, %c0_23, %c24], %10 {strides = array<i32>} : memref<2x16x16x72xf32, #tpu.memory_space<vmem>>, vector<2x16x1x8xf32>,
    %cst_24 = arith.constant 0.000000e+00 : f32
    %12 = vector.broadcast %cst_24 : f32 to vector<2x16x1x8xf32>
    %c0_25 = arith.constant 0 : index
    %c0_26 = arith.constant 0 : index
    %c15_27 = arith.constant 15 : index
    %c40 = arith.constant 40 : index
    %13 = vector.load %arg9[%c0_25, %c0_26, %c15_27, %c40] : memref<2x16x16x72xf32, #tpu.memory_space<vmem>>, vector<2x16x1x8xf32>
    tpu.vector_store %arg9[%c0_25, %c0_26, %c15_27, %c40], %12 {strides = array<i32>} : memref<2x16x16x72xf32, #tpu.memory_space<vmem>>, vector<2x16x1x8xf32>,
    %cst_28 = arith.constant 0.000000e+00 : f32
    %14 = vector.broadcast %cst_28 : f32 to vector<2x1x16x8xf32>
    %c0_29 = arith.constant 0 : index
    %c15_30 = arith.constant 15 : index
    %c0_31 = arith.constant 0 : index
    %c48 = arith.constant 48 : index
    %15 = vector.load %arg9[%c0_29, %c15_30, %c0_31, %c48] : memref<2x16x16x72xf32, #tpu.memory_space<vmem>>, vector<2x1x16x8xf32>
    tpu.vector_store %arg9[%c0_29, %c15_30, %c0_31, %c48], %14 {strides = array<i32>} : memref<2x16x16x72xf32, #tpu.memory_space<vmem>>, vector<2x1x16x8xf32>,
    %cst_32 = arith.constant 0.000000e+00 : f32
    %16 = vector.broadcast %cst_32 : f32 to vector<2x16x1x8xf32>
    %c0_33 = arith.constant 0 : index
    %c0_34 = arith.constant 0 : index
    %c0_35 = arith.constant 0 : index
    %c48_36 = arith.constant 48 : index
    %17 = vector.load %arg9[%c0_33, %c0_34, %c0_35, %c48_36] : memref<2x16x16x72xf32, #tpu.memory_space<vmem>>, vector<2x16x1x8xf32>
    tpu.vector_store %arg9[%c0_33, %c0_34, %c0_35, %c48_36], %16 {strides = array<i32>} : memref<2x16x16x72xf32, #tpu.memory_space<vmem>>, vector<2x16x1x8xf32>,
    %cst_37 = arith.constant 0.000000e+00 : f32
    %18 = vector.broadcast %cst_37 : f32 to vector<2x1x16x8xf32>
    %c0_38 = arith.constant 0 : index
    %c15_39 = arith.constant 15 : index
    %c0_40 = arith.constant 0 : index
    %c56 = arith.constant 56 : index
    %19 = vector.load %arg9[%c0_38, %c15_39, %c0_40, %c56] : memref<2x16x16x72xf32, #tpu.memory_space<vmem>>, vector<2x1x16x8xf32>
    tpu.vector_store %arg9[%c0_38, %c15_39, %c0_40, %c56], %18 {strides = array<i32>} : memref<2x16x16x72xf32, #tpu.memory_space<vmem>>, vector<2x1x16x8xf32>,
    %cst_41 = arith.constant 0.000000e+00 : f32
    %20 = vector.broadcast %cst_41 : f32 to vector<2x1x16x8xf32>
    %c0_42 = arith.constant 0 : index
    %c15_43 = arith.constant 15 : index
    %c0_44 = arith.constant 0 : index
    %c64 = arith.constant 64 : index
    %21 = vector.load %arg9[%c0_42, %c15_43, %c0_44, %c64] : memref<2x16x16x72xf32, #tpu.memory_space<vmem>>, vector<2x1x16x8xf32>
    tpu.vector_store %arg9[%c0_42, %c15_43, %c0_44, %c64], %20 {strides = array<i32>} : memref<2x16x16x72xf32, #tpu.memory_space<vmem>>, vector<2x1x16x8xf32>,
    %cst_45 = arith.constant 0.000000e+00 : f32
    %22 = vector.broadcast %cst_45 : f32 to vector<2x16x1x8xf32>
    %c0_46 = arith.constant 0 : index
    %c0_47 = arith.constant 0 : index
    %c15_48 = arith.constant 15 : index
    %c64_49 = arith.constant 64 : index
    %23 = vector.load %arg9[%c0_46, %c0_47, %c15_48, %c64_49] : memref<2x16x16x72xf32, #tpu.memory_space<vmem>>, vector<2x16x1x8xf32>
    tpu.vector_store %arg9[%c0_46, %c0_47, %c15_48, %c64_49], %22 {strides = array<i32>} : memref<2x16x16x72xf32, #tpu.memory_space<vmem>>, vector<2x16x1x8xf32>,
    %c0_50 = arith.constant 0 : index
    %c0_51 = arith.constant 0 : index
    %c0_52 = arith.constant 0 : index
    %c0_53 = arith.constant 0 : index
    %24 = vector.load %arg1[%c0_50, %c0_51, %c0_52, %c0_53] : memref<2x16x16x8xf32, #tpu.memory_space<vmem>>, vector<2x15x15x8xf32>
    %c0_54 = arith.constant 0 : index
    %c1 = arith.constant 1 : index
    %c1_55 = arith.constant 1 : index
    %c0_56 = arith.constant 0 : index
    %25 = vector.load %arg9[%c0_54, %c1, %c1_55, %c0_56] : memref<2x16x16x72xf32, #tpu.memory_space<vmem>>, vector<2x15x15x8xf32>
    tpu.vector_store %arg9[%c0_54, %c1, %c1_55, %c0_56], %24 {strides = array<i32>} : memref<2x16x16x72xf32, #tpu.memory_space<vmem>>, vector<2x15x15x8xf32>,
    %c0_57 = arith.constant 0 : index
    %c0_58 = arith.constant 0 : index
    %c0_59 = arith.constant 0 : index
    %c0_60 = arith.constant 0 : index
    %26 = vector.load %arg1[%c0_57, %c0_58, %c0_59, %c0_60] : memref<2x16x16x8xf32, #tpu.memory_space<vmem>>, vector<2x15x16x8xf32>
    %c0_61 = arith.constant 0 : index
    %c1_62 = arith.constant 1 : index
    %c0_63 = arith.constant 0 : index
    %c8_64 = arith.constant 8 : index
    %27 = vector.load %arg9[%c0_61, %c1_62, %c0_63, %c8_64] : memref<2x16x16x72xf32, #tpu.memory_space<vmem>>, vector<2x15x16x8xf32>
    tpu.vector_store %arg9[%c0_61, %c1_62, %c0_63, %c8_64], %26 {strides = array<i32>} : memref<2x16x16x72xf32, #tpu.memory_space<vmem>>, vector<2x15x16x8xf32>,
    %c0_65 = arith.constant 0 : index
    %c0_66 = arith.constant 0 : index
    %c1_67 = arith.constant 1 : index
    %c0_68 = arith.constant 0 : index
    %28 = vector.load %arg1[%c0_65, %c0_66, %c1_67, %c0_68] : memref<2x16x16x8xf32, #tpu.memory_space<vmem>>, vector<2x15x15x8xf32>
    %c0_69 = arith.constant 0 : index
    %c1_70 = arith.constant 1 : index
    %c0_71 = arith.constant 0 : index
    %c16_72 = arith.constant 16 : index
    %29 = vector.load %arg9[%c0_69, %c1_70, %c0_71, %c16_72] : memref<2x16x16x72xf32, #tpu.memory_space<vmem>>, vector<2x15x15x8xf32>
    tpu.vector_store %arg9[%c0_69, %c1_70, %c0_71, %c16_72], %28 {strides = array<i32>} : memref<2x16x16x72xf32, #tpu.memory_space<vmem>>, vector<2x15x15x8xf32>,
    %c0_73 = arith.constant 0 : index
    %c0_74 = arith.constant 0 : index
    %c0_75 = arith.constant 0 : index
    %c0_76 = arith.constant 0 : index
    %30 = vector.load %arg1[%c0_73, %c0_74, %c0_75, %c0_76] : memref<2x16x16x8xf32, #tpu.memory_space<vmem>>, vector<2x16x15x8xf32>
    %c0_77 = arith.constant 0 : index
    %c0_78 = arith.constant 0 : index
    %c1_79 = arith.constant 1 : index
    %c24_80 = arith.constant 24 : index
    %31 = vector.load %arg9[%c0_77, %c0_78, %c1_79, %c24_80] : memref<2x16x16x72xf32, #tpu.memory_space<vmem>>, vector<2x16x15x8xf32>
    tpu.vector_store %arg9[%c0_77, %c0_78, %c1_79, %c24_80], %30 {strides = array<i32>} : memref<2x16x16x72xf32, #tpu.memory_space<vmem>>, vector<2x16x15x8xf32>,
    %c0_81 = arith.constant 0 : index
    %c0_82 = arith.constant 0 : index
    %c0_83 = arith.constant 0 : index
    %c0_84 = arith.constant 0 : index
    %32 = vector.load %arg1[%c0_81, %c0_82, %c0_83, %c0_84] : memref<2x16x16x8xf32, #tpu.memory_space<vmem>>, vector<2x16x16x8xf32>
    %c0_85 = arith.constant 0 : index
    %c0_86 = arith.constant 0 : index
    %c0_87 = arith.constant 0 : index
    %c32 = arith.constant 32 : index
    %33 = vector.load %arg9[%c0_85, %c0_86, %c0_87, %c32] : memref<2x16x16x72xf32, #tpu.memory_space<vmem>>, vector<2x16x16x8xf32>
    tpu.vector_store %arg9[%c0_85, %c0_86, %c0_87, %c32], %32 {strides = array<i32>} : memref<2x16x16x72xf32, #tpu.memory_space<vmem>>, vector<2x16x16x8xf32>,
    %c0_88 = arith.constant 0 : index
    %c0_89 = arith.constant 0 : index
    %c1_90 = arith.constant 1 : index
    %c0_91 = arith.constant 0 : index
    %34 = vector.load %arg1[%c0_88, %c0_89, %c1_90, %c0_91] : memref<2x16x16x8xf32, #tpu.memory_space<vmem>>, vector<2x16x15x8xf32>
    %c0_92 = arith.constant 0 : index
    %c0_93 = arith.constant 0 : index
    %c0_94 = arith.constant 0 : index
    %c40_95 = arith.constant 40 : index
    %35 = vector.load %arg9[%c0_92, %c0_93, %c0_94, %c40_95] : memref<2x16x16x72xf32, #tpu.memory_space<vmem>>, vector<2x16x15x8xf32>
    tpu.vector_store %arg9[%c0_92, %c0_93, %c0_94, %c40_95], %34 {strides = array<i32>} : memref<2x16x16x72xf32, #tpu.memory_space<vmem>>, vector<2x16x15x8xf32>,
    %c0_96 = arith.constant 0 : index
    %c1_97 = arith.constant 1 : index
    %c0_98 = arith.constant 0 : index
    %c0_99 = arith.constant 0 : index
    %36 = vector.load %arg1[%c0_96, %c1_97, %c0_98, %c0_99] : memref<2x16x16x8xf32, #tpu.memory_space<vmem>>, vector<2x15x15x8xf32>
    %c0_100 = arith.constant 0 : index
    %c0_101 = arith.constant 0 : index
    %c1_102 = arith.constant 1 : index
    %c48_103 = arith.constant 48 : index
    %37 = vector.load %arg9[%c0_100, %c0_101, %c1_102, %c48_103] : memref<2x16x16x72xf32, #tpu.memory_space<vmem>>, vector<2x15x15x8xf32>
    tpu.vector_store %arg9[%c0_100, %c0_101, %c1_102, %c48_103], %36 {strides = array<i32>} : memref<2x16x16x72xf32, #tpu.memory_space<vmem>>, vector<2x15x15x8xf32>,
    %c0_104 = arith.constant 0 : index
    %c1_105 = arith.constant 1 : index
    %c0_106 = arith.constant 0 : index
    %c0_107 = arith.constant 0 : index
    %38 = vector.load %arg1[%c0_104, %c1_105, %c0_106, %c0_107] : memref<2x16x16x8xf32, #tpu.memory_space<vmem>>, vector<2x15x16x8xf32>
    %c0_108 = arith.constant 0 : index
    %c0_109 = arith.constant 0 : index
    %c0_110 = arith.constant 0 : index
    %c56_111 = arith.constant 56 : index
    %39 = vector.load %arg9[%c0_108, %c0_109, %c0_110, %c56_111] : memref<2x16x16x72xf32, #tpu.memory_space<vmem>>, vector<2x15x16x8xf32>
    tpu.vector_store %arg9[%c0_108, %c0_109, %c0_110, %c56_111], %38 {strides = array<i32>} : memref<2x16x16x72xf32, #tpu.memory_space<vmem>>, vector<2x15x16x8xf32>,
    %c0_112 = arith.constant 0 : index
    %c1_113 = arith.constant 1 : index
    %c1_114 = arith.constant 1 : index
    %c0_115 = arith.constant 0 : index
    %40 = vector.load %arg1[%c0_112, %c1_113, %c1_114, %c0_115] : memref<2x16x16x8xf32, #tpu.memory_space<vmem>>, vector<2x15x15x8xf32>
    %c0_116 = arith.constant 0 : index
    %c0_117 = arith.constant 0 : index
    %c0_118 = arith.constant 0 : index
    %c64_119 = arith.constant 64 : index
    %41 = vector.load %arg9[%c0_116, %c0_117, %c0_118, %c64_119] : memref<2x16x16x72xf32, #tpu.memory_space<vmem>>, vector<2x15x15x8xf32>
    tpu.vector_store %arg9[%c0_116, %c0_117, %c0_118, %c64_119], %40 {strides = array<i32>} : memref<2x16x16x72xf32, #tpu.memory_space<vmem>>, vector<2x15x15x8xf32>,
    %c0_120 = arith.constant 0 : index
    %c0_121 = arith.constant 0 : index
    %c0_122 = arith.constant 0 : index
    %c0_123 = arith.constant 0 : index
    %42 = vector.load %arg9[%c0_120, %c0_121, %c0_122, %c0_123] : memref<2x16x16x72xf32, #tpu.memory_space<vmem>>, vector<2x16x16x72xf32>
    %43 = vector.shape_cast %42 : vector<2x16x16x72xf32> to vector<512x72xf32>
    %44 = arith.truncf %43 : vector<512x72xf32> to vector<512x72xbf16>
    %c0_124 = arith.constant 0 : index
    %c0_125 = arith.constant 0 : index
    %45 = vector.load %arg2[%c0_124, %c0_125] : memref<72x8xbf16, #tpu.memory_space<vmem>>, vector<72x8xbf16>
    %cst_126 = arith.constant dense<0.000000e+00> : vector<512x8xf32>
    %46 = tpu.matmul %44, %45, %cst_126 {dimension_numbers = #tpu.dot_dimension_numbers<[1], [0], [0], [1], [0, 0, 1, 1], [], []>} : vector<512x72xbf16>, vector<72x8xbf16>, vector<512x8xf32> -> vector<512x8xf32>
    %cst_127 = arith.constant dense<0.000000e+00> : vector<8xf32>
    %47 = vector.multi_reduction <add>, %46, %cst_127 [0] : vector<512x8xf32> to vector<8xf32>
    %48 = vector.shape_cast %47 : vector<8xf32> to vector<1x8xf32>
    %49 = arith.mulf %46, %46 : vector<512x8xf32>
    %cst_128 = arith.constant dense<0.000000e+00> : vector<8xf32>
    %50 = vector.multi_reduction <add>, %49, %cst_128 [0] : vector<512x8xf32> to vector<8xf32>
    %51 = vector.shape_cast %50 : vector<8xf32> to vector<1x8xf32>
    %cst_129 = arith.constant 0.001953125 : f32
    %52 = vector.broadcast %cst_129 : f32 to vector<1x8xf32>
    %53 = arith.mulf %48, %52 : vector<1x8xf32>
    %cst_130 = arith.constant 0.001953125 : f32
    %54 = vector.broadcast %cst_130 : f32 to vector<1x8xf32>
    %55 = arith.mulf %51, %54 : vector<1x8xf32>
    %56 = arith.mulf %53, %53 : vector<1x8xf32>
    %57 = arith.subf %55, %56 : vector<1x8xf32>
    %cst_131 = arith.constant 9.99999974E-6 : f32
    %58 = vector.broadcast %cst_131 : f32 to vector<1x8xf32>
    %59 = arith.addf %57, %58 : vector<1x8xf32>
    %60 = math.rsqrt %59 : vector<1x8xf32>
    %c0_132 = arith.constant 0 : index
    %c0_133 = arith.constant 0 : index
    %61 = vector.load %arg3[%c0_132, %c0_133] : memref<1x8xf32, #tpu.memory_space<vmem>>, vector<1x8xf32>
    %62 = arith.mulf %60, %61 : vector<1x8xf32>
    %c0_134 = arith.constant 0 : index
    %c0_135 = arith.constant 0 : index
    %63 = vector.load %arg4[%c0_134, %c0_135] : memref<1x8xf32, #tpu.memory_space<vmem>>, vector<1x8xf32>
    %64 = arith.mulf %53, %62 : vector<1x8xf32>
    %65 = arith.subf %63, %64 : vector<1x8xf32>
    %66 = vector.broadcast %62 : vector<1x8xf32> to vector<512x8xf32>
    %67 = arith.mulf %46, %66 : vector<512x8xf32>
    %68 = vector.broadcast %65 : vector<1x8xf32> to vector<512x8xf32>
    %69 = arith.addf %67, %68 : vector<512x8xf32>
    %cst_136 = arith.constant 0.000000e+00 : f32
    %70 = vector.broadcast %cst_136 : f32 to vector<512x8xf32>
    %71 = arith.maximumf %69, %70 : vector<512x8xf32>
    %72 = vector.shape_cast %71 : vector<512x8xf32> to vector<2x16x16x8xf32>
    %c0_137 = arith.constant 0 : index
    %c0_138 = arith.constant 0 : index
    %c0_139 = arith.constant 0 : index
    %c0_140 = arith.constant 0 : index
    %73 = vector.load %arg10[%c0_137, %c0_138, %c0_139, %c0_140] : memref<2x16x16x8xf32, #tpu.memory_space<vmem>>, vector<2x16x16x8xf32>
    tpu.vector_store %arg10[%c0_137, %c0_138, %c0_139, %c0_140], %72 {strides = array<i32>} : memref<2x16x16x8xf32, #tpu.memory_space<vmem>>, vector<2x16x16x8xf32>,
    %c0_141 = arith.constant 0 : index
    %c0_142 = arith.constant 0 : index
    %c0_143 = arith.constant 0 : index
    %c0_144 = arith.constant 0 : index
    %74 = vector.load %arg10[%c0_141, %c0_142, %c0_143, %c0_144] : memref<2x16x16x8xf32, #tpu.memory_space<vmem>>, vector<2x15x15x8xf32>
    %c0_145 = arith.constant 0 : index
    %c1_146 = arith.constant 1 : index
    %c1_147 = arith.constant 1 : index
    %c0_148 = arith.constant 0 : index
    %75 = vector.load %arg9[%c0_145, %c1_146, %c1_147, %c0_148] : memref<2x16x16x72xf32, #tpu.memory_space<vmem>>, vector<2x15x15x8xf32>
    tpu.vector_store %arg9[%c0_145, %c1_146, %c1_147, %c0_148], %74 {strides = array<i32>} : memref<2x16x16x72xf32, #tpu.memory_space<vmem>>, vector<2x15x15x8xf32>,
    %c0_149 = arith.constant 0 : index
    %c0_150 = arith.constant 0 : index
    %c0_151 = arith.constant 0 : index
    %c0_152 = arith.constant 0 : index
    %76 = vector.load %arg10[%c0_149, %c0_150, %c0_151, %c0_152] : memref<2x16x16x8xf32, #tpu.memory_space<vmem>>, vector<2x15x16x8xf32>
    %c0_153 = arith.constant 0 : index
    %c1_154 = arith.constant 1 : index
    %c0_155 = arith.constant 0 : index
    %c8_156 = arith.constant 8 : index
    %77 = vector.load %arg9[%c0_153, %c1_154, %c0_155, %c8_156] : memref<2x16x16x72xf32, #tpu.memory_space<vmem>>, vector<2x15x16x8xf32>
    tpu.vector_store %arg9[%c0_153, %c1_154, %c0_155, %c8_156], %76 {strides = array<i32>} : memref<2x16x16x72xf32, #tpu.memory_space<vmem>>, vector<2x15x16x8xf32>,
    %c0_157 = arith.constant 0 : index
    %c0_158 = arith.constant 0 : index
    %c1_159 = arith.constant 1 : index
    %c0_160 = arith.constant 0 : index
    %78 = vector.load %arg10[%c0_157, %c0_158, %c1_159, %c0_160] : memref<2x16x16x8xf32, #tpu.memory_space<vmem>>, vector<2x15x15x8xf32>
    %c0_161 = arith.constant 0 : index
    %c1_162 = arith.constant 1 : index
    %c0_163 = arith.constant 0 : index
    %c16_164 = arith.constant 16 : index
    %79 = vector.load %arg9[%c0_161, %c1_162, %c0_163, %c16_164] : memref<2x16x16x72xf32, #tpu.memory_space<vmem>>, vector<2x15x15x8xf32>
    tpu.vector_store %arg9[%c0_161, %c1_162, %c0_163, %c16_164], %78 {strides = array<i32>} : memref<2x16x16x72xf32, #tpu.memory_space<vmem>>, vector<2x15x15x8xf32>,
    %c0_165 = arith.constant 0 : index
    %c0_166 = arith.constant 0 : index
    %c0_167 = arith.constant 0 : index
    %c0_168 = arith.constant 0 : index
    %80 = vector.load %arg10[%c0_165, %c0_166, %c0_167, %c0_168] : memref<2x16x16x8xf32, #tpu.memory_space<vmem>>, vector<2x16x15x8xf32>
    %c0_169 = arith.constant 0 : index
    %c0_170 = arith.constant 0 : index
    %c1_171 = arith.constant 1 : index
    %c24_172 = arith.constant 24 : index
    %81 = vector.load %arg9[%c0_169, %c0_170, %c1_171, %c24_172] : memref<2x16x16x72xf32, #tpu.memory_space<vmem>>, vector<2x16x15x8xf32>
    tpu.vector_store %arg9[%c0_169, %c0_170, %c1_171, %c24_172], %80 {strides = array<i32>} : memref<2x16x16x72xf32, #tpu.memory_space<vmem>>, vector<2x16x15x8xf32>,
    %c0_173 = arith.constant 0 : index
    %c0_174 = arith.constant 0 : index
    %c0_175 = arith.constant 0 : index
    %c0_176 = arith.constant 0 : index
    %82 = vector.load %arg10[%c0_173, %c0_174, %c0_175, %c0_176] : memref<2x16x16x8xf32, #tpu.memory_space<vmem>>, vector<2x16x16x8xf32>
    %c0_177 = arith.constant 0 : index
    %c0_178 = arith.constant 0 : index
    %c0_179 = arith.constant 0 : index
    %c32_180 = arith.constant 32 : index
    %83 = vector.load %arg9[%c0_177, %c0_178, %c0_179, %c32_180] : memref<2x16x16x72xf32, #tpu.memory_space<vmem>>, vector<2x16x16x8xf32>
    tpu.vector_store %arg9[%c0_177, %c0_178, %c0_179, %c32_180], %82 {strides = array<i32>} : memref<2x16x16x72xf32, #tpu.memory_space<vmem>>, vector<2x16x16x8xf32>,
    %c0_181 = arith.constant 0 : index
    %c0_182 = arith.constant 0 : index
    %c1_183 = arith.constant 1 : index
    %c0_184 = arith.constant 0 : index
    %84 = vector.load %arg10[%c0_181, %c0_182, %c1_183, %c0_184] : memref<2x16x16x8xf32, #tpu.memory_space<vmem>>, vector<2x16x15x8xf32>
    %c0_185 = arith.constant 0 : index
    %c0_186 = arith.constant 0 : index
    %c0_187 = arith.constant 0 : index
    %c40_188 = arith.constant 40 : index
    %85 = vector.load %arg9[%c0_185, %c0_186, %c0_187, %c40_188] : memref<2x16x16x72xf32, #tpu.memory_space<vmem>>, vector<2x16x15x8xf32>
    tpu.vector_store %arg9[%c0_185, %c0_186, %c0_187, %c40_188], %84 {strides = array<i32>} : memref<2x16x16x72xf32, #tpu.memory_space<vmem>>, vector<2x16x15x8xf32>,
    %c0_189 = arith.constant 0 : index
    %c1_190 = arith.constant 1 : index
    %c0_191 = arith.constant 0 : index
    %c0_192 = arith.constant 0 : index
    %86 = vector.load %arg10[%c0_189, %c1_190, %c0_191, %c0_192] : memref<2x16x16x8xf32, #tpu.memory_space<vmem>>, vector<2x15x15x8xf32>
    %c0_193 = arith.constant 0 : index
    %c0_194 = arith.constant 0 : index
    %c1_195 = arith.constant 1 : index
    %c48_196 = arith.constant 48 : index
    %87 = vector.load %arg9[%c0_193, %c0_194, %c1_195, %c48_196] : memref<2x16x16x72xf32, #tpu.memory_space<vmem>>, vector<2x15x15x8xf32>
    tpu.vector_store %arg9[%c0_193, %c0_194, %c1_195, %c48_196], %86 {strides = array<i32>} : memref<2x16x16x72xf32, #tpu.memory_space<vmem>>, vector<2x15x15x8xf32>,
    %c0_197 = arith.constant 0 : index
    %c1_198 = arith.constant 1 : index
    %c0_199 = arith.constant 0 : index
    %c0_200 = arith.constant 0 : index
    %88 = vector.load %arg10[%c0_197, %c1_198, %c0_199, %c0_200] : memref<2x16x16x8xf32, #tpu.memory_space<vmem>>, vector<2x15x16x8xf32>
    %c0_201 = arith.constant 0 : index
    %c0_202 = arith.constant 0 : index
    %c0_203 = arith.constant 0 : index
    %c56_204 = arith.constant 56 : index
    %89 = vector.load %arg9[%c0_201, %c0_202, %c0_203, %c56_204] : memref<2x16x16x72xf32, #tpu.memory_space<vmem>>, vector<2x15x16x8xf32>
    tpu.vector_store %arg9[%c0_201, %c0_202, %c0_203, %c56_204], %88 {strides = array<i32>} : memref<2x16x16x72xf32, #tpu.memory_space<vmem>>, vector<2x15x16x8xf32>,
    %c0_205 = arith.constant 0 : index
    %c1_206 = arith.constant 1 : index
    %c1_207 = arith.constant 1 : index
    %c0_208 = arith.constant 0 : index
    %90 = vector.load %arg10[%c0_205, %c1_206, %c1_207, %c0_208] : memref<2x16x16x8xf32, #tpu.memory_space<vmem>>, vector<2x15x15x8xf32>
    %c0_209 = arith.constant 0 : index
    %c0_210 = arith.constant 0 : index
    %c0_211 = arith.constant 0 : index
    %c64_212 = arith.constant 64 : index
    %91 = vector.load %arg9[%c0_209, %c0_210, %c0_211, %c64_212] : memref<2x16x16x72xf32, #tpu.memory_space<vmem>>, vector<2x15x15x8xf32>
    tpu.vector_store %arg9[%c0_209, %c0_210, %c0_211, %c64_212], %90 {strides = array<i32>} : memref<2x16x16x72xf32, #tpu.memory_space<vmem>>, vector<2x15x15x8xf32>,
    %c0_213 = arith.constant 0 : index
    %c0_214 = arith.constant 0 : index
    %c0_215 = arith.constant 0 : index
    %c0_216 = arith.constant 0 : index
    %92 = vector.load %arg9[%c0_213, %c0_214, %c0_215, %c0_216] : memref<2x16x16x72xf32, #tpu.memory_space<vmem>>, vector<2x16x16x72xf32>
    %93 = vector.shape_cast %92 : vector<2x16x16x72xf32> to vector<512x72xf32>
    %94 = arith.truncf %93 : vector<512x72xf32> to vector<512x72xbf16>
    %c0_217 = arith.constant 0 : index
    %c0_218 = arith.constant 0 : index
    %95 = vector.load %arg5[%c0_217, %c0_218] : memref<72x8xbf16, #tpu.memory_space<vmem>>, vector<72x8xbf16>
    %cst_219 = arith.constant dense<0.000000e+00> : vector<512x8xf32>
    %96 = tpu.matmul %94, %95, %cst_219 {dimension_numbers = #tpu.dot_dimension_numbers<[1], [0], [0], [1], [0, 0, 1, 1], [], []>} : vector<512x72xbf16>, vector<72x8xbf16>, vector<512x8xf32> -> vector<512x8xf32>
    %cst_220 = arith.constant dense<0.000000e+00> : vector<8xf32>
    %97 = vector.multi_reduction <add>, %96, %cst_220 [0] : vector<512x8xf32> to vector<8xf32>
    %98 = vector.shape_cast %97 : vector<8xf32> to vector<1x8xf32>
    %99 = arith.mulf %96, %96 : vector<512x8xf32>
    %cst_221 = arith.constant dense<0.000000e+00> : vector<8xf32>
    %100 = vector.multi_reduction <add>, %99, %cst_221 [0] : vector<512x8xf32> to vector<8xf32>
    %101 = vector.shape_cast %100 : vector<8xf32> to vector<1x8xf32>
    %cst_222 = arith.constant 0.001953125 : f32
    %102 = vector.broadcast %cst_222 : f32 to vector<1x8xf32>
    %103 = arith.mulf %98, %102 : vector<1x8xf32>
    %cst_223 = arith.constant 0.001953125 : f32
    %104 = vector.broadcast %cst_223 : f32 to vector<1x8xf32>
    %105 = arith.mulf %101, %104 : vector<1x8xf32>
    %106 = arith.mulf %103, %103 : vector<1x8xf32>
    %107 = arith.subf %105, %106 : vector<1x8xf32>
    %cst_224 = arith.constant 9.99999974E-6 : f32
    %108 = vector.broadcast %cst_224 : f32 to vector<1x8xf32>
    %109 = arith.addf %107, %108 : vector<1x8xf32>
    %110 = math.rsqrt %109 : vector<1x8xf32>
    %c0_225 = arith.constant 0 : index
    %c0_226 = arith.constant 0 : index
    %111 = vector.load %arg6[%c0_225, %c0_226] : memref<1x8xf32, #tpu.memory_space<vmem>>, vector<1x8xf32>
    %112 = arith.mulf %110, %111 : vector<1x8xf32>
    %c0_227 = arith.constant 0 : index
    %c0_228 = arith.constant 0 : index
    %113 = vector.load %arg7[%c0_227, %c0_228] : memref<1x8xf32, #tpu.memory_space<vmem>>, vector<1x8xf32>
    %114 = arith.mulf %103, %112 : vector<1x8xf32>
    %115 = arith.subf %113, %114 : vector<1x8xf32>
    %116 = vector.broadcast %112 : vector<1x8xf32> to vector<512x8xf32>
    %117 = arith.mulf %96, %116 : vector<512x8xf32>
    %118 = vector.broadcast %115 : vector<1x8xf32> to vector<512x8xf32>
    %119 = arith.addf %117, %118 : vector<512x8xf32>
    %c0_229 = arith.constant 0 : index
    %c0_230 = arith.constant 0 : index
    %c0_231 = arith.constant 0 : index
    %c0_232 = arith.constant 0 : index
    %120 = vector.load %arg1[%c0_229, %c0_230, %c0_231, %c0_232] : memref<2x16x16x8xf32, #tpu.memory_space<vmem>>, vector<2x16x16x8xf32>
    %121 = vector.shape_cast %120 : vector<2x16x16x8xf32> to vector<512x8xf32>
    %122 = arith.addf %119, %121 : vector<512x8xf32>
    %cst_233 = arith.constant 0.000000e+00 : f32
    %123 = vector.broadcast %cst_233 : f32 to vector<512x8xf32>
    %124 = arith.maximumf %122, %123 : vector<512x8xf32>
    %125 = vector.shape_cast %124 : vector<512x8xf32> to vector<2x16x16x8xf32>
    %c0_234 = arith.constant 0 : index
    %c0_235 = arith.constant 0 : index
    %c0_236 = arith.constant 0 : index
    %c0_237 = arith.constant 0 : index
    %126 = vector.load %arg8[%c0_234, %c0_235, %c0_236, %c0_237] : memref<2x16x16x8xf32, #tpu.memory_space<vmem>>, vector<2x16x16x8xf32>
    tpu.vector_store %arg8[%c0_234, %c0_235, %c0_236, %c0_237], %125 {strides = array<i32>} : memref<2x16x16x8xf32, #tpu.memory_space<vmem>>, vector<2x16x16x8xf32>,
    return
  }
  func.func @transform_0(%arg0: i32) -> (i32, i32, i32, i32) {
    %c0_i32 = arith.constant 0 : i32
    %c0_i32_0 = arith.constant 0 : i32
    %c0_i32_1 = arith.constant 0 : i32
    %c0_i32_2 = arith.constant 0 : i32
    %c0_i32_3 = arith.constant 0 : i32
    return %c0_i32, %c0_i32_0, %c0_i32_1, %c0_i32_2 : i32, i32, i32, i32
  }
  func.func @transform_1(%arg0: i32) -> (i32, i32) {
    %c0_i32 = arith.constant 0 : i32
    %c0_i32_0 = arith.constant 0 : i32
    %c0_i32_1 = arith.constant 0 : i32
    return %c0_i32, %c0_i32_0 : i32, i32
  }
  func.func @transform_2(%arg0: i32) -> (i32, i32) {
    %c0_i32 = arith.constant 0 : i32
    %c0_i32_0 = arith.constant 0 : i32
    %c0_i32_1 = arith.constant 0 : i32
    return %c0_i32, %c0_i32_0 : i32, i32
  }
  func.func @transform_3(%arg0: i32) -> (i32, i32) {
    %c0_i32 = arith.constant 0 : i32
    %c0_i32_0 = arith.constant 0 : i32
    %c0_i32_1 = arith.constant 0 : i32
    return %c0_i32, %c0_i32_0 : i32, i32
  }
  func.func @transform_4(%arg0: i32) -> (i32, i32) {
    %c0_i32 = arith.constant 0 : i32
    %c0_i32_0 = arith.constant 0 : i32
    %c0_i32_1 = arith.constant 0 : i32
    return %c0_i32, %c0_i32_0 : i32, i32
  }
  func.func @transform_5(%arg0: i32) -> (i32, i32) {
    %c0_i32 = arith.constant 0 : i32
    %c0_i32_0 = arith.constant 0 : i32
    %c0_i32_1 = arith.constant 0 : i32
    return %c0_i32, %c0_i32_0 : i32, i32
  }
  func.func @transform_6(%arg0: i32) -> (i32, i32) {
    %c0_i32 = arith.constant 0 : i32
    %c0_i32_0 = arith.constant 0 : i32
    %c0_i32_1 = arith.constant 0 : i32
    return %c0_i32, %c0_i32_0 : i32, i32
  }
  func.func @transform_7(%arg0: i32) -> (i32, i32, i32, i32) {
    %c0_i32 = arith.constant 0 : i32
    %c0_i32_0 = arith.constant 0 : i32
    %c0_i32_1 = arith.constant 0 : i32
    %c0_i32_2 = arith.constant 0 : i32
    %c0_i32_3 = arith.constant 0 : i32
    return %c0_i32, %c0_i32_0, %c0_i32_1, %c0_i32_2 : i32, i32, i32, i32
  }
}

</mosaic_0001>

<llo_original>
// kernel: basic_block_forward_nchw.1
$region0: #{basic_block_forward_nchw.1}
  #allocation0 [shape = 'u32[]', space=smem, size = 0x4, offset = 0x4, fixed_abs, tag = 'smem constant byte address 0x4 - core index']
  #allocation1 [shape = 'u32[72,128]{1,0:T(1,128)}', space=vmem, size = 0x9000, scoped, tag = 'internal scratch']
  #allocation2 [shape = 'f32[2,16,16,72]{3,2,1,0:T(8,128)}', space=vmem, size = 0x40000, scoped, tag = 'scratch operand']
  #allocation3 [shape = 'f32[2,16,16,8]{3,2,1,0:T(8,128)}', space=vmem, size = 0x40000, scoped, tag = 'scratch operand']
  %s0 = inlined_call_operand.vmem [shape: f32[2,16,16,8], index: 0, kind: input, shape index: {}]
  %s1 = inlined_call_operand.vmem [shape: bf16[72,8], index: 1, kind: input, shape index: {}]
  %s2 = inlined_call_operand.vmem [shape: f32[1,8], index: 2, kind: input, shape index: {}]
  %s3 = inlined_call_operand.vmem [shape: f32[1,8], index: 3, kind: input, shape index: {}]
  %s4 = inlined_call_operand.vmem [shape: bf16[72,8], index: 4, kind: input, shape index: {}]
  %s5 = inlined_call_operand.vmem [shape: f32[1,8], index: 5, kind: input, shape index: {}]
  %s6 = inlined_call_operand.vmem [shape: f32[1,8], index: 6, kind: input, shape index: {}]
  %s7 = inlined_call_operand.vmem [shape: f32[2,16,16,8], index: 7, kind: output, shape index: {}]
  %s8 = sld [smem:[#allocation0]]
  $region38: #{basic_block_forward_nchw.1} parent=0
    _
  %s10 = ssub.s32 1, %s8
  %s11 = scalar_select 0, %s10, %s8
  // Predicated region
  $region2: #{basic_block_forward_nchw.1} parent=0 // pred_check
    _
  $region3: #{basic_block_forward_nchw.1} parent=0 // pred_check_branch
    %13 = sbr.rel (0) target = $region5
  $region4: #{basic_block_forward_nchw.1} parent=0 // pred_region
    _
  $region5: #{basic_block_forward_nchw.1} parent=0 // pred_fallthru
    _
  // Predicated region
  $region6: #{basic_block_forward_nchw.1} parent=0 // pred_check
    _
  $region7: #{basic_block_forward_nchw.1} parent=0 // pred_check_branch
    %15 = sbr.rel (0) target = $region9
  $region8: #{basic_block_forward_nchw.1} parent=0 // pred_region
    _
  $region9: #{basic_block_forward_nchw.1} parent=0 // pred_fallthru
    _
  // Predicated region
  $region10: #{basic_block_forward_nchw.1} parent=0 // pred_check
    _
  $region11: #{basic_block_forward_nchw.1} parent=0 // pred_check_branch
    %17 = sbr.rel (0) target = $region13
  $region12: #{basic_block_forward_nchw.1} parent=0 // pred_region
    _
  $region13: #{basic_block_forward_nchw.1} parent=0 // pred_fallthru
    _
  // Predicated region
  $region14: #{basic_block_forward_nchw.1} parent=0 // pred_check
    _
  $region15: #{basic_block_forward_nchw.1} parent=0 // pred_check_branch
    %19 = sbr.rel (0) target = $region17
  $region16: #{basic_block_forward_nchw.1} parent=0 // pred_region
    _
  $region17: #{basic_block_forward_nchw.1} parent=0 // pred_fallthru
    _
  // Predicated region
  $region18: #{basic_block_forward_nchw.1} parent=0 // pred_check
    _
  $region19: #{basic_block_forward_nchw.1} parent=0 // pred_check_branch
    %21 = sbr.rel (0) target = $region21
  $region20: #{basic_block_forward_nchw.1} parent=0 // pred_region
    _
  $region21: #{basic_block_forward_nchw.1} parent=0 // pred_fallthru
    _
  // Predicated region
  $region22: #{basic_block_forward_nchw.1} parent=0 // pred_check
    _
  $region23: #{basic_block_forward_nchw.1} parent=0 // pred_check_branch
    %23 = sbr.rel (0) target = $region25
  $region24: #{basic_block_forward_nchw.1} parent=0 // pred_region
    _
  $region25: #{basic_block_forward_nchw.1} parent=0 // pred_fallthru
    _
  // Predicated region
  $region26: #{basic_block_forward_nchw.1} parent=0 // pred_check
    _
  $region27: #{basic_block_forward_nchw.1} parent=0 // pred_check_branch
    %25 = sbr.rel (0) target = $region29
  $region28: #{basic_block_forward_nchw.1} parent=0 // pred_region
    _
  $region29: #{basic_block_forward_nchw.1} parent=0 // pred_fallthru
    _
  %vm27 = vcmask 64512
  %28 = vst.msk [vmem:[#allocation2] sm:$0xff] %vm27, 0.0
  %29 = vst.msk [vmem:[#allocation2 + $0x8] sm:$0xff] %vm27, 0.0
  %30 = vst.msk [vmem:[#allocation2 + $0x100] sm:$0xff] %vm27, 0.0
  %31 = vst.msk [vmem:[#allocation2 + $0x108] sm:$0xff] %vm27, 0.0
  %vm32 = vcmask 57344
  %33 = vst.msk [vmem:[#allocation2] sm:$0x1] %vm32, 0.0
  %34 = vst.msk [vmem:[#allocation2 + $0x10] sm:$0x1] %vm32, 0.0
  %35 = vst.msk [vmem:[#allocation2 + $0x20] sm:$0x1] %vm32, 0.0
  %36 = vst.msk [vmem:[#allocation2 + $0x30] sm:$0x1] %vm32, 0.0
  %37 = vst.msk [vmem:[#allocation2 + $0x40] sm:$0x1] %vm32, 0.0
  %38 = vst.msk [vmem:[#allocation2 + $0x50] sm:$0x1] %vm32, 0.0
  %39 = vst.msk [vmem:[#allocation2 + $0x60] sm:$0x1] %vm32, 0.0
  %40 = vst.msk [vmem:[#allocation2 + $0x70] sm:$0x1] %vm32, 0.0
  %41 = vst.msk [vmem:[#allocation2 + $0x80] sm:$0x1] %vm32, 0.0
  %42 = vst.msk [vmem:[#allocation2 + $0x90] sm:$0x1] %vm32, 0.0
  %43 = vst.msk [vmem:[#allocation2 + $0xa0] sm:$0x1] %vm32, 0.0
  %44 = vst.msk [vmem:[#allocation2 + $0xb0] sm:$0x1] %vm32, 0.0
  %45 = vst.msk [vmem:[#allocation2 + $0xc0] sm:$0x1] %vm32, 0.0
  %46 = vst.msk [vmem:[#allocation2 + $0xd0] sm:$0x1] %vm32, 0.0
  %47 = vst.msk [vmem:[#allocation2 + $0xe0] sm:$0x1] %vm32, 0.0
  %48 = vst.msk [vmem:[#allocation2 + $0xf0] sm:$0x1] %vm32, 0.0
  %49 = vst.msk [vmem:[#allocation2 + $0x100] sm:$0x1] %vm32, 0.0
  %50 = vst.msk [vmem:[#allocation2 + $0x110] sm:$0x1] %vm32, 0.0
  %51 = vst.msk [vmem:[#allocation2 + $0x120] sm:$0x1] %vm32, 0.0
  %52 = vst.msk [vmem:[#allocation2 + $0x130] sm:$0x1] %vm32, 0.0
  %53 = vst.msk [vmem:[#allocation2 + $0x140] sm:$0x1] %vm32, 0.0
  %54 = vst.msk [vmem:[#allocation2 + $0x150] sm:$0x1] %vm32, 0.0
  %55 = vst.msk [vmem:[#allocation2 + $0x160] sm:$0x1] %vm32, 0.0
  %56 = vst.msk [vmem:[#allocation2 + $0x170] sm:$0x1] %vm32, 0.0
  %57 = vst.msk [vmem:[#allocation2 + $0x180] sm:$0x1] %vm32, 0.0
  %58 = vst.msk [vmem:[#allocation2 + $0x190] sm:$0x1] %vm32, 0.0
  %59 = vst.msk [vmem:[#allocation2 + $0x1a0] sm:$0x1] %vm32, 0.0
  %60 = vst.msk [vmem:[#allocation2 + $0x1b0] sm:$0x1] %vm32, 0.0
  %61 = vst.msk [vmem:[#allocation2 + $0x1c0] sm:$0x1] %vm32, 0.0
  %62 = vst.msk [vmem:[#allocation2 + $0x1d0] sm:$0x1] %vm32, 0.0
  %63 = vst.msk [vmem:[#allocation2 + $0x1e0] sm:$0x1] %vm32, 0.0
  %64 = vst.msk [vmem:[#allocation2 + $0x1f0] sm:$0x1] %vm32, 0.0
  %vm65 = vcmask 130112
  %66 = vst.msk [vmem:[#allocation2] sm:$0xff] %vm65, 0.0
  %67 = vst.msk [vmem:[#allocation2 + $0x8] sm:$0xff] %vm65, 0.0
  %68 = vst.msk [vmem:[#allocation2 + $0x100] sm:$0xff] %vm65, 0.0
  %69 = vst.msk [vmem:[#allocation2 + $0x108] sm:$0xff] %vm65, 0.0
  %vm70 = vcmask 195712
  %71 = vst.msk [vmem:[#allocation2] sm:$0xff] %vm70, 0.0
  %72 = vst.msk [vmem:[#allocation2 + $0x8] sm:$0xff] %vm70, 0.0
  %73 = vst.msk [vmem:[#allocation2 + $0x100] sm:$0xff] %vm70, 0.0
  %74 = vst.msk [vmem:[#allocation2 + $0x108] sm:$0xff] %vm70, 0.0
  %vm75 = vcmask 188544
  %76 = vst.msk [vmem:[#allocation2 + $0xf] sm:$0x1] %vm75, 0.0
  %77 = vst.msk [vmem:[#allocation2 + $0x1f] sm:$0x1] %vm75, 0.0
  %78 = vst.msk [vmem:[#allocation2 + $0x2f] sm:$0x1] %vm75, 0.0
  %79 = vst.msk [vmem:[#allocation2 + $0x3f] sm:$0x1] %vm75, 0.0
  %80 = vst.msk [vmem:[#allocation2 + $0x4f] sm:$0x1] %vm75, 0.0
  %81 = vst.msk [vmem:[#allocation2 + $0x5f] sm:$0x1] %vm75, 0.0
  %82 = vst.msk [vmem:[#allocation2 + $0x6f] sm:$0x1] %vm75, 0.0
  %83 = vst.msk [vmem:[#allocation2 + $0x7f] sm:$0x1] %vm75, 0.0
  %84 = vst.msk [vmem:[#allocation2 + $0x8f] sm:$0x1] %vm75, 0.0
  %85 = vst.msk [vmem:[#allocation2 + $0x9f] sm:$0x1] %vm75, 0.0
  %86 = vst.msk [vmem:[#allocation2 + $0xaf] sm:$0x1] %vm75, 0.0
  %87 = vst.msk [vmem:[#allocation2 + $0xbf] sm:$0x1] %vm75, 0.0
  %88 = vst.msk [vmem:[#allocation2 + $0xcf] sm:$0x1] %vm75, 0.0
  %89 = vst.msk [vmem:[#allocation2 + $0xdf] sm:$0x1] %vm75, 0.0
  %90 = vst.msk [vmem:[#allocation2 + $0xef] sm:$0x1] %vm75, 0.0
  %91 = vst.msk [vmem:[#allocation2 + $0xff] sm:$0x1] %vm75, 0.0
  %92 = vst.msk [vmem:[#allocation2 + $0x10f] sm:$0x1] %vm75, 0.0
  %93 = vst.msk [vmem:[#allocation2 + $0x11f] sm:$0x1] %vm75, 0.0
  %94 = vst.msk [vmem:[#allocation2 + $0x12f] sm:$0x1] %vm75, 0.0
  %95 = vst.msk [vmem:[#allocation2 + $0x13f] sm:$0x1] %vm75, 0.0
  %96 = vst.msk [vmem:[#allocation2 + $0x14f] sm:$0x1] %vm75, 0.0
  %97 = vst.msk [vmem:[#allocation2 + $0x15f] sm:$0x1] %vm75, 0.0
  %98 = vst.msk [vmem:[#allocation2 + $0x16f] sm:$0x1] %vm75, 0.0
  %99 = vst.msk [vmem:[#allocation2 + $0x17f] sm:$0x1] %vm75, 0.0
  %100 = vst.msk [vmem:[#allocation2 + $0x18f] sm:$0x1] %vm75, 0.0
  %101 = vst.msk [vmem:[#allocation2 + $0x19f] sm:$0x1] %vm75, 0.0
  %102 = vst.msk [vmem:[#allocation2 + $0x1af] sm:$0x1] %vm75, 0.0
  %103 = vst.msk [vmem:[#allocation2 + $0x1bf] sm:$0x1] %vm75, 0.0
  %104 = vst.msk [vmem:[#allocation2 + $0x1cf] sm:$0x1] %vm75, 0.0
  %105 = vst.msk [vmem:[#allocation2 + $0x1df] sm:$0x1] %vm75, 0.0
  %106 = vst.msk [vmem:[#allocation2 + $0x1ef] sm:$0x1] %vm75, 0.0
  %107 = vst.msk [vmem:[#allocation2 + $0x1ff] sm:$0x1] %vm75, 0.0
  %vm108 = vcmask 254144
  %109 = vst.msk [vmem:[#allocation2] sm:$0x1] %vm108, 0.0
  %110 = vst.msk [vmem:[#allocation2 + $0x10] sm:$0x1] %vm108, 0.0
  %111 = vst.msk [vmem:[#allocation2 + $0x20] sm:$0x1] %vm108, 0.0
  %112 = vst.msk [vmem:[#allocation2 + $0x30] sm:$0x1] %vm108, 0.0
  %113 = vst.msk [vmem:[#allocation2 + $0x40] sm:$0x1] %vm108, 0.0
  %114 = vst.msk [vmem:[#allocation2 + $0x50] sm:$0x1] %vm108, 0.0
  %115 = vst.msk [vmem:[#allocation2 + $0x60] sm:$0x1] %vm108, 0.0
  %116 = vst.msk [vmem:[#allocation2 + $0x70] sm:$0x1] %vm108, 0.0
  %117 = vst.msk [vmem:[#allocation2 + $0x80] sm:$0x1] %vm108, 0.0
  %118 = vst.msk [vmem:[#allocation2 + $0x90] sm:$0x1] %vm108, 0.0
  %119 = vst.msk [vmem:[#allocation2 + $0xa0] sm:$0x1] %vm108, 0.0
  %120 = vst.msk [vmem:[#allocation2 + $0xb0] sm:$0x1] %vm108, 0.0
  %121 = vst.msk [vmem:[#allocation2 + $0xc0] sm:$0x1] %vm108, 0.0
  %122 = vst.msk [vmem:[#allocation2 + $0xd0] sm:$0x1] %vm108, 0.0
  %123 = vst.msk [vmem:[#allocation2 + $0xe0] sm:$0x1] %vm108, 0.0
  %124 = vst.msk [vmem:[#allocation2 + $0xf0] sm:$0x1] %vm108, 0.0
  %125 = vst.msk [vmem:[#allocation2 + $0x100] sm:$0x1] %vm108, 0.0
  %126 = vst.msk [vmem:[#allocation2 + $0x110] sm:$0x1] %vm108, 0.0
  %127 = vst.msk [vmem:[#allocation2 + $0x120] sm:$0x1] %vm108, 0.0
  %128 = vst.msk [vmem:[#allocation2 + $0x130] sm:$0x1] %vm108, 0.0
  %129 = vst.msk [vmem:[#allocation2 + $0x140] sm:$0x1] %vm108, 0.0
  %130 = vst.msk [vmem:[#allocation2 + $0x150] sm:$0x1] %vm108, 0.0
  %131 = vst.msk [vmem:[#allocation2 + $0x160] sm:$0x1] %vm108, 0.0
  %132 = vst.msk [vmem:[#allocation2 + $0x170] sm:$0x1] %vm108, 0.0
  %133 = vst.msk [vmem:[#allocation2 + $0x180] sm:$0x1] %vm108, 0.0
  %134 = vst.msk [vmem:[#allocation2 + $0x190] sm:$0x1] %vm108, 0.0
  %135 = vst.msk [vmem:[#allocation2 + $0x1a0] sm:$0x1] %vm108, 0.0
  %136 = vst.msk [vmem:[#allocation2 + $0x1b0] sm:$0x1] %vm108, 0.0
  %137 = vst.msk [vmem:[#allocation2 + $0x1c0] sm:$0x1] %vm108, 0.0
  %138 = vst.msk [vmem:[#allocation2 + $0x1d0] sm:$0x1] %vm108, 0.0
  %139 = vst.msk [vmem:[#allocation2 + $0x1e0] sm:$0x1] %vm108, 0.0
  %140 = vst.msk [vmem:[#allocation2 + $0x1f0] sm:$0x1] %vm108, 0.0
  %vm141 = vcmask 385344
  %142 = vst.msk [vmem:[#allocation2 + $0xf] sm:$0x1] %vm141, 0.0
  %143 = vst.msk [vmem:[#allocation2 + $0x1f] sm:$0x1] %vm141, 0.0
  %144 = vst.msk [vmem:[#allocation2 + $0x2f] sm:$0x1] %vm141, 0.0
  %145 = vst.msk [vmem:[#allocation2 + $0x3f] sm:$0x1] %vm141, 0.0
  %146 = vst.msk [vmem:[#allocation2 + $0x4f] sm:$0x1] %vm141, 0.0
  %147 = vst.msk [vmem:[#allocation2 + $0x5f] sm:$0x1] %vm141, 0.0
  %148 = vst.msk [vmem:[#allocation2 + $0x6f] sm:$0x1] %vm141, 0.0
  %149 = vst.msk [vmem:[#allocation2 + $0x7f] sm:$0x1] %vm141, 0.0
  %150 = vst.msk [vmem:[#allocation2 + $0x8f] sm:$0x1] %vm141, 0.0
  %151 = vst.msk [vmem:[#allocation2 + $0x9f] sm:$0x1] %vm141, 0.0
  %152 = vst.msk [vmem:[#allocation2 + $0xaf] sm:$0x1] %vm141, 0.0
  %153 = vst.msk [vmem:[#allocation2 + $0xbf] sm:$0x1] %vm141, 0.0
  %154 = vst.msk [vmem:[#allocation2 + $0xcf] sm:$0x1] %vm141, 0.0
  %155 = vst.msk [vmem:[#allocation2 + $0xdf] sm:$0x1] %vm141, 0.0
  %156 = vst.msk [vmem:[#allocation2 + $0xef] sm:$0x1] %vm141, 0.0
  %157 = vst.msk [vmem:[#allocation2 + $0xff] sm:$0x1] %vm141, 0.0
  %158 = vst.msk [vmem:[#allocation2 + $0x10f] sm:$0x1] %vm141, 0.0
  %159 = vst.msk [vmem:[#allocation2 + $0x11f] sm:$0x1] %vm141, 0.0
  %160 = vst.msk [vmem:[#allocation2 + $0x12f] sm:$0x1] %vm141, 0.0
  %161 = vst.msk [vmem:[#allocation2 + $0x13f] sm:$0x1] %vm141, 0.0
  %162 = vst.msk [vmem:[#allocation2 + $0x14f] sm:$0x1] %vm141, 0.0
  %163 = vst.msk [vmem:[#allocation2 + $0x15f] sm:$0x1] %vm141, 0.0
  %164 = vst.msk [vmem:[#allocation2 + $0x16f] sm:$0x1] %vm141, 0.0
  %165 = vst.msk [vmem:[#allocation2 + $0x17f] sm:$0x1] %vm141, 0.0
  %166 = vst.msk [vmem:[#allocation2 + $0x18f] sm:$0x1] %vm141, 0.0
  %167 = vst.msk [vmem:[#allocation2 + $0x19f] sm:$0x1] %vm141, 0.0
  %168 = vst.msk [vmem:[#allocation2 + $0x1af] sm:$0x1] %vm141, 0.0
  %169 = vst.msk [vmem:[#allocation2 + $0x1bf] sm:$0x1] %vm141, 0.0
  %170 = vst.msk [vmem:[#allocation2 + $0x1cf] sm:$0x1] %vm141, 0.0
  %171 = vst.msk [vmem:[#allocation2 + $0x1df] sm:$0x1] %vm141, 0.0
  %172 = vst.msk [vmem:[#allocation2 + $0x1ef] sm:$0x1] %vm141, 0.0
  %173 = vst.msk [vmem:[#allocation2 + $0x1ff] sm:$0x1] %vm141, 0.0
  %s174 = scalar_lea.vmem [#allocation2], 240
  %vm175 = vcmask 458112
  %176 = vst.msk [vmem:[%s174] sm:$0xff] %vm175, 0.0
  %177 = vst.msk [vmem:[%s174 + $0x8] sm:$0xff] %vm175, 0.0
  %178 = vst.msk [vmem:[%s174 + $0x100] sm:$0xff] %vm175, 0.0
  %179 = vst.msk [vmem:[%s174 + $0x108] sm:$0xff] %vm175, 0.0
  %vm180 = vcmask 450944
  %181 = vst.msk [vmem:[#allocation2] sm:$0x1] %vm180, 0.0
  %182 = vst.msk [vmem:[#allocation2 + $0x10] sm:$0x1] %vm180, 0.0
  %183 = vst.msk [vmem:[#allocation2 + $0x20] sm:$0x1] %vm180, 0.0
  %184 = vst.msk [vmem:[#allocation2 + $0x30] sm:$0x1] %vm180, 0.0
  %185 = vst.msk [vmem:[#allocation2 + $0x40] sm:$0x1] %vm180, 0.0
  %186 = vst.msk [vmem:[#allocation2 + $0x50] sm:$0x1] %vm180, 0.0
  %187 = vst.msk [vmem:[#allocation2 + $0x60] sm:$0x1] %vm180, 0.0
  %188 = vst.msk [vmem:[#allocation2 + $0x70] sm:$0x1] %vm180, 0.0
  %189 = vst.msk [vmem:[#allocation2 + $0x80] sm:$0x1] %vm180, 0.0
  %190 = vst.msk [vmem:[#allocation2 + $0x90] sm:$0x1] %vm180, 0.0
  %191 = vst.msk [vmem:[#allocation2 + $0xa0] sm:$0x1] %vm180, 0.0
  %192 = vst.msk [vmem:[#allocation2 + $0xb0] sm:$0x1] %vm180, 0.0
  %193 = vst.msk [vmem:[#allocation2 + $0xc0] sm:$0x1] %vm180, 0.0
  %194 = vst.msk [vmem:[#allocation2 + $0xd0] sm:$0x1] %vm180, 0.0
  %195 = vst.msk [vmem:[#allocation2 + $0xe0] sm:$0x1] %vm180, 0.0
  %196 = vst.msk [vmem:[#allocation2 + $0xf0] sm:$0x1] %vm180, 0.0
  %197 = vst.msk [vmem:[#allocation2 + $0x100] sm:$0x1] %vm180, 0.0
  %198 = vst.msk [vmem:[#allocation2 + $0x110] sm:$0x1] %vm180, 0.0
  %199 = vst.msk [vmem:[#allocation2 + $0x120] sm:$0x1] %vm180, 0.0
  %200 = vst.msk [vmem:[#allocation2 + $0x130] sm:$0x1] %vm180, 0.0
  %201 = vst.msk [vmem:[#allocation2 + $0x140] sm:$0x1] %vm180, 0.0
  %202 = vst.msk [vmem:[#allocation2 + $0x150] sm:$0x1] %vm180, 0.0
  %203 = vst.msk [vmem:[#allocation2 + $0x160] sm:$0x1] %vm180, 0.0
  %204 = vst.msk [vmem:[#allocation2 + $0x170] sm:$0x1] %vm180, 0.0
  %205 = vst.msk [vmem:[#allocation2 + $0x180] sm:$0x1] %vm180, 0.0
  %206 = vst.msk [vmem:[#allocation2 + $0x190] sm:$0x1] %vm180, 0.0
  %207 = vst.msk [vmem:[#allocation2 + $0x1a0] sm:$0x1] %vm180, 0.0
  %208 = vst.msk [vmem:[#allocation2 + $0x1b0] sm:$0x1] %vm180, 0.0
  %209 = vst.msk [vmem:[#allocation2 + $0x1c0] sm:$0x1] %vm180, 0.0
  %210 = vst.msk [vmem:[#allocation2 + $0x1d0] sm:$0x1] %vm180, 0.0
  %211 = vst.msk [vmem:[#allocation2 + $0x1e0] sm:$0x1] %vm180, 0.0
  %212 = vst.msk [vmem:[#allocation2 + $0x1f0] sm:$0x1] %vm180, 0.0
  %vm213 = vcmask 523712
  %214 = vst.msk [vmem:[%s174] sm:$0xff] %vm213, 0.0
  %215 = vst.msk [vmem:[%s174 + $0x8] sm:$0xff] %vm213, 0.0
  %216 = vst.msk [vmem:[%s174 + $0x100] sm:$0xff] %vm213, 0.0
  %217 = vst.msk [vmem:[%s174 + $0x108] sm:$0xff] %vm213, 0.0
  %vm218 = vcmask 589312
  %219 = vst.msk [vmem:[%s174] sm:$0xff] %vm218, 0.0
  %220 = vst.msk [vmem:[%s174 + $0x8] sm:$0xff] %vm218, 0.0
  %221 = vst.msk [vmem:[%s174 + $0x100] sm:$0xff] %vm218, 0.0
  %222 = vst.msk [vmem:[%s174 + $0x108] sm:$0xff] %vm218, 0.0
  %vm223 = vcmask 582144
  %224 = vst.msk [vmem:[#allocation2 + $0xf] sm:$0x1] %vm223, 0.0
  %225 = vst.msk [vmem:[#allocation2 + $0x1f] sm:$0x1] %vm223, 0.0
  %226 = vst.msk [vmem:[#allocation2 + $0x2f] sm:$0x1] %vm223, 0.0
  %227 = vst.msk [vmem:[#allocation2 + $0x3f] sm:$0x1] %vm223, 0.0
  %228 = vst.msk [vmem:[#allocation2 + $0x4f] sm:$0x1] %vm223, 0.0
  %229 = vst.msk [vmem:[#allocation2 + $0x5f] sm:$0x1] %vm223, 0.0
  %230 = vst.msk [vmem:[#allocation2 + $0x6f] sm:$0x1] %vm223, 0.0
  %231 = vst.msk [vmem:[#allocation2 + $0x7f] sm:$0x1] %vm223, 0.0
  %232 = vst.msk [vmem:[#allocation2 + $0x8f] sm:$0x1] %vm223, 0.0
  %233 = vst.msk [vmem:[#allocation2 + $0x9f] sm:$0x1] %vm223, 0.0
  %234 = vst.msk [vmem:[#allocation2 + $0xaf] sm:$0x1] %vm223, 0.0
  %235 = vst.msk [vmem:[#allocation2 + $0xbf] sm:$0x1] %vm223, 0.0
  %236 = vst.msk [vmem:[#allocation2 + $0xcf] sm:$0x1] %vm223, 0.0
  %237 = vst.msk [vmem:[#allocation2 + $0xdf] sm:$0x1] %vm223, 0.0
  %238 = vst.msk [vmem:[#allocation2 + $0xef] sm:$0x1] %vm223, 0.0
  %239 = vst.msk [vmem:[#allocation2 + $0xff] sm:$0x1] %vm223, 0.0
  %240 = vst.msk [vmem:[#allocation2 + $0x10f] sm:$0x1] %vm223, 0.0
  %241 = vst.msk [vmem:[#allocation2 + $0x11f] sm:$0x1] %vm223, 0.0
  %242 = vst.msk [vmem:[#allocation2 + $0x12f] sm:$0x1] %vm223, 0.0
  %243 = vst.msk [vmem:[#allocation2 + $0x13f] sm:$0x1] %vm223, 0.0
  %244 = vst.msk [vmem:[#allocation2 + $0x14f] sm:$0x1] %vm223, 0.0
  %245 = vst.msk [vmem:[#allocation2 + $0x15f] sm:$0x1] %vm223, 0.0
  %246 = vst.msk [vmem:[#allocation2 + $0x16f] sm:$0x1] %vm223, 0.0
  %247 = vst.msk [vmem:[#allocation2 + $0x17f] sm:$0x1] %vm223, 0.0
  %248 = vst.msk [vmem:[#allocation2 + $0x18f] sm:$0x1] %vm223, 0.0
  %249 = vst.msk [vmem:[#allocation2 + $0x19f] sm:$0x1] %vm223, 0.0
  %250 = vst.msk [vmem:[#allocation2 + $0x1af] sm:$0x1] %vm223, 0.0
  %251 = vst.msk [vmem:[#allocation2 + $0x1bf] sm:$0x1] %vm223, 0.0
  %252 = vst.msk [vmem:[#allocation2 + $0x1cf] sm:$0x1] %vm223, 0.0
  %253 = vst.msk [vmem:[#allocation2 + $0x1df] sm:$0x1] %vm223, 0.0
  %254 = vst.msk [vmem:[#allocation2 + $0x1ef] sm:$0x1] %vm223, 0.0
  %255 = vst.msk [vmem:[#allocation2 + $0x1ff] sm:$0x1] %vm223, 0.0
  %v256 = vld [vmem:[%s0] sm:$0xff]
  %v257 = vld [vmem:[%s0 + $0x8] sm:$0x7f]
  %v258 = vld [vmem:[%s0 + $0x10] sm:$0xff]
  %v259 = vld [vmem:[%s0 + $0x18] sm:$0x7f]
  %v260 = vld [vmem:[%s0 + $0x20] sm:$0xff]
  %v261 = vld [vmem:[%s0 + $0x28] sm:$0x7f]
  %v262 = vld [vmem:[%s0 + $0x30] sm:$0xff]
  %v263 = vld [vmem:[%s0 + $0x38] sm:$0x7f]
  %v264 = vld [vmem:[%s0 + $0x40] sm:$0xff]
  %v265 = vld [vmem:[%s0 + $0x48] sm:$0x7f]
  %v266 = vld [vmem:[%s0 + $0x50] sm:$0xff]
  %v267 = vld [vmem:[%s0 + $0x58] sm:$0x7f]
  %v268 = vld [vmem:[%s0 + $0x60] sm:$0xff]
  %v269 = vld [vmem:[%s0 + $0x68] sm:$0x7f]
  %v270 = vld [vmem:[%s0 + $0x70] sm:$0xff]
  %v271 = vld [vmem:[%s0 + $0x78] sm:$0x7f]
  %v272 = vld [vmem:[%s0 + $0x80] sm:$0xff]
  %v273 = vld [vmem:[%s0 + $0x88] sm:$0x7f]
  %v274 = vld [vmem:[%s0 + $0x90] sm:$0xff]
  %v275 = vld [vmem:[%s0 + $0x98] sm:$0x7f]
  %v276 = vld [vmem:[%s0 + $0xa0] sm:$0xff]
  %v277 = vld [vmem:[%s0 + $0xa8] sm:$0x7f]
  %v278 = vld [vmem:[%s0 + $0xb0] sm:$0xff]
  %v279 = vld [vmem:[%s0 + $0xb8] sm:$0x7f]
  %v280 = vld [vmem:[%s0 + $0xc0] sm:$0xff]
  %v281 = vld [vmem:[%s0 + $0xc8] sm:$0x7f]
  %v282 = vld [vmem:[%s0 + $0xd0] sm:$0xff]
  %v283 = vld [vmem:[%s0 + $0xd8] sm:$0x7f]
  %v284 = vld [vmem:[%s0 + $0xe0] sm:$0xff]
  %v285 = vld [vmem:[%s0 + $0xe8] sm:$0x7f]
  %v286 = vld [vmem:[%s0 + $0x100] sm:$0xff]
  %v287 = vld [vmem:[%s0 + $0x108] sm:$0x7f]
  %v288 = vld [vmem:[%s0 + $0x110] sm:$0xff]
  %v289 = vld [vmem:[%s0 + $0x118] sm:$0x7f]
  %v290 = vld [vmem:[%s0 + $0x120] sm:$0xff]
  %v291 = vld [vmem:[%s0 + $0x128] sm:$0x7f]
  %v292 = vld [vmem:[%s0 + $0x130] sm:$0xff]
  %v293 = vld [vmem:[%s0 + $0x138] sm:$0x7f]
  %v294 = vld [vmem:[%s0 + $0x140] sm:$0xff]
  %v295 = vld [vmem:[%s0 + $0x148] sm:$0x7f]
  %v296 = vld [vmem:[%s0 + $0x150] sm:$0xff]
  %v297 = vld [vmem:[%s0 + $0x158] sm:$0x7f]
  %v298 = vld [vmem:[%s0 + $0x160] sm:$0xff]
  %v299 = vld [vmem:[%s0 + $0x168] sm:$0x7f]
  %v300 = vld [vmem:[%s0 + $0x170] sm:$0xff]
  %v301 = vld [vmem:[%s0 + $0x178] sm:$0x7f]
  %v302 = vld [vmem:[%s0 + $0x180] sm:$0xff]
  %v303 = vld [vmem:[%s0 + $0x188] sm:$0x7f]
  %v304 = vld [vmem:[%s0 + $0x190] sm:$0xff]
  %v305 = vld [vmem:[%s0 + $0x198] sm:$0x7f]
  %v306 = vld [vmem:[%s0 + $0x1a0] sm:$0xff]
  %v307 = vld [vmem:[%s0 + $0x1a8] sm:$0x7f]
  %v308 = vld [vmem:[%s0 + $0x1b0] sm:$0xff]
  %v309 = vld [vmem:[%s0 + $0x1b8] sm:$0x7f]
  %v310 = vld [vmem:[%s0 + $0x1c0] sm:$0xff]
  %v311 = vld [vmem:[%s0 + $0x1c8] sm:$0x7f]
  %v312 = vld [vmem:[%s0 + $0x1d0] sm:$0xff]
  %v313 = vld [vmem:[%s0 + $0x1d8] sm:$0x7f]
  %v314 = vld [vmem:[%s0 + $0x1e0] sm:$0xff]
  %v315 = vld [vmem:[%s0 + $0x1e8] sm:$0x7f]
  %s316 = scalar_lea.vmem [#allocation2], 16
  %317 = vst.msk [vmem:[%s316 + $0x1] sm:$0xff] %vm27, %v256
  %vm318 = vcmask 63488
  %319 = vst.msk [vmem:[%s316 + $0x9] sm:$0x7f] %vm318, %v257
  %320 = vst.msk [vmem:[%s316 + $0x11] sm:$0xff] %vm27, %v258
  %321 = vst.msk [vmem:[%s316 + $0x19] sm:$0x7f] %vm318, %v259
  %322 = vst.msk [vmem:[%s316 + $0x21] sm:$0xff] %vm27, %v260
  %323 = vst.msk [vmem:[%s316 + $0x29] sm:$0x7f] %vm318, %v261
  %324 = vst.msk [vmem:[%s316 + $0x31] sm:$0xff] %vm27, %v262
  %325 = vst.msk [vmem:[%s316 + $0x39] sm:$0x7f] %vm318, %v263
  %326 = vst.msk [vmem:[%s316 + $0x41] sm:$0xff] %vm27, %v264
  %327 = vst.msk [vmem:[%s316 + $0x49] sm:$0x7f] %vm318, %v265
  %328 = vst.msk [vmem:[%s316 + $0x51] sm:$0xff] %vm27, %v266
  %329 = vst.msk [vmem:[%s316 + $0x59] sm:$0x7f] %vm318, %v267
  %330 = vst.msk [vmem:[%s316 + $0x61] sm:$0xff] %vm27, %v268
  %331 = vst.msk [vmem:[%s316 + $0x69] sm:$0x7f] %vm318, %v269
  %332 = vst.msk [vmem:[%s316 + $0x71] sm:$0xff] %vm27, %v270
  %333 = vst.msk [vmem:[%s316 + $0x79] sm:$0x7f] %vm318, %v271
  %334 = vst.msk [vmem:[%s316 + $0x81] sm:$0xff] %vm27, %v272
  %335 = vst.msk [vmem:[%s316 + $0x89] sm:$0x7f] %vm318, %v273
  %336 = vst.msk [vmem:[%s316 + $0x91] sm:$0xff] %vm27, %v274
  %337 = vst.msk [vmem:[%s316 + $0x99] sm:$0x7f] %vm318, %v275
  %338 = vst.msk [vmem:[%s316 + $0xa1] sm:$0xff] %vm27, %v276
  %339 = vst.msk [vmem:[%s316 + $0xa9] sm:$0x7f] %vm318, %v277
  %340 = vst.msk [vmem:[%s316 + $0xb1] sm:$0xff] %vm27, %v278
  %341 = vst.msk [vmem:[%s316 + $0xb9] sm:$0x7f] %vm318, %v279
  %342 = vst.msk [vmem:[%s316 + $0xc1] sm:$0xff] %vm27, %v280
  %343 = vst.msk [vmem:[%s316 + $0xc9] sm:$0x7f] %vm318, %v281
  %344 = vst.msk [vmem:[%s316 + $0xd1] sm:$0xff] %vm27, %v282
  %345 = vst.msk [vmem:[%s316 + $0xd9] sm:$0x7f] %vm318, %v283
  %346 = vst.msk [vmem:[%s316 + $0xe1] sm:$0xff] %vm27, %v284
  %347 = vst.msk [vmem:[%s316 + $0xe9] sm:$0x7f] %vm318, %v285
  %348 = vst.msk [vmem:[%s316 + $0x101] sm:$0xff] %vm27, %v286
  %349 = vst.msk [vmem:[%s316 + $0x109] sm:$0x7f] %vm318, %v287
  %350 = vst.msk [vmem:[%s316 + $0x111] sm:$0xff] %vm27, %v288
  %351 = vst.msk [vmem:[%s316 + $0x119] sm:$0x7f] %vm318, %v289
  %352 = vst.msk [vmem:[%s316 + $0x121] sm:$0xff] %vm27, %v290
  %353 = vst.msk [vmem:[%s316 + $0x129] sm:$0x7f] %vm318, %v291
  %354 = vst.msk [vmem:[%s316 + $0x131] sm:$0xff] %vm27, %v292
  %355 = vst.msk [vmem:[%s316 + $0x139] sm:$0x7f] %vm318, %v293
  %356 = vst.msk [vmem:[%s316 + $0x141] sm:$0xff] %vm27, %v294
  %357 = vst.msk [vmem:[%s316 + $0x149] sm:$0x7f] %vm318, %v295
  %358 = vst.msk [vmem:[%s316 + $0x151] sm:$0xff] %vm27, %v296
  %359 = vst.msk [vmem:[%s316 + $0x159] sm:$0x7f] %vm318, %v297
  %360 = vst.msk [vmem:[%s316 + $0x161] sm:$0xff] %vm27, %v298
  %361 = vst.msk [vmem:[%s316 + $0x169] sm:$0x7f] %vm318, %v299
  %362 = vst.msk [vmem:[%s316 + $0x171] sm:$0xff] %vm27, %v300
  %363 = vst.msk [vmem:[%s316 + $0x179] sm:$0x7f] %vm318, %v301
  %364 = vst.msk [vmem:[%s316 + $0x181] sm:$0xff] %vm27, %v302
  %365 = vst.msk [vmem:[%s316 + $0x189] sm:$0x7f] %vm318, %v303
  %366 = vst.msk [vmem:[%s316 + $0x191] sm:$0xff] %vm27, %v304
  %367 = vst.msk [vmem:[%s316 + $0x199] sm:$0x7f] %vm318, %v305
  %368 = vst.msk [vmem:[%s316 + $0x1a1] sm:$0xff] %vm27, %v306
  %369 = vst.msk [vmem:[%s316 + $0x1a9] sm:$0x7f] %vm318, %v307
  %370 = vst.msk [vmem:[%s316 + $0x1b1] sm:$0xff] %vm27, %v308
  %371 = vst.msk [vmem:[%s316 + $0x1b9] sm:$0x7f] %vm318, %v309
  %372 = vst.msk [vmem:[%s316 + $0x1c1] sm:$0xff] %vm27, %v310
  %373 = vst.msk [vmem:[%s316 + $0x1c9] sm:$0x7f] %vm318, %v311
  %374 = vst.msk [vmem:[%s316 + $0x1d1] sm:$0xff] %vm27, %v312
  %375 = vst.msk [vmem:[%s316 + $0x1d9] sm:$0x7f] %vm318, %v313
  %376 = vst.msk [vmem:[%s316 + $0x1e1] sm:$0xff] %vm27, %v314
  %377 = vst.msk [vmem:[%s316 + $0x1e9] sm:$0x7f] %vm318, %v315
  %v378 = vld [vmem:[%s0] sm:$0xff]
  %v379 = vld [vmem:[%s0 + $0x8] sm:$0xff]
  %v380 = vld [vmem:[%s0 + $0x10] sm:$0xff]
  %v381 = vld [vmem:[%s0 + $0x18] sm:$0xff]
  %v382 = vld [vmem:[%s0 + $0x20] sm:$0xff]
  %v383 = vld [vmem:[%s0 + $0x28] sm:$0xff]
  %v384 = vld [vmem:[%s0 + $0x30] sm:$0xff]
  %v385 = vld [vmem:[%s0 + $0x38] sm:$0xff]
  %v386 = vld [vmem:[%s0 + $0x40] sm:$0xff]
  %v387 = vld [vmem:[%s0 + $0x48] sm:$0xff]
  %v388 = vld [vmem:[%s0 + $0x50] sm:$0xff]
  %v389 = vld [vmem:[%s0 + $0x58] sm:$0xff]
  %v390 = vld [vmem:[%s0 + $0x60] sm:$0xff]
  %v391 = vld [vmem:[%s0 + $0x68] sm:$0xff]
  %v392 = vld [vmem:[%s0 + $0x70] sm:$0xff]
  %v393 = vld [vmem:[%s0 + $0x78] sm:$0xff]
  %v394 = vld [vmem:[%s0 + $0x80] sm:$0xff]
  %v395 = vld [vmem:[%s0 + $0x88] sm:$0xff]
  %v396 = vld [vmem:[%s0 + $0x90] sm:$0xff]
  %v397 = vld [vmem:[%s0 + $0x98] sm:$0xff]
  %v398 = vld [vmem:[%s0 + $0xa0] sm:$0xff]
  %v399 = vld [vmem:[%s0 + $0xa8] sm:$0xff]
  %v400 = vld [vmem:[%s0 + $0xb0] sm:$0xff]
  %v401 = vld [vmem:[%s0 + $0xb8] sm:$0xff]
  %v402 = vld [vmem:[%s0 + $0xc0] sm:$0xff]
  %v403 = vld [vmem:[%s0 + $0xc8] sm:$0xff]
  %v404 = vld [vmem:[%s0 + $0xd0] sm:$0xff]
  %v405 = vld [vmem:[%s0 + $0xd8] sm:$0xff]
  %v406 = vld [vmem:[%s0 + $0xe0] sm:$0xff]
  %v407 = vld [vmem:[%s0 + $0xe8] sm:$0xff]
  %v408 = vld [vmem:[%s0 + $0x100] sm:$0xff]
  %v409 = vld [vmem:[%s0 + $0x108] sm:$0xff]
  %v410 = vld [vmem:[%s0 + $0x110] sm:$0xff]
  %v411 = vld [vmem:[%s0 + $0x118] sm:$0xff]
  %v412 = vld [vmem:[%s0 + $0x120] sm:$0xff]
  %v413 = vld [vmem:[%s0 + $0x128] sm:$0xff]
  %v414 = vld [vmem:[%s0 + $0x130] sm:$0xff]
  %v415 = vld [vmem:[%s0 + $0x138] sm:$0xff]
  %v416 = vld [vmem:[%s0 + $0x140] sm:$0xff]
  %v417 = vld [vmem:[%s0 + $0x148] sm:$0xff]
  %v418 = vld [vmem:[%s0 + $0x150] sm:$0xff]
  %v419 = vld [vmem:[%s0 + $0x158] sm:$0xff]
  %v420 = vld [vmem:[%s0 + $0x160] sm:$0xff]
  %v421 = vld [vmem:[%s0 + $0x168] sm:$0xff]
  %v422 = vld [vmem:[%s0 + $0x170] sm:$0xff]
  %v423 = vld [vmem:[%s0 + $0x178] sm:$0xff]
  %v424 = vld [vmem:[%s0 + $0x180] sm:$0xff]
  %v425 = vld [vmem:[%s0 + $0x188] sm:$0xff]
  %v426 = vld [vmem:[%s0 + $0x190] sm:$0xff]
  %v427 = vld [vmem:[%s0 + $0x198] sm:$0xff]
  %v428 = vld [vmem:[%s0 + $0x1a0] sm:$0xff]
  %v429 = vld [vmem:[%s0 + $0x1a8] sm:$0xff]
  %v430 = vld [vmem:[%s0 + $0x1b0] sm:$0xff]
  %v431 = vld [vmem:[%s0 + $0x1b8] sm:$0xff]
  %v432 = vld [vmem:[%s0 + $0x1c0] sm:$0xff]
  %v433 = vld [vmem:[%s0 + $0x1c8] sm:$0xff]
  %v434 = vld [vmem:[%s0 + $0x1d0] sm:$0xff]
  %v435 = vld [vmem:[%s0 + $0x1d8] sm:$0xff]
  %v436 = vld [vmem:[%s0 + $0x1e0] sm:$0xff]
  %v437 = vld [vmem:[%s0 + $0x1e8] sm:$0xff]
  %498 = vrot.lane.b32.xlu0 %v378, 8
  %v499 = vpop.permute.xlu0 %498
  %500 = vrot.lane.b32.xlu0 %v379, 8
  %v501 = vpop.permute.xlu0 %500
  %502 = vrot.lane.b32.xlu0 %v380, 8
  %v503 = vpop.permute.xlu0 %502
  %504 = vrot.lane.b32.xlu0 %v381, 8
  %v505 = vpop.permute.xlu0 %504
  %506 = vrot.lane.b32.xlu0 %v382, 8
  %v507 = vpop.permute.xlu0 %506
  %508 = vrot.lane.b32.xlu0 %v383, 8
  %v509 = vpop.permute.xlu0 %508
  %510 = vrot.lane.b32.xlu0 %v384, 8
  %v511 = vpop.permute.xlu0 %510
  %512 = vrot.lane.b32.xlu0 %v385, 8
  %v513 = vpop.permute.xlu0 %512
  %514 = vrot.lane.b32.xlu0 %v386, 8
  %v515 = vpop.permute.xlu0 %514
  %516 = vrot.lane.b32.xlu0 %v387, 8
  %v517 = vpop.permute.xlu0 %516
  %518 = vrot.lane.b32.xlu0 %v388, 8
  %v519 = vpop.permute.xlu0 %518
  %520 = vrot.lane.b32.xlu0 %v389, 8
  %v521 = vpop.permute.xlu0 %520
  %522 = vrot.lane.b32.xlu0 %v390, 8
  %v523 = vpop.permute.xlu0 %522
  %524 = vrot.lane.b32.xlu0 %v391, 8
  %v525 = vpop.permute.xlu0 %524
  %526 = vrot.lane.b32.xlu0 %v392, 8
  %v527 = vpop.permute.xlu0 %526
  %528 = vrot.lane.b32.xlu0 %v393, 8
  %v529 = vpop.permute.xlu0 %528
  %530 = vrot.lane.b32.xlu0 %v394, 8
  %v531 = vpop.permute.xlu0 %530
  %532 = vrot.lane.b32.xlu0 %v395, 8
  %v533 = vpop.permute.xlu0 %532
  %534 = vrot.lane.b32.xlu0 %v396, 8
  %v535 = vpop.permute.xlu0 %534
  %536 = vrot.lane.b32.xlu0 %v397, 8
  %v537 = vpop.permute.xlu0 %536
  %538 = vrot.lane.b32.xlu0 %v398, 8
  %v539 = vpop.permute.xlu0 %538
  %540 = vrot.lane.b32.xlu0 %v399, 8
  %v541 = vpop.permute.xlu0 %540
  %542 = vrot.lane.b32.xlu0 %v400, 8
  %v543 = vpop.permute.xlu0 %542
  %544 = vrot.lane.b32.xlu0 %v401, 8
  %v545 = vpop.permute.xlu0 %544
  %546 = vrot.lane.b32.xlu0 %v402, 8
  %v547 = vpop.permute.xlu0 %546
  %548 = vrot.lane.b32.xlu0 %v403, 8
  %v549 = vpop.permute.xlu0 %548
  %550 = vrot.lane.b32.xlu0 %v404, 8
  %v551 = vpop.permute.xlu0 %550
  %552 = vrot.lane.b32.xlu0 %v405, 8
  %v553 = vpop.permute.xlu0 %552
  %554 = vrot.lane.b32.xlu0 %v406, 8
  %v555 = vpop.permute.xlu0 %554
  %556 = vrot.lane.b32.xlu0 %v407, 8
  %v557 = vpop.permute.xlu0 %556
  %558 = vrot.lane.b32.xlu0 %v408, 8
  %v559 = vpop.permute.xlu0 %558
  %560 = vrot.lane.b32.xlu0 %v409, 8
  %v561 = vpop.permute.xlu0 %560
  %562 = vrot.lane.b32.xlu0 %v410, 8
  %v563 = vpop.permute.xlu0 %562
  %564 = vrot.lane.b32.xlu0 %v411, 8
  %v565 = vpop.permute.xlu0 %564
  %566 = vrot.lane.b32.xlu0 %v412, 8
  %v567 = vpop.permute.xlu0 %566
  %568 = vrot.lane.b32.xlu0 %v413, 8
  %v569 = vpop.permute.xlu0 %568
  %570 = vrot.lane.b32.xlu0 %v414, 8
  %v571 = vpop.permute.xlu0 %570
  %572 = vrot.lane.b32.xlu0 %v415, 8
  %v573 = vpop.permute.xlu0 %572
  %574 = vrot.lane.b32.xlu0 %v416, 8
  %v575 = vpop.permute.xlu0 %574
  %576 = vrot.lane.b32.xlu0 %v417, 8
  %v577 = vpop.permute.xlu0 %576
  %578 = vrot.lane.b32.xlu0 %v418, 8
  %v579 = vpop.permute.xlu0 %578
  %580 = vrot.lane.b32.xlu0 %v419, 8
  %v581 = vpop.permute.xlu0 %580
  %582 = vrot.lane.b32.xlu0 %v420, 8
  %v583 = vpop.permute.xlu0 %582
  %584 = vrot.lane.b32.xlu0 %v421, 8
  %v585 = vpop.permute.xlu0 %584
  %586 = vrot.lane.b32.xlu0 %v422, 8
  %v587 = vpop.permute.xlu0 %586
  %588 = vrot.lane.b32.xlu0 %v423, 8
  %v589 = vpop.permute.xlu0 %588
  %590 = vrot.lane.b32.xlu0 %v424, 8
  %v591 = vpop.permute.xlu0 %590
  %592 = vrot.lane.b32.xlu0 %v425, 8
  %v593 = vpop.permute.xlu0 %592
  %594 = vrot.lane.b32.xlu0 %v426, 8
  %v595 = vpop.permute.xlu0 %594
  %596 = vrot.lane.b32.xlu0 %v427, 8
  %v597 = vpop.permute.xlu0 %596
  %598 = vrot.lane.b32.xlu0 %v428, 8
  %v599 = vpop.permute.xlu0 %598
  %600 = vrot.lane.b32.xlu0 %v429, 8
  %v601 = vpop.permute.xlu0 %600
  %602 = vrot.lane.b32.xlu0 %v430, 8
  %v603 = vpop.permute.xlu0 %602
  %604 = vrot.lane.b32.xlu0 %v431, 8
  %v605 = vpop.permute.xlu0 %604
  %606 = vrot.lane.b32.xlu0 %v432, 8
  %v607 = vpop.permute.xlu0 %606
  %608 = vrot.lane.b32.xlu0 %v433, 8
  %v609 = vpop.permute.xlu0 %608
  %610 = vrot.lane.b32.xlu0 %v434, 8
  %v611 = vpop.permute.xlu0 %610
  %612 = vrot.lane.b32.xlu0 %v435, 8
  %v613 = vpop.permute.xlu0 %612
  %614 = vrot.lane.b32.xlu0 %v436, 8
  %v615 = vpop.permute.xlu0 %614
  %616 = vrot.lane.b32.xlu0 %v437, 8
  %v617 = vpop.permute.xlu0 %616
  %678 = vst.msk [vmem:[%s316] sm:$0xff] %vm65, %v499
  %679 = vst.msk [vmem:[%s316 + $0x8] sm:$0xff] %vm65, %v501
  %680 = vst.msk [vmem:[%s316 + $0x10] sm:$0xff] %vm65, %v503
  %681 = vst.msk [vmem:[%s316 + $0x18] sm:$0xff] %vm65, %v505
  %682 = vst.msk [vmem:[%s316 + $0x20] sm:$0xff] %vm65, %v507
  %683 = vst.msk [vmem:[%s316 + $0x28] sm:$0xff] %vm65, %v509
  %684 = vst.msk [vmem:[%s316 + $0x30] sm:$0xff] %vm65, %v511
  %685 = vst.msk [vmem:[%s316 + $0x38] sm:$0xff] %vm65, %v513
  %686 = vst.msk [vmem:[%s316 + $0x40] sm:$0xff] %vm65, %v515
  %687 = vst.msk [vmem:[%s316 + $0x48] sm:$0xff] %vm65, %v517
  %688 = vst.msk [vmem:[%s316 + $0x50] sm:$0xff] %vm65, %v519
  %689 = vst.msk [vmem:[%s316 + $0x58] sm:$0xff] %vm65, %v521
  %690 = vst.msk [vmem:[%s316 + $0x60] sm:$0xff] %vm65, %v523
  %691 = vst.msk [vmem:[%s316 + $0x68] sm:$0xff] %vm65, %v525
  %692 = vst.msk [vmem:[%s316 + $0x70] sm:$0xff] %vm65, %v527
  %693 = vst.msk [vmem:[%s316 + $0x78] sm:$0xff] %vm65, %v529
  %694 = vst.msk [vmem:[%s316 + $0x80] sm:$0xff] %vm65, %v531
  %695 = vst.msk [vmem:[%s316 + $0x88] sm:$0xff] %vm65, %v533
  %696 = vst.msk [vmem:[%s316 + $0x90] sm:$0xff] %vm65, %v535
  %697 = vst.msk [vmem:[%s316 + $0x98] sm:$0xff] %vm65, %v537
  %698 = vst.msk [vmem:[%s316 + $0xa0] sm:$0xff] %vm65, %v539
  %699 = vst.msk [vmem:[%s316 + $0xa8] sm:$0xff] %vm65, %v541
  %700 = vst.msk [vmem:[%s316 + $0xb0] sm:$0xff] %vm65, %v543
  %701 = vst.msk [vmem:[%s316 + $0xb8] sm:$0xff] %vm65, %v545
  %702 = vst.msk [vmem:[%s316 + $0xc0] sm:$0xff] %vm65, %v547
  %703 = vst.msk [vmem:[%s316 + $0xc8] sm:$0xff] %vm65, %v549
  %704 = vst.msk [vmem:[%s316 + $0xd0] sm:$0xff] %vm65, %v551
  %705 = vst.msk [vmem:[%s316 + $0xd8] sm:$0xff] %vm65, %v553
  %706 = vst.msk [vmem:[%s316 + $0xe0] sm:$0xff] %vm65, %v555
  %707 = vst.msk [vmem:[%s316 + $0xe8] sm:$0xff] %vm65, %v557
  %708 = vst.msk [vmem:[%s316 + $0x100] sm:$0xff] %vm65, %v559
  %709 = vst.msk [vmem:[%s316 + $0x108] sm:$0xff] %vm65, %v561
  %710 = vst.msk [vmem:[%s316 + $0x110] sm:$0xff] %vm65, %v563
  %711 = vst.msk [vmem:[%s316 + $0x118] sm:$0xff] %vm65, %v565
  %712 = vst.msk [vmem:[%s316 + $0x120] sm:$0xff] %vm65, %v567
  %713 = vst.msk [vmem:[%s316 + $0x128] sm:$0xff] %vm65, %v569
  %714 = vst.msk [vmem:[%s316 + $0x130] sm:$0xff] %vm65, %v571
  %715 = vst.msk [vmem:[%s316 + $0x138] sm:$0xff] %vm65, %v573
  %716 = vst.msk [vmem:[%s316 + $0x140] sm:$0xff] %vm65, %v575
  %717 = vst.msk [vmem:[%s316 + $0x148] sm:$0xff] %vm65, %v577
  %718 = vst.msk [vmem:[%s316 + $0x150] sm:$0xff] %vm65, %v579
  %719 = vst.msk [vmem:[%s316 + $0x158] sm:$0xff] %vm65, %v581
  %720 = vst.msk [vmem:[%s316 + $0x160] sm:$0xff] %vm65, %v583
  %721 = vst.msk [vmem:[%s316 + $0x168] sm:$0xff] %vm65, %v585
  %722 = vst.msk [vmem:[%s316 + $0x170] sm:$0xff] %vm65, %v587
  %723 = vst.msk [vmem:[%s316 + $0x178] sm:$0xff] %vm65, %v589
  %724 = vst.msk [vmem:[%s316 + $0x180] sm:$0xff] %vm65, %v591
  %725 = vst.msk [vmem:[%s316 + $0x188] sm:$0xff] %vm65, %v593
  %726 = vst.msk [vmem:[%s316 + $0x190] sm:$0xff] %vm65, %v595
  %727 = vst.msk [vmem:[%s316 + $0x198] sm:$0xff] %vm65, %v597
  %728 = vst.msk [vmem:[%s316 + $0x1a0] sm:$0xff] %vm65, %v599
  %729 = vst.msk [vmem:[%s316 + $0x1a8] sm:$0xff] %vm65, %v601
  %730 = vst.msk [vmem:[%s316 + $0x1b0] sm:$0xff] %vm65, %v603
  %731 = vst.msk [vmem:[%s316 + $0x1b8] sm:$0xff] %vm65, %v605
  %732 = vst.msk [vmem:[%s316 + $0x1c0] sm:$0xff] %vm65, %v607
  %733 = vst.msk [vmem:[%s316 + $0x1c8] sm:$0xff] %vm65, %v609
  %734 = vst.msk [vmem:[%s316 + $0x1d0] sm:$0xff] %vm65, %v611
  %735 = vst.msk [vmem:[%s316 + $0x1d8] sm:$0xff] %vm65, %v613
  %736 = vst.msk [vmem:[%s316 + $0x1e0] sm:$0xff] %vm65, %v615
  %737 = vst.msk [vmem:[%s316 + $0x1e8] sm:$0xff] %vm65, %v617
  %v738 = vld [vmem:[%s0 + $0x1] sm:$0xff]
  %v739 = vld [vmem:[%s0 + $0x9] sm:$0x7f]
  %v740 = vld [vmem:[%s0 + $0x11] sm:$0xff]
  %v741 = vld [vmem:[%s0 + $0x19] sm:$0x7f]
  %v742 = vld [vmem:[%s0 + $0x21] sm:$0xff]
  %v743 = vld [vmem:[%s0 + $0x29] sm:$0x7f]
  %v744 = vld [vmem:[%s0 + $0x31] sm:$0xff]
  %v745 = vld [vmem:[%s0 + $0x39] sm:$0x7f]
  %v746 = vld [vmem:[%s0 + $0x41] sm:$0xff]
  %v747 = vld [vmem:[%s0 + $0x49] sm:$0x7f]
  %v748 = vld [vmem:[%s0 + $0x51] sm:$0xff]
  %v749 = vld [vmem:[%s0 + $0x59] sm:$0x7f]
  %v750 = vld [vmem:[%s0 + $0x61] sm:$0xff]
  %v751 = vld [vmem:[%s0 + $0x69] sm:$0x7f]
  %v752 = vld [vmem:[%s0 + $0x71] sm:$0xff]
  %v753 = vld [vmem:[%s0 + $0x79] sm:$0x7f]
  %v754 = vld [vmem:[%s0 + $0x81] sm:$0xff]
  %v755 = vld [vmem:[%s0 + $0x89] sm:$0x7f]
  %v756 = vld [vmem:[%s0 + $0x91] sm:$0xff]
  %v757 = vld [vmem:[%s0 + $0x99] sm:$0x7f]
  %v758 = vld [vmem:[%s0 + $0xa1] sm:$0xff]
  %v759 = vld [vmem:[%s0 + $0xa9] sm:$0x7f]
  %v760 = vld [vmem:[%s0 + $0xb1] sm:$0xff]
  %v761 = vld [vmem:[%s0 + $0xb9] sm:$0x7f]
  %v762 = vld [vmem:[%s0 + $0xc1] sm:$0xff]
  %v763 = vld [vmem:[%s0 + $0xc9] sm:$0x7f]
  %v764 = vld [vmem:[%s0 + $0xd1] sm:$0xff]
  %v765 = vld [vmem:[%s0 + $0xd9] sm:$0x7f]
  %v766 = vld [vmem:[%s0 + $0xe1] sm:$0xff]
  %v767 = vld [vmem:[%s0 + $0xe9] sm:$0x7f]
  %v768 = vld [vmem:[%s0 + $0x101] sm:$0xff]
  %v769 = vld [vmem:[%s0 + $0x109] sm:$0x7f]
  %v770 = vld [vmem:[%s0 + $0x111] sm:$0xff]
  %v771 = vld [vmem:[%s0 + $0x119] sm:$0x7f]
  %v772 = vld [vmem:[%s0 + $0x121] sm:$0xff]
  %v773 = vld [vmem:[%s0 + $0x129] sm:$0x7f]
  %v774 = vld [vmem:[%s0 + $0x131] sm:$0xff]
  %v775 = vld [vmem:[%s0 + $0x139] sm:$0x7f]
  %v776 = vld [vmem:[%s0 + $0x141] sm:$0xff]
  %v777 = vld [vmem:[%s0 + $0x149] sm:$0x7f]
  %v778 = vld [vmem:[%s0 + $0x151] sm:$0xff]
  %v779 = vld [vmem:[%s0 + $0x159] sm:$0x7f]
  %v780 = vld [vmem:[%s0 + $0x161] sm:$0xff]
  %v781 = vld [vmem:[%s0 + $0x169] sm:$0x7f]
  %v782 = vld [vmem:[%s0 + $0x171] sm:$0xff]
  %v783 = vld [vmem:[%s0 + $0x179] sm:$0x7f]
  %v784 = vld [vmem:[%s0 + $0x181] sm:$0xff]
  %v785 = vld [vmem:[%s0 + $0x189] sm:$0x7f]
  %v786 = vld [vmem:[%s0 + $0x191] sm:$0xff]
  %v787 = vld [vmem:[%s0 + $0x199] sm:$0x7f]
  %v788 = vld [vmem:[%s0 + $0x1a1] sm:$0xff]
  %v789 = vld [vmem:[%s0 + $0x1a9] sm:$0x7f]
  %v790 = vld [vmem:[%s0 + $0x1b1] sm:$0xff]
  %v791 = vld [vmem:[%s0 + $0x1b9] sm:$0x7f]
  %v792 = vld [vmem:[%s0 + $0x1c1] sm:$0xff]
  %v793 = vld [vmem:[%s0 + $0x1c9] sm:$0x7f]
  %v794 = vld [vmem:[%s0 + $0x1d1] sm:$0xff]
  %v795 = vld [vmem:[%s0 + $0x1d9] sm:$0x7f]
  %v796 = vld [vmem:[%s0 + $0x1e1] sm:$0xff]
  %v797 = vld [vmem:[%s0 + $0x1e9] sm:$0x7f]
  %858 = vrot.lane.b32.xlu0 %v738, 16
  %v859 = vpop.permute.xlu0 %858
  %860 = vrot.lane.b32.xlu0 %v739, 16
  %v861 = vpop.permute.xlu0 %860
  %862 = vrot.lane.b32.xlu0 %v740, 16
  %v863 = vpop.permute.xlu0 %862
  %864 = vrot.lane.b32.xlu0 %v741, 16
  %v865 = vpop.permute.xlu0 %864
  %866 = vrot.lane.b32.xlu0 %v742, 16
  %v867 = vpop.permute.xlu0 %866
  %868 = vrot.lane.b32.xlu0 %v743, 16
  %v869 = vpop.permute.xlu0 %868
  %870 = vrot.lane.b32.xlu0 %v744, 16
  %v871 = vpop.permute.xlu0 %870
  %872 = vrot.lane.b32.xlu0 %v745, 16
  %v873 = vpop.permute.xlu0 %872
  %874 = vrot.lane.b32.xlu0 %v746, 16
  %v875 = vpop.permute.xlu0 %874
  %876 = vrot.lane.b32.xlu0 %v747, 16
  %v877 = vpop.permute.xlu0 %876
  %878 = vrot.lane.b32.xlu0 %v748, 16
  %v879 = vpop.permute.xlu0 %878
  %880 = vrot.lane.b32.xlu0 %v749, 16
  %v881 = vpop.permute.xlu0 %880
  %882 = vrot.lane.b32.xlu0 %v750, 16
  %v883 = vpop.permute.xlu0 %882
  %884 = vrot.lane.b32.xlu0 %v751, 16
  %v885 = vpop.permute.xlu0 %884
  %886 = vrot.lane.b32.xlu0 %v752, 16
  %v887 = vpop.permute.xlu0 %886
  %888 = vrot.lane.b32.xlu0 %v753, 16
  %v889 = vpop.permute.xlu0 %888
  %890 = vrot.lane.b32.xlu0 %v754, 16
  %v891 = vpop.permute.xlu0 %890
  %892 = vrot.lane.b32.xlu0 %v755, 16
  %v893 = vpop.permute.xlu0 %892
  %894 = vrot.lane.b32.xlu0 %v756, 16
  %v895 = vpop.permute.xlu0 %894
  %896 = vrot.lane.b32.xlu0 %v757, 16
  %v897 = vpop.permute.xlu0 %896
  %898 = vrot.lane.b32.xlu0 %v758, 16
  %v899 = vpop.permute.xlu0 %898
  %900 = vrot.lane.b32.xlu0 %v759, 16
  %v901 = vpop.permute.xlu0 %900
  %902 = vrot.lane.b32.xlu0 %v760, 16
  %v903 = vpop.permute.xlu0 %902
  %904 = vrot.lane.b32.xlu0 %v761, 16
  %v905 = vpop.permute.xlu0 %904
  %906 = vrot.lane.b32.xlu0 %v762, 16
  %v907 = vpop.permute.xlu0 %906
  %908 = vrot.lane.b32.xlu0 %v763, 16
  %v909 = vpop.permute.xlu0 %908
  %910 = vrot.lane.b32.xlu0 %v764, 16
  %v911 = vpop.permute.xlu0 %910
  %912 = vrot.lane.b32.xlu0 %v765, 16
  %v913 = vpop.permute.xlu0 %912
  %914 = vrot.lane.b32.xlu0 %v766, 16
  %v915 = vpop.permute.xlu0 %914
  %916 = vrot.lane.b32.xlu0 %v767, 16
  %v917 = vpop.permute.xlu0 %916
  %918 = vrot.lane.b32.xlu0 %v768, 16
  %v919 = vpop.permute.xlu0 %918
  %920 = vrot.lane.b32.xlu0 %v769, 16
  %v921 = vpop.permute.xlu0 %920
  %922 = vrot.lane.b32.xlu0 %v770, 16
  %v923 = vpop.permute.xlu0 %922
  %924 = vrot.lane.b32.xlu0 %v771, 16
  %v925 = vpop.permute.xlu0 %924
  %926 = vrot.lane.b32.xlu0 %v772, 16
  %v927 = vpop.permute.xlu0 %926
  %928 = vrot.lane.b32.xlu0 %v773, 16
  %v929 = vpop.permute.xlu0 %928
  %930 = vrot.lane.b32.xlu0 %v774, 16
  %v931 = vpop.permute.xlu0 %930
  %932 = vrot.lane.b32.xlu0 %v775, 16
  %v933 = vpop.permute.xlu0 %932
  %934 = vrot.lane.b32.xlu0 %v776, 16
  %v935 = vpop.permute.xlu0 %934
  %936 = vrot.lane.b32.xlu0 %v777, 16
  %v937 = vpop.permute.xlu0 %936
  %938 = vrot.lane.b32.xlu0 %v778, 16
  %v939 = vpop.permute.xlu0 %938
  %940 = vrot.lane.b32.xlu0 %v779, 16
  %v941 = vpop.permute.xlu0 %940
  %942 = vrot.lane.b32.xlu0 %v780, 16
  %v943 = vpop.permute.xlu0 %942
  %944 = vrot.lane.b32.xlu0 %v781, 16
  %v945 = vpop.permute.xlu0 %944
  %946 = vrot.lane.b32.xlu0 %v782, 16
  %v947 = vpop.permute.xlu0 %946
  %948 = vrot.lane.b32.xlu0 %v783, 16
  %v949 = vpop.permute.xlu0 %948
  %950 = vrot.lane.b32.xlu0 %v784, 16
  %v951 = vpop.permute.xlu0 %950
  %952 = vrot.lane.b32.xlu0 %v785, 16
  %v953 = vpop.permute.xlu0 %952
  %954 = vrot.lane.b32.xlu0 %v786, 16
  %v955 = vpop.permute.xlu0 %954
  %956 = vrot.lane.b32.xlu0 %v787, 16
  %v957 = vpop.permute.xlu0 %956
  %958 = vrot.lane.b32.xlu0 %v788, 16
  %v959 = vpop.permute.xlu0 %958
  %960 = vrot.lane.b32.xlu0 %v789, 16
  %v961 = vpop.permute.xlu0 %960
  %962 = vrot.lane.b32.xlu0 %v790, 16
  %v963 = vpop.permute.xlu0 %962
  %964 = vrot.lane.b32.xlu0 %v791, 16
  %v965 = vpop.permute.xlu0 %964
  %966 = vrot.lane.b32.xlu0 %v792, 16
  %v967 = vpop.permute.xlu0 %966
  %968 = vrot.lane.b32.xlu0 %v793, 16
  %v969 = vpop.permute.xlu0 %968
  %970 = vrot.lane.b32.xlu0 %v794, 16
  %v971 = vpop.permute.xlu0 %970
  %972 = vrot.lane.b32.xlu0 %v795, 16
  %v973 = vpop.permute.xlu0 %972
  %974 = vrot.lane.b32.xlu0 %v796, 16
  %v975 = vpop.permute.xlu0 %974
  %976 = vrot.lane.b32.xlu0 %v797, 16
  %v977 = vpop.permute.xlu0 %976
  %1038 = vst.msk [vmem:[%s316] sm:$0xff] %vm70, %v859
  %vm1039 = vcmask 194688
  %1040 = vst.msk [vmem:[%s316 + $0x8] sm:$0x7f] %vm1039, %v861
  %1041 = vst.msk [vmem:[%s316 + $0x10] sm:$0xff] %vm70, %v863
  %1042 = vst.msk [vmem:[%s316 + $0x18] sm:$0x7f] %vm1039, %v865
  %1043 = vst.msk [vmem:[%s316 + $0x20] sm:$0xff] %vm70, %v867
  %1044 = vst.msk [vmem:[%s316 + $0x28] sm:$0x7f] %vm1039, %v869
  %1045 = vst.msk [vmem:[%s316 + $0x30] sm:$0xff] %vm70, %v871
  %1046 = vst.msk [vmem:[%s316 + $0x38] sm:$0x7f] %vm1039, %v873
  %1047 = vst.msk [vmem:[%s316 + $0x40] sm:$0xff] %vm70, %v875
  %1048 = vst.msk [vmem:[%s316 + $0x48] sm:$0x7f] %vm1039, %v877
  %1049 = vst.msk [vmem:[%s316 + $0x50] sm:$0xff] %vm70, %v879
  %1050 = vst.msk [vmem:[%s316 + $0x58] sm:$0x7f] %vm1039, %v881
  %1051 = vst.msk [vmem:[%s316 + $0x60] sm:$0xff] %vm70, %v883
  %1052 = vst.msk [vmem:[%s316 + $0x68] sm:$0x7f] %vm1039, %v885
  %1053 = vst.msk [vmem:[%s316 + $0x70] sm:$0xff] %vm70, %v887
  %1054 = vst.msk [vmem:[%s316 + $0x78] sm:$0x7f] %vm1039, %v889
  %1055 = vst.msk [vmem:[%s316 + $0x80] sm:$0xff] %vm70, %v891
  %1056 = vst.msk [vmem:[%s316 + $0x88] sm:$0x7f] %vm1039, %v893
  %1057 = vst.msk [vmem:[%s316 + $0x90] sm:$0xff] %vm70, %v895
  %1058 = vst.msk [vmem:[%s316 + $0x98] sm:$0x7f] %vm1039, %v897
  %1059 = vst.msk [vmem:[%s316 + $0xa0] sm:$0xff] %vm70, %v899
  %1060 = vst.msk [vmem:[%s316 + $0xa8] sm:$0x7f] %vm1039, %v901
  %1061 = vst.msk [vmem:[%s316 + $0xb0] sm:$0xff] %vm70, %v903
  %1062 = vst.msk [vmem:[%s316 + $0xb8] sm:$0x7f] %vm1039, %v905
  %1063 = vst.msk [vmem:[%s316 + $0xc0] sm:$0xff] %vm70, %v907
  %1064 = vst.msk [vmem:[%s316 + $0xc8] sm:$0x7f] %vm1039, %v909
  %1065 = vst.msk [vmem:[%s316 + $0xd0] sm:$0xff] %vm70, %v911
  %1066 = vst.msk [vmem:[%s316 + $0xd8] sm:$0x7f] %vm1039, %v913
  %1067 = vst.msk [vmem:[%s316 + $0xe0] sm:$0xff] %vm70, %v915
  %1068 = vst.msk [vmem:[%s316 + $0xe8] sm:$0x7f] %vm1039, %v917
  %1069 = vst.msk [vmem:[%s316 + $0x100] sm:$0xff] %vm70, %v919
  %1070 = vst.msk [vmem:[%s316 + $0x108] sm:$0x7f] %vm1039, %v921
  %1071 = vst.msk [vmem:[%s316 + $0x110] sm:$0xff] %vm70, %v923
  %1072 = vst.msk [vmem:[%s316 + $0x118] sm:$0x7f] %vm1039, %v925
  %1073 = vst.msk [vmem:[%s316 + $0x120] sm:$0xff] %vm70, %v927
  %1074 = vst.msk [vmem:[%s316 + $0x128] sm:$0x7f] %vm1039, %v929
  %1075 = vst.msk [vmem:[%s316 + $0x130] sm:$0xff] %vm70, %v931
  %1076 = vst.msk [vmem:[%s316 + $0x138] sm:$0x7f] %vm1039, %v933
  %1077 = vst.msk [vmem:[%s316 + $0x140] sm:$0xff] %vm70, %v935
  %1078 = vst.msk [vmem:[%s316 + $0x148] sm:$0x7f] %vm1039, %v937
  %1079 = vst.msk [vmem:[%s316 + $0x150] sm:$0xff] %vm70, %v939
  %1080 = vst.msk [vmem:[%s316 + $0x158] sm:$0x7f] %vm1039, %v941
  %1081 = vst.msk [vmem:[%s316 + $0x160] sm:$0xff] %vm70, %v943
  %1082 = vst.msk [vmem:[%s316 + $0x168] sm:$0x7f] %vm1039, %v945
  %1083 = vst.msk [vmem:[%s316 + $0x170] sm:$0xff] %vm70, %v947
  %1084 = vst.msk [vmem:[%s316 + $0x178] sm:$0x7f] %vm1039, %v949
  %1085 = vst.msk [vmem:[%s316 + $0x180] sm:$0xff] %vm70, %v951
  %1086 = vst.msk [vmem:[%s316 + $0x188] sm:$0x7f] %vm1039, %v953
  %1087 = vst.msk [vmem:[%s316 + $0x190] sm:$0xff] %vm70, %v955
  %1088 = vst.msk [vmem:[%s316 + $0x198] sm:$0x7f] %vm1039, %v957
  %1089 = vst.msk [vmem:[%s316 + $0x1a0] sm:$0xff] %vm70, %v959
  %1090 = vst.msk [vmem:[%s316 + $0x1a8] sm:$0x7f] %vm1039, %v961
  %1091 = vst.msk [vmem:[%s316 + $0x1b0] sm:$0xff] %vm70, %v963
  %1092 = vst.msk [vmem:[%s316 + $0x1b8] sm:$0x7f] %vm1039, %v965
  %1093 = vst.msk [vmem:[%s316 + $0x1c0] sm:$0xff] %vm70, %v967
  %1094 = vst.msk [vmem:[%s316 + $0x1c8] sm:$0x7f] %vm1039, %v969
  %1095 = vst.msk [vmem:[%s316 + $0x1d0] sm:$0xff] %vm70, %v971
  %1096 = vst.msk [vmem:[%s316 + $0x1d8] sm:$0x7f] %vm1039, %v973
  %1097 = vst.msk [vmem:[%s316 + $0x1e0] sm:$0xff] %vm70, %v975
  %1098 = vst.msk [vmem:[%s316 + $0x1e8] sm:$0x7f] %vm1039, %v977
  %v1099 = vld [vmem:[%s0] sm:$0xff]
  %v1100 = vld [vmem:[%s0 + $0x8] sm:$0x7f]
  %v1101 = vld [vmem:[%s0 + $0x10] sm:$0xff]
  %v1102 = vld [vmem:[%s0 + $0x18] sm:$0x7f]
  %v1103 = vld [vmem:[%s0 + $0x20] sm:$0xff]
  %v1104 = vld [vmem:[%s0 + $0x28] sm:$0x7f]
  %v1105 = vld [vmem:[%s0 + $0x30] sm:$0xff]
  %v1106 = vld [vmem:[%s0 + $0x38] sm:$0x7f]
  %v1107 = vld [vmem:[%s0 + $0x40] sm:$0xff]
  %v1108 = vld [vmem:[%s0 + $0x48] sm:$0x7f]
  %v1109 = vld [vmem:[%s0 + $0x50] sm:$0xff]
  %v1110 = vld [vmem:[%s0 + $0x58] sm:$0x7f]
  %v1111 = vld [vmem:[%s0 + $0x60] sm:$0xff]
  %v1112 = vld [vmem:[%s0 + $0x68] sm:$0x7f]
  %v1113 = vld [vmem:[%s0 + $0x70] sm:$0xff]
  %v1114 = vld [vmem:[%s0 + $0x78] sm:$0x7f]
  %v1115 = vld [vmem:[%s0 + $0x80] sm:$0xff]
  %v1116 = vld [vmem:[%s0 + $0x88] sm:$0x7f]
  %v1117 = vld [vmem:[%s0 + $0x90] sm:$0xff]
  %v1118 = vld [vmem:[%s0 + $0x98] sm:$0x7f]
  %v1119 = vld [vmem:[%s0 + $0xa0] sm:$0xff]
  %v1120 = vld [vmem:[%s0 + $0xa8] sm:$0x7f]
  %v1121 = vld [vmem:[%s0 + $0xb0] sm:$0xff]
  %v1122 = vld [vmem:[%s0 + $0xb8] sm:$0x7f]
  %v1123 = vld [vmem:[%s0 + $0xc0] sm:$0xff]
  %v1124 = vld [vmem:[%s0 + $0xc8] sm:$0x7f]
  %v1125 = vld [vmem:[%s0 + $0xd0] sm:$0xff]
  %v1126 = vld [vmem:[%s0 + $0xd8] sm:$0x7f]
  %v1127 = vld [vmem:[%s0 + $0xe0] sm:$0xff]
  %v1128 = vld [vmem:[%s0 + $0xe8] sm:$0x7f]
  %v1129 = vld [vmem:[%s0 + $0xf0] sm:$0xff]
  %v1130 = vld [vmem:[%s0 + $0xf8] sm:$0x7f]
  %v1131 = vld [vmem:[%s0 + $0x100] sm:$0xff]
  %v1132 = vld [vmem:[%s0 + $0x108] sm:$0x7f]
  %v1133 = vld [vmem:[%s0 + $0x110] sm:$0xff]
  %v1134 = vld [vmem:[%s0 + $0x118] sm:$0x7f]
  %v1135 = vld [vmem:[%s0 + $0x120] sm:$0xff]
  %v1136 = vld [vmem:[%s0 + $0x128] sm:$0x7f]
  %v1137 = vld [vmem:[%s0 + $0x130] sm:$0xff]
  %v1138 = vld [vmem:[%s0 + $0x138] sm:$0x7f]
  %v1139 = vld [vmem:[%s0 + $0x140] sm:$0xff]
  %v1140 = vld [vmem:[%s0 + $0x148] sm:$0x7f]
  %v1141 = vld [vmem:[%s0 + $0x150] sm:$0xff]
  %v1142 = vld [vmem:[%s0 + $0x158] sm:$0x7f]
  %v1143 = vld [vmem:[%s0 + $0x160] sm:$0xff]
  %v1144 = vld [vmem:[%s0 + $0x168] sm:$0x7f]
  %v1145 = vld [vmem:[%s0 + $0x170] sm:$0xff]
  %v1146 = vld [vmem:[%s0 + $0x178] sm:$0x7f]
  %v1147 = vld [vmem:[%s0 + $0x180] sm:$0xff]
  %v1148 = vld [vmem:[%s0 + $0x188] sm:$0x7f]
  %v1149 = vld [vmem:[%s0 + $0x190] sm:$0xff]
  %v1150 = vld [vmem:[%s0 + $0x198] sm:$0x7f]
  %v1151 = vld [vmem:[%s0 + $0x1a0] sm:$0xff]
  %v1152 = vld [vmem:[%s0 + $0x1a8] sm:$0x7f]
  %v1153 = vld [vmem:[%s0 + $0x1b0] sm:$0xff]
  %v1154 = vld [vmem:[%s0 + $0x1b8] sm:$0x7f]
  %v1155 = vld [vmem:[%s0 + $0x1c0] sm:$0xff]
  %v1156 = vld [vmem:[%s0 + $0x1c8] sm:$0x7f]
  %v1157 = vld [vmem:[%s0 + $0x1d0] sm:$0xff]
  %v1158 = vld [vmem:[%s0 + $0x1d8] sm:$0x7f]
  %v1159 = vld [vmem:[%s0 + $0x1e0] sm:$0xff]
  %v1160 = vld [vmem:[%s0 + $0x1e8] sm:$0x7f]
  %v1161 = vld [vmem:[%s0 + $0x1f0] sm:$0xff]
  %v1162 = vld [vmem:[%s0 + $0x1f8] sm:$0x7f]
  %1227 = vrot.lane.b32.xlu0 %v1099, 24
  %v1228 = vpop.permute.xlu0 %1227
  %1229 = vrot.lane.b32.xlu0 %v1100, 24
  %v1230 = vpop.permute.xlu0 %1229
  %1231 = vrot.lane.b32.xlu0 %v1101, 24
  %v1232 = vpop.permute.xlu0 %1231
  %1233 = vrot.lane.b32.xlu0 %v1102, 24
  %v1234 = vpop.permute.xlu0 %1233
  %1235 = vrot.lane.b32.xlu0 %v1103, 24
  %v1236 = vpop.permute.xlu0 %1235
  %1237 = vrot.lane.b32.xlu0 %v1104, 24
  %v1238 = vpop.permute.xlu0 %1237
  %1239 = vrot.lane.b32.xlu0 %v1105, 24
  %v1240 = vpop.permute.xlu0 %1239
  %1241 = vrot.lane.b32.xlu0 %v1106, 24
  %v1242 = vpop.permute.xlu0 %1241
  %1243 = vrot.lane.b32.xlu0 %v1107, 24
  %v1244 = vpop.permute.xlu0 %1243
  %1245 = vrot.lane.b32.xlu0 %v1108, 24
  %v1246 = vpop.permute.xlu0 %1245
  %1247 = vrot.lane.b32.xlu0 %v1109, 24
  %v1248 = vpop.permute.xlu0 %1247
  %1249 = vrot.lane.b32.xlu0 %v1110, 24
  %v1250 = vpop.permute.xlu0 %1249
  %1251 = vrot.lane.b32.xlu0 %v1111, 24
  %v1252 = vpop.permute.xlu0 %1251
  %1253 = vrot.lane.b32.xlu0 %v1112, 24
  %v1254 = vpop.permute.xlu0 %1253
  %1255 = vrot.lane.b32.xlu0 %v1113, 24
  %v1256 = vpop.permute.xlu0 %1255
  %1257 = vrot.lane.b32.xlu0 %v1114, 24
  %v1258 = vpop.permute.xlu0 %1257
  %1259 = vrot.lane.b32.xlu0 %v1115, 24
  %v1260 = vpop.permute.xlu0 %1259
  %1261 = vrot.lane.b32.xlu0 %v1116, 24
  %v1262 = vpop.permute.xlu0 %1261
  %1263 = vrot.lane.b32.xlu0 %v1117, 24
  %v1264 = vpop.permute.xlu0 %1263
  %1265 = vrot.lane.b32.xlu0 %v1118, 24
  %v1266 = vpop.permute.xlu0 %1265
  %1267 = vrot.lane.b32.xlu0 %v1119, 24
  %v1268 = vpop.permute.xlu0 %1267
  %1269 = vrot.lane.b32.xlu0 %v1120, 24
  %v1270 = vpop.permute.xlu0 %1269
  %1271 = vrot.lane.b32.xlu0 %v1121, 24
  %v1272 = vpop.permute.xlu0 %1271
  %1273 = vrot.lane.b32.xlu0 %v1122, 24
  %v1274 = vpop.permute.xlu0 %1273
  %1275 = vrot.lane.b32.xlu0 %v1123, 24
  %v1276 = vpop.permute.xlu0 %1275
  %1277 = vrot.lane.b32.xlu0 %v1124, 24
  %v1278 = vpop.permute.xlu0 %1277
  %1279 = vrot.lane.b32.xlu0 %v1125, 24
  %v1280 = vpop.permute.xlu0 %1279
  %1281 = vrot.lane.b32.xlu0 %v1126, 24
  %v1282 = vpop.permute.xlu0 %1281
  %1283 = vrot.lane.b32.xlu0 %v1127, 24
  %v1284 = vpop.permute.xlu0 %1283
  %1285 = vrot.lane.b32.xlu0 %v1128, 24
  %v1286 = vpop.permute.xlu0 %1285
  %1287 = vrot.lane.b32.xlu0 %v1129, 24
  %v1288 = vpop.permute.xlu0 %1287
  %1289 = vrot.lane.b32.xlu0 %v1130, 24
  %v1290 = vpop.permute.xlu0 %1289
  %1291 = vrot.lane.b32.xlu0 %v1131, 24
  %v1292 = vpop.permute.xlu0 %1291
  %1293 = vrot.lane.b32.xlu0 %v1132, 24
  %v1294 = vpop.permute.xlu0 %1293
  %1295 = vrot.lane.b32.xlu0 %v1133, 24
  %v1296 = vpop.permute.xlu0 %1295
  %1297 = vrot.lane.b32.xlu0 %v1134, 24
  %v1298 = vpop.permute.xlu0 %1297
  %1299 = vrot.lane.b32.xlu0 %v1135, 24
  %v1300 = vpop.permute.xlu0 %1299
  %1301 = vrot.lane.b32.xlu0 %v1136, 24
  %v1302 = vpop.permute.xlu0 %1301
  %1303 = vrot.lane.b32.xlu0 %v1137, 24
  %v1304 = vpop.permute.xlu0 %1303
  %1305 = vrot.lane.b32.xlu0 %v1138, 24
  %v1306 = vpop.permute.xlu0 %1305
  %1307 = vrot.lane.b32.xlu0 %v1139, 24
  %v1308 = vpop.permute.xlu0 %1307
  %1309 = vrot.lane.b32.xlu0 %v1140, 24
  %v1310 = vpop.permute.xlu0 %1309
  %1311 = vrot.lane.b32.xlu0 %v1141, 24
  %v1312 = vpop.permute.xlu0 %1311
  %1313 = vrot.lane.b32.xlu0 %v1142, 24
  %v1314 = vpop.permute.xlu0 %1313
  %1315 = vrot.lane.b32.xlu0 %v1143, 24
  %v1316 = vpop.permute.xlu0 %1315
  %1317 = vrot.lane.b32.xlu0 %v1144, 24
  %v1318 = vpop.permute.xlu0 %1317
  %1319 = vrot.lane.b32.xlu0 %v1145, 24
  %v1320 = vpop.permute.xlu0 %1319
  %1321 = vrot.lane.b32.xlu0 %v1146, 24
  %v1322 = vpop.permute.xlu0 %1321
  %1323 = vrot.lane.b32.xlu0 %v1147, 24
  %v1324 = vpop.permute.xlu0 %1323
  %1325 = vrot.lane.b32.xlu0 %v1148, 24
  %v1326 = vpop.permute.xlu0 %1325
  %1327 = vrot.lane.b32.xlu0 %v1149, 24
  %v1328 = vpop.permute.xlu0 %1327
  %1329 = vrot.lane.b32.xlu0 %v1150, 24
  %v1330 = vpop.permute.xlu0 %1329
  %1331 = vrot.lane.b32.xlu0 %v1151, 24
  %v1332 = vpop.permute.xlu0 %1331
  %1333 = vrot.lane.b32.xlu0 %v1152, 24
  %v1334 = vpop.permute.xlu0 %1333
  %1335 = vrot.lane.b32.xlu0 %v1153, 24
  %v1336 = vpop.permute.xlu0 %1335
  %1337 = vrot.lane.b32.xlu0 %v1154, 24
  %v1338 = vpop.permute.xlu0 %1337
  %1339 = vrot.lane.b32.xlu0 %v1155, 24
  %v1340 = vpop.permute.xlu0 %1339
  %1341 = vrot.lane.b32.xlu0 %v1156, 24
  %v1342 = vpop.permute.xlu0 %1341
  %1343 = vrot.lane.b32.xlu0 %v1157, 24
  %v1344 = vpop.permute.xlu0 %1343
  %1345 = vrot.lane.b32.xlu0 %v1158, 24
  %v1346 = vpop.permute.xlu0 %1345
  %1347 = vrot.lane.b32.xlu0 %v1159, 24
  %v1348 = vpop.permute.xlu0 %1347
  %1349 = vrot.lane.b32.xlu0 %v1160, 24
  %v1350 = vpop.permute.xlu0 %1349
  %1351 = vrot.lane.b32.xlu0 %v1161, 24
  %v1352 = vpop.permute.xlu0 %1351
  %1353 = vrot.lane.b32.xlu0 %v1162, 24
  %v1354 = vpop.permute.xlu0 %1353
  %vm1419 = vcmask 261312
  %1420 = vst.msk [vmem:[#allocation2 + $0x1] sm:$0xff] %vm1419, %v1228
  %vm1421 = vcmask 260288
  %1422 = vst.msk [vmem:[#allocation2 + $0x9] sm:$0x7f] %vm1421, %v1230
  %1423 = vst.msk [vmem:[#allocation2 + $0x11] sm:$0xff] %vm1419, %v1232
  %1424 = vst.msk [vmem:[#allocation2 + $0x19] sm:$0x7f] %vm1421, %v1234
  %1425 = vst.msk [vmem:[#allocation2 + $0x21] sm:$0xff] %vm1419, %v1236
  %1426 = vst.msk [vmem:[#allocation2 + $0x29] sm:$0x7f] %vm1421, %v1238
  %1427 = vst.msk [vmem:[#allocation2 + $0x31] sm:$0xff] %vm1419, %v1240
  %1428 = vst.msk [vmem:[#allocation2 + $0x39] sm:$0x7f] %vm1421, %v1242
  %1429 = vst.msk [vmem:[#allocation2 + $0x41] sm:$0xff] %vm1419, %v1244
  %1430 = vst.msk [vmem:[#allocation2 + $0x49] sm:$0x7f] %vm1421, %v1246
  %1431 = vst.msk [vmem:[#allocation2 + $0x51] sm:$0xff] %vm1419, %v1248
  %1432 = vst.msk [vmem:[#allocation2 + $0x59] sm:$0x7f] %vm1421, %v1250
  %1433 = vst.msk [vmem:[#allocation2 + $0x61] sm:$0xff] %vm1419, %v1252
  %1434 = vst.msk [vmem:[#allocation2 + $0x69] sm:$0x7f] %vm1421, %v1254
  %1435 = vst.msk [vmem:[#allocation2 + $0x71] sm:$0xff] %vm1419, %v1256
  %1436 = vst.msk [vmem:[#allocation2 + $0x79] sm:$0x7f] %vm1421, %v1258
  %1437 = vst.msk [vmem:[#allocation2 + $0x81] sm:$0xff] %vm1419, %v1260
  %1438 = vst.msk [vmem:[#allocation2 + $0x89] sm:$0x7f] %vm1421, %v1262
  %1439 = vst.msk [vmem:[#allocation2 + $0x91] sm:$0xff] %vm1419, %v1264
  %1440 = vst.msk [vmem:[#allocation2 + $0x99] sm:$0x7f] %vm1421, %v1266
  %1441 = vst.msk [vmem:[#allocation2 + $0xa1] sm:$0xff] %vm1419, %v1268
  %1442 = vst.msk [vmem:[#allocation2 + $0xa9] sm:$0x7f] %vm1421, %v1270
  %1443 = vst.msk [vmem:[#allocation2 + $0xb1] sm:$0xff] %vm1419, %v1272
  %1444 = vst.msk [vmem:[#allocation2 + $0xb9] sm:$0x7f] %vm1421, %v1274
  %1445 = vst.msk [vmem:[#allocation2 + $0xc1] sm:$0xff] %vm1419, %v1276
  %1446 = vst.msk [vmem:[#allocation2 + $0xc9] sm:$0x7f] %vm1421, %v1278
  %1447 = vst.msk [vmem:[#allocation2 + $0xd1] sm:$0xff] %vm1419, %v1280
  %1448 = vst.msk [vmem:[#allocation2 + $0xd9] sm:$0x7f] %vm1421, %v1282
  %1449 = vst.msk [vmem:[#allocation2 + $0xe1] sm:$0xff] %vm1419, %v1284
  %1450 = vst.msk [vmem:[#allocation2 + $0xe9] sm:$0x7f] %vm1421, %v1286
  %1451 = vst.msk [vmem:[#allocation2 + $0xf1] sm:$0xff] %vm1419, %v1288
  %1452 = vst.msk [vmem:[#allocation2 + $0xf9] sm:$0x7f] %vm1421, %v1290
  %1453 = vst.msk [vmem:[#allocation2 + $0x101] sm:$0xff] %vm1419, %v1292
  %1454 = vst.msk [vmem:[#allocation2 + $0x109] sm:$0x7f] %vm1421, %v1294
  %1455 = vst.msk [vmem:[#allocation2 + $0x111] sm:$0xff] %vm1419, %v1296
  %1456 = vst.msk [vmem:[#allocation2 + $0x119] sm:$0x7f] %vm1421, %v1298
  %1457 = vst.msk [vmem:[#allocation2 + $0x121] sm:$0xff] %vm1419, %v1300
  %1458 = vst.msk [vmem:[#allocation2 + $0x129] sm:$0x7f] %vm1421, %v1302
  %1459 = vst.msk [vmem:[#allocation2 + $0x131] sm:$0xff] %vm1419, %v1304
  %1460 = vst.msk [vmem:[#allocation2 + $0x139] sm:$0x7f] %vm1421, %v1306
  %1461 = vst.msk [vmem:[#allocation2 + $0x141] sm:$0xff] %vm1419, %v1308
  %1462 = vst.msk [vmem:[#allocation2 + $0x149] sm:$0x7f] %vm1421, %v1310
  %1463 = vst.msk [vmem:[#allocation2 + $0x151] sm:$0xff] %vm1419, %v1312
  %1464 = vst.msk [vmem:[#allocation2 + $0x159] sm:$0x7f] %vm1421, %v1314
  %1465 = vst.msk [vmem:[#allocation2 + $0x161] sm:$0xff] %vm1419, %v1316
  %1466 = vst.msk [vmem:[#allocation2 + $0x169] sm:$0x7f] %vm1421, %v1318
  %1467 = vst.msk [vmem:[#allocation2 + $0x171] sm:$0xff] %vm1419, %v1320
  %1468 = vst.msk [vmem:[#allocation2 + $0x179] sm:$0x7f] %vm1421, %v1322
  %1469 = vst.msk [vmem:[#allocation2 + $0x181] sm:$0xff] %vm1419, %v1324
  %1470 = vst.msk [vmem:[#allocation2 + $0x189] sm:$0x7f] %vm1421, %v1326
  %1471 = vst.msk [vmem:[#allocation2 + $0x191] sm:$0xff] %vm1419, %v1328
  %1472 = vst.msk [vmem:[#allocation2 + $0x199] sm:$0x7f] %vm1421, %v1330
  %1473 = vst.msk [vmem:[#allocation2 + $0x1a1] sm:$0xff] %vm1419, %v1332
  %1474 = vst.msk [vmem:[#allocation2 + $0x1a9] sm:$0x7f] %vm1421, %v1334
  %1475 = vst.msk [vmem:[#allocation2 + $0x1b1] sm:$0xff] %vm1419, %v1336
  %1476 = vst.msk [vmem:[#allocation2 + $0x1b9] sm:$0x7f] %vm1421, %v1338
  %1477 = vst.msk [vmem:[#allocation2 + $0x1c1] sm:$0xff] %vm1419, %v1340
  %1478 = vst.msk [vmem:[#allocation2 + $0x1c9] sm:$0x7f] %vm1421, %v1342
  %1479 = vst.msk [vmem:[#allocation2 + $0x1d1] sm:$0xff] %vm1419, %v1344
  %1480 = vst.msk [vmem:[#allocation2 + $0x1d9] sm:$0x7f] %vm1421, %v1346
  %1481 = vst.msk [vmem:[#allocation2 + $0x1e1] sm:$0xff] %vm1419, %v1348
  %1482 = vst.msk [vmem:[#allocation2 + $0x1e9] sm:$0x7f] %vm1421, %v1350
  %1483 = vst.msk [vmem:[#allocation2 + $0x1f1] sm:$0xff] %vm1419, %v1352
  %1484 = vst.msk [vmem:[#allocation2 + $0x1f9] sm:$0x7f] %vm1421, %v1354
  %v1485 = vld [vmem:[%s0] sm:$0xff]
  %v1486 = vld [vmem:[%s0 + $0x8] sm:$0xff]
  %v1487 = vld [vmem:[%s0 + $0x10] sm:$0xff]
  %v1488 = vld [vmem:[%s0 + $0x18] sm:$0xff]
  %v1489 = vld [vmem:[%s0 + $0x20] sm:$0xff]
  %v1490 = vld [vmem:[%s0 + $0x28] sm:$0xff]
  %v1491 = vld [vmem:[%s0 + $0x30] sm:$0xff]
  %v1492 = vld [vmem:[%s0 + $0x38] sm:$0xff]
  %v1493 = vld [vmem:[%s0 + $0x40] sm:$0xff]
  %v1494 = vld [vmem:[%s0 + $0x48] sm:$0xff]
  %v1495 = vld [vmem:[%s0 + $0x50] sm:$0xff]
  %v1496 = vld [vmem:[%s0 + $0x58] sm:$0xff]
  %v1497 = vld [vmem:[%s0 + $0x60] sm:$0xff]
  %v1498 = vld [vmem:[%s0 + $0x68] sm:$0xff]
  %v1499 = vld [vmem:[%s0 + $0x70] sm:$0xff]
  %v1500 = vld [vmem:[%s0 + $0x78] sm:$0xff]
  %v1501 = vld [vmem:[%s0 + $0x80] sm:$0xff]
  %v1502 = vld [vmem:[%s0 + $0x88] sm:$0xff]
  %v1503 = vld [vmem:[%s0 + $0x90] sm:$0xff]
  %v1504 = vld [vmem:[%s0 + $0x98] sm:$0xff]
  %v1505 = vld [vmem:[%s0 + $0xa0] sm:$0xff]
  %v1506 = vld [vmem:[%s0 + $0xa8] sm:$0xff]
  %v1507 = vld [vmem:[%s0 + $0xb0] sm:$0xff]
  %v1508 = vld [vmem:[%s0 + $0xb8] sm:$0xff]
  %v1509 = vld [vmem:[%s0 + $0xc0] sm:$0xff]
  %v1510 = vld [vmem:[%s0 + $0xc8] sm:$0xff]
  %v1511 = vld [vmem:[%s0 + $0xd0] sm:$0xff]
  %v1512 = vld [vmem:[%s0 + $0xd8] sm:$0xff]
  %v1513 = vld [vmem:[%s0 + $0xe0] sm:$0xff]
  %v1514 = vld [vmem:[%s0 + $0xe8] sm:$0xff]
  %v1515 = vld [vmem:[%s0 + $0xf0] sm:$0xff]
  %v1516 = vld [vmem:[%s0 + $0xf8] sm:$0xff]
  %v1517 = vld [vmem:[%s0 + $0x100] sm:$0xff]
  %v1518 = vld [vmem:[%s0 + $0x108] sm:$0xff]
  %v1519 = vld [vmem:[%s0 + $0x110] sm:$0xff]
  %v1520 = vld [vmem:[%s0 + $0x118] sm:$0xff]
  %v1521 = vld [vmem:[%s0 + $0x120] sm:$0xff]
  %v1522 = vld [vmem:[%s0 + $0x128] sm:$0xff]
  %v1523 = vld [vmem:[%s0 + $0x130] sm:$0xff]
  %v1524 = vld [vmem:[%s0 + $0x138] sm:$0xff]
  %v1525 = vld [vmem:[%s0 + $0x140] sm:$0xff]
  %v1526 = vld [vmem:[%s0 + $0x148] sm:$0xff]
  %v1527 = vld [vmem:[%s0 + $0x150] sm:$0xff]
  %v1528 = vld [vmem:[%s0 + $0x158] sm:$0xff]
  %v1529 = vld [vmem:[%s0 + $0x160] sm:$0xff]
  %v1530 = vld [vmem:[%s0 + $0x168] sm:$0xff]
  %v1531 = vld [vmem:[%s0 + $0x170] sm:$0xff]
  %v1532 = vld [vmem:[%s0 + $0x178] sm:$0xff]
  %v1533 = vld [vmem:[%s0 + $0x180] sm:$0xff]
  %v1534 = vld [vmem:[%s0 + $0x188] sm:$0xff]
  %v1535 = vld [vmem:[%s0 + $0x190] sm:$0xff]
  %v1536 = vld [vmem:[%s0 + $0x198] sm:$0xff]
  %v1537 = vld [vmem:[%s0 + $0x1a0] sm:$0xff]
  %v1538 = vld [vmem:[%s0 + $0x1a8] sm:$0xff]
  %v1539 = vld [vmem:[%s0 + $0x1b0] sm:$0xff]
  %v1540 = vld [vmem:[%s0 + $0x1b8] sm:$0xff]
  %v1541 = vld [vmem:[%s0 + $0x1c0] sm:$0xff]
  %v1542 = vld [vmem:[%s0 + $0x1c8] sm:$0xff]
  %v1543 = vld [vmem:[%s0 + $0x1d0] sm:$0xff]
  %v1544 = vld [vmem:[%s0 + $0x1d8] sm:$0xff]
  %v1545 = vld [vmem:[%s0 + $0x1e0] sm:$0xff]
  %v1546 = vld [vmem:[%s0 + $0x1e8] sm:$0xff]
  %v1547 = vld [vmem:[%s0 + $0x1f0] sm:$0xff]
  %v1548 = vld [vmem:[%s0 + $0x1f8] sm:$0xff]
  %1613 = vrot.lane.b32.xlu0 %v1485, 32
  %v1614 = vpop.permute.xlu0 %1613
  %1615 = vrot.lane.b32.xlu0 %v1486, 32
  %v1616 = vpop.permute.xlu0 %1615
  %1617 = vrot.lane.b32.xlu0 %v1487, 32
  %v1618 = vpop.permute.xlu0 %1617
  %1619 = vrot.lane.b32.xlu0 %v1488, 32
  %v1620 = vpop.permute.xlu0 %1619
  %1621 = vrot.lane.b32.xlu0 %v1489, 32
  %v1622 = vpop.permute.xlu0 %1621
  %1623 = vrot.lane.b32.xlu0 %v1490, 32
  %v1624 = vpop.permute.xlu0 %1623
  %1625 = vrot.lane.b32.xlu0 %v1491, 32
  %v1626 = vpop.permute.xlu0 %1625
  %1627 = vrot.lane.b32.xlu0 %v1492, 32
  %v1628 = vpop.permute.xlu0 %1627
  %1629 = vrot.lane.b32.xlu0 %v1493, 32
  %v1630 = vpop.permute.xlu0 %1629
  %1631 = vrot.lane.b32.xlu0 %v1494, 32
  %v1632 = vpop.permute.xlu0 %1631
  %1633 = vrot.lane.b32.xlu0 %v1495, 32
  %v1634 = vpop.permute.xlu0 %1633
  %1635 = vrot.lane.b32.xlu0 %v1496, 32
  %v1636 = vpop.permute.xlu0 %1635
  %1637 = vrot.lane.b32.xlu0 %v1497, 32
  %v1638 = vpop.permute.xlu0 %1637
  %1639 = vrot.lane.b32.xlu0 %v1498, 32
  %v1640 = vpop.permute.xlu0 %1639
  %1641 = vrot.lane.b32.xlu0 %v1499, 32
  %v1642 = vpop.permute.xlu0 %1641
  %1643 = vrot.lane.b32.xlu0 %v1500, 32
  %v1644 = vpop.permute.xlu0 %1643
  %1645 = vrot.lane.b32.xlu0 %v1501, 32
  %v1646 = vpop.permute.xlu0 %1645
  %1647 = vrot.lane.b32.xlu0 %v1502, 32
  %v1648 = vpop.permute.xlu0 %1647
  %1649 = vrot.lane.b32.xlu0 %v1503, 32
  %v1650 = vpop.permute.xlu0 %1649
  %1651 = vrot.lane.b32.xlu0 %v1504, 32
  %v1652 = vpop.permute.xlu0 %1651
  %1653 = vrot.lane.b32.xlu0 %v1505, 32
  %v1654 = vpop.permute.xlu0 %1653
  %1655 = vrot.lane.b32.xlu0 %v1506, 32
  %v1656 = vpop.permute.xlu0 %1655
  %1657 = vrot.lane.b32.xlu0 %v1507, 32
  %v1658 = vpop.permute.xlu0 %1657
  %1659 = vrot.lane.b32.xlu0 %v1508, 32
  %v1660 = vpop.permute.xlu0 %1659
  %1661 = vrot.lane.b32.xlu0 %v1509, 32
  %v1662 = vpop.permute.xlu0 %1661
  %1663 = vrot.lane.b32.xlu0 %v1510, 32
  %v1664 = vpop.permute.xlu0 %1663
  %1665 = vrot.lane.b32.xlu0 %v1511, 32
  %v1666 = vpop.permute.xlu0 %1665
  %1667 = vrot.lane.b32.xlu0 %v1512, 32
  %v1668 = vpop.permute.xlu0 %1667
  %1669 = vrot.lane.b32.xlu0 %v1513, 32
  %v1670 = vpop.permute.xlu0 %1669
  %1671 = vrot.lane.b32.xlu0 %v1514, 32
  %v1672 = vpop.permute.xlu0 %1671
  %1673 = vrot.lane.b32.xlu0 %v1515, 32
  %v1674 = vpop.permute.xlu0 %1673
  %1675 = vrot.lane.b32.xlu0 %v1516, 32
  %v1676 = vpop.permute.xlu0 %1675
  %1677 = vrot.lane.b32.xlu0 %v1517, 32
  %v1678 = vpop.permute.xlu0 %1677
  %1679 = vrot.lane.b32.xlu0 %v1518, 32
  %v1680 = vpop.permute.xlu0 %1679
  %1681 = vrot.lane.b32.xlu0 %v1519, 32
  %v1682 = vpop.permute.xlu0 %1681
  %1683 = vrot.lane.b32.xlu0 %v1520, 32
  %v1684 = vpop.permute.xlu0 %1683
  %1685 = vrot.lane.b32.xlu0 %v1521, 32
  %v1686 = vpop.permute.xlu0 %1685
  %1687 = vrot.lane.b32.xlu0 %v1522, 32
  %v1688 = vpop.permute.xlu0 %1687
  %1689 = vrot.lane.b32.xlu0 %v1523, 32
  %v1690 = vpop.permute.xlu0 %1689
  %1691 = vrot.lane.b32.xlu0 %v1524, 32
  %v1692 = vpop.permute.xlu0 %1691
  %1693 = vrot.lane.b32.xlu0 %v1525, 32
  %v1694 = vpop.permute.xlu0 %1693
  %1695 = vrot.lane.b32.xlu0 %v1526, 32
  %v1696 = vpop.permute.xlu0 %1695
  %1697 = vrot.lane.b32.xlu0 %v1527, 32
  %v1698 = vpop.permute.xlu0 %1697
  %1699 = vrot.lane.b32.xlu0 %v1528, 32
  %v1700 = vpop.permute.xlu0 %1699
  %1701 = vrot.lane.b32.xlu0 %v1529, 32
  %v1702 = vpop.permute.xlu0 %1701
  %1703 = vrot.lane.b32.xlu0 %v1530, 32
  %v1704 = vpop.permute.xlu0 %1703
  %1705 = vrot.lane.b32.xlu0 %v1531, 32
  %v1706 = vpop.permute.xlu0 %1705
  %1707 = vrot.lane.b32.xlu0 %v1532, 32
  %v1708 = vpop.permute.xlu0 %1707
  %1709 = vrot.lane.b32.xlu0 %v1533, 32
  %v1710 = vpop.permute.xlu0 %1709
  %1711 = vrot.lane.b32.xlu0 %v1534, 32
  %v1712 = vpop.permute.xlu0 %1711
  %1713 = vrot.lane.b32.xlu0 %v1535, 32
  %v1714 = vpop.permute.xlu0 %1713
  %1715 = vrot.lane.b32.xlu0 %v1536, 32
  %v1716 = vpop.permute.xlu0 %1715
  %1717 = vrot.lane.b32.xlu0 %v1537, 32
  %v1718 = vpop.permute.xlu0 %1717
  %1719 = vrot.lane.b32.xlu0 %v1538, 32
  %v1720 = vpop.permute.xlu0 %1719
  %1721 = vrot.lane.b32.xlu0 %v1539, 32
  %v1722 = vpop.permute.xlu0 %1721
  %1723 = vrot.lane.b32.xlu0 %v1540, 32
  %v1724 = vpop.permute.xlu0 %1723
  %1725 = vrot.lane.b32.xlu0 %v1541, 32
  %v1726 = vpop.permute.xlu0 %1725
  %1727 = vrot.lane.b32.xlu0 %v1542, 32
  %v1728 = vpop.permute.xlu0 %1727
  %1729 = vrot.lane.b32.xlu0 %v1543, 32
  %v1730 = vpop.permute.xlu0 %1729
  %1731 = vrot.lane.b32.xlu0 %v1544, 32
  %v1732 = vpop.permute.xlu0 %1731
  %1733 = vrot.lane.b32.xlu0 %v1545, 32
  %v1734 = vpop.permute.xlu0 %1733
  %1735 = vrot.lane.b32.xlu0 %v1546, 32
  %v1736 = vpop.permute.xlu0 %1735
  %1737 = vrot.lane.b32.xlu0 %v1547, 32
  %v1738 = vpop.permute.xlu0 %1737
  %1739 = vrot.lane.b32.xlu0 %v1548, 32
  %v1740 = vpop.permute.xlu0 %1739
  %vm1805 = vcmask 326912
  %1806 = vst.msk [vmem:[#allocation2] sm:$0xff] %vm1805, %v1614
  %1807 = vst.msk [vmem:[#allocation2 + $0x8] sm:$0xff] %vm1805, %v1616
  %1808 = vst.msk [vmem:[#allocation2 + $0x10] sm:$0xff] %vm1805, %v1618
  %1809 = vst.msk [vmem:[#allocation2 + $0x18] sm:$0xff] %vm1805, %v1620
  %1810 = vst.msk [vmem:[#allocation2 + $0x20] sm:$0xff] %vm1805, %v1622
  %1811 = vst.msk [vmem:[#allocation2 + $0x28] sm:$0xff] %vm1805, %v1624
  %1812 = vst.msk [vmem:[#allocation2 + $0x30] sm:$0xff] %vm1805, %v1626
  %1813 = vst.msk [vmem:[#allocation2 + $0x38] sm:$0xff] %vm1805, %v1628
  %1814 = vst.msk [vmem:[#allocation2 + $0x40] sm:$0xff] %vm1805, %v1630
  %1815 = vst.msk [vmem:[#allocation2 + $0x48] sm:$0xff] %vm1805, %v1632
  %1816 = vst.msk [vmem:[#allocation2 + $0x50] sm:$0xff] %vm1805, %v1634
  %1817 = vst.msk [vmem:[#allocation2 + $0x58] sm:$0xff] %vm1805, %v1636
  %1818 = vst.msk [vmem:[#allocation2 + $0x60] sm:$0xff] %vm1805, %v1638
  %1819 = vst.msk [vmem:[#allocation2 + $0x68] sm:$0xff] %vm1805, %v1640
  %1820 = vst.msk [vmem:[#allocation2 + $0x70] sm:$0xff] %vm1805, %v1642
  %1821 = vst.msk [vmem:[#allocation2 + $0x78] sm:$0xff] %vm1805, %v1644
  %1822 = vst.msk [vmem:[#allocation2 + $0x80] sm:$0xff] %vm1805, %v1646
  %1823 = vst.msk [vmem:[#allocation2 + $0x88] sm:$0xff] %vm1805, %v1648
  %1824 = vst.msk [vmem:[#allocation2 + $0x90] sm:$0xff] %vm1805, %v1650
  %1825 = vst.msk [vmem:[#allocation2 + $0x98] sm:$0xff] %vm1805, %v1652
  %1826 = vst.msk [vmem:[#allocation2 + $0xa0] sm:$0xff] %vm1805, %v1654
  %1827 = vst.msk [vmem:[#allocation2 + $0xa8] sm:$0xff] %vm1805, %v1656
  %1828 = vst.msk [vmem:[#allocation2 + $0xb0] sm:$0xff] %vm1805, %v1658
  %1829 = vst.msk [vmem:[#allocation2 + $0xb8] sm:$0xff] %vm1805, %v1660
  %1830 = vst.msk [vmem:[#allocation2 + $0xc0] sm:$0xff] %vm1805, %v1662
  %1831 = vst.msk [vmem:[#allocation2 + $0xc8] sm:$0xff] %vm1805, %v1664
  %1832 = vst.msk [vmem:[#allocation2 + $0xd0] sm:$0xff] %vm1805, %v1666
  %1833 = vst.msk [vmem:[#allocation2 + $0xd8] sm:$0xff] %vm1805, %v1668
  %1834 = vst.msk [vmem:[#allocation2 + $0xe0] sm:$0xff] %vm1805, %v1670
  %1835 = vst.msk [vmem:[#allocation2 + $0xe8] sm:$0xff] %vm1805, %v1672
  %1836 = vst.msk [vmem:[#allocation2 + $0xf0] sm:$0xff] %vm1805, %v1674
  %1837 = vst.msk [vmem:[#allocation2 + $0xf8] sm:$0xff] %vm1805, %v1676
  %1838 = vst.msk [vmem:[#allocation2 + $0x100] sm:$0xff] %vm1805, %v1678
  %1839 = vst.msk [vmem:[#allocation2 + $0x108] sm:$0xff] %vm1805, %v1680
  %1840 = vst.msk [vmem:[#allocation2 + $0x110] sm:$0xff] %vm1805, %v1682
  %1841 = vst.msk [vmem:[#allocation2 + $0x118] sm:$0xff] %vm1805, %v1684
  %1842 = vst.msk [vmem:[#allocation2 + $0x120] sm:$0xff] %vm1805, %v1686
  %1843 = vst.msk [vmem:[#allocation2 + $0x128] sm:$0xff] %vm1805, %v1688
  %1844 = vst.msk [vmem:[#allocation2 + $0x130] sm:$0xff] %vm1805, %v1690
  %1845 = vst.msk [vmem:[#allocation2 + $0x138] sm:$0xff] %vm1805, %v1692
  %1846 = vst.msk [vmem:[#allocation2 + $0x140] sm:$0xff] %vm1805, %v1694
  %1847 = vst.msk [vmem:[#allocation2 + $0x148] sm:$0xff] %vm1805, %v1696
  %1848 = vst.msk [vmem:[#allocation2 + $0x150] sm:$0xff] %vm1805, %v1698
  %1849 = vst.msk [vmem:[#allocation2 + $0x158] sm:$0xff] %vm1805, %v1700
  %1850 = vst.msk [vmem:[#allocation2 + $0x160] sm:$0xff] %vm1805, %v1702
  %1851 = vst.msk [vmem:[#allocation2 + $0x168] sm:$0xff] %vm1805, %v1704
  %1852 = vst.msk [vmem:[#allocation2 + $0x170] sm:$0xff] %vm1805, %v1706
  %1853 = vst.msk [vmem:[#allocation2 + $0x178] sm:$0xff] %vm1805, %v1708
  %1854 = vst.msk [vmem:[#allocation2 + $0x180] sm:$0xff] %vm1805, %v1710
  %1855 = vst.msk [vmem:[#allocation2 + $0x188] sm:$0xff] %vm1805, %v1712
  %1856 = vst.msk [vmem:[#allocation2 + $0x190] sm:$0xff] %vm1805, %v1714
  %1857 = vst.msk [vmem:[#allocation2 + $0x198] sm:$0xff] %vm1805, %v1716
  %1858 = vst.msk [vmem:[#allocation2 + $0x1a0] sm:$0xff] %vm1805, %v1718
  %1859 = vst.msk [vmem:[#allocation2 + $0x1a8] sm:$0xff] %vm1805, %v1720
  %1860 = vst.msk [vmem:[#allocation2 + $0x1b0] sm:$0xff] %vm1805, %v1722
  %1861 = vst.msk [vmem:[#allocation2 + $0x1b8] sm:$0xff] %vm1805, %v1724
  %1862 = vst.msk [vmem:[#allocation2 + $0x1c0] sm:$0xff] %vm1805, %v1726
  %1863 = vst.msk [vmem:[#allocation2 + $0x1c8] sm:$0xff] %vm1805, %v1728
  %1864 = vst.msk [vmem:[#allocation2 + $0x1d0] sm:$0xff] %vm1805, %v1730
  %1865 = vst.msk [vmem:[#allocation2 + $0x1d8] sm:$0xff] %vm1805, %v1732
  %1866 = vst.msk [vmem:[#allocation2 + $0x1e0] sm:$0xff] %vm1805, %v1734
  %1867 = vst.msk [vmem:[#allocation2 + $0x1e8] sm:$0xff] %vm1805, %v1736
  %1868 = vst.msk [vmem:[#allocation2 + $0x1f0] sm:$0xff] %vm1805, %v1738
  %1869 = vst.msk [vmem:[#allocation2 + $0x1f8] sm:$0xff] %vm1805, %v1740
  %v1870 = vld [vmem:[%s0 + $0x1] sm:$0xff]
  %v1871 = vld [vmem:[%s0 + $0x9] sm:$0x7f]
  %v1872 = vld [vmem:[%s0 + $0x11] sm:$0xff]
  %v1873 = vld [vmem:[%s0 + $0x19] sm:$0x7f]
  %v1874 = vld [vmem:[%s0 + $0x21] sm:$0xff]
  %v1875 = vld [vmem:[%s0 + $0x29] sm:$0x7f]
  %v1876 = vld [vmem:[%s0 + $0x31] sm:$0xff]
  %v1877 = vld [vmem:[%s0 + $0x39] sm:$0x7f]
  %v1878 = vld [vmem:[%s0 + $0x41] sm:$0xff]
  %v1879 = vld [vmem:[%s0 + $0x49] sm:$0x7f]
  %v1880 = vld [vmem:[%s0 + $0x51] sm:$0xff]
  %v1881 = vld [vmem:[%s0 + $0x59] sm:$0x7f]
  %v1882 = vld [vmem:[%s0 + $0x61] sm:$0xff]
  %v1883 = vld [vmem:[%s0 + $0x69] sm:$0x7f]
  %v1884 = vld [vmem:[%s0 + $0x71] sm:$0xff]
  %v1885 = vld [vmem:[%s0 + $0x79] sm:$0x7f]
  %v1886 = vld [vmem:[%s0 + $0x81] sm:$0xff]
  %v1887 = vld [vmem:[%s0 + $0x89] sm:$0x7f]
  %v1888 = vld [vmem:[%s0 + $0x91] sm:$0xff]
  %v1889 = vld [vmem:[%s0 + $0x99] sm:$0x7f]
  %v1890 = vld [vmem:[%s0 + $0xa1] sm:$0xff]
  %v1891 = vld [vmem:[%s0 + $0xa9] sm:$0x7f]
  %v1892 = vld [vmem:[%s0 + $0xb1] sm:$0xff]
  %v1893 = vld [vmem:[%s0 + $0xb9] sm:$0x7f]
  %v1894 = vld [vmem:[%s0 + $0xc1] sm:$0xff]
  %v1895 = vld [vmem:[%s0 + $0xc9] sm:$0x7f]
  %v1896 = vld [vmem:[%s0 + $0xd1] sm:$0xff]
  %v1897 = vld [vmem:[%s0 + $0xd9] sm:$0x7f]
  %v1898 = vld [vmem:[%s0 + $0xe1] sm:$0xff]
  %v1899 = vld [vmem:[%s0 + $0xe9] sm:$0x7f]
  %v1900 = vld [vmem:[%s0 + $0xf1] sm:$0xff]
  %v1901 = vld [vmem:[%s0 + $0xf9] sm:$0x7f]
  %v1902 = vld [vmem:[%s0 + $0x101] sm:$0xff]
  %v1903 = vld [vmem:[%s0 + $0x109] sm:$0x7f]
  %v1904 = vld [vmem:[%s0 + $0x111] sm:$0xff]
  %v1905 = vld [vmem:[%s0 + $0x119] sm:$0x7f]
  %v1906 = vld [vmem:[%s0 + $0x121] sm:$0xff]
  %v1907 = vld [vmem:[%s0 + $0x129] sm:$0x7f]
  %v1908 = vld [vmem:[%s0 + $0x131] sm:$0xff]
  %v1909 = vld [vmem:[%s0 + $0x139] sm:$0x7f]
  %v1910 = vld [vmem:[%s0 + $0x141] sm:$0xff]
  %v1911 = vld [vmem:[%s0 + $0x149] sm:$0x7f]
  %v1912 = vld [vmem:[%s0 + $0x151] sm:$0xff]
  %v1913 = vld [vmem:[%s0 + $0x159] sm:$0x7f]
  %v1914 = vld [vmem:[%s0 + $0x161] sm:$0xff]
  %v1915 = vld [vmem:[%s0 + $0x169] sm:$0x7f]
  %v1916 = vld [vmem:[%s0 + $0x171] sm:$0xff]
  %v1917 = vld [vmem:[%s0 + $0x179] sm:$0x7f]
  %v1918 = vld [vmem:[%s0 + $0x181] sm:$0xff]
  %v1919 = vld [vmem:[%s0 + $0x189] sm:$0x7f]
  %v1920 = vld [vmem:[%s0 + $0x191] sm:$0xff]
  %v1921 = vld [vmem:[%s0 + $0x199] sm:$0x7f]
  %v1922 = vld [vmem:[%s0 + $0x1a1] sm:$0xff]
  %v1923 = vld [vmem:[%s0 + $0x1a9] sm:$0x7f]
  %v1924 = vld [vmem:[%s0 + $0x1b1] sm:$0xff]
  %v1925 = vld [vmem:[%s0 + $0x1b9] sm:$0x7f]
  %v1926 = vld [vmem:[%s0 + $0x1c1] sm:$0xff]
  %v1927 = vld [vmem:[%s0 + $0x1c9] sm:$0x7f]
  %v1928 = vld [vmem:[%s0 + $0x1d1] sm:$0xff]
  %v1929 = vld [vmem:[%s0 + $0x1d9] sm:$0x7f]
  %v1930 = vld [vmem:[%s0 + $0x1e1] sm:$0xff]
  %v1931 = vld [vmem:[%s0 + $0x1e9] sm:$0x7f]
  %v1932 = vld [vmem:[%s0 + $0x1f1] sm:$0xff]
  %v1933 = vld [vmem:[%s0 + $0x1f9] sm:$0x7f]
  %1998 = vrot.lane.b32.xlu0 %v1870, 40
  %v1999 = vpop.permute.xlu0 %1998
  %2000 = vrot.lane.b32.xlu0 %v1871, 40
  %v2001 = vpop.permute.xlu0 %2000
  %2002 = vrot.lane.b32.xlu0 %v1872, 40
  %v2003 = vpop.permute.xlu0 %2002
  %2004 = vrot.lane.b32.xlu0 %v1873, 40
  %v2005 = vpop.permute.xlu0 %2004
  %2006 = vrot.lane.b32.xlu0 %v1874, 40
  %v2007 = vpop.permute.xlu0 %2006
  %2008 = vrot.lane.b32.xlu0 %v1875, 40
  %v2009 = vpop.permute.xlu0 %2008
  %2010 = vrot.lane.b32.xlu0 %v1876, 40
  %v2011 = vpop.permute.xlu0 %2010
  %2012 = vrot.lane.b32.xlu0 %v1877, 40
  %v2013 = vpop.permute.xlu0 %2012
  %2014 = vrot.lane.b32.xlu0 %v1878, 40
  %v2015 = vpop.permute.xlu0 %2014
  %2016 = vrot.lane.b32.xlu0 %v1879, 40
  %v2017 = vpop.permute.xlu0 %2016
  %2018 = vrot.lane.b32.xlu0 %v1880, 40
  %v2019 = vpop.permute.xlu0 %2018
  %2020 = vrot.lane.b32.xlu0 %v1881, 40
  %v2021 = vpop.permute.xlu0 %2020
  %2022 = vrot.lane.b32.xlu0 %v1882, 40
  %v2023 = vpop.permute.xlu0 %2022
  %2024 = vrot.lane.b32.xlu0 %v1883, 40
  %v2025 = vpop.permute.xlu0 %2024
  %2026 = vrot.lane.b32.xlu0 %v1884, 40
  %v2027 = vpop.permute.xlu0 %2026
  %2028 = vrot.lane.b32.xlu0 %v1885, 40
  %v2029 = vpop.permute.xlu0 %2028
  %2030 = vrot.lane.b32.xlu0 %v1886, 40
  %v2031 = vpop.permute.xlu0 %2030
  %2032 = vrot.lane.b32.xlu0 %v1887, 40
  %v2033 = vpop.permute.xlu0 %2032
  %2034 = vrot.lane.b32.xlu0 %v1888, 40
  %v2035 = vpop.permute.xlu0 %2034
  %2036 = vrot.lane.b32.xlu0 %v1889, 40
  %v2037 = vpop.permute.xlu0 %2036
  %2038 = vrot.lane.b32.xlu0 %v1890, 40
  %v2039 = vpop.permute.xlu0 %2038
  %2040 = vrot.lane.b32.xlu0 %v1891, 40
  %v2041 = vpop.permute.xlu0 %2040
  %2042 = vrot.lane.b32.xlu0 %v1892, 40
  %v2043 = vpop.permute.xlu0 %2042
  %2044 = vrot.lane.b32.xlu0 %v1893, 40
  %v2045 = vpop.permute.xlu0 %2044
  %2046 = vrot.lane.b32.xlu0 %v1894, 40
  %v2047 = vpop.permute.xlu0 %2046
  %2048 = vrot.lane.b32.xlu0 %v1895, 40
  %v2049 = vpop.permute.xlu0 %2048
  %2050 = vrot.lane.b32.xlu0 %v1896, 40
  %v2051 = vpop.permute.xlu0 %2050
  %2052 = vrot.lane.b32.xlu0 %v1897, 40
  %v2053 = vpop.permute.xlu0 %2052
  %2054 = vrot.lane.b32.xlu0 %v1898, 40
  %v2055 = vpop.permute.xlu0 %2054
  %2056 = vrot.lane.b32.xlu0 %v1899, 40
  %v2057 = vpop.permute.xlu0 %2056
  %2058 = vrot.lane.b32.xlu0 %v1900, 40
  %v2059 = vpop.permute.xlu0 %2058
  %2060 = vrot.lane.b32.xlu0 %v1901, 40
  %v2061 = vpop.permute.xlu0 %2060
  %2062 = vrot.lane.b32.xlu0 %v1902, 40
  %v2063 = vpop.permute.xlu0 %2062
  %2064 = vrot.lane.b32.xlu0 %v1903, 40
  %v2065 = vpop.permute.xlu0 %2064
  %2066 = vrot.lane.b32.xlu0 %v1904, 40
  %v2067 = vpop.permute.xlu0 %2066
  %2068 = vrot.lane.b32.xlu0 %v1905, 40
  %v2069 = vpop.permute.xlu0 %2068
  %2070 = vrot.lane.b32.xlu0 %v1906, 40
  %v2071 = vpop.permute.xlu0 %2070
  %2072 = vrot.lane.b32.xlu0 %v1907, 40
  %v2073 = vpop.permute.xlu0 %2072
  %2074 = vrot.lane.b32.xlu0 %v1908, 40
  %v2075 = vpop.permute.xlu0 %2074
  %2076 = vrot.lane.b32.xlu0 %v1909, 40
  %v2077 = vpop.permute.xlu0 %2076
  %2078 = vrot.lane.b32.xlu0 %v1910, 40
  %v2079 = vpop.permute.xlu0 %2078
  %2080 = vrot.lane.b32.xlu0 %v1911, 40
  %v2081 = vpop.permute.xlu0 %2080
  %2082 = vrot.lane.b32.xlu0 %v1912, 40
  %v2083 = vpop.permute.xlu0 %2082
  %2084 = vrot.lane.b32.xlu0 %v1913, 40
  %v2085 = vpop.permute.xlu0 %2084
  %2086 = vrot.lane.b32.xlu0 %v1914, 40
  %v2087 = vpop.permute.xlu0 %2086
  %2088 = vrot.lane.b32.xlu0 %v1915, 40
  %v2089 = vpop.permute.xlu0 %2088
  %2090 = vrot.lane.b32.xlu0 %v1916, 40
  %v2091 = vpop.permute.xlu0 %2090
  %2092 = vrot.lane.b32.xlu0 %v1917, 40
  %v2093 = vpop.permute.xlu0 %2092
  %2094 = vrot.lane.b32.xlu0 %v1918, 40
  %v2095 = vpop.permute.xlu0 %2094
  %2096 = vrot.lane.b32.xlu0 %v1919, 40
  %v2097 = vpop.permute.xlu0 %2096
  %2098 = vrot.lane.b32.xlu0 %v1920, 40
  %v2099 = vpop.permute.xlu0 %2098
  %2100 = vrot.lane.b32.xlu0 %v1921, 40
  %v2101 = vpop.permute.xlu0 %2100
  %2102 = vrot.lane.b32.xlu0 %v1922, 40
  %v2103 = vpop.permute.xlu0 %2102
  %2104 = vrot.lane.b32.xlu0 %v1923, 40
  %v2105 = vpop.permute.xlu0 %2104
  %2106 = vrot.lane.b32.xlu0 %v1924, 40
  %v2107 = vpop.permute.xlu0 %2106
  %2108 = vrot.lane.b32.xlu0 %v1925, 40
  %v2109 = vpop.permute.xlu0 %2108
  %2110 = vrot.lane.b32.xlu0 %v1926, 40
  %v2111 = vpop.permute.xlu0 %2110
  %2112 = vrot.lane.b32.xlu0 %v1927, 40
  %v2113 = vpop.permute.xlu0 %2112
  %2114 = vrot.lane.b32.xlu0 %v1928, 40
  %v2115 = vpop.permute.xlu0 %2114
  %2116 = vrot.lane.b32.xlu0 %v1929, 40
  %v2117 = vpop.permute.xlu0 %2116
  %2118 = vrot.lane.b32.xlu0 %v1930, 40
  %v2119 = vpop.permute.xlu0 %2118
  %2120 = vrot.lane.b32.xlu0 %v1931, 40
  %v2121 = vpop.permute.xlu0 %2120
  %2122 = vrot.lane.b32.xlu0 %v1932, 40
  %v2123 = vpop.permute.xlu0 %2122
  %2124 = vrot.lane.b32.xlu0 %v1933, 40
  %v2125 = vpop.permute.xlu0 %2124
  %vm2190 = vcmask 392512
  %2191 = vst.msk [vmem:[#allocation2] sm:$0xff] %vm2190, %v1999
  %vm2192 = vcmask 391488
  %2193 = vst.msk [vmem:[#allocation2 + $0x8] sm:$0x7f] %vm2192, %v2001
  %2194 = vst.msk [vmem:[#allocation2 + $0x10] sm:$0xff] %vm2190, %v2003
  %2195 = vst.msk [vmem:[#allocation2 + $0x18] sm:$0x7f] %vm2192, %v2005
  %2196 = vst.msk [vmem:[#allocation2 + $0x20] sm:$0xff] %vm2190, %v2007
  %2197 = vst.msk [vmem:[#allocation2 + $0x28] sm:$0x7f] %vm2192, %v2009
  %2198 = vst.msk [vmem:[#allocation2 + $0x30] sm:$0xff] %vm2190, %v2011
  %2199 = vst.msk [vmem:[#allocation2 + $0x38] sm:$0x7f] %vm2192, %v2013
  %2200 = vst.msk [vmem:[#allocation2 + $0x40] sm:$0xff] %vm2190, %v2015
  %2201 = vst.msk [vmem:[#allocation2 + $0x48] sm:$0x7f] %vm2192, %v2017
  %2202 = vst.msk [vmem:[#allocation2 + $0x50] sm:$0xff] %vm2190, %v2019
  %2203 = vst.msk [vmem:[#allocation2 + $0x58] sm:$0x7f] %vm2192, %v2021
  %2204 = vst.msk [vmem:[#allocation2 + $0x60] sm:$0xff] %vm2190, %v2023
  %2205 = vst.msk [vmem:[#allocation2 + $0x68] sm:$0x7f] %vm2192, %v2025
  %2206 = vst.msk [vmem:[#allocation2 + $0x70] sm:$0xff] %vm2190, %v2027
  %2207 = vst.msk [vmem:[#allocation2 + $0x78] sm:$0x7f] %vm2192, %v2029
  %2208 = vst.msk [vmem:[#allocation2 + $0x80] sm:$0xff] %vm2190, %v2031
  %2209 = vst.msk [vmem:[#allocation2 + $0x88] sm:$0x7f] %vm2192, %v2033
  %2210 = vst.msk [vmem:[#allocation2 + $0x90] sm:$0xff] %vm2190, %v2035
  %2211 = vst.msk [vmem:[#allocation2 + $0x98] sm:$0x7f] %vm2192, %v2037
  %2212 = vst.msk [vmem:[#allocation2 + $0xa0] sm:$0xff] %vm2190, %v2039
  %2213 = vst.msk [vmem:[#allocation2 + $0xa8] sm:$0x7f] %vm2192, %v2041
  %2214 = vst.msk [vmem:[#allocation2 + $0xb0] sm:$0xff] %vm2190, %v2043
  %2215 = vst.msk [vmem:[#allocation2 + $0xb8] sm:$0x7f] %vm2192, %v2045
  %2216 = vst.msk [vmem:[#allocation2 + $0xc0] sm:$0xff] %vm2190, %v2047
  %2217 = vst.msk [vmem:[#allocation2 + $0xc8] sm:$0x7f] %vm2192, %v2049
  %2218 = vst.msk [vmem:[#allocation2 + $0xd0] sm:$0xff] %vm2190, %v2051
  %2219 = vst.msk [vmem:[#allocation2 + $0xd8] sm:$0x7f] %vm2192, %v2053
  %2220 = vst.msk [vmem:[#allocation2 + $0xe0] sm:$0xff] %vm2190, %v2055
  %2221 = vst.msk [vmem:[#allocation2 + $0xe8] sm:$0x7f] %vm2192, %v2057
  %2222 = vst.msk [vmem:[#allocation2 + $0xf0] sm:$0xff] %vm2190, %v2059
  %2223 = vst.msk [vmem:[#allocation2 + $0xf8] sm:$0x7f] %vm2192, %v2061
  %2224 = vst.msk [vmem:[#allocation2 + $0x100] sm:$0xff] %vm2190, %v2063
  %2225 = vst.msk [vmem:[#allocation2 + $0x108] sm:$0x7f] %vm2192, %v2065
  %2226 = vst.msk [vmem:[#allocation2 + $0x110] sm:$0xff] %vm2190, %v2067
  %2227 = vst.msk [vmem:[#allocation2 + $0x118] sm:$0x7f] %vm2192, %v2069
  %2228 = vst.msk [vmem:[#allocation2 + $0x120] sm:$0xff] %vm2190, %v2071
  %2229 = vst.msk [vmem:[#allocation2 + $0x128] sm:$0x7f] %vm2192, %v2073
  %2230 = vst.msk [vmem:[#allocation2 + $0x130] sm:$0xff] %vm2190, %v2075
  %2231 = vst.msk [vmem:[#allocation2 + $0x138] sm:$0x7f] %vm2192, %v2077
  %2232 = vst.msk [vmem:[#allocation2 + $0x140] sm:$0xff] %vm2190, %v2079
  %2233 = vst.msk [vmem:[#allocation2 + $0x148] sm:$0x7f] %vm2192, %v2081
  %2234 = vst.msk [vmem:[#allocation2 + $0x150] sm:$0xff] %vm2190, %v2083
  %2235 = vst.msk [vmem:[#allocation2 + $0x158] sm:$0x7f] %vm2192, %v2085
  %2236 = vst.msk [vmem:[#allocation2 + $0x160] sm:$0xff] %vm2190, %v2087
  %2237 = vst.msk [vmem:[#allocation2 + $0x168] sm:$0x7f] %vm2192, %v2089
  %2238 = vst.msk [vmem:[#allocation2 + $0x170] sm:$0xff] %vm2190, %v2091
  %2239 = vst.msk [vmem:[#allocation2 + $0x178] sm:$0x7f] %vm2192, %v2093
  %2240 = vst.msk [vmem:[#allocation2 + $0x180] sm:$0xff] %vm2190, %v2095
  %2241 = vst.msk [vmem:[#allocation2 + $0x188] sm:$0x7f] %vm2192, %v2097
  %2242 = vst.msk [vmem:[#allocation2 + $0x190] sm:$0xff] %vm2190, %v2099
  %2243 = vst.msk [vmem:[#allocation2 + $0x198] sm:$0x7f] %vm2192, %v2101
  %2244 = vst.msk [vmem:[#allocation2 + $0x1a0] sm:$0xff] %vm2190, %v2103
  %2245 = vst.msk [vmem:[#allocation2 + $0x1a8] sm:$0x7f] %vm2192, %v2105
  %2246 = vst.msk [vmem:[#allocation2 + $0x1b0] sm:$0xff] %vm2190, %v2107
  %2247 = vst.msk [vmem:[#allocation2 + $0x1b8] sm:$0x7f] %vm2192, %v2109
  %2248 = vst.msk [vmem:[#allocation2 + $0x1c0] sm:$0xff] %vm2190, %v2111
  %2249 = vst.msk [vmem:[#allocation2 + $0x1c8] sm:$0x7f] %vm2192, %v2113
  %2250 = vst.msk [vmem:[#allocation2 + $0x1d0] sm:$0xff] %vm2190, %v2115
  %2251 = vst.msk [vmem:[#allocation2 + $0x1d8] sm:$0x7f] %vm2192, %v2117
  %2252 = vst.msk [vmem:[#allocation2 + $0x1e0] sm:$0xff] %vm2190, %v2119
  %2253 = vst.msk [vmem:[#allocation2 + $0x1e8] sm:$0x7f] %vm2192, %v2121
  %2254 = vst.msk [vmem:[#allocation2 + $0x1f0] sm:$0xff] %vm2190, %v2123
  %2255 = vst.msk [vmem:[#allocation2 + $0x1f8] sm:$0x7f] %vm2192, %v2125
  %s2256 = scalar_lea.vmem %s0, 16
  %v2257 = vld [vmem:[%s2256] sm:$0xff]
  %v2258 = vld [vmem:[%s2256 + $0x8] sm:$0x7f]
  %v2259 = vld [vmem:[%s2256 + $0x10] sm:$0xff]
  %v2260 = vld [vmem:[%s2256 + $0x18] sm:$0x7f]
  %v2261 = vld [vmem:[%s2256 + $0x20] sm:$0xff]
  %v2262 = vld [vmem:[%s2256 + $0x28] sm:$0x7f]
  %v2263 = vld [vmem:[%s2256 + $0x30] sm:$0xff]
  %v2264 = vld [vmem:[%s2256 + $0x38] sm:$0x7f]
  %v2265 = vld [vmem:[%s2256 + $0x40] sm:$0xff]
  %v2266 = vld [vmem:[%s2256 + $0x48] sm:$0x7f]
  %v2267 = vld [vmem:[%s2256 + $0x50] sm:$0xff]
  %v2268 = vld [vmem:[%s2256 + $0x58] sm:$0x7f]
  %v2269 = vld [vmem:[%s2256 + $0x60] sm:$0xff]
  %v2270 = vld [vmem:[%s2256 + $0x68] sm:$0x7f]
  %v2271 = vld [vmem:[%s2256 + $0x70] sm:$0xff]
  %v2272 = vld [vmem:[%s2256 + $0x78] sm:$0x7f]
  %v2273 = vld [vmem:[%s2256 + $0x80] sm:$0xff]
  %v2274 = vld [vmem:[%s2256 + $0x88] sm:$0x7f]
  %v2275 = vld [vmem:[%s2256 + $0x90] sm:$0xff]
  %v2276 = vld [vmem:[%s2256 + $0x98] sm:$0x7f]
  %v2277 = vld [vmem:[%s2256 + $0xa0] sm:$0xff]
  %v2278 = vld [vmem:[%s2256 + $0xa8] sm:$0x7f]
  %v2279 = vld [vmem:[%s2256 + $0xb0] sm:$0xff]
  %v2280 = vld [vmem:[%s2256 + $0xb8] sm:$0x7f]
  %v2281 = vld [vmem:[%s2256 + $0xc0] sm:$0xff]
  %v2282 = vld [vmem:[%s2256 + $0xc8] sm:$0x7f]
  %v2283 = vld [vmem:[%s2256 + $0xd0] sm:$0xff]
  %v2284 = vld [vmem:[%s2256 + $0xd8] sm:$0x7f]
  %v2285 = vld [vmem:[%s2256 + $0xe0] sm:$0xff]
  %v2286 = vld [vmem:[%s2256 + $0xe8] sm:$0x7f]
  %v2287 = vld [vmem:[%s2256 + $0x100] sm:$0xff]
  %v2288 = vld [vmem:[%s2256 + $0x108] sm:$0x7f]
  %v2289 = vld [vmem:[%s2256 + $0x110] sm:$0xff]
  %v2290 = vld [vmem:[%s2256 + $0x118] sm:$0x7f]
  %v2291 = vld [vmem:[%s2256 + $0x120] sm:$0xff]
  %v2292 = vld [vmem:[%s2256 + $0x128] sm:$0x7f]
  %v2293 = vld [vmem:[%s2256 + $0x130] sm:$0xff]
  %v2294 = vld [vmem:[%s2256 + $0x138] sm:$0x7f]
  %v2295 = vld [vmem:[%s2256 + $0x140] sm:$0xff]
  %v2296 = vld [vmem:[%s2256 + $0x148] sm:$0x7f]
  %v2297 = vld [vmem:[%s2256 + $0x150] sm:$0xff]
  %v2298 = vld [vmem:[%s2256 + $0x158] sm:$0x7f]
  %v2299 = vld [vmem:[%s2256 + $0x160] sm:$0xff]
  %v2300 = vld [vmem:[%s2256 + $0x168] sm:$0x7f]
  %v2301 = vld [vmem:[%s2256 + $0x170] sm:$0xff]
  %v2302 = vld [vmem:[%s2256 + $0x178] sm:$0x7f]
  %v2303 = vld [vmem:[%s2256 + $0x180] sm:$0xff]
  %v2304 = vld [vmem:[%s2256 + $0x188] sm:$0x7f]
  %v2305 = vld [vmem:[%s2256 + $0x190] sm:$0xff]
  %v2306 = vld [vmem:[%s2256 + $0x198] sm:$0x7f]
  %v2307 = vld [vmem:[%s2256 + $0x1a0] sm:$0xff]
  %v2308 = vld [vmem:[%s2256 + $0x1a8] sm:$0x7f]
  %v2309 = vld [vmem:[%s2256 + $0x1b0] sm:$0xff]
  %v2310 = vld [vmem:[%s2256 + $0x1b8] sm:$0x7f]
  %v2311 = vld [vmem:[%s2256 + $0x1c0] sm:$0xff]
  %v2312 = vld [vmem:[%s2256 + $0x1c8] sm:$0x7f]
  %v2313 = vld [vmem:[%s2256 + $0x1d0] sm:$0xff]
  %v2314 = vld [vmem:[%s2256 + $0x1d8] sm:$0x7f]
  %v2315 = vld [vmem:[%s2256 + $0x1e0] sm:$0xff]
  %v2316 = vld [vmem:[%s2256 + $0x1e8] sm:$0x7f]
  %2377 = vrot.lane.b32.xlu0 %v2257, 48
  %v2378 = vpop.permute.xlu0 %2377
  %2379 = vrot.lane.b32.xlu0 %v2258, 48
  %v2380 = vpop.permute.xlu0 %2379
  %2381 = vrot.lane.b32.xlu0 %v2259, 48
  %v2382 = vpop.permute.xlu0 %2381
  %2383 = vrot.lane.b32.xlu0 %v2260, 48
  %v2384 = vpop.permute.xlu0 %2383
  %2385 = vrot.lane.b32.xlu0 %v2261, 48
  %v2386 = vpop.permute.xlu0 %2385
  %2387 = vrot.lane.b32.xlu0 %v2262, 48
  %v2388 = vpop.permute.xlu0 %2387
  %2389 = vrot.lane.b32.xlu0 %v2263, 48
  %v2390 = vpop.permute.xlu0 %2389
  %2391 = vrot.lane.b32.xlu0 %v2264, 48
  %v2392 = vpop.permute.xlu0 %2391
  %2393 = vrot.lane.b32.xlu0 %v2265, 48
  %v2394 = vpop.permute.xlu0 %2393
  %2395 = vrot.lane.b32.xlu0 %v2266, 48
  %v2396 = vpop.permute.xlu0 %2395
  %2397 = vrot.lane.b32.xlu0 %v2267, 48
  %v2398 = vpop.permute.xlu0 %2397
  %2399 = vrot.lane.b32.xlu0 %v2268, 48
  %v2400 = vpop.permute.xlu0 %2399
  %2401 = vrot.lane.b32.xlu0 %v2269, 48
  %v2402 = vpop.permute.xlu0 %2401
  %2403 = vrot.lane.b32.xlu0 %v2270, 48
  %v2404 = vpop.permute.xlu0 %2403
  %2405 = vrot.lane.b32.xlu0 %v2271, 48
  %v2406 = vpop.permute.xlu0 %2405
  %2407 = vrot.lane.b32.xlu0 %v2272, 48
  %v2408 = vpop.permute.xlu0 %2407
  %2409 = vrot.lane.b32.xlu0 %v2273, 48
  %v2410 = vpop.permute.xlu0 %2409
  %2411 = vrot.lane.b32.xlu0 %v2274, 48
  %v2412 = vpop.permute.xlu0 %2411
  %2413 = vrot.lane.b32.xlu0 %v2275, 48
  %v2414 = vpop.permute.xlu0 %2413
  %2415 = vrot.lane.b32.xlu0 %v2276, 48
  %v2416 = vpop.permute.xlu0 %2415
  %2417 = vrot.lane.b32.xlu0 %v2277, 48
  %v2418 = vpop.permute.xlu0 %2417
  %2419 = vrot.lane.b32.xlu0 %v2278, 48
  %v2420 = vpop.permute.xlu0 %2419
  %2421 = vrot.lane.b32.xlu0 %v2279, 48
  %v2422 = vpop.permute.xlu0 %2421
  %2423 = vrot.lane.b32.xlu0 %v2280, 48
  %v2424 = vpop.permute.xlu0 %2423
  %2425 = vrot.lane.b32.xlu0 %v2281, 48
  %v2426 = vpop.permute.xlu0 %2425
  %2427 = vrot.lane.b32.xlu0 %v2282, 48
  %v2428 = vpop.permute.xlu0 %2427
  %2429 = vrot.lane.b32.xlu0 %v2283, 48
  %v2430 = vpop.permute.xlu0 %2429
  %2431 = vrot.lane.b32.xlu0 %v2284, 48
  %v2432 = vpop.permute.xlu0 %2431
  %2433 = vrot.lane.b32.xlu0 %v2285, 48
  %v2434 = vpop.permute.xlu0 %2433
  %2435 = vrot.lane.b32.xlu0 %v2286, 48
  %v2436 = vpop.permute.xlu0 %2435
  %2437 = vrot.lane.b32.xlu0 %v2287, 48
  %v2438 = vpop.permute.xlu0 %2437
  %2439 = vrot.lane.b32.xlu0 %v2288, 48
  %v2440 = vpop.permute.xlu0 %2439
  %2441 = vrot.lane.b32.xlu0 %v2289, 48
  %v2442 = vpop.permute.xlu0 %2441
  %2443 = vrot.lane.b32.xlu0 %v2290, 48
  %v2444 = vpop.permute.xlu0 %2443
  %2445 = vrot.lane.b32.xlu0 %v2291, 48
  %v2446 = vpop.permute.xlu0 %2445
  %2447 = vrot.lane.b32.xlu0 %v2292, 48
  %v2448 = vpop.permute.xlu0 %2447
  %2449 = vrot.lane.b32.xlu0 %v2293, 48
  %v2450 = vpop.permute.xlu0 %2449
  %2451 = vrot.lane.b32.xlu0 %v2294, 48
  %v2452 = vpop.permute.xlu0 %2451
  %2453 = vrot.lane.b32.xlu0 %v2295, 48
  %v2454 = vpop.permute.xlu0 %2453
  %2455 = vrot.lane.b32.xlu0 %v2296, 48
  %v2456 = vpop.permute.xlu0 %2455
  %2457 = vrot.lane.b32.xlu0 %v2297, 48
  %v2458 = vpop.permute.xlu0 %2457
  %2459 = vrot.lane.b32.xlu0 %v2298, 48
  %v2460 = vpop.permute.xlu0 %2459
  %2461 = vrot.lane.b32.xlu0 %v2299, 48
  %v2462 = vpop.permute.xlu0 %2461
  %2463 = vrot.lane.b32.xlu0 %v2300, 48
  %v2464 = vpop.permute.xlu0 %2463
  %2465 = vrot.lane.b32.xlu0 %v2301, 48
  %v2466 = vpop.permute.xlu0 %2465
  %2467 = vrot.lane.b32.xlu0 %v2302, 48
  %v2468 = vpop.permute.xlu0 %2467
  %2469 = vrot.lane.b32.xlu0 %v2303, 48
  %v2470 = vpop.permute.xlu0 %2469
  %2471 = vrot.lane.b32.xlu0 %v2304, 48
  %v2472 = vpop.permute.xlu0 %2471
  %2473 = vrot.lane.b32.xlu0 %v2305, 48
  %v2474 = vpop.permute.xlu0 %2473
  %2475 = vrot.lane.b32.xlu0 %v2306, 48
  %v2476 = vpop.permute.xlu0 %2475
  %2477 = vrot.lane.b32.xlu0 %v2307, 48
  %v2478 = vpop.permute.xlu0 %2477
  %2479 = vrot.lane.b32.xlu0 %v2308, 48
  %v2480 = vpop.permute.xlu0 %2479
  %2481 = vrot.lane.b32.xlu0 %v2309, 48
  %v2482 = vpop.permute.xlu0 %2481
  %2483 = vrot.lane.b32.xlu0 %v2310, 48
  %v2484 = vpop.permute.xlu0 %2483
  %2485 = vrot.lane.b32.xlu0 %v2311, 48
  %v2486 = vpop.permute.xlu0 %2485
  %2487 = vrot.lane.b32.xlu0 %v2312, 48
  %v2488 = vpop.permute.xlu0 %2487
  %2489 = vrot.lane.b32.xlu0 %v2313, 48
  %v2490 = vpop.permute.xlu0 %2489
  %2491 = vrot.lane.b32.xlu0 %v2314, 48
  %v2492 = vpop.permute.xlu0 %2491
  %2493 = vrot.lane.b32.xlu0 %v2315, 48
  %v2494 = vpop.permute.xlu0 %2493
  %2495 = vrot.lane.b32.xlu0 %v2316, 48
  %v2496 = vpop.permute.xlu0 %2495
  %2557 = vst.msk [vmem:[#allocation2 + $0x1] sm:$0xff] %vm175, %v2378
  %vm2558 = vcmask 457088
  %2559 = vst.msk [vmem:[#allocation2 + $0x9] sm:$0x7f] %vm2558, %v2380
  %2560 = vst.msk [vmem:[#allocation2 + $0x11] sm:$0xff] %vm175, %v2382
  %2561 = vst.msk [vmem:[#allocation2 + $0x19] sm:$0x7f] %vm2558, %v2384
  %2562 = vst.msk [vmem:[#allocation2 + $0x21] sm:$0xff] %vm175, %v2386
  %2563 = vst.msk [vmem:[#allocation2 + $0x29] sm:$0x7f] %vm2558, %v2388
  %2564 = vst.msk [vmem:[#allocation2 + $0x31] sm:$0xff] %vm175, %v2390
  %2565 = vst.msk [vmem:[#allocation2 + $0x39] sm:$0x7f] %vm2558, %v2392
  %2566 = vst.msk [vmem:[#allocation2 + $0x41] sm:$0xff] %vm175, %v2394
  %2567 = vst.msk [vmem:[#allocation2 + $0x49] sm:$0x7f] %vm2558, %v2396
  %2568 = vst.msk [vmem:[#allocation2 + $0x51] sm:$0xff] %vm175, %v2398
  %2569 = vst.msk [vmem:[#allocation2 + $0x59] sm:$0x7f] %vm2558, %v2400
  %2570 = vst.msk [vmem:[#allocation2 + $0x61] sm:$0xff] %vm175, %v2402
  %2571 = vst.msk [vmem:[#allocation2 + $0x69] sm:$0x7f] %vm2558, %v2404
  %2572 = vst.msk [vmem:[#allocation2 + $0x71] sm:$0xff] %vm175, %v2406
  %2573 = vst.msk [vmem:[#allocation2 + $0x79] sm:$0x7f] %vm2558, %v2408
  %2574 = vst.msk [vmem:[#allocation2 + $0x81] sm:$0xff] %vm175, %v2410
  %2575 = vst.msk [vmem:[#allocation2 + $0x89] sm:$0x7f] %vm2558, %v2412
  %2576 = vst.msk [vmem:[#allocation2 + $0x91] sm:$0xff] %vm175, %v2414
  %2577 = vst.msk [vmem:[#allocation2 + $0x99] sm:$0x7f] %vm2558, %v2416
  %2578 = vst.msk [vmem:[#allocation2 + $0xa1] sm:$0xff] %vm175, %v2418
  %2579 = vst.msk [vmem:[#allocation2 + $0xa9] sm:$0x7f] %vm2558, %v2420
  %2580 = vst.msk [vmem:[#allocation2 + $0xb1] sm:$0xff] %vm175, %v2422
  %2581 = vst.msk [vmem:[#allocation2 + $0xb9] sm:$0x7f] %vm2558, %v2424
  %2582 = vst.msk [vmem:[#allocation2 + $0xc1] sm:$0xff] %vm175, %v2426
  %2583 = vst.msk [vmem:[#allocation2 + $0xc9] sm:$0x7f] %vm2558, %v2428
  %2584 = vst.msk [vmem:[#allocation2 + $0xd1] sm:$0xff] %vm175, %v2430
  %2585 = vst.msk [vmem:[#allocation2 + $0xd9] sm:$0x7f] %vm2558, %v2432
  %2586 = vst.msk [vmem:[#allocation2 + $0xe1] sm:$0xff] %vm175, %v2434
  %2587 = vst.msk [vmem:[#allocation2 + $0xe9] sm:$0x7f] %vm2558, %v2436
  %2588 = vst.msk [vmem:[#allocation2 + $0x101] sm:$0xff] %vm175, %v2438
  %2589 = vst.msk [vmem:[#allocation2 + $0x109] sm:$0x7f] %vm2558, %v2440
  %2590 = vst.msk [vmem:[#allocation2 + $0x111] sm:$0xff] %vm175, %v2442
  %2591 = vst.msk [vmem:[#allocation2 + $0x119] sm:$0x7f] %vm2558, %v2444
  %2592 = vst.msk [vmem:[#allocation2 + $0x121] sm:$0xff] %vm175, %v2446
  %2593 = vst.msk [vmem:[#allocation2 + $0x129] sm:$0x7f] %vm2558, %v2448
  %2594 = vst.msk [vmem:[#allocation2 + $0x131] sm:$0xff] %vm175, %v2450
  %2595 = vst.msk [vmem:[#allocation2 + $0x139] sm:$0x7f] %vm2558, %v2452
  %2596 = vst.msk [vmem:[#allocation2 + $0x141] sm:$0xff] %vm175, %v2454
  %2597 = vst.msk [vmem:[#allocation2 + $0x149] sm:$0x7f] %vm2558, %v2456
  %2598 = vst.msk [vmem:[#allocation2 + $0x151] sm:$0xff] %vm175, %v2458
  %2599 = vst.msk [vmem:[#allocation2 + $0x159] sm:$0x7f] %vm2558, %v2460
  %2600 = vst.msk [vmem:[#allocation2 + $0x161] sm:$0xff] %vm175, %v2462
  %2601 = vst.msk [vmem:[#allocation2 + $0x169] sm:$0x7f] %vm2558, %v2464
  %2602 = vst.msk [vmem:[#allocation2 + $0x171] sm:$0xff] %vm175, %v2466
  %2603 = vst.msk [vmem:[#allocation2 + $0x179] sm:$0x7f] %vm2558, %v2468
  %2604 = vst.msk [vmem:[#allocation2 + $0x181] sm:$0xff] %vm175, %v2470
  %2605 = vst.msk [vmem:[#allocation2 + $0x189] sm:$0x7f] %vm2558, %v2472
  %2606 = vst.msk [vmem:[#allocation2 + $0x191] sm:$0xff] %vm175, %v2474
  %2607 = vst.msk [vmem:[#allocation2 + $0x199] sm:$0x7f] %vm2558, %v2476
  %2608 = vst.msk [vmem:[#allocation2 + $0x1a1] sm:$0xff] %vm175, %v2478
  %2609 = vst.msk [vmem:[#allocation2 + $0x1a9] sm:$0x7f] %vm2558, %v2480
  %2610 = vst.msk [vmem:[#allocation2 + $0x1b1] sm:$0xff] %vm175, %v2482
  %2611 = vst.msk [vmem:[#allocation2 + $0x1b9] sm:$0x7f] %vm2558, %v2484
  %2612 = vst.msk [vmem:[#allocation2 + $0x1c1] sm:$0xff] %vm175, %v2486
  %2613 = vst.msk [vmem:[#allocation2 + $0x1c9] sm:$0x7f] %vm2558, %v2488
  %2614 = vst.msk [vmem:[#allocation2 + $0x1d1] sm:$0xff] %vm175, %v2490
  %2615 = vst.msk [vmem:[#allocation2 + $0x1d9] sm:$0x7f] %vm2558, %v2492
  %2616 = vst.msk [vmem:[#allocation2 + $0x1e1] sm:$0xff] %vm175, %v2494
  %2617 = vst.msk [vmem:[#allocation2 + $0x1e9] sm:$0x7f] %vm2558, %v2496
  %v2618 = vld [vmem:[%s2256] sm:$0xff]
  %v2619 = vld [vmem:[%s2256 + $0x8] sm:$0xff]
  %v2620 = vld [vmem:[%s2256 + $0x10] sm:$0xff]
  %v2621 = vld [vmem:[%s2256 + $0x18] sm:$0xff]
  %v2622 = vld [vmem:[%s2256 + $0x20] sm:$0xff]
  %v2623 = vld [vmem:[%s2256 + $0x28] sm:$0xff]
  %v2624 = vld [vmem:[%s2256 + $0x30] sm:$0xff]
  %v2625 = vld [vmem:[%s2256 + $0x38] sm:$0xff]
  %v2626 = vld [vmem:[%s2256 + $0x40] sm:$0xff]
  %v2627 = vld [vmem:[%s2256 + $0x48] sm:$0xff]
  %v2628 = vld [vmem:[%s2256 + $0x50] sm:$0xff]
  %v2629 = vld [vmem:[%s2256 + $0x58] sm:$0xff]
  %v2630 = vld [vmem:[%s2256 + $0x60] sm:$0xff]
  %v2631 = vld [vmem:[%s2256 + $0x68] sm:$0xff]
  %v2632 = vld [vmem:[%s2256 + $0x70] sm:$0xff]
  %v2633 = vld [vmem:[%s2256 + $0x78] sm:$0xff]
  %v2634 = vld [vmem:[%s2256 + $0x80] sm:$0xff]
  %v2635 = vld [vmem:[%s2256 + $0x88] sm:$0xff]
  %v2636 = vld [vmem:[%s2256 + $0x90] sm:$0xff]
  %v2637 = vld [vmem:[%s2256 + $0x98] sm:$0xff]
  %v2638 = vld [vmem:[%s2256 + $0xa0] sm:$0xff]
  %v2639 = vld [vmem:[%s2256 + $0xa8] sm:$0xff]
  %v2640 = vld [vmem:[%s2256 + $0xb0] sm:$0xff]
  %v2641 = vld [vmem:[%s2256 + $0xb8] sm:$0xff]
  %v2642 = vld [vmem:[%s2256 + $0xc0] sm:$0xff]
  %v2643 = vld [vmem:[%s2256 + $0xc8] sm:$0xff]
  %v2644 = vld [vmem:[%s2256 + $0xd0] sm:$0xff]
  %v2645 = vld [vmem:[%s2256 + $0xd8] sm:$0xff]
  %v2646 = vld [vmem:[%s2256 + $0xe0] sm:$0xff]
  %v2647 = vld [vmem:[%s2256 + $0xe8] sm:$0xff]
  %v2648 = vld [vmem:[%s2256 + $0x100] sm:$0xff]
  %v2649 = vld [vmem:[%s2256 + $0x108] sm:$0xff]
  %v2650 = vld [vmem:[%s2256 + $0x110] sm:$0xff]
  %v2651 = vld [vmem:[%s2256 + $0x118] sm:$0xff]
  %v2652 = vld [vmem:[%s2256 + $0x120] sm:$0xff]
  %v2653 = vld [vmem:[%s2256 + $0x128] sm:$0xff]
  %v2654 = vld [vmem:[%s2256 + $0x130] sm:$0xff]
  %v2655 = vld [vmem:[%s2256 + $0x138] sm:$0xff]
  %v2656 = vld [vmem:[%s2256 + $0x140] sm:$0xff]
  %v2657 = vld [vmem:[%s2256 + $0x148] sm:$0xff]
  %v2658 = vld [vmem:[%s2256 + $0x150] sm:$0xff]
  %v2659 = vld [vmem:[%s2256 + $0x158] sm:$0xff]
  %v2660 = vld [vmem:[%s2256 + $0x160] sm:$0xff]
  %v2661 = vld [vmem:[%s2256 + $0x168] sm:$0xff]
  %v2662 = vld [vmem:[%s2256 + $0x170] sm:$0xff]
  %v2663 = vld [vmem:[%s2256 + $0x178] sm:$0xff]
  %v2664 = vld [vmem:[%s2256 + $0x180] sm:$0xff]
  %v2665 = vld [vmem:[%s2256 + $0x188] sm:$0xff]
  %v2666 = vld [vmem:[%s2256 + $0x190] sm:$0xff]
  %v2667 = vld [vmem:[%s2256 + $0x198] sm:$0xff]
  %v2668 = vld [vmem:[%s2256 + $0x1a0] sm:$0xff]
  %v2669 = vld [vmem:[%s2256 + $0x1a8] sm:$0xff]
  %v2670 = vld [vmem:[%s2256 + $0x1b0] sm:$0xff]
  %v2671 = vld [vmem:[%s2256 + $0x1b8] sm:$0xff]
  %v2672 = vld [vmem:[%s2256 + $0x1c0] sm:$0xff]
  %v2673 = vld [vmem:[%s2256 + $0x1c8] sm:$0xff]
  %v2674 = vld [vmem:[%s2256 + $0x1d0] sm:$0xff]
  %v2675 = vld [vmem:[%s2256 + $0x1d8] sm:$0xff]
  %v2676 = vld [vmem:[%s2256 + $0x1e0] sm:$0xff]
  %v2677 = vld [vmem:[%s2256 + $0x1e8] sm:$0xff]
  %2738 = vrot.lane.b32.xlu0 %v2618, 56
  %v2739 = vpop.permute.xlu0 %2738
  %2740 = vrot.lane.b32.xlu0 %v2619, 56
  %v2741 = vpop.permute.xlu0 %2740
  %2742 = vrot.lane.b32.xlu0 %v2620, 56
  %v2743 = vpop.permute.xlu0 %2742
  %2744 = vrot.lane.b32.xlu0 %v2621, 56
  %v2745 = vpop.permute.xlu0 %2744
  %2746 = vrot.lane.b32.xlu0 %v2622, 56
  %v2747 = vpop.permute.xlu0 %2746
  %2748 = vrot.lane.b32.xlu0 %v2623, 56
  %v2749 = vpop.permute.xlu0 %2748
  %2750 = vrot.lane.b32.xlu0 %v2624, 56
  %v2751 = vpop.permute.xlu0 %2750
  %2752 = vrot.lane.b32.xlu0 %v2625, 56
  %v2753 = vpop.permute.xlu0 %2752
  %2754 = vrot.lane.b32.xlu0 %v2626, 56
  %v2755 = vpop.permute.xlu0 %2754
  %2756 = vrot.lane.b32.xlu0 %v2627, 56
  %v2757 = vpop.permute.xlu0 %2756
  %2758 = vrot.lane.b32.xlu0 %v2628, 56
  %v2759 = vpop.permute.xlu0 %2758
  %2760 = vrot.lane.b32.xlu0 %v2629, 56
  %v2761 = vpop.permute.xlu0 %2760
  %2762 = vrot.lane.b32.xlu0 %v2630, 56
  %v2763 = vpop.permute.xlu0 %2762
  %2764 = vrot.lane.b32.xlu0 %v2631, 56
  %v2765 = vpop.permute.xlu0 %2764
  %2766 = vrot.lane.b32.xlu0 %v2632, 56
  %v2767 = vpop.permute.xlu0 %2766
  %2768 = vrot.lane.b32.xlu0 %v2633, 56
  %v2769 = vpop.permute.xlu0 %2768
  %2770 = vrot.lane.b32.xlu0 %v2634, 56
  %v2771 = vpop.permute.xlu0 %2770
  %2772 = vrot.lane.b32.xlu0 %v2635, 56
  %v2773 = vpop.permute.xlu0 %2772
  %2774 = vrot.lane.b32.xlu0 %v2636, 56
  %v2775 = vpop.permute.xlu0 %2774
  %2776 = vrot.lane.b32.xlu0 %v2637, 56
  %v2777 = vpop.permute.xlu0 %2776
  %2778 = vrot.lane.b32.xlu0 %v2638, 56
  %v2779 = vpop.permute.xlu0 %2778
  %2780 = vrot.lane.b32.xlu0 %v2639, 56
  %v2781 = vpop.permute.xlu0 %2780
  %2782 = vrot.lane.b32.xlu0 %v2640, 56
  %v2783 = vpop.permute.xlu0 %2782
  %2784 = vrot.lane.b32.xlu0 %v2641, 56
  %v2785 = vpop.permute.xlu0 %2784
  %2786 = vrot.lane.b32.xlu0 %v2642, 56
  %v2787 = vpop.permute.xlu0 %2786
  %2788 = vrot.lane.b32.xlu0 %v2643, 56
  %v2789 = vpop.permute.xlu0 %2788
  %2790 = vrot.lane.b32.xlu0 %v2644, 56
  %v2791 = vpop.permute.xlu0 %2790
  %2792 = vrot.lane.b32.xlu0 %v2645, 56
  %v2793 = vpop.permute.xlu0 %2792
  %2794 = vrot.lane.b32.xlu0 %v2646, 56
  %v2795 = vpop.permute.xlu0 %2794
  %2796 = vrot.lane.b32.xlu0 %v2647, 56
  %v2797 = vpop.permute.xlu0 %2796
  %2798 = vrot.lane.b32.xlu0 %v2648, 56
  %v2799 = vpop.permute.xlu0 %2798
  %2800 = vrot.lane.b32.xlu0 %v2649, 56
  %v2801 = vpop.permute.xlu0 %2800
  %2802 = vrot.lane.b32.xlu0 %v2650, 56
  %v2803 = vpop.permute.xlu0 %2802
  %2804 = vrot.lane.b32.xlu0 %v2651, 56
  %v2805 = vpop.permute.xlu0 %2804
  %2806 = vrot.lane.b32.xlu0 %v2652, 56
  %v2807 = vpop.permute.xlu0 %2806
  %2808 = vrot.lane.b32.xlu0 %v2653, 56
  %v2809 = vpop.permute.xlu0 %2808
  %2810 = vrot.lane.b32.xlu0 %v2654, 56
  %v2811 = vpop.permute.xlu0 %2810
  %2812 = vrot.lane.b32.xlu0 %v2655, 56
  %v2813 = vpop.permute.xlu0 %2812
  %2814 = vrot.lane.b32.xlu0 %v2656, 56
  %v2815 = vpop.permute.xlu0 %2814
  %2816 = vrot.lane.b32.xlu0 %v2657, 56
  %v2817 = vpop.permute.xlu0 %2816
  %2818 = vrot.lane.b32.xlu0 %v2658, 56
  %v2819 = vpop.permute.xlu0 %2818
  %2820 = vrot.lane.b32.xlu0 %v2659, 56
  %v2821 = vpop.permute.xlu0 %2820
  %2822 = vrot.lane.b32.xlu0 %v2660, 56
  %v2823 = vpop.permute.xlu0 %2822
  %2824 = vrot.lane.b32.xlu0 %v2661, 56
  %v2825 = vpop.permute.xlu0 %2824
  %2826 = vrot.lane.b32.xlu0 %v2662, 56
  %v2827 = vpop.permute.xlu0 %2826
  %2828 = vrot.lane.b32.xlu0 %v2663, 56
  %v2829 = vpop.permute.xlu0 %2828
  %2830 = vrot.lane.b32.xlu0 %v2664, 56
  %v2831 = vpop.permute.xlu0 %2830
  %2832 = vrot.lane.b32.xlu0 %v2665, 56
  %v2833 = vpop.permute.xlu0 %2832
  %2834 = vrot.lane.b32.xlu0 %v2666, 56
  %v2835 = vpop.permute.xlu0 %2834
  %2836 = vrot.lane.b32.xlu0 %v2667, 56
  %v2837 = vpop.permute.xlu0 %2836
  %2838 = vrot.lane.b32.xlu0 %v2668, 56
  %v2839 = vpop.permute.xlu0 %2838
  %2840 = vrot.lane.b32.xlu0 %v2669, 56
  %v2841 = vpop.permute.xlu0 %2840
  %2842 = vrot.lane.b32.xlu0 %v2670, 56
  %v2843 = vpop.permute.xlu0 %2842
  %2844 = vrot.lane.b32.xlu0 %v2671, 56
  %v2845 = vpop.permute.xlu0 %2844
  %2846 = vrot.lane.b32.xlu0 %v2672, 56
  %v2847 = vpop.permute.xlu0 %2846
  %2848 = vrot.lane.b32.xlu0 %v2673, 56
  %v2849 = vpop.permute.xlu0 %2848
  %2850 = vrot.lane.b32.xlu0 %v2674, 56
  %v2851 = vpop.permute.xlu0 %2850
  %2852 = vrot.lane.b32.xlu0 %v2675, 56
  %v2853 = vpop.permute.xlu0 %2852
  %2854 = vrot.lane.b32.xlu0 %v2676, 56
  %v2855 = vpop.permute.xlu0 %2854
  %2856 = vrot.lane.b32.xlu0 %v2677, 56
  %v2857 = vpop.permute.xlu0 %2856
  %2918 = vst.msk [vmem:[#allocation2] sm:$0xff] %vm213, %v2739
  %2919 = vst.msk [vmem:[#allocation2 + $0x8] sm:$0xff] %vm213, %v2741
  %2920 = vst.msk [vmem:[#allocation2 + $0x10] sm:$0xff] %vm213, %v2743
  %2921 = vst.msk [vmem:[#allocation2 + $0x18] sm:$0xff] %vm213, %v2745
  %2922 = vst.msk [vmem:[#allocation2 + $0x20] sm:$0xff] %vm213, %v2747
  %2923 = vst.msk [vmem:[#allocation2 + $0x28] sm:$0xff] %vm213, %v2749
  %2924 = vst.msk [vmem:[#allocation2 + $0x30] sm:$0xff] %vm213, %v2751
  %2925 = vst.msk [vmem:[#allocation2 + $0x38] sm:$0xff] %vm213, %v2753
  %2926 = vst.msk [vmem:[#allocation2 + $0x40] sm:$0xff] %vm213, %v2755
  %2927 = vst.msk [vmem:[#allocation2 + $0x48] sm:$0xff] %vm213, %v2757
  %2928 = vst.msk [vmem:[#allocation2 + $0x50] sm:$0xff] %vm213, %v2759
  %2929 = vst.msk [vmem:[#allocation2 + $0x58] sm:$0xff] %vm213, %v2761
  %2930 = vst.msk [vmem:[#allocation2 + $0x60] sm:$0xff] %vm213, %v2763
  %2931 = vst.msk [vmem:[#allocation2 + $0x68] sm:$0xff] %vm213, %v2765
  %2932 = vst.msk [vmem:[#allocation2 + $0x70] sm:$0xff] %vm213, %v2767
  %2933 = vst.msk [vmem:[#allocation2 + $0x78] sm:$0xff] %vm213, %v2769
  %2934 = vst.msk [vmem:[#allocation2 + $0x80] sm:$0xff] %vm213, %v2771
  %2935 = vst.msk [vmem:[#allocation2 + $0x88] sm:$0xff] %vm213, %v2773
  %2936 = vst.msk [vmem:[#allocation2 + $0x90] sm:$0xff] %vm213, %v2775
  %2937 = vst.msk [vmem:[#allocation2 + $0x98] sm:$0xff] %vm213, %v2777
  %2938 = vst.msk [vmem:[#allocation2 + $0xa0] sm:$0xff] %vm213, %v2779
  %2939 = vst.msk [vmem:[#allocation2 + $0xa8] sm:$0xff] %vm213, %v2781
  %2940 = vst.msk [vmem:[#allocation2 + $0xb0] sm:$0xff] %vm213, %v2783
  %2941 = vst.msk [vmem:[#allocation2 + $0xb8] sm:$0xff] %vm213, %v2785
  %2942 = vst.msk [vmem:[#allocation2 + $0xc0] sm:$0xff] %vm213, %v2787
  %2943 = vst.msk [vmem:[#allocation2 + $0xc8] sm:$0xff] %vm213, %v2789
  %2944 = vst.msk [vmem:[#allocation2 + $0xd0] sm:$0xff] %vm213, %v2791
  %2945 = vst.msk [vmem:[#allocation2 + $0xd8] sm:$0xff] %vm213, %v2793
  %2946 = vst.msk [vmem:[#allocation2 + $0xe0] sm:$0xff] %vm213, %v2795
  %2947 = vst.msk [vmem:[#allocation2 + $0xe8] sm:$0xff] %vm213, %v2797
  %2948 = vst.msk [vmem:[#allocation2 + $0x100] sm:$0xff] %vm213, %v2799
  %2949 = vst.msk [vmem:[#allocation2 + $0x108] sm:$0xff] %vm213, %v2801
  %2950 = vst.msk [vmem:[#allocation2 + $0x110] sm:$0xff] %vm213, %v2803
  %2951 = vst.msk [vmem:[#allocation2 + $0x118] sm:$0xff] %vm213, %v2805
  %2952 = vst.msk [vmem:[#allocation2 + $0x120] sm:$0xff] %vm213, %v2807
  %2953 = vst.msk [vmem:[#allocation2 + $0x128] sm:$0xff] %vm213, %v2809
  %2954 = vst.msk [vmem:[#allocation2 + $0x130] sm:$0xff] %vm213, %v2811
  %2955 = vst.msk [vmem:[#allocation2 + $0x138] sm:$0xff] %vm213, %v2813
  %2956 = vst.msk [vmem:[#allocation2 + $0x140] sm:$0xff] %vm213, %v2815
  %2957 = vst.msk [vmem:[#allocation2 + $0x148] sm:$0xff] %vm213, %v2817
  %2958 = vst.msk [vmem:[#allocation2 + $0x150] sm:$0xff] %vm213, %v2819
  %2959 = vst.msk [vmem:[#allocation2 + $0x158] sm:$0xff] %vm213, %v2821
  %2960 = vst.msk [vmem:[#allocation2 + $0x160] sm:$0xff] %vm213, %v2823
  %2961 = vst.msk [vmem:[#allocation2 + $0x168] sm:$0xff] %vm213, %v2825
  %2962 = vst.msk [vmem:[#allocation2 + $0x170] sm:$0xff] %vm213, %v2827
  %2963 = vst.msk [vmem:[#allocation2 + $0x178] sm:$0xff] %vm213, %v2829
  %2964 = vst.msk [vmem:[#allocation2 + $0x180] sm:$0xff] %vm213, %v2831
  %2965 = vst.msk [vmem:[#allocation2 + $0x188] sm:$0xff] %vm213, %v2833
  %2966 = vst.msk [vmem:[#allocation2 + $0x190] sm:$0xff] %vm213, %v2835
  %2967 = vst.msk [vmem:[#allocation2 + $0x198] sm:$0xff] %vm213, %v2837
  %2968 = vst.msk [vmem:[#allocation2 + $0x1a0] sm:$0xff] %vm213, %v2839
  %2969 = vst.msk [vmem:[#allocation2 + $0x1a8] sm:$0xff] %vm213, %v2841
  %2970 = vst.msk [vmem:[#allocation2 + $0x1b0] sm:$0xff] %vm213, %v2843
  %2971 = vst.msk [vmem:[#allocation2 + $0x1b8] sm:$0xff] %vm213, %v2845
  %2972 = vst.msk [vmem:[#allocation2 + $0x1c0] sm:$0xff] %vm213, %v2847
  %2973 = vst.msk [vmem:[#allocation2 + $0x1c8] sm:$0xff] %vm213, %v2849
  %2974 = vst.msk [vmem:[#allocation2 + $0x1d0] sm:$0xff] %vm213, %v2851
  %2975 = vst.msk [vmem:[#allocation2 + $0x1d8] sm:$0xff] %vm213, %v2853
  %2976 = vst.msk [vmem:[#allocation2 + $0x1e0] sm:$0xff] %vm213, %v2855
  %2977 = vst.msk [vmem:[#allocation2 + $0x1e8] sm:$0xff] %vm213, %v2857
  %v2978 = vld [vmem:[%s2256 + $0x1] sm:$0xff]
  %v2979 = vld [vmem:[%s2256 + $0x9] sm:$0x7f]
  %v2980 = vld [vmem:[%s2256 + $0x11] sm:$0xff]
  %v2981 = vld [vmem:[%s2256 + $0x19] sm:$0x7f]
  %v2982 = vld [vmem:[%s2256 + $0x21] sm:$0xff]
  %v2983 = vld [vmem:[%s2256 + $0x29] sm:$0x7f]
  %v2984 = vld [vmem:[%s2256 + $0x31] sm:$0xff]
  %v2985 = vld [vmem:[%s2256 + $0x39] sm:$0x7f]
  %v2986 = vld [vmem:[%s2256 + $0x41] sm:$0xff]
  %v2987 = vld [vmem:[%s2256 + $0x49] sm:$0x7f]
  %v2988 = vld [vmem:[%s2256 + $0x51] sm:$0xff]
  %v2989 = vld [vmem:[%s2256 + $0x59] sm:$0x7f]
  %v2990 = vld [vmem:[%s2256 + $0x61] sm:$0xff]
  %v2991 = vld [vmem:[%s2256 + $0x69] sm:$0x7f]
  %v2992 = vld [vmem:[%s2256 + $0x71] sm:$0xff]
  %v2993 = vld [vmem:[%s2256 + $0x79] sm:$0x7f]
  %v2994 = vld [vmem:[%s2256 + $0x81] sm:$0xff]
  %v2995 = vld [vmem:[%s2256 + $0x89] sm:$0x7f]
  %v2996 = vld [vmem:[%s2256 + $0x91] sm:$0xff]
  %v2997 = vld [vmem:[%s2256 + $0x99] sm:$0x7f]
  %v2998 = vld [vmem:[%s2256 + $0xa1] sm:$0xff]
  %v2999 = vld [vmem:[%s2256 + $0xa9] sm:$0x7f]
  %v3000 = vld [vmem:[%s2256 + $0xb1] sm:$0xff]
  %v3001 = vld [vmem:[%s2256 + $0xb9] sm:$0x7f]
  %v3002 = vld [vmem:[%s2256 + $0xc1] sm:$0xff]
  %v3003 = vld [vmem:[%s2256 + $0xc9] sm:$0x7f]
  %v3004 = vld [vmem:[%s2256 + $0xd1] sm:$0xff]
  %v3005 = vld [vmem:[%s2256 + $0xd9] sm:$0x7f]
  %v3006 = vld [vmem:[%s2256 + $0xe1] sm:$0xff]
  %v3007 = vld [vmem:[%s2256 + $0xe9] sm:$0x7f]
  %v3008 = vld [vmem:[%s2256 + $0x101] sm:$0xff]
  %v3009 = vld [vmem:[%s2256 + $0x109] sm:$0x7f]
  %v3010 = vld [vmem:[%s2256 + $0x111] sm:$0xff]
  %v3011 = vld [vmem:[%s2256 + $0x119] sm:$0x7f]
  %v3012 = vld [vmem:[%s2256 + $0x121] sm:$0xff]
  %v3013 = vld [vmem:[%s2256 + $0x129] sm:$0x7f]
  %v3014 = vld [vmem:[%s2256 + $0x131] sm:$0xff]
  %v3015 = vld [vmem:[%s2256 + $0x139] sm:$0x7f]
  %v3016 = vld [vmem:[%s2256 + $0x141] sm:$0xff]
  %v3017 = vld [vmem:[%s2256 + $0x149] sm:$0x7f]
  %v3018 = vld [vmem:[%s2256 + $0x151] sm:$0xff]
  %v3019 = vld [vmem:[%s2256 + $0x159] sm:$0x7f]
  %v3020 = vld [vmem:[%s2256 + $0x161] sm:$0xff]
  %v3021 = vld [vmem:[%s2256 + $0x169] sm:$0x7f]
  %v3022 = vld [vmem:[%s2256 + $0x171] sm:$0xff]
  %v3023 = vld [vmem:[%s2256 + $0x179] sm:$0x7f]
  %v3024 = vld [vmem:[%s2256 + $0x181] sm:$0xff]
  %v3025 = vld [vmem:[%s2256 + $0x189] sm:$0x7f]
  %v3026 = vld [vmem:[%s2256 + $0x191] sm:$0xff]
  %v3027 = vld [vmem:[%s2256 + $0x199] sm:$0x7f]
  %v3028 = vld [vmem:[%s2256 + $0x1a1] sm:$0xff]
  %v3029 = vld [vmem:[%s2256 + $0x1a9] sm:$0x7f]
  %v3030 = vld [vmem:[%s2256 + $0x1b1] sm:$0xff]
  %v3031 = vld [vmem:[%s2256 + $0x1b9] sm:$0x7f]
  %v3032 = vld [vmem:[%s2256 + $0x1c1] sm:$0xff]
  %v3033 = vld [vmem:[%s2256 + $0x1c9] sm:$0x7f]
  %v3034 = vld [vmem:[%s2256 + $0x1d1] sm:$0xff]
  %v3035 = vld [vmem:[%s2256 + $0x1d9] sm:$0x7f]
  %v3036 = vld [vmem:[%s2256 + $0x1e1] sm:$0xff]
  %v3037 = vld [vmem:[%s2256 + $0x1e9] sm:$0x7f]
  %3098 = vrot.lane.b32.xlu0 %v2978, 64
  %v3099 = vpop.permute.xlu0 %3098
  %3100 = vrot.lane.b32.xlu0 %v2979, 64
  %v3101 = vpop.permute.xlu0 %3100
  %3102 = vrot.lane.b32.xlu0 %v2980, 64
  %v3103 = vpop.permute.xlu0 %3102
  %3104 = vrot.lane.b32.xlu0 %v2981, 64
  %v3105 = vpop.permute.xlu0 %3104
  %3106 = vrot.lane.b32.xlu0 %v2982, 64
  %v3107 = vpop.permute.xlu0 %3106
  %3108 = vrot.lane.b32.xlu0 %v2983, 64
  %v3109 = vpop.permute.xlu0 %3108
  %3110 = vrot.lane.b32.xlu0 %v2984, 64
  %v3111 = vpop.permute.xlu0 %3110
  %3112 = vrot.lane.b32.xlu0 %v2985, 64
  %v3113 = vpop.permute.xlu0 %3112
  %3114 = vrot.lane.b32.xlu0 %v2986, 64
  %v3115 = vpop.permute.xlu0 %3114
  %3116 = vrot.lane.b32.xlu0 %v2987, 64
  %v3117 = vpop.permute.xlu0 %3116
  %3118 = vrot.lane.b32.xlu0 %v2988, 64
  %v3119 = vpop.permute.xlu0 %3118
  %3120 = vrot.lane.b32.xlu0 %v2989, 64
  %v3121 = vpop.permute.xlu0 %3120
  %3122 = vrot.lane.b32.xlu0 %v2990, 64
  %v3123 = vpop.permute.xlu0 %3122
  %3124 = vrot.lane.b32.xlu0 %v2991, 64
  %v3125 = vpop.permute.xlu0 %3124
  %3126 = vrot.lane.b32.xlu0 %v2992, 64
  %v3127 = vpop.permute.xlu0 %3126
  %3128 = vrot.lane.b32.xlu0 %v2993, 64
  %v3129 = vpop.permute.xlu0 %3128
  %3130 = vrot.lane.b32.xlu0 %v2994, 64
  %v3131 = vpop.permute.xlu0 %3130
  %3132 = vrot.lane.b32.xlu0 %v2995, 64
  %v3133 = vpop.permute.xlu0 %3132
  %3134 = vrot.lane.b32.xlu0 %v2996, 64
  %v3135 = vpop.permute.xlu0 %3134
  %3136 = vrot.lane.b32.xlu0 %v2997, 64
  %v3137 = vpop.permute.xlu0 %3136
  %3138 = vrot.lane.b32.xlu0 %v2998, 64
  %v3139 = vpop.permute.xlu0 %3138
  %3140 = vrot.lane.b32.xlu0 %v2999, 64
  %v3141 = vpop.permute.xlu0 %3140
  %3142 = vrot.lane.b32.xlu0 %v3000, 64
  %v3143 = vpop.permute.xlu0 %3142
  %3144 = vrot.lane.b32.xlu0 %v3001, 64
  %v3145 = vpop.permute.xlu0 %3144
  %3146 = vrot.lane.b32.xlu0 %v3002, 64
  %v3147 = vpop.permute.xlu0 %3146
  %3148 = vrot.lane.b32.xlu0 %v3003, 64
  %v3149 = vpop.permute.xlu0 %3148
  %3150 = vrot.lane.b32.xlu0 %v3004, 64
  %v3151 = vpop.permute.xlu0 %3150
  %3152 = vrot.lane.b32.xlu0 %v3005, 64
  %v3153 = vpop.permute.xlu0 %3152
  %3154 = vrot.lane.b32.xlu0 %v3006, 64
  %v3155 = vpop.permute.xlu0 %3154
  %3156 = vrot.lane.b32.xlu0 %v3007, 64
  %v3157 = vpop.permute.xlu0 %3156
  %3158 = vrot.lane.b32.xlu0 %v3008, 64
  %v3159 = vpop.permute.xlu0 %3158
  %3160 = vrot.lane.b32.xlu0 %v3009, 64
  %v3161 = vpop.permute.xlu0 %3160
  %3162 = vrot.lane.b32.xlu0 %v3010, 64
  %v3163 = vpop.permute.xlu0 %3162
  %3164 = vrot.lane.b32.xlu0 %v3011, 64
  %v3165 = vpop.permute.xlu0 %3164
  %3166 = vrot.lane.b32.xlu0 %v3012, 64
  %v3167 = vpop.permute.xlu0 %3166
  %3168 = vrot.lane.b32.xlu0 %v3013, 64
  %v3169 = vpop.permute.xlu0 %3168
  %3170 = vrot.lane.b32.xlu0 %v3014, 64
  %v3171 = vpop.permute.xlu0 %3170
  %3172 = vrot.lane.b32.xlu0 %v3015, 64
  %v3173 = vpop.permute.xlu0 %3172
  %3174 = vrot.lane.b32.xlu0 %v3016, 64
  %v3175 = vpop.permute.xlu0 %3174
  %3176 = vrot.lane.b32.xlu0 %v3017, 64
  %v3177 = vpop.permute.xlu0 %3176
  %3178 = vrot.lane.b32.xlu0 %v3018, 64
  %v3179 = vpop.permute.xlu0 %3178
  %3180 = vrot.lane.b32.xlu0 %v3019, 64
  %v3181 = vpop.permute.xlu0 %3180
  %3182 = vrot.lane.b32.xlu0 %v3020, 64
  %v3183 = vpop.permute.xlu0 %3182
  %3184 = vrot.lane.b32.xlu0 %v3021, 64
  %v3185 = vpop.permute.xlu0 %3184
  %3186 = vrot.lane.b32.xlu0 %v3022, 64
  %v3187 = vpop.permute.xlu0 %3186
  %3188 = vrot.lane.b32.xlu0 %v3023, 64
  %v3189 = vpop.permute.xlu0 %3188
  %3190 = vrot.lane.b32.xlu0 %v3024, 64
  %v3191 = vpop.permute.xlu0 %3190
  %3192 = vrot.lane.b32.xlu0 %v3025, 64
  %v3193 = vpop.permute.xlu0 %3192
  %3194 = vrot.lane.b32.xlu0 %v3026, 64
  %v3195 = vpop.permute.xlu0 %3194
  %3196 = vrot.lane.b32.xlu0 %v3027, 64
  %v3197 = vpop.permute.xlu0 %3196
  %3198 = vrot.lane.b32.xlu0 %v3028, 64
  %v3199 = vpop.permute.xlu0 %3198
  %3200 = vrot.lane.b32.xlu0 %v3029, 64
  %v3201 = vpop.permute.xlu0 %3200
  %3202 = vrot.lane.b32.xlu0 %v3030, 64
  %v3203 = vpop.permute.xlu0 %3202
  %3204 = vrot.lane.b32.xlu0 %v3031, 64
  %v3205 = vpop.permute.xlu0 %3204
  %3206 = vrot.lane.b32.xlu0 %v3032, 64
  %v3207 = vpop.permute.xlu0 %3206
  %3208 = vrot.lane.b32.xlu0 %v3033, 64
  %v3209 = vpop.permute.xlu0 %3208
  %3210 = vrot.lane.b32.xlu0 %v3034, 64
  %v3211 = vpop.permute.xlu0 %3210
  %3212 = vrot.lane.b32.xlu0 %v3035, 64
  %v3213 = vpop.permute.xlu0 %3212
  %3214 = vrot.lane.b32.xlu0 %v3036, 64
  %v3215 = vpop.permute.xlu0 %3214
  %3216 = vrot.lane.b32.xlu0 %v3037, 64
  %v3217 = vpop.permute.xlu0 %3216
  %3278 = vst.msk [vmem:[#allocation2] sm:$0xff] %vm218, %v3099
  %vm3279 = vcmask 588288
  %3280 = vst.msk [vmem:[#allocation2 + $0x8] sm:$0x7f] %vm3279, %v3101
  %3281 = vst.msk [vmem:[#allocation2 + $0x10] sm:$0xff] %vm218, %v3103
  %3282 = vst.msk [vmem:[#allocation2 + $0x18] sm:$0x7f] %vm3279, %v3105
  %3283 = vst.msk [vmem:[#allocation2 + $0x20] sm:$0xff] %vm218, %v3107
  %3284 = vst.msk [vmem:[#allocation2 + $0x28] sm:$0x7f] %vm3279, %v3109
  %3285 = vst.msk [vmem:[#allocation2 + $0x30] sm:$0xff] %vm218, %v3111
  %3286 = vst.msk [vmem:[#allocation2 + $0x38] sm:$0x7f] %vm3279, %v3113
  %3287 = vst.msk [vmem:[#allocation2 + $0x40] sm:$0xff] %vm218, %v3115
  %3288 = vst.msk [vmem:[#allocation2 + $0x48] sm:$0x7f] %vm3279, %v3117
  %3289 = vst.msk [vmem:[#allocation2 + $0x50] sm:$0xff] %vm218, %v3119
  %3290 = vst.msk [vmem:[#allocation2 + $0x58] sm:$0x7f] %vm3279, %v3121
  %3291 = vst.msk [vmem:[#allocation2 + $0x60] sm:$0xff] %vm218, %v3123
  %3292 = vst.msk [vmem:[#allocation2 + $0x68] sm:$0x7f] %vm3279, %v3125
  %3293 = vst.msk [vmem:[#allocation2 + $0x70] sm:$0xff] %vm218, %v3127
  %3294 = vst.msk [vmem:[#allocation2 + $0x78] sm:$0x7f] %vm3279, %v3129
  %3295 = vst.msk [vmem:[#allocation2 + $0x80] sm:$0xff] %vm218, %v3131
  %3296 = vst.msk [vmem:[#allocation2 + $0x88] sm:$0x7f] %vm3279, %v3133
  %3297 = vst.msk [vmem:[#allocation2 + $0x90] sm:$0xff] %vm218, %v3135
  %3298 = vst.msk [vmem:[#allocation2 + $0x98] sm:$0x7f] %vm3279, %v3137
  %3299 = vst.msk [vmem:[#allocation2 + $0xa0] sm:$0xff] %vm218, %v3139
  %3300 = vst.msk [vmem:[#allocation2 + $0xa8] sm:$0x7f] %vm3279, %v3141
  %3301 = vst.msk [vmem:[#allocation2 + $0xb0] sm:$0xff] %vm218, %v3143
  %3302 = vst.msk [vmem:[#allocation2 + $0xb8] sm:$0x7f] %vm3279, %v3145
  %3303 = vst.msk [vmem:[#allocation2 + $0xc0] sm:$0xff] %vm218, %v3147
  %3304 = vst.msk [vmem:[#allocation2 + $0xc8] sm:$0x7f] %vm3279, %v3149
  %3305 = vst.msk [vmem:[#allocation2 + $0xd0] sm:$0xff] %vm218, %v3151
  %3306 = vst.msk [vmem:[#allocation2 + $0xd8] sm:$0x7f] %vm3279, %v3153
  %3307 = vst.msk [vmem:[#allocation2 + $0xe0] sm:$0xff] %vm218, %v3155
  %3308 = vst.msk [vmem:[#allocation2 + $0xe8] sm:$0x7f] %vm3279, %v3157
  %3309 = vst.msk [vmem:[#allocation2 + $0x100] sm:$0xff] %vm218, %v3159
  %3310 = vst.msk [vmem:[#allocation2 + $0x108] sm:$0x7f] %vm3279, %v3161
  %3311 = vst.msk [vmem:[#allocation2 + $0x110] sm:$0xff] %vm218, %v3163
  %3312 = vst.msk [vmem:[#allocation2 + $0x118] sm:$0x7f] %vm3279, %v3165
  %3313 = vst.msk [vmem:[#allocation2 + $0x120] sm:$0xff] %vm218, %v3167
  %3314 = vst.msk [vmem:[#allocation2 + $0x128] sm:$0x7f] %vm3279, %v3169
  %3315 = vst.msk [vmem:[#allocation2 + $0x130] sm:$0xff] %vm218, %v3171
  %3316 = vst.msk [vmem:[#allocation2 + $0x138] sm:$0x7f] %vm3279, %v3173
  %3317 = vst.msk [vmem:[#allocation2 + $0x140] sm:$0xff] %vm218, %v3175
  %3318 = vst.msk [vmem:[#allocation2 + $0x148] sm:$0x7f] %vm3279, %v3177
  %3319 = vst.msk [vmem:[#allocation2 + $0x150] sm:$0xff] %vm218, %v3179
  %3320 = vst.msk [vmem:[#allocation2 + $0x158] sm:$0x7f] %vm3279, %v3181
  %3321 = vst.msk [vmem:[#allocation2 + $0x160] sm:$0xff] %vm218, %v3183
  %3322 = vst.msk [vmem:[#allocation2 + $0x168] sm:$0x7f] %vm3279, %v3185
  %3323 = vst.msk [vmem:[#allocation2 + $0x170] sm:$0xff] %vm218, %v3187
  %3324 = vst.msk [vmem:[#allocation2 + $0x178] sm:$0x7f] %vm3279, %v3189
  %3325 = vst.msk [vmem:[#allocation2 + $0x180] sm:$0xff] %vm218, %v3191
  %3326 = vst.msk [vmem:[#allocation2 + $0x188] sm:$0x7f] %vm3279, %v3193
  %3327 = vst.msk [vmem:[#allocation2 + $0x190] sm:$0xff] %vm218, %v3195
  %3328 = vst.msk [vmem:[#allocation2 + $0x198] sm:$0x7f] %vm3279, %v3197
  %3329 = vst.msk [vmem:[#allocation2 + $0x1a0] sm:$0xff] %vm218, %v3199
  %3330 = vst.msk [vmem:[#allocation2 + $0x1a8] sm:$0x7f] %vm3279, %v3201
  %3331 = vst.msk [vmem:[#allocation2 + $0x1b0] sm:$0xff] %vm218, %v3203
  %3332 = vst.msk [vmem:[#allocation2 + $0x1b8] sm:$0x7f] %vm3279, %v3205
  %3333 = vst.msk [vmem:[#allocation2 + $0x1c0] sm:$0xff] %vm218, %v3207
  %3334 = vst.msk [vmem:[#allocation2 + $0x1c8] sm:$0x7f] %vm3279, %v3209
  %3335 = vst.msk [vmem:[#allocation2 + $0x1d0] sm:$0xff] %vm218, %v3211
  %3336 = vst.msk [vmem:[#allocation2 + $0x1d8] sm:$0x7f] %vm3279, %v3213
  %3337 = vst.msk [vmem:[#allocation2 + $0x1e0] sm:$0xff] %vm218, %v3215
  %3338 = vst.msk [vmem:[#allocation2 + $0x1e8] sm:$0x7f] %vm3279, %v3217
  %v3339 = vld [vmem:[#allocation2] sm:$0xff]
  %v3340 = vld [vmem:[#allocation2 + $0x8] sm:$0xff]
  %v3341 = vld [vmem:[#allocation2 + $0x10] sm:$0xff]
  %v3342 = vld [vmem:[#allocation2 + $0x18] sm:$0xff]
  %v3343 = vld [vmem:[#allocation2 + $0x20] sm:$0xff]
  %v3344 = vld [vmem:[#allocation2 + $0x28] sm:$0xff]
  %v3345 = vld [vmem:[#allocation2 + $0x30] sm:$0xff]
  %v3346 = vld [vmem:[#allocation2 + $0x38] sm:$0xff]
  %v3347 = vld [vmem:[#allocation2 + $0x40] sm:$0xff]
  %v3348 = vld [vmem:[#allocation2 + $0x48] sm:$0xff]
  %v3349 = vld [vmem:[#allocation2 + $0x50] sm:$0xff]
  %v3350 = vld [vmem:[#allocation2 + $0x58] sm:$0xff]
  %v3351 = vld [vmem:[#allocation2 + $0x60] sm:$0xff]
  %v3352 = vld [vmem:[#allocation2 + $0x68] sm:$0xff]
  %v3353 = vld [vmem:[#allocation2 + $0x70] sm:$0xff]
  %v3354 = vld [vmem:[#allocation2 + $0x78] sm:$0xff]
  %v3355 = vld [vmem:[#allocation2 + $0x80] sm:$0xff]
  %v3356 = vld [vmem:[#allocation2 + $0x88] sm:$0xff]
  %v3357 = vld [vmem:[#allocation2 + $0x90] sm:$0xff]
  %v3358 = vld [vmem:[#allocation2 + $0x98] sm:$0xff]
  %v3359 = vld [vmem:[#allocation2 + $0xa0] sm:$0xff]
  %v3360 = vld [vmem:[#allocation2 + $0xa8] sm:$0xff]
  %v3361 = vld [vmem:[#allocation2 + $0xb0] sm:$0xff]
  %v3362 = vld [vmem:[#allocation2 + $0xb8] sm:$0xff]
  %v3363 = vld [vmem:[#allocation2 + $0xc0] sm:$0xff]
  %v3364 = vld [vmem:[#allocation2 + $0xc8] sm:$0xff]
  %v3365 = vld [vmem:[#allocation2 + $0xd0] sm:$0xff]
  %v3366 = vld [vmem:[#allocation2 + $0xd8] sm:$0xff]
  %v3367 = vld [vmem:[#allocation2 + $0xe0] sm:$0xff]
  %v3368 = vld [vmem:[#allocation2 + $0xe8] sm:$0xff]
  %v3369 = vld [vmem:[#allocation2 + $0xf0] sm:$0xff]
  %v3370 = vld [vmem:[#allocation2 + $0xf8] sm:$0xff]
  %v3371 = vld [vmem:[#allocation2 + $0x100] sm:$0xff]
  %v3372 = vld [vmem:[#allocation2 + $0x108] sm:$0xff]
  %v3373 = vld [vmem:[#allocation2 + $0x110] sm:$0xff]
  %v3374 = vld [vmem:[#allocation2 + $0x118] sm:$0xff]
  %v3375 = vld [vmem:[#allocation2 + $0x120] sm:$0xff]
  %v3376 = vld [vmem:[#allocation2 + $0x128] sm:$0xff]
  %v3377 = vld [vmem:[#allocation2 + $0x130] sm:$0xff]
  %v3378 = vld [vmem:[#allocation2 + $0x138] sm:$0xff]
  %v3379 = vld [vmem:[#allocation2 + $0x140] sm:$0xff]
  %v3380 = vld [vmem:[#allocation2 + $0x148] sm:$0xff]
  %v3381 = vld [vmem:[#allocation2 + $0x150] sm:$0xff]
  %v3382 = vld [vmem:[#allocation2 + $0x158] sm:$0xff]
  %v3383 = vld [vmem:[#allocation2 + $0x160] sm:$0xff]
  %v3384 = vld [vmem:[#allocation2 + $0x168] sm:$0xff]
  %v3385 = vld [vmem:[#allocation2 + $0x170] sm:$0xff]
  %v3386 = vld [vmem:[#allocation2 + $0x178] sm:$0xff]
  %v3387 = vld [vmem:[#allocation2 + $0x180] sm:$0xff]
  %v3388 = vld [vmem:[#allocation2 + $0x188] sm:$0xff]
  %v3389 = vld [vmem:[#allocation2 + $0x190] sm:$0xff]
  %v3390 = vld [vmem:[#allocation2 + $0x198] sm:$0xff]
  %v3391 = vld [vmem:[#allocation2 + $0x1a0] sm:$0xff]
  %v3392 = vld [vmem:[#allocation2 + $0x1a8] sm:$0xff]
  %v3393 = vld [vmem:[#allocation2 + $0x1b0] sm:$0xff]
  %v3394 = vld [vmem:[#allocation2 + $0x1b8] sm:$0xff]
  %v3395 = vld [vmem:[#allocation2 + $0x1c0] sm:$0xff]
  %v3396 = vld [vmem:[#allocation2 + $0x1c8] sm:$0xff]
  %v3397 = vld [vmem:[#allocation2 + $0x1d0] sm:$0xff]
  %v3398 = vld [vmem:[#allocation2 + $0x1d8] sm:$0xff]
  %v3399 = vld [vmem:[#allocation2 + $0x1e0] sm:$0xff]
  %v3400 = vld [vmem:[#allocation2 + $0x1e8] sm:$0xff]
  %v3401 = vld [vmem:[#allocation2 + $0x1f0] sm:$0xff]
  %v3402 = vld [vmem:[#allocation2 + $0x1f8] sm:$0xff]
  %v3403 = vpack.c.bf16 %v3340, %v3339
  %v3404 = vpack.c.bf16 %v3342, %v3341
  %v3405 = vpack.c.bf16 %v3344, %v3343
  %v3406 = vpack.c.bf16 %v3346, %v3345
  %v3407 = vpack.c.bf16 %v3348, %v3347
  %v3408 = vpack.c.bf16 %v3350, %v3349
  %v3409 = vpack.c.bf16 %v3352, %v3351
  %v3410 = vpack.c.bf16 %v3354, %v3353
  %v3411 = vpack.c.bf16 %v3356, %v3355
  %v3412 = vpack.c.bf16 %v3358, %v3357
  %v3413 = vpack.c.bf16 %v3360, %v3359
  %v3414 = vpack.c.bf16 %v3362, %v3361
  %v3415 = vpack.c.bf16 %v3364, %v3363
  %v3416 = vpack.c.bf16 %v3366, %v3365
  %v3417 = vpack.c.bf16 %v3368, %v3367
  %v3418 = vpack.c.bf16 %v3370, %v3369
  %v3419 = vpack.c.bf16 %v3372, %v3371
  %v3420 = vpack.c.bf16 %v3374, %v3373
  %v3421 = vpack.c.bf16 %v3376, %v3375
  %v3422 = vpack.c.bf16 %v3378, %v3377
  %v3423 = vpack.c.bf16 %v3380, %v3379
  %v3424 = vpack.c.bf16 %v3382, %v3381
  %v3425 = vpack.c.bf16 %v3384, %v3383
  %v3426 = vpack.c.bf16 %v3386, %v3385
  %v3427 = vpack.c.bf16 %v3388, %v3387
  %v3428 = vpack.c.bf16 %v3390, %v3389
  %v3429 = vpack.c.bf16 %v3392, %v3391
  %v3430 = vpack.c.bf16 %v3394, %v3393
  %v3431 = vpack.c.bf16 %v3396, %v3395
  %v3432 = vpack.c.bf16 %v3398, %v3397
  %v3433 = vpack.c.bf16 %v3400, %v3399
  %v3434 = vpack.c.bf16 %v3402, %v3401
  %v3435 = vld [vmem:[%s1] sm:$0xf]
  %v3436 = vld [vmem:[%s1 + $0x4] sm:$0xf]
  %v3437 = vld [vmem:[%s1 + $0x8] sm:$0xf]
  %v3438 = vld [vmem:[%s1 + $0xc] sm:$0xf]
  %v3439 = vld [vmem:[%s1 + $0x10] sm:$0xf]
  %v3440 = vld [vmem:[%s1 + $0x14] sm:$0xf]
  %v3441 = vld [vmem:[%s1 + $0x18] sm:$0xf]
  %v3442 = vld [vmem:[%s1 + $0x1c] sm:$0xf]
  %v3443 = vld [vmem:[%s1 + $0x20] sm:$0xf]
  %v3453 = vunpack.c.l.b16 %v3435
  %v3454 = vunpack.c.l.b16 %v3436
  %v3455 = vunpack.c.l.b16 %v3437
  %v3456 = vunpack.c.l.b16 %v3438
  %v3457 = vunpack.c.l.b16 %v3439
  %v3458 = vunpack.c.l.b16 %v3440
  %v3459 = vunpack.c.l.b16 %v3441
  %v3460 = vunpack.c.l.b16 %v3442
  %v3461 = vunpack.c.l.b16 %v3443
  %v3462 = vpack.c.b16 %v3454, %v3453
  %v3463 = vpack.c.b16 %v3456, %v3455
  %v3464 = vpack.c.b16 %v3458, %v3457
  %v3465 = vpack.c.b16 %v3460, %v3459
  %v3466 = vpack.c.b16 %v3461, %v3461
  %vm3471 = vcmask 588800
  %v3473 = vsel %vm3471, %v3403, 0
  %v3476 = vsel %vm3471, %v3404, 0
  %v3479 = vsel %vm3471, %v3405, 0
  %v3482 = vsel %vm3471, %v3406, 0
  %v3485 = vsel %vm3471, %v3407, 0
  %v3488 = vsel %vm3471, %v3408, 0
  %v3491 = vsel %vm3471, %v3409, 0
  %v3494 = vsel %vm3471, %v3410, 0
  %v3497 = vsel %vm3471, %v3411, 0
  %v3500 = vsel %vm3471, %v3412, 0
  %v3503 = vsel %vm3471, %v3413, 0
  %v3506 = vsel %vm3471, %v3414, 0
  %v3509 = vsel %vm3471, %v3415, 0
  %v3512 = vsel %vm3471, %v3416, 0
  %v3515 = vsel %vm3471, %v3417, 0
  %v3518 = vsel %vm3471, %v3418, 0
  %v3521 = vsel %vm3471, %v3419, 0
  %v3524 = vsel %vm3471, %v3420, 0
  %v3527 = vsel %vm3471, %v3421, 0
  %v3530 = vsel %vm3471, %v3422, 0
  %v3533 = vsel %vm3471, %v3423, 0
  %v3536 = vsel %vm3471, %v3424, 0
  %v3539 = vsel %vm3471, %v3425, 0
  %v3542 = vsel %vm3471, %v3426, 0
  %v3545 = vsel %vm3471, %v3427, 0
  %v3548 = vsel %vm3471, %v3428, 0
  %v3551 = vsel %vm3471, %v3429, 0
  %v3554 = vsel %vm3471, %v3430, 0
  %v3557 = vsel %vm3471, %v3431, 0
  %v3560 = vsel %vm3471, %v3432, 0
  %v3563 = vsel %vm3471, %v3433, 0
  %v3566 = vsel %vm3471, %v3434, 0
  %vm3568 = vcmask 1043456
  %v3570 = vsel %vm3568, %v3466, 0
  %3572 = vmatpush.bf16.msra.mxu0 0
  %3573 = vmatpush.bf16.msra.mxu0 0
  %3574 = vmatpush.bf16.msra.mxu0 0
  %3575 = vmatpush.bf16.msra.mxu0 %v3570
  %3576 = vmatpush.bf16.msra.mxu0 %v3465
  %3577 = vmatpush.bf16.msra.mxu0 %v3464
  %3578 = vmatpush.bf16.msra.mxu0 %v3463
  %3579 = vmatpush.bf16.msra.mxu0 %v3462
  %3580 = vmatmul.bf16.gmra.mxu0 %v3473
  %v3581 = vpop.f32.mrf.mxu0
  %v3582 = vadd.f32 0.0, %v3581
  %v3583 = vpop.f32.mrf.mxu0
  %v3584 = vadd.f32 0.0, %v3583
  %3585 = vmatmul.bf16.gmra.mxu0 %v3476
  %v3586 = vpop.f32.mrf.mxu0
  %v3587 = vadd.f32 0.0, %v3586
  %v3588 = vpop.f32.mrf.mxu0
  %v3589 = vadd.f32 0.0, %v3588
  %3590 = vmatmul.bf16.gmra.mxu0 %v3479
  %v3591 = vpop.f32.mrf.mxu0
  %v3592 = vadd.f32 0.0, %v3591
  %v3593 = vpop.f32.mrf.mxu0
  %v3594 = vadd.f32 0.0, %v3593
  %3595 = vmatmul.bf16.gmra.mxu0 %v3482
  %v3596 = vpop.f32.mrf.mxu0
  %v3597 = vadd.f32 0.0, %v3596
  %v3598 = vpop.f32.mrf.mxu0
  %v3599 = vadd.f32 0.0, %v3598
  %3600 = vmatmul.bf16.gmra.mxu0 %v3485
  %v3601 = vpop.f32.mrf.mxu0
  %v3602 = vadd.f32 0.0, %v3601
  %v3603 = vpop.f32.mrf.mxu0
  %v3604 = vadd.f32 0.0, %v3603
  %3605 = vmatmul.bf16.gmra.mxu0 %v3488
  %v3606 = vpop.f32.mrf.mxu0
  %v3607 = vadd.f32 0.0, %v3606
  %v3608 = vpop.f32.mrf.mxu0
  %v3609 = vadd.f32 0.0, %v3608
  %3610 = vmatmul.bf16.gmra.mxu0 %v3491
  %v3611 = vpop.f32.mrf.mxu0
  %v3612 = vadd.f32 0.0, %v3611
  %v3613 = vpop.f32.mrf.mxu0
  %v3614 = vadd.f32 0.0, %v3613
  %3615 = vmatmul.bf16.gmra.mxu0 %v3494
  %v3616 = vpop.f32.mrf.mxu0
  %v3617 = vadd.f32 0.0, %v3616
  %v3618 = vpop.f32.mrf.mxu0
  %v3619 = vadd.f32 0.0, %v3618
  %3620 = vmatmul.bf16.gmra.mxu0 %v3497
  %v3621 = vpop.f32.mrf.mxu0
  %v3622 = vadd.f32 0.0, %v3621
  %v3623 = vpop.f32.mrf.mxu0
  %v3624 = vadd.f32 0.0, %v3623
  %3625 = vmatmul.bf16.gmra.mxu0 %v3500
  %v3626 = vpop.f32.mrf.mxu0
  %v3627 = vadd.f32 0.0, %v3626
  %v3628 = vpop.f32.mrf.mxu0
  %v3629 = vadd.f32 0.0, %v3628
  %3630 = vmatmul.bf16.gmra.mxu0 %v3503
  %v3631 = vpop.f32.mrf.mxu0
  %v3632 = vadd.f32 0.0, %v3631
  %v3633 = vpop.f32.mrf.mxu0
  %v3634 = vadd.f32 0.0, %v3633
  %3635 = vmatmul.bf16.gmra.mxu0 %v3506
  %v3636 = vpop.f32.mrf.mxu0
  %v3637 = vadd.f32 0.0, %v3636
  %v3638 = vpop.f32.mrf.mxu0
  %v3639 = vadd.f32 0.0, %v3638
  %3640 = vmatmul.bf16.gmra.mxu0 %v3509
  %v3641 = vpop.f32.mrf.mxu0
  %v3642 = vadd.f32 0.0, %v3641
  %v3643 = vpop.f32.mrf.mxu0
  %v3644 = vadd.f32 0.0, %v3643
  %3645 = vmatmul.bf16.gmra.mxu0 %v3512
  %v3646 = vpop.f32.mrf.mxu0
  %v3647 = vadd.f32 0.0, %v3646
  %v3648 = vpop.f32.mrf.mxu0
  %v3649 = vadd.f32 0.0, %v3648
  %3650 = vmatmul.bf16.gmra.mxu0 %v3515
  %v3651 = vpop.f32.mrf.mxu0
  %v3652 = vadd.f32 0.0, %v3651
  %v3653 = vpop.f32.mrf.mxu0
  %v3654 = vadd.f32 0.0, %v3653
  %3655 = vmatmul.bf16.gmra.mxu0 %v3518
  %v3656 = vpop.f32.mrf.mxu0
  %v3657 = vadd.f32 0.0, %v3656
  %v3658 = vpop.f32.mrf.mxu0
  %v3659 = vadd.f32 0.0, %v3658
  %3660 = vmatmul.bf16.gmra.mxu0 %v3521
  %v3661 = vpop.f32.mrf.mxu0
  %v3662 = vadd.f32 0.0, %v3661
  %v3663 = vpop.f32.mrf.mxu0
  %v3664 = vadd.f32 0.0, %v3663
  %3665 = vmatmul.bf16.gmra.mxu0 %v3524
  %v3666 = vpop.f32.mrf.mxu0
  %v3667 = vadd.f32 0.0, %v3666
  %v3668 = vpop.f32.mrf.mxu0
  %v3669 = vadd.f32 0.0, %v3668
  %3670 = vmatmul.bf16.gmra.mxu0 %v3527
  %v3671 = vpop.f32.mrf.mxu0
  %v3672 = vadd.f32 0.0, %v3671
  %v3673 = vpop.f32.mrf.mxu0
  %v3674 = vadd.f32 0.0, %v3673
  %3675 = vmatmul.bf16.gmra.mxu0 %v3530
  %v3676 = vpop.f32.mrf.mxu0
  %v3677 = vadd.f32 0.0, %v3676
  %v3678 = vpop.f32.mrf.mxu0
  %v3679 = vadd.f32 0.0, %v3678
  %3680 = vmatmul.bf16.gmra.mxu0 %v3533
  %v3681 = vpop.f32.mrf.mxu0
  %v3682 = vadd.f32 0.0, %v3681
  %v3683 = vpop.f32.mrf.mxu0
  %v3684 = vadd.f32 0.0, %v3683
  %3685 = vmatmul.bf16.gmra.mxu0 %v3536
  %v3686 = vpop.f32.mrf.mxu0
  %v3687 = vadd.f32 0.0, %v3686
  %v3688 = vpop.f32.mrf.mxu0
  %v3689 = vadd.f32 0.0, %v3688
  %3690 = vmatmul.bf16.gmra.mxu0 %v3539
  %v3691 = vpop.f32.mrf.mxu0
  %v3692 = vadd.f32 0.0, %v3691
  %v3693 = vpop.f32.mrf.mxu0
  %v3694 = vadd.f32 0.0, %v3693
  %3695 = vmatmul.bf16.gmra.mxu0 %v3542
  %v3696 = vpop.f32.mrf.mxu0
  %v3697 = vadd.f32 0.0, %v3696
  %v3698 = vpop.f32.mrf.mxu0
  %v3699 = vadd.f32 0.0, %v3698
  %3700 = vmatmul.bf16.gmra.mxu0 %v3545
  %v3701 = vpop.f32.mrf.mxu0
  %v3702 = vadd.f32 0.0, %v3701
  %v3703 = vpop.f32.mrf.mxu0
  %v3704 = vadd.f32 0.0, %v3703
  %3705 = vmatmul.bf16.gmra.mxu0 %v3548
  %v3706 = vpop.f32.mrf.mxu0
  %v3707 = vadd.f32 0.0, %v3706
  %v3708 = vpop.f32.mrf.mxu0
  %v3709 = vadd.f32 0.0, %v3708
  %3710 = vmatmul.bf16.gmra.mxu0 %v3551
  %v3711 = vpop.f32.mrf.mxu0
  %v3712 = vadd.f32 0.0, %v3711
  %v3713 = vpop.f32.mrf.mxu0
  %v3714 = vadd.f32 0.0, %v3713
  %3715 = vmatmul.bf16.gmra.mxu0 %v3554
  %v3716 = vpop.f32.mrf.mxu0
  %v3717 = vadd.f32 0.0, %v3716
  %v3718 = vpop.f32.mrf.mxu0
  %v3719 = vadd.f32 0.0, %v3718
  %3720 = vmatmul.bf16.gmra.mxu0 %v3557
  %v3721 = vpop.f32.mrf.mxu0
  %v3722 = vadd.f32 0.0, %v3721
  %v3723 = vpop.f32.mrf.mxu0
  %v3724 = vadd.f32 0.0, %v3723
  %3725 = vmatmul.bf16.gmra.mxu0 %v3560
  %v3726 = vpop.f32.mrf.mxu0
  %v3727 = vadd.f32 0.0, %v3726
  %v3728 = vpop.f32.mrf.mxu0
  %v3729 = vadd.f32 0.0, %v3728
  %3730 = vmatmul.bf16.gmra.mxu0 %v3563
  %v3731 = vpop.f32.mrf.mxu0
  %v3732 = vadd.f32 0.0, %v3731
  %v3733 = vpop.f32.mrf.mxu0
  %v3734 = vadd.f32 0.0, %v3733
  %3735 = vmatmul.bf16.gmra.mxu0 %v3566
  %v3736 = vpop.f32.mrf.mxu0
  %v3737 = vadd.f32 0.0, %v3736
  %v3738 = vpop.f32.mrf.mxu0
  %v3739 = vadd.f32 0.0, %v3738
  %3740 = vdwg.mxu0
  %v3741 = vsel %vm27, %v3582, 0.0
  %v3742 = vsel %vm27, %v3584, 0.0
  %v3743 = vadd.f32 %v3741, %v3742
  %v3744 = vsel %vm27, %v3587, 0.0
  %v3745 = vadd.f32 %v3743, %v3744
  %v3746 = vsel %vm27, %v3589, 0.0
  %v3747 = vadd.f32 %v3745, %v3746
  %v3748 = vsel %vm27, %v3592, 0.0
  %v3749 = vadd.f32 %v3747, %v3748
  %v3750 = vsel %vm27, %v3594, 0.0
  %v3751 = vadd.f32 %v3749, %v3750
  %v3752 = vsel %vm27, %v3597, 0.0
  %v3753 = vadd.f32 %v3751, %v3752
  %v3754 = vsel %vm27, %v3599, 0.0
  %v3755 = vadd.f32 %v3753, %v3754
  %v3756 = vsel %vm27, %v3602, 0.0
  %v3757 = vadd.f32 %v3755, %v3756
  %v3758 = vsel %vm27, %v3604, 0.0
  %v3759 = vadd.f32 %v3757, %v3758
  %v3760 = vsel %vm27, %v3607, 0.0
  %v3761 = vadd.f32 %v3759, %v3760
  %v3762 = vsel %vm27, %v3609, 0.0
  %v3763 = vadd.f32 %v3761, %v3762
  %v3764 = vsel %vm27, %v3612, 0.0
  %v3765 = vadd.f32 %v3763, %v3764
  %v3766 = vsel %vm27, %v3614, 0.0
  %v3767 = vadd.f32 %v3765, %v3766
  %v3768 = vsel %vm27, %v3617, 0.0
  %v3769 = vadd.f32 %v3767, %v3768
  %v3770 = vsel %vm27, %v3619, 0.0
  %v3771 = vadd.f32 %v3769, %v3770
  %v3772 = vsel %vm27, %v3622, 0.0
  %v3773 = vadd.f32 %v3771, %v3772
  %v3774 = vsel %vm27, %v3624, 0.0
  %v3775 = vadd.f32 %v3773, %v3774
  %v3776 = vsel %vm27, %v3627, 0.0
  %v3777 = vadd.f32 %v3775, %v3776
  %v3778 = vsel %vm27, %v3629, 0.0
  %v3779 = vadd.f32 %v3777, %v3778
  %v3780 = vsel %vm27, %v3632, 0.0
  %v3781 = vadd.f32 %v3779, %v3780
  %v3782 = vsel %vm27, %v3634, 0.0
  %v3783 = vadd.f32 %v3781, %v3782
  %v3784 = vsel %vm27, %v3637, 0.0
  %v3785 = vadd.f32 %v3783, %v3784
  %v3786 = vsel %vm27, %v3639, 0.0
  %v3787 = vadd.f32 %v3785, %v3786
  %v3788 = vsel %vm27, %v3642, 0.0
  %v3789 = vadd.f32 %v3787, %v3788
  %v3790 = vsel %vm27, %v3644, 0.0
  %v3791 = vadd.f32 %v3789, %v3790
  %v3792 = vsel %vm27, %v3647, 0.0
  %v3793 = vadd.f32 %v3791, %v3792
  %v3794 = vsel %vm27, %v3649, 0.0
  %v3795 = vadd.f32 %v3793, %v3794
  %v3796 = vsel %vm27, %v3652, 0.0
  %v3797 = vadd.f32 %v3795, %v3796
  %v3798 = vsel %vm27, %v3654, 0.0
  %v3799 = vadd.f32 %v3797, %v3798
  %v3800 = vsel %vm27, %v3657, 0.0
  %v3801 = vadd.f32 %v3799, %v3800
  %v3802 = vsel %vm27, %v3659, 0.0
  %v3803 = vadd.f32 %v3801, %v3802
  %v3804 = vsel %vm27, %v3662, 0.0
  %v3805 = vadd.f32 %v3803, %v3804
  %v3806 = vsel %vm27, %v3664, 0.0
  %v3807 = vadd.f32 %v3805, %v3806
  %v3808 = vsel %vm27, %v3667, 0.0
  %v3809 = vadd.f32 %v3807, %v3808
  %v3810 = vsel %vm27, %v3669, 0.0
  %v3811 = vadd.f32 %v3809, %v3810
  %v3812 = vsel %vm27, %v3672, 0.0
  %v3813 = vadd.f32 %v3811, %v3812
  %v3814 = vsel %vm27, %v3674, 0.0
  %v3815 = vadd.f32 %v3813, %v3814
  %v3816 = vsel %vm27, %v3677, 0.0
  %v3817 = vadd.f32 %v3815, %v3816
  %v3818 = vsel %vm27, %v3679, 0.0
  %v3819 = vadd.f32 %v3817, %v3818
  %v3820 = vsel %vm27, %v3682, 0.0
  %v3821 = vadd.f32 %v3819, %v3820
  %v3822 = vsel %vm27, %v3684, 0.0
  %v3823 = vadd.f32 %v3821, %v3822
  %v3824 = vsel %vm27, %v3687, 0.0
  %v3825 = vadd.f32 %v3823, %v3824
  %v3826 = vsel %vm27, %v3689, 0.0
  %v3827 = vadd.f32 %v3825, %v3826
  %v3828 = vsel %vm27, %v3692, 0.0
  %v3829 = vadd.f32 %v3827, %v3828
  %v3830 = vsel %vm27, %v3694, 0.0
  %v3831 = vadd.f32 %v3829, %v3830
  %v3832 = vsel %vm27, %v3697, 0.0
  %v3833 = vadd.f32 %v3831, %v3832
  %v3834 = vsel %vm27, %v3699, 0.0
  %v3835 = vadd.f32 %v3833, %v3834
  %v3836 = vsel %vm27, %v3702, 0.0
  %v3837 = vadd.f32 %v3835, %v3836
  %v3838 = vsel %vm27, %v3704, 0.0
  %v3839 = vadd.f32 %v3837, %v3838
  %v3840 = vsel %vm27, %v3707, 0.0
  %v3841 = vadd.f32 %v3839, %v3840
  %v3842 = vsel %vm27, %v3709, 0.0
  %v3843 = vadd.f32 %v3841, %v3842
  %v3844 = vsel %vm27, %v3712, 0.0
  %v3845 = vadd.f32 %v3843, %v3844
  %v3846 = vsel %vm27, %v3714, 0.0
  %v3847 = vadd.f32 %v3845, %v3846
  %v3848 = vsel %vm27, %v3717, 0.0
  %v3849 = vadd.f32 %v3847, %v3848
  %v3850 = vsel %vm27, %v3719, 0.0
  %v3851 = vadd.f32 %v3849, %v3850
  %v3852 = vsel %vm27, %v3722, 0.0
  %v3853 = vadd.f32 %v3851, %v3852
  %v3854 = vsel %vm27, %v3724, 0.0
  %v3855 = vadd.f32 %v3853, %v3854
  %v3856 = vsel %vm27, %v3727, 0.0
  %v3857 = vadd.f32 %v3855, %v3856
  %v3858 = vsel %vm27, %v3729, 0.0
  %v3859 = vadd.f32 %v3857, %v3858
  %v3860 = vsel %vm27, %v3732, 0.0
  %v3861 = vadd.f32 %v3859, %v3860
  %v3862 = vsel %vm27, %v3734, 0.0
  %v3863 = vadd.f32 %v3861, %v3862
  %v3864 = vsel %vm27, %v3737, 0.0
  %v3865 = vadd.f32 %v3863, %v3864
  %v3866 = vsel %vm27, %v3739, 0.0
  %v3867 = vadd.f32 %v3865, %v3866
  %v3868 = vrot.slane %v3867, 4
  %v3869 = vadd.f32 %v3867, %v3868
  %v3870 = vrot.slane %v3869, 2
  %v3871 = vadd.f32 %v3869, %v3870
  %v3872 = vrot.slane %v3871, 1
  %v3873 = vadd.f32 %v3871, %v3872
  %v3874 = vmul.f32 %v3582, %v3582
  %v3875 = vmul.f32 %v3584, %v3584
  %v3876 = vmul.f32 %v3587, %v3587
  %v3877 = vmul.f32 %v3589, %v3589
  %v3878 = vmul.f32 %v3592, %v3592
  %v3879 = vmul.f32 %v3594, %v3594
  %v3880 = vmul.f32 %v3597, %v3597
  %v3881 = vmul.f32 %v3599, %v3599
  %v3882 = vmul.f32 %v3602, %v3602
  %v3883 = vmul.f32 %v3604, %v3604
  %v3884 = vmul.f32 %v3607, %v3607
  %v3885 = vmul.f32 %v3609, %v3609
  %v3886 = vmul.f32 %v3612, %v3612
  %v3887 = vmul.f32 %v3614, %v3614
  %v3888 = vmul.f32 %v3617, %v3617
  %v3889 = vmul.f32 %v3619, %v3619
  %v3890 = vmul.f32 %v3622, %v3622
  %v3891 = vmul.f32 %v3624, %v3624
  %v3892 = vmul.f32 %v3627, %v3627
  %v3893 = vmul.f32 %v3629, %v3629
  %v3894 = vmul.f32 %v3632, %v3632
  %v3895 = vmul.f32 %v3634, %v3634
  %v3896 = vmul.f32 %v3637, %v3637
  %v3897 = vmul.f32 %v3639, %v3639
  %v3898 = vmul.f32 %v3642, %v3642
  %v3899 = vmul.f32 %v3644, %v3644
  %v3900 = vmul.f32 %v3647, %v3647
  %v3901 = vmul.f32 %v3649, %v3649
  %v3902 = vmul.f32 %v3652, %v3652
  %v3903 = vmul.f32 %v3654, %v3654
  %v3904 = vmul.f32 %v3657, %v3657
  %v3905 = vmul.f32 %v3659, %v3659
  %v3906 = vmul.f32 %v3662, %v3662
  %v3907 = vmul.f32 %v3664, %v3664
  %v3908 = vmul.f32 %v3667, %v3667
  %v3909 = vmul.f32 %v3669, %v3669
  %v3910 = vmul.f32 %v3672, %v3672
  %v3911 = vmul.f32 %v3674, %v3674
  %v3912 = vmul.f32 %v3677, %v3677
  %v3913 = vmul.f32 %v3679, %v3679
  %v3914 = vmul.f32 %v3682, %v3682
  %v3915 = vmul.f32 %v3684, %v3684
  %v3916 = vmul.f32 %v3687, %v3687
  %v3917 = vmul.f32 %v3689, %v3689
  %v3918 = vmul.f32 %v3692, %v3692
  %v3919 = vmul.f32 %v3694, %v3694
  %v3920 = vmul.f32 %v3697, %v3697
  %v3921 = vmul.f32 %v3699, %v3699
  %v3922 = vmul.f32 %v3702, %v3702
  %v3923 = vmul.f32 %v3704, %v3704
  %v3924 = vmul.f32 %v3707, %v3707
  %v3925 = vmul.f32 %v3709, %v3709
  %v3926 = vmul.f32 %v3712, %v3712
  %v3927 = vmul.f32 %v3714, %v3714
  %v3928 = vmul.f32 %v3717, %v3717
  %v3929 = vmul.f32 %v3719, %v3719
  %v3930 = vmul.f32 %v3722, %v3722
  %v3931 = vmul.f32 %v3724, %v3724
  %v3932 = vmul.f32 %v3727, %v3727
  %v3933 = vmul.f32 %v3729, %v3729
  %v3934 = vmul.f32 %v3732, %v3732
  %v3935 = vmul.f32 %v3734, %v3734
  %v3936 = vmul.f32 %v3737, %v3737
  %v3937 = vmul.f32 %v3739, %v3739
  %v3938 = vsel %vm27, %v3874, 0.0
  %v3939 = vsel %vm27, %v3875, 0.0
  %v3940 = vadd.f32 %v3938, %v3939
  %v3941 = vsel %vm27, %v3876, 0.0
  %v3942 = vadd.f32 %v3940, %v3941
  %v3943 = vsel %vm27, %v3877, 0.0
  %v3944 = vadd.f32 %v3942, %v3943
  %v3945 = vsel %vm27, %v3878, 0.0
  %v3946 = vadd.f32 %v3944, %v3945
  %v3947 = vsel %vm27, %v3879, 0.0
  %v3948 = vadd.f32 %v3946, %v3947
  %v3949 = vsel %vm27, %v3880, 0.0
  %v3950 = vadd.f32 %v3948, %v3949
  %v3951 = vsel %vm27, %v3881, 0.0
  %v3952 = vadd.f32 %v3950, %v3951
  %v3953 = vsel %vm27, %v3882, 0.0
  %v3954 = vadd.f32 %v3952, %v3953
  %v3955 = vsel %vm27, %v3883, 0.0
  %v3956 = vadd.f32 %v3954, %v3955
  %v3957 = vsel %vm27, %v3884, 0.0
  %v3958 = vadd.f32 %v3956, %v3957
  %v3959 = vsel %vm27, %v3885, 0.0
  %v3960 = vadd.f32 %v3958, %v3959
  %v3961 = vsel %vm27, %v3886, 0.0
  %v3962 = vadd.f32 %v3960, %v3961
  %v3963 = vsel %vm27, %v3887, 0.0
  %v3964 = vadd.f32 %v3962, %v3963
  %v3965 = vsel %vm27, %v3888, 0.0
  %v3966 = vadd.f32 %v3964, %v3965
  %v3967 = vsel %vm27, %v3889, 0.0
  %v3968 = vadd.f32 %v3966, %v3967
  %v3969 = vsel %vm27, %v3890, 0.0
  %v3970 = vadd.f32 %v3968, %v3969
  %v3971 = vsel %vm27, %v3891, 0.0
  %v3972 = vadd.f32 %v3970, %v3971
  %v3973 = vsel %vm27, %v3892, 0.0
  %v3974 = vadd.f32 %v3972, %v3973
  %v3975 = vsel %vm27, %v3893, 0.0
  %v3976 = vadd.f32 %v3974, %v3975
  %v3977 = vsel %vm27, %v3894, 0.0
  %v3978 = vadd.f32 %v3976, %v3977
  %v3979 = vsel %vm27, %v3895, 0.0
  %v3980 = vadd.f32 %v3978, %v3979
  %v3981 = vsel %vm27, %v3896, 0.0
  %v3982 = vadd.f32 %v3980, %v3981
  %v3983 = vsel %vm27, %v3897, 0.0
  %v3984 = vadd.f32 %v3982, %v3983
  %v3985 = vsel %vm27, %v3898, 0.0
  %v3986 = vadd.f32 %v3984, %v3985
  %v3987 = vsel %vm27, %v3899, 0.0
  %v3988 = vadd.f32 %v3986, %v3987
  %v3989 = vsel %vm27, %v3900, 0.0
  %v3990 = vadd.f32 %v3988, %v3989
  %v3991 = vsel %vm27, %v3901, 0.0
  %v3992 = vadd.f32 %v3990, %v3991
  %v3993 = vsel %vm27, %v3902, 0.0
  %v3994 = vadd.f32 %v3992, %v3993
  %v3995 = vsel %vm27, %v3903, 0.0
  %v3996 = vadd.f32 %v3994, %v3995
  %v3997 = vsel %vm27, %v3904, 0.0
  %v3998 = vadd.f32 %v3996, %v3997
  %v3999 = vsel %vm27, %v3905, 0.0
  %v4000 = vadd.f32 %v3998, %v3999
  %v4001 = vsel %vm27, %v3906, 0.0
  %v4002 = vadd.f32 %v4000, %v4001
  %v4003 = vsel %vm27, %v3907, 0.0
  %v4004 = vadd.f32 %v4002, %v4003
  %v4005 = vsel %vm27, %v3908, 0.0
  %v4006 = vadd.f32 %v4004, %v4005
  %v4007 = vsel %vm27, %v3909, 0.0
  %v4008 = vadd.f32 %v4006, %v4007
  %v4009 = vsel %vm27, %v3910, 0.0
  %v4010 = vadd.f32 %v4008, %v4009
  %v4011 = vsel %vm27, %v3911, 0.0
  %v4012 = vadd.f32 %v4010, %v4011
  %v4013 = vsel %vm27, %v3912, 0.0
  %v4014 = vadd.f32 %v4012, %v4013
  %v4015 = vsel %vm27, %v3913, 0.0
  %v4016 = vadd.f32 %v4014, %v4015
  %v4017 = vsel %vm27, %v3914, 0.0
  %v4018 = vadd.f32 %v4016, %v4017
  %v4019 = vsel %vm27, %v3915, 0.0
  %v4020 = vadd.f32 %v4018, %v4019
  %v4021 = vsel %vm27, %v3916, 0.0
  %v4022 = vadd.f32 %v4020, %v4021
  %v4023 = vsel %vm27, %v3917, 0.0
  %v4024 = vadd.f32 %v4022, %v4023
  %v4025 = vsel %vm27, %v3918, 0.0
  %v4026 = vadd.f32 %v4024, %v4025
  %v4027 = vsel %vm27, %v3919, 0.0
  %v4028 = vadd.f32 %v4026, %v4027
  %v4029 = vsel %vm27, %v3920, 0.0
  %v4030 = vadd.f32 %v4028, %v4029
  %v4031 = vsel %vm27, %v3921, 0.0
  %v4032 = vadd.f32 %v4030, %v4031
  %v4033 = vsel %vm27, %v3922, 0.0
  %v4034 = vadd.f32 %v4032, %v4033
  %v4035 = vsel %vm27, %v3923, 0.0
  %v4036 = vadd.f32 %v4034, %v4035
  %v4037 = vsel %vm27, %v3924, 0.0
  %v4038 = vadd.f32 %v4036, %v4037
  %v4039 = vsel %vm27, %v3925, 0.0
  %v4040 = vadd.f32 %v4038, %v4039
  %v4041 = vsel %vm27, %v3926, 0.0
  %v4042 = vadd.f32 %v4040, %v4041
  %v4043 = vsel %vm27, %v3927, 0.0
  %v4044 = vadd.f32 %v4042, %v4043
  %v4045 = vsel %vm27, %v3928, 0.0
  %v4046 = vadd.f32 %v4044, %v4045
  %v4047 = vsel %vm27, %v3929, 0.0
  %v4048 = vadd.f32 %v4046, %v4047
  %v4049 = vsel %vm27, %v3930, 0.0
  %v4050 = vadd.f32 %v4048, %v4049
  %v4051 = vsel %vm27, %v3931, 0.0
  %v4052 = vadd.f32 %v4050, %v4051
  %v4053 = vsel %vm27, %v3932, 0.0
  %v4054 = vadd.f32 %v4052, %v4053
  %v4055 = vsel %vm27, %v3933, 0.0
  %v4056 = vadd.f32 %v4054, %v4055
  %v4057 = vsel %vm27, %v3934, 0.0
  %v4058 = vadd.f32 %v4056, %v4057
  %v4059 = vsel %vm27, %v3935, 0.0
  %v4060 = vadd.f32 %v4058, %v4059
  %v4061 = vsel %vm27, %v3936, 0.0
  %v4062 = vadd.f32 %v4060, %v4061
  %v4063 = vsel %vm27, %v3937, 0.0
  %v4064 = vadd.f32 %v4062, %v4063
  %v4065 = vrot.slane %v4064, 4
  %v4066 = vadd.f32 %v4064, %v4065
  %v4067 = vrot.slane %v4066, 2
  %v4068 = vadd.f32 %v4066, %v4067
  %v4069 = vrot.slane %v4068, 1
  %v4070 = vadd.f32 %v4068, %v4069
  %v4071 = vmul.f32 %v3873, 0.001953125
  %v4072 = vmul.f32 %v4070, 0.001953125
  %v4073 = vmul.f32 %v4071, %v4071
  %v4074 = vsub.f32 %v4072, %v4073
  %v4075 = vadd.f32 %v4074, 1e-05
  %v4076 = vrsqrt.pop %v4075
  %v4077 = vmul.f32 %v4076, %v4075
  %v4078 = vmul.f32 %v4077, %v4076
  %v4079 = vmul.f32 0.5, %v4078
  %v4080 = vsub.f32 1.5, %v4079
  %v4081 = vmul.f32 %v4076, %v4080
  %vm4082 = vweird.f32 %v4075
  %vm4083 = vweird.f32 %v4076
  %vm4084 = vmor %vm4082, %vm4083
  %v4085 = vsel %vm4084, %v4076, %v4081
  %v4086 = vld [vmem:[%s2] sm:$0x1]
  %v4087 = vmul.f32 %v4085, %v4086
  %v4088 = vld [vmem:[%s3] sm:$0x1]
  %v4089 = vmul.f32 %v4071, %v4087
  %v4090 = vsub.f32 %v4088, %v4089
  %v4091 = vperm.slane %v4087, 0
  %v4092 = vmul.f32 %v3582, %v4091
  %v4093 = vmul.f32 %v3584, %v4091
  %v4094 = vmul.f32 %v3587, %v4091
  %v4095 = vmul.f32 %v3589, %v4091
  %v4096 = vmul.f32 %v3592, %v4091
  %v4097 = vmul.f32 %v3594, %v4091
  %v4098 = vmul.f32 %v3597, %v4091
  %v4099 = vmul.f32 %v3599, %v4091
  %v4100 = vmul.f32 %v3602, %v4091
  %v4101 = vmul.f32 %v3604, %v4091
  %v4102 = vmul.f32 %v3607, %v4091
  %v4103 = vmul.f32 %v3609, %v4091
  %v4104 = vmul.f32 %v3612, %v4091
  %v4105 = vmul.f32 %v3614, %v4091
  %v4106 = vmul.f32 %v3617, %v4091
  %v4107 = vmul.f32 %v3619, %v4091
  %v4108 = vmul.f32 %v3622, %v4091
  %v4109 = vmul.f32 %v3624, %v4091
  %v4110 = vmul.f32 %v3627, %v4091
  %v4111 = vmul.f32 %v3629, %v4091
  %v4112 = vmul.f32 %v3632, %v4091
  %v4113 = vmul.f32 %v3634, %v4091
  %v4114 = vmul.f32 %v3637, %v4091
  %v4115 = vmul.f32 %v3639, %v4091
  %v4116 = vmul.f32 %v3642, %v4091
  %v4117 = vmul.f32 %v3644, %v4091
  %v4118 = vmul.f32 %v3647, %v4091
  %v4119 = vmul.f32 %v3649, %v4091
  %v4120 = vmul.f32 %v3652, %v4091
  %v4121 = vmul.f32 %v3654, %v4091
  %v4122 = vmul.f32 %v3657, %v4091
  %v4123 = vmul.f32 %v3659, %v4091
  %v4124 = vmul.f32 %v3662, %v4091
  %v4125 = vmul.f32 %v3664, %v4091
  %v4126 = vmul.f32 %v3667, %v4091
  %v4127 = vmul.f32 %v3669, %v4091
  %v4128 = vmul.f32 %v3672, %v4091
  %v4129 = vmul.f32 %v3674, %v4091
  %v4130 = vmul.f32 %v3677, %v4091
  %v4131 = vmul.f32 %v3679, %v4091
  %v4132 = vmul.f32 %v3682, %v4091
  %v4133 = vmul.f32 %v3684, %v4091
  %v4134 = vmul.f32 %v3687, %v4091
  %v4135 = vmul.f32 %v3689, %v4091
  %v4136 = vmul.f32 %v3692, %v4091
  %v4137 = vmul.f32 %v3694, %v4091
  %v4138 = vmul.f32 %v3697, %v4091
  %v4139 = vmul.f32 %v3699, %v4091
  %v4140 = vmul.f32 %v3702, %v4091
  %v4141 = vmul.f32 %v3704, %v4091
  %v4142 = vmul.f32 %v3707, %v4091
  %v4143 = vmul.f32 %v3709, %v4091
  %v4144 = vmul.f32 %v3712, %v4091
  %v4145 = vmul.f32 %v3714, %v4091
  %v4146 = vmul.f32 %v3717, %v4091
  %v4147 = vmul.f32 %v3719, %v4091
  %v4148 = vmul.f32 %v3722, %v4091
  %v4149 = vmul.f32 %v3724, %v4091
  %v4150 = vmul.f32 %v3727, %v4091
  %v4151 = vmul.f32 %v3729, %v4091
  %v4152 = vmul.f32 %v3732, %v4091
  %v4153 = vmul.f32 %v3734, %v4091
  %v4154 = vmul.f32 %v3737, %v4091
  %v4155 = vmul.f32 %v3739, %v4091
  %v4157 = vperm.slane %v4090, 0
  %v4159 = vadd.f32 %v4092, %v4157
  %v4160 = vadd.f32 %v4093, %v4157
  %v4161 = vadd.f32 %v4094, %v4157
  %v4162 = vadd.f32 %v4095, %v4157
  %v4163 = vadd.f32 %v4096, %v4157
  %v4164 = vadd.f32 %v4097, %v4157
  %v4165 = vadd.f32 %v4098, %v4157
  %v4166 = vadd.f32 %v4099, %v4157
  %v4167 = vadd.f32 %v4100, %v4157
  %v4168 = vadd.f32 %v4101, %v4157
  %v4169 = vadd.f32 %v4102, %v4157
  %v4170 = vadd.f32 %v4103, %v4157
  %v4171 = vadd.f32 %v4104, %v4157
  %v4172 = vadd.f32 %v4105, %v4157
  %v4173 = vadd.f32 %v4106, %v4157
  %v4174 = vadd.f32 %v4107, %v4157
  %v4175 = vadd.f32 %v4108, %v4157
  %v4176 = vadd.f32 %v4109, %v4157
  %v4177 = vadd.f32 %v4110, %v4157
  %v4178 = vadd.f32 %v4111, %v4157
  %v4179 = vadd.f32 %v4112, %v4157
  %v4180 = vadd.f32 %v4113, %v4157
  %v4181 = vadd.f32 %v4114, %v4157
  %v4182 = vadd.f32 %v4115, %v4157
  %v4183 = vadd.f32 %v4116, %v4157
  %v4184 = vadd.f32 %v4117, %v4157
  %v4185 = vadd.f32 %v4118, %v4157
  %v4186 = vadd.f32 %v4119, %v4157
  %v4187 = vadd.f32 %v4120, %v4157
  %v4188 = vadd.f32 %v4121, %v4157
  %v4189 = vadd.f32 %v4122, %v4157
  %v4190 = vadd.f32 %v4123, %v4157
  %v4191 = vadd.f32 %v4124, %v4157
  %v4192 = vadd.f32 %v4125, %v4157
  %v4193 = vadd.f32 %v4126, %v4157
  %v4194 = vadd.f32 %v4127, %v4157
  %v4195 = vadd.f32 %v4128, %v4157
  %v4196 = vadd.f32 %v4129, %v4157
  %v4197 = vadd.f32 %v4130, %v4157
  %v4198 = vadd.f32 %v4131, %v4157
  %v4199 = vadd.f32 %v4132, %v4157
  %v4200 = vadd.f32 %v4133, %v4157
  %v4201 = vadd.f32 %v4134, %v4157
  %v4202 = vadd.f32 %v4135, %v4157
  %v4203 = vadd.f32 %v4136, %v4157
  %v4204 = vadd.f32 %v4137, %v4157
  %v4205 = vadd.f32 %v4138, %v4157
  %v4206 = vadd.f32 %v4139, %v4157
  %v4207 = vadd.f32 %v4140, %v4157
  %v4208 = vadd.f32 %v4141, %v4157
  %v4209 = vadd.f32 %v4142, %v4157
  %v4210 = vadd.f32 %v4143, %v4157
  %v4211 = vadd.f32 %v4144, %v4157
  %v4212 = vadd.f32 %v4145, %v4157
  %v4213 = vadd.f32 %v4146, %v4157
  %v4214 = vadd.f32 %v4147, %v4157
  %v4215 = vadd.f32 %v4148, %v4157
  %v4216 = vadd.f32 %v4149, %v4157
  %v4217 = vadd.f32 %v4150, %v4157
  %v4218 = vadd.f32 %v4151, %v4157
  %v4219 = vadd.f32 %v4152, %v4157
  %v4220 = vadd.f32 %v4153, %v4157
  %v4221 = vadd.f32 %v4154, %v4157
  %v4222 = vadd.f32 %v4155, %v4157
  %v4223 = vmax.f32 %v4159, 0.0
  %v4224 = vmax.f32 %v4160, 0.0
  %v4225 = vmax.f32 %v4161, 0.0
  %v4226 = vmax.f32 %v4162, 0.0
  %v4227 = vmax.f32 %v4163, 0.0
  %v4228 = vmax.f32 %v4164, 0.0
  %v4229 = vmax.f32 %v4165, 0.0
  %v4230 = vmax.f32 %v4166, 0.0
  %v4231 = vmax.f32 %v4167, 0.0
  %v4232 = vmax.f32 %v4168, 0.0
  %v4233 = vmax.f32 %v4169, 0.0
  %v4234 = vmax.f32 %v4170, 0.0
  %v4235 = vmax.f32 %v4171, 0.0
  %v4236 = vmax.f32 %v4172, 0.0
  %v4237 = vmax.f32 %v4173, 0.0
  %v4238 = vmax.f32 %v4174, 0.0
  %v4239 = vmax.f32 %v4175, 0.0
  %v4240 = vmax.f32 %v4176, 0.0
  %v4241 = vmax.f32 %v4177, 0.0
  %v4242 = vmax.f32 %v4178, 0.0
  %v4243 = vmax.f32 %v4179, 0.0
  %v4244 = vmax.f32 %v4180, 0.0
  %v4245 = vmax.f32 %v4181, 0.0
  %v4246 = vmax.f32 %v4182, 0.0
  %v4247 = vmax.f32 %v4183, 0.0
  %v4248 = vmax.f32 %v4184, 0.0
  %v4249 = vmax.f32 %v4185, 0.0
  %v4250 = vmax.f32 %v4186, 0.0
  %v4251 = vmax.f32 %v4187, 0.0
  %v4252 = vmax.f32 %v4188, 0.0
  %v4253 = vmax.f32 %v4189, 0.0
  %v4254 = vmax.f32 %v4190, 0.0
  %v4255 = vmax.f32 %v4191, 0.0
  %v4256 = vmax.f32 %v4192, 0.0
  %v4257 = vmax.f32 %v4193, 0.0
  %v4258 = vmax.f32 %v4194, 0.0
  %v4259 = vmax.f32 %v4195, 0.0
  %v4260 = vmax.f32 %v4196, 0.0
  %v4261 = vmax.f32 %v4197, 0.0
  %v4262 = vmax.f32 %v4198, 0.0
  %v4263 = vmax.f32 %v4199, 0.0
  %v4264 = vmax.f32 %v4200, 0.0
  %v4265 = vmax.f32 %v4201, 0.0
  %v4266 = vmax.f32 %v4202, 0.0
  %v4267 = vmax.f32 %v4203, 0.0
  %v4268 = vmax.f32 %v4204, 0.0
  %v4269 = vmax.f32 %v4205, 0.0
  %v4270 = vmax.f32 %v4206, 0.0
  %v4271 = vmax.f32 %v4207, 0.0
  %v4272 = vmax.f32 %v4208, 0.0
  %v4273 = vmax.f32 %v4209, 0.0
  %v4274 = vmax.f32 %v4210, 0.0
  %v4275 = vmax.f32 %v4211, 0.0
  %v4276 = vmax.f32 %v4212, 0.0
  %v4277 = vmax.f32 %v4213, 0.0
  %v4278 = vmax.f32 %v4214, 0.0
  %v4279 = vmax.f32 %v4215, 0.0
  %v4280 = vmax.f32 %v4216, 0.0
  %v4281 = vmax.f32 %v4217, 0.0
  %v4282 = vmax.f32 %v4218, 0.0
  %v4283 = vmax.f32 %v4219, 0.0
  %v4284 = vmax.f32 %v4220, 0.0
  %v4285 = vmax.f32 %v4221, 0.0
  %v4286 = vmax.f32 %v4222, 0.0
  %4287 = vst.msk [vmem:[#allocation3] sm:$0xff] %vm27, %v4223
  %4288 = vst.msk [vmem:[#allocation3 + $0x8] sm:$0xff] %vm27, %v4224
  %4289 = vst.msk [vmem:[#allocation3 + $0x10] sm:$0xff] %vm27, %v4225
  %4290 = vst.msk [vmem:[#allocation3 + $0x18] sm:$0xff] %vm27, %v4226
  %4291 = vst.msk [vmem:[#allocation3 + $0x20] sm:$0xff] %vm27, %v4227
  %4292 = vst.msk [vmem:[#allocation3 + $0x28] sm:$0xff] %vm27, %v4228
  %4293 = vst.msk [vmem:[#allocation3 + $0x30] sm:$0xff] %vm27, %v4229
  %4294 = vst.msk [vmem:[#allocation3 + $0x38] sm:$0xff] %vm27, %v4230
  %4295 = vst.msk [vmem:[#allocation3 + $0x40] sm:$0xff] %vm27, %v4231
  %4296 = vst.msk [vmem:[#allocation3 + $0x48] sm:$0xff] %vm27, %v4232
  %4297 = vst.msk [vmem:[#allocation3 + $0x50] sm:$0xff] %vm27, %v4233
  %4298 = vst.msk [vmem:[#allocation3 + $0x58] sm:$0xff] %vm27, %v4234
  %4299 = vst.msk [vmem:[#allocation3 + $0x60] sm:$0xff] %vm27, %v4235
  %4300 = vst.msk [vmem:[#allocation3 + $0x68] sm:$0xff] %vm27, %v4236
  %4301 = vst.msk [vmem:[#allocation3 + $0x70] sm:$0xff] %vm27, %v4237
  %4302 = vst.msk [vmem:[#allocation3 + $0x78] sm:$0xff] %vm27, %v4238
  %4303 = vst.msk [vmem:[#allocation3 + $0x80] sm:$0xff] %vm27, %v4239
  %4304 = vst.msk [vmem:[#allocation3 + $0x88] sm:$0xff] %vm27, %v4240
  %4305 = vst.msk [vmem:[#allocation3 + $0x90] sm:$0xff] %vm27, %v4241
  %4306 = vst.msk [vmem:[#allocation3 + $0x98] sm:$0xff] %vm27, %v4242
  %4307 = vst.msk [vmem:[#allocation3 + $0xa0] sm:$0xff] %vm27, %v4243
  %4308 = vst.msk [vmem:[#allocation3 + $0xa8] sm:$0xff] %vm27, %v4244
  %4309 = vst.msk [vmem:[#allocation3 + $0xb0] sm:$0xff] %vm27, %v4245
  %4310 = vst.msk [vmem:[#allocation3 + $0xb8] sm:$0xff] %vm27, %v4246
  %4311 = vst.msk [vmem:[#allocation3 + $0xc0] sm:$0xff] %vm27, %v4247
  %4312 = vst.msk [vmem:[#allocation3 + $0xc8] sm:$0xff] %vm27, %v4248
  %4313 = vst.msk [vmem:[#allocation3 + $0xd0] sm:$0xff] %vm27, %v4249
  %4314 = vst.msk [vmem:[#allocation3 + $0xd8] sm:$0xff] %vm27, %v4250
  %4315 = vst.msk [vmem:[#allocation3 + $0xe0] sm:$0xff] %vm27, %v4251
  %4316 = vst.msk [vmem:[#allocation3 + $0xe8] sm:$0xff] %vm27, %v4252
  %4317 = vst.msk [vmem:[#allocation3 + $0xf0] sm:$0xff] %vm27, %v4253
  %4318 = vst.msk [vmem:[#allocation3 + $0xf8] sm:$0xff] %vm27, %v4254
  %4319 = vst.msk [vmem:[#allocation3 + $0x100] sm:$0xff] %vm27, %v4255
  %4320 = vst.msk [vmem:[#allocation3 + $0x108] sm:$0xff] %vm27, %v4256
  %4321 = vst.msk [vmem:[#allocation3 + $0x110] sm:$0xff] %vm27, %v4257
  %4322 = vst.msk [vmem:[#allocation3 + $0x118] sm:$0xff] %vm27, %v4258
  %4323 = vst.msk [vmem:[#allocation3 + $0x120] sm:$0xff] %vm27, %v4259
  %4324 = vst.msk [vmem:[#allocation3 + $0x128] sm:$0xff] %vm27, %v4260
  %4325 = vst.msk [vmem:[#allocation3 + $0x130] sm:$0xff] %vm27, %v4261
  %4326 = vst.msk [vmem:[#allocation3 + $0x138] sm:$0xff] %vm27, %v4262
  %4327 = vst.msk [vmem:[#allocation3 + $0x140] sm:$0xff] %vm27, %v4263
  %4328 = vst.msk [vmem:[#allocation3 + $0x148] sm:$0xff] %vm27, %v4264
  %4329 = vst.msk [vmem:[#allocation3 + $0x150] sm:$0xff] %vm27, %v4265
  %4330 = vst.msk [vmem:[#allocation3 + $0x158] sm:$0xff] %vm27, %v4266
  %4331 = vst.msk [vmem:[#allocation3 + $0x160] sm:$0xff] %vm27, %v4267
  %4332 = vst.msk [vmem:[#allocation3 + $0x168] sm:$0xff] %vm27, %v4268
  %4333 = vst.msk [vmem:[#allocation3 + $0x170] sm:$0xff] %vm27, %v4269
  %4334 = vst.msk [vmem:[#allocation3 + $0x178] sm:$0xff] %vm27, %v4270
  %4335 = vst.msk [vmem:[#allocation3 + $0x180] sm:$0xff] %vm27, %v4271
  %4336 = vst.msk [vmem:[#allocation3 + $0x188] sm:$0xff] %vm27, %v4272
  %4337 = vst.msk [vmem:[#allocation3 + $0x190] sm:$0xff] %vm27, %v4273
  %4338 = vst.msk [vmem:[#allocation3 + $0x198] sm:$0xff] %vm27, %v4274
  %4339 = vst.msk [vmem:[#allocation3 + $0x1a0] sm:$0xff] %vm27, %v4275
  %4340 = vst.msk [vmem:[#allocation3 + $0x1a8] sm:$0xff] %vm27, %v4276
  %4341 = vst.msk [vmem:[#allocation3 + $0x1b0] sm:$0xff] %vm27, %v4277
  %4342 = vst.msk [vmem:[#allocation3 + $0x1b8] sm:$0xff] %vm27, %v4278
  %4343 = vst.msk [vmem:[#allocation3 + $0x1c0] sm:$0xff] %vm27, %v4279
  %4344 = vst.msk [vmem:[#allocation3 + $0x1c8] sm:$0xff] %vm27, %v4280
  %4345 = vst.msk [vmem:[#allocation3 + $0x1d0] sm:$0xff] %vm27, %v4281
  %4346 = vst.msk [vmem:[#allocation3 + $0x1d8] sm:$0xff] %vm27, %v4282
  %4347 = vst.msk [vmem:[#allocation3 + $0x1e0] sm:$0xff] %vm27, %v4283
  %4348 = vst.msk [vmem:[#allocation3 + $0x1e8] sm:$0xff] %vm27, %v4284
  %4349 = vst.msk [vmem:[#allocation3 + $0x1f0] sm:$0xff] %vm27, %v4285
  %4350 = vst.msk [vmem:[#allocation3 + $0x1f8] sm:$0xff] %vm27, %v4286
  %v4351 = vld [vmem:[#allocation3] sm:$0xff]
  %v4352 = vld [vmem:[#allocation3 + $0x8] sm:$0x7f]
  %v4353 = vld [vmem:[#allocation3 + $0x10] sm:$0xff]
  %v4354 = vld [vmem:[#allocation3 + $0x18] sm:$0x7f]
  %v4355 = vld [vmem:[#allocation3 + $0x20] sm:$0xff]
  %v4356 = vld [vmem:[#allocation3 + $0x28] sm:$0x7f]
  %v4357 = vld [vmem:[#allocation3 + $0x30] sm:$0xff]
  %v4358 = vld [vmem:[#allocation3 + $0x38] sm:$0x7f]
  %v4359 = vld [vmem:[#allocation3 + $0x40] sm:$0xff]
  %v4360 = vld [vmem:[#allocation3 + $0x48] sm:$0x7f]
  %v4361 = vld [vmem:[#allocation3 + $0x50] sm:$0xff]
  %v4362 = vld [vmem:[#allocation3 + $0x58] sm:$0x7f]
  %v4363 = vld [vmem:[#allocation3 + $0x60] sm:$0xff]
  %v4364 = vld [vmem:[#allocation3 + $0x68] sm:$0x7f]
  %v4365 = vld [vmem:[#allocation3 + $0x70] sm:$0xff]
  %v4366 = vld [vmem:[#allocation3 + $0x78] sm:$0x7f]
  %v4367 = vld [vmem:[#allocation3 + $0x80] sm:$0xff]
  %v4368 = vld [vmem:[#allocation3 + $0x88] sm:$0x7f]
  %v4369 = vld [vmem:[#allocation3 + $0x90] sm:$0xff]
  %v4370 = vld [vmem:[#allocation3 + $0x98] sm:$0x7f]
  %v4371 = vld [vmem:[#allocation3 + $0xa0] sm:$0xff]
  %v4372 = vld [vmem:[#allocation3 + $0xa8] sm:$0x7f]
  %v4373 = vld [vmem:[#allocation3 + $0xb0] sm:$0xff]
  %v4374 = vld [vmem:[#allocation3 + $0xb8] sm:$0x7f]
  %v4375 = vld [vmem:[#allocation3 + $0xc0] sm:$0xff]
  %v4376 = vld [vmem:[#allocation3 + $0xc8] sm:$0x7f]
  %v4377 = vld [vmem:[#allocation3 + $0xd0] sm:$0xff]
  %v4378 = vld [vmem:[#allocation3 + $0xd8] sm:$0x7f]
  %v4379 = vld [vmem:[#allocation3 + $0xe0] sm:$0xff]
  %v4380 = vld [vmem:[#allocation3 + $0xe8] sm:$0x7f]
  %v4381 = vld [vmem:[#allocation3 + $0x100] sm:$0xff]
  %v4382 = vld [vmem:[#allocation3 + $0x108] sm:$0x7f]
  %v4383 = vld [vmem:[#allocation3 + $0x110] sm:$0xff]
  %v4384 = vld [vmem:[#allocation3 + $0x118] sm:$0x7f]
  %v4385 = vld [vmem:[#allocation3 + $0x120] sm:$0xff]
  %v4386 = vld [vmem:[#allocation3 + $0x128] sm:$0x7f]
  %v4387 = vld [vmem:[#allocation3 + $0x130] sm:$0xff]
  %v4388 = vld [vmem:[#allocation3 + $0x138] sm:$0x7f]
  %v4389 = vld [vmem:[#allocation3 + $0x140] sm:$0xff]
  %v4390 = vld [vmem:[#allocation3 + $0x148] sm:$0x7f]
  %v4391 = vld [vmem:[#allocation3 + $0x150] sm:$0xff]
  %v4392 = vld [vmem:[#allocation3 + $0x158] sm:$0x7f]
  %v4393 = vld [vmem:[#allocation3 + $0x160] sm:$0xff]
  %v4394 = vld [vmem:[#allocation3 + $0x168] sm:$0x7f]
  %v4395 = vld [vmem:[#allocation3 + $0x170] sm:$0xff]
  %v4396 = vld [vmem:[#allocation3 + $0x178] sm:$0x7f]
  %v4397 = vld [vmem:[#allocation3 + $0x180] sm:$0xff]
  %v4398 = vld [vmem:[#allocation3 + $0x188] sm:$0x7f]
  %v4399 = vld [vmem:[#allocation3 + $0x190] sm:$0xff]
  %v4400 = vld [vmem:[#allocation3 + $0x198] sm:$0x7f]
  %v4401 = vld [vmem:[#allocation3 + $0x1a0] sm:$0xff]
  %v4402 = vld [vmem:[#allocation3 + $0x1a8] sm:$0x7f]
  %v4403 = vld [vmem:[#allocation3 + $0x1b0] sm:$0xff]
  %v4404 = vld [vmem:[#allocation3 + $0x1b8] sm:$0x7f]
  %v4405 = vld [vmem:[#allocation3 + $0x1c0] sm:$0xff]
  %v4406 = vld [vmem:[#allocation3 + $0x1c8] sm:$0x7f]
  %v4407 = vld [vmem:[#allocation3 + $0x1d0] sm:$0xff]
  %v4408 = vld [vmem:[#allocation3 + $0x1d8] sm:$0x7f]
  %v4409 = vld [vmem:[#allocation3 + $0x1e0] sm:$0xff]
  %v4410 = vld [vmem:[#allocation3 + $0x1e8] sm:$0x7f]
  %4411 = vst.msk [vmem:[%s316 + $0x1] sm:$0xff] %vm27, %v4351
  %4412 = vst.msk [vmem:[%s316 + $0x9] sm:$0x7f] %vm318, %v4352
  %4413 = vst.msk [vmem:[%s316 + $0x11] sm:$0xff] %vm27, %v4353
  %4414 = vst.msk [vmem:[%s316 + $0x19] sm:$0x7f] %vm318, %v4354
  %4415 = vst.msk [vmem:[%s316 + $0x21] sm:$0xff] %vm27, %v4355
  %4416 = vst.msk [vmem:[%s316 + $0x29] sm:$0x7f] %vm318, %v4356
  %4417 = vst.msk [vmem:[%s316 + $0x31] sm:$0xff] %vm27, %v4357
  %4418 = vst.msk [vmem:[%s316 + $0x39] sm:$0x7f] %vm318, %v4358
  %4419 = vst.msk [vmem:[%s316 + $0x41] sm:$0xff] %vm27, %v4359
  %4420 = vst.msk [vmem:[%s316 + $0x49] sm:$0x7f] %vm318, %v4360
  %4421 = vst.msk [vmem:[%s316 + $0x51] sm:$0xff] %vm27, %v4361
  %4422 = vst.msk [vmem:[%s316 + $0x59] sm:$0x7f] %vm318, %v4362
  %4423 = vst.msk [vmem:[%s316 + $0x61] sm:$0xff] %vm27, %v4363
  %4424 = vst.msk [vmem:[%s316 + $0x69] sm:$0x7f] %vm318, %v4364
  %4425 = vst.msk [vmem:[%s316 + $0x71] sm:$0xff] %vm27, %v4365
  %4426 = vst.msk [vmem:[%s316 + $0x79] sm:$0x7f] %vm318, %v4366
  %4427 = vst.msk [vmem:[%s316 + $0x81] sm:$0xff] %vm27, %v4367
  %4428 = vst.msk [vmem:[%s316 + $0x89] sm:$0x7f] %vm318, %v4368
  %4429 = vst.msk [vmem:[%s316 + $0x91] sm:$0xff] %vm27, %v4369
  %4430 = vst.msk [vmem:[%s316 + $0x99] sm:$0x7f] %vm318, %v4370
  %4431 = vst.msk [vmem:[%s316 + $0xa1] sm:$0xff] %vm27, %v4371
  %4432 = vst.msk [vmem:[%s316 + $0xa9] sm:$0x7f] %vm318, %v4372
  %4433 = vst.msk [vmem:[%s316 + $0xb1] sm:$0xff] %vm27, %v4373
  %4434 = vst.msk [vmem:[%s316 + $0xb9] sm:$0x7f] %vm318, %v4374
  %4435 = vst.msk [vmem:[%s316 + $0xc1] sm:$0xff] %vm27, %v4375
  %4436 = vst.msk [vmem:[%s316 + $0xc9] sm:$0x7f] %vm318, %v4376
  %4437 = vst.msk [vmem:[%s316 + $0xd1] sm:$0xff] %vm27, %v4377
  %4438 = vst.msk [vmem:[%s316 + $0xd9] sm:$0x7f] %vm318, %v4378
  %4439 = vst.msk [vmem:[%s316 + $0xe1] sm:$0xff] %vm27, %v4379
  %4440 = vst.msk [vmem:[%s316 + $0xe9] sm:$0x7f] %vm318, %v4380
  %4441 = vst.msk [vmem:[%s316 + $0x101] sm:$0xff] %vm27, %v4381
  %4442 = vst.msk [vmem:[%s316 + $0x109] sm:$0x7f] %vm318, %v4382
  %4443 = vst.msk [vmem:[%s316 + $0x111] sm:$0xff] %vm27, %v4383
  %4444 = vst.msk [vmem:[%s316 + $0x119] sm:$0x7f] %vm318, %v4384
  %4445 = vst.msk [vmem:[%s316 + $0x121] sm:$0xff] %vm27, %v4385
  %4446 = vst.msk [vmem:[%s316 + $0x129] sm:$0x7f] %vm318, %v4386
  %4447 = vst.msk [vmem:[%s316 + $0x131] sm:$0xff] %vm27, %v4387
  %4448 = vst.msk [vmem:[%s316 + $0x139] sm:$0x7f] %vm318, %v4388
  %4449 = vst.msk [vmem:[%s316 + $0x141] sm:$0xff] %vm27, %v4389
  %4450 = vst.msk [vmem:[%s316 + $0x149] sm:$0x7f] %vm318, %v4390
  %4451 = vst.msk [vmem:[%s316 + $0x151] sm:$0xff] %vm27, %v4391
  %4452 = vst.msk [vmem:[%s316 + $0x159] sm:$0x7f] %vm318, %v4392
  %4453 = vst.msk [vmem:[%s316 + $0x161] sm:$0xff] %vm27, %v4393
  %4454 = vst.msk [vmem:[%s316 + $0x169] sm:$0x7f] %vm318, %v4394
  %4455 = vst.msk [vmem:[%s316 + $0x171] sm:$0xff] %vm27, %v4395
  %4456 = vst.msk [vmem:[%s316 + $0x179] sm:$0x7f] %vm318, %v4396
  %4457 = vst.msk [vmem:[%s316 + $0x181] sm:$0xff] %vm27, %v4397
  %4458 = vst.msk [vmem:[%s316 + $0x189] sm:$0x7f] %vm318, %v4398
  %4459 = vst.msk [vmem:[%s316 + $0x191] sm:$0xff] %vm27, %v4399
  %4460 = vst.msk [vmem:[%s316 + $0x199] sm:$0x7f] %vm318, %v4400
  %4461 = vst.msk [vmem:[%s316 + $0x1a1] sm:$0xff] %vm27, %v4401
  %4462 = vst.msk [vmem:[%s316 + $0x1a9] sm:$0x7f] %vm318, %v4402
  %4463 = vst.msk [vmem:[%s316 + $0x1b1] sm:$0xff] %vm27, %v4403
  %4464 = vst.msk [vmem:[%s316 + $0x1b9] sm:$0x7f] %vm318, %v4404
  %4465 = vst.msk [vmem:[%s316 + $0x1c1] sm:$0xff] %vm27, %v4405
  %4466 = vst.msk [vmem:[%s316 + $0x1c9] sm:$0x7f] %vm318, %v4406
  %4467 = vst.msk [vmem:[%s316 + $0x1d1] sm:$0xff] %vm27, %v4407
  %4468 = vst.msk [vmem:[%s316 + $0x1d9] sm:$0x7f] %vm318, %v4408
  %4469 = vst.msk [vmem:[%s316 + $0x1e1] sm:$0xff] %vm27, %v4409
  %4470 = vst.msk [vmem:[%s316 + $0x1e9] sm:$0x7f] %vm318, %v4410
  %v4471 = vld [vmem:[#allocation3] sm:$0xff]
  %v4472 = vld [vmem:[#allocation3 + $0x8] sm:$0xff]
  %v4473 = vld [vmem:[#allocation3 + $0x10] sm:$0xff]
  %v4474 = vld [vmem:[#allocation3 + $0x18] sm:$0xff]
  %v4475 = vld [vmem:[#allocation3 + $0x20] sm:$0xff]
  %v4476 = vld [vmem:[#allocation3 + $0x28] sm:$0xff]
  %v4477 = vld [vmem:[#allocation3 + $0x30] sm:$0xff]
  %v4478 = vld [vmem:[#allocation3 + $0x38] sm:$0xff]
  %v4479 = vld [vmem:[#allocation3 + $0x40] sm:$0xff]
  %v4480 = vld [vmem:[#allocation3 + $0x48] sm:$0xff]
  %v4481 = vld [vmem:[#allocation3 + $0x50] sm:$0xff]
  %v4482 = vld [vmem:[#allocation3 + $0x58] sm:$0xff]
  %v4483 = vld [vmem:[#allocation3 + $0x60] sm:$0xff]
  %v4484 = vld [vmem:[#allocation3 + $0x68] sm:$0xff]
  %v4485 = vld [vmem:[#allocation3 + $0x70] sm:$0xff]
  %v4486 = vld [vmem:[#allocation3 + $0x78] sm:$0xff]
  %v4487 = vld [vmem:[#allocation3 + $0x80] sm:$0xff]
  %v4488 = vld [vmem:[#allocation3 + $0x88] sm:$0xff]
  %v4489 = vld [vmem:[#allocation3 + $0x90] sm:$0xff]
  %v4490 = vld [vmem:[#allocation3 + $0x98] sm:$0xff]
  %v4491 = vld [vmem:[#allocation3 + $0xa0] sm:$0xff]
  %v4492 = vld [vmem:[#allocation3 + $0xa8] sm:$0xff]
  %v4493 = vld [vmem:[#allocation3 + $0xb0] sm:$0xff]
  %v4494 = vld [vmem:[#allocation3 + $0xb8] sm:$0xff]
  %v4495 = vld [vmem:[#allocation3 + $0xc0] sm:$0xff]
  %v4496 = vld [vmem:[#allocation3 + $0xc8] sm:$0xff]
  %v4497 = vld [vmem:[#allocation3 + $0xd0] sm:$0xff]
  %v4498 = vld [vmem:[#allocation3 + $0xd8] sm:$0xff]
  %v4499 = vld [vmem:[#allocation3 + $0xe0] sm:$0xff]
  %v4500 = vld [vmem:[#allocation3 + $0xe8] sm:$0xff]
  %v4501 = vld [vmem:[#allocation3 + $0x100] sm:$0xff]
  %v4502 = vld [vmem:[#allocation3 + $0x108] sm:$0xff]
  %v4503 = vld [vmem:[#allocation3 + $0x110] sm:$0xff]
  %v4504 = vld [vmem:[#allocation3 + $0x118] sm:$0xff]
  %v4505 = vld [vmem:[#allocation3 + $0x120] sm:$0xff]
  %v4506 = vld [vmem:[#allocation3 + $0x128] sm:$0xff]
  %v4507 = vld [vmem:[#allocation3 + $0x130] sm:$0xff]
  %v4508 = vld [vmem:[#allocation3 + $0x138] sm:$0xff]
  %v4509 = vld [vmem:[#allocation3 + $0x140] sm:$0xff]
  %v4510 = vld [vmem:[#allocation3 + $0x148] sm:$0xff]
  %v4511 = vld [vmem:[#allocation3 + $0x150] sm:$0xff]
  %v4512 = vld [vmem:[#allocation3 + $0x158] sm:$0xff]
  %v4513 = vld [vmem:[#allocation3 + $0x160] sm:$0xff]
  %v4514 = vld [vmem:[#allocation3 + $0x168] sm:$0xff]
  %v4515 = vld [vmem:[#allocation3 + $0x170] sm:$0xff]
  %v4516 = vld [vmem:[#allocation3 + $0x178] sm:$0xff]
  %v4517 = vld [vmem:[#allocation3 + $0x180] sm:$0xff]
  %v4518 = vld [vmem:[#allocation3 + $0x188] sm:$0xff]
  %v4519 = vld [vmem:[#allocation3 + $0x190] sm:$0xff]
  %v4520 = vld [vmem:[#allocation3 + $0x198] sm:$0xff]
  %v4521 = vld [vmem:[#allocation3 + $0x1a0] sm:$0xff]
  %v4522 = vld [vmem:[#allocation3 + $0x1a8] sm:$0xff]
  %v4523 = vld [vmem:[#allocation3 + $0x1b0] sm:$0xff]
  %v4524 = vld [vmem:[#allocation3 + $0x1b8] sm:$0xff]
  %v4525 = vld [vmem:[#allocation3 + $0x1c0] sm:$0xff]
  %v4526 = vld [vmem:[#allocation3 + $0x1c8] sm:$0xff]
  %v4527 = vld [vmem:[#allocation3 + $0x1d0] sm:$0xff]
  %v4528 = vld [vmem:[#allocation3 + $0x1d8] sm:$0xff]
  %v4529 = vld [vmem:[#allocation3 + $0x1e0] sm:$0xff]
  %v4530 = vld [vmem:[#allocation3 + $0x1e8] sm:$0xff]
  %4591 = vrot.lane.b32.xlu0 %v4471, 8
  %v4592 = vpop.permute.xlu0 %4591
  %4593 = vrot.lane.b32.xlu0 %v4472, 8
  %v4594 = vpop.permute.xlu0 %4593
  %4595 = vrot.lane.b32.xlu0 %v4473, 8
  %v4596 = vpop.permute.xlu0 %4595
  %4597 = vrot.lane.b32.xlu0 %v4474, 8
  %v4598 = vpop.permute.xlu0 %4597
  %4599 = vrot.lane.b32.xlu0 %v4475, 8
  %v4600 = vpop.permute.xlu0 %4599
  %4601 = vrot.lane.b32.xlu0 %v4476, 8
  %v4602 = vpop.permute.xlu0 %4601
  %4603 = vrot.lane.b32.xlu0 %v4477, 8
  %v4604 = vpop.permute.xlu0 %4603
  %4605 = vrot.lane.b32.xlu0 %v4478, 8
  %v4606 = vpop.permute.xlu0 %4605
  %4607 = vrot.lane.b32.xlu0 %v4479, 8
  %v4608 = vpop.permute.xlu0 %4607
  %4609 = vrot.lane.b32.xlu0 %v4480, 8
  %v4610 = vpop.permute.xlu0 %4609
  %4611 = vrot.lane.b32.xlu0 %v4481, 8
  %v4612 = vpop.permute.xlu0 %4611
  %4613 = vrot.lane.b32.xlu0 %v4482, 8
  %v4614 = vpop.permute.xlu0 %4613
  %4615 = vrot.lane.b32.xlu0 %v4483, 8
  %v4616 = vpop.permute.xlu0 %4615
  %4617 = vrot.lane.b32.xlu0 %v4484, 8
  %v4618 = vpop.permute.xlu0 %4617
  %4619 = vrot.lane.b32.xlu0 %v4485, 8
  %v4620 = vpop.permute.xlu0 %4619
  %4621 = vrot.lane.b32.xlu0 %v4486, 8
  %v4622 = vpop.permute.xlu0 %4621
  %4623 = vrot.lane.b32.xlu0 %v4487, 8
  %v4624 = vpop.permute.xlu0 %4623
  %4625 = vrot.lane.b32.xlu0 %v4488, 8
  %v4626 = vpop.permute.xlu0 %4625
  %4627 = vrot.lane.b32.xlu0 %v4489, 8
  %v4628 = vpop.permute.xlu0 %4627
  %4629 = vrot.lane.b32.xlu0 %v4490, 8
  %v4630 = vpop.permute.xlu0 %4629
  %4631 = vrot.lane.b32.xlu0 %v4491, 8
  %v4632 = vpop.permute.xlu0 %4631
  %4633 = vrot.lane.b32.xlu0 %v4492, 8
  %v4634 = vpop.permute.xlu0 %4633
  %4635 = vrot.lane.b32.xlu0 %v4493, 8
  %v4636 = vpop.permute.xlu0 %4635
  %4637 = vrot.lane.b32.xlu0 %v4494, 8
  %v4638 = vpop.permute.xlu0 %4637
  %4639 = vrot.lane.b32.xlu0 %v4495, 8
  %v4640 = vpop.permute.xlu0 %4639
  %4641 = vrot.lane.b32.xlu0 %v4496, 8
  %v4642 = vpop.permute.xlu0 %4641
  %4643 = vrot.lane.b32.xlu0 %v4497, 8
  %v4644 = vpop.permute.xlu0 %4643
  %4645 = vrot.lane.b32.xlu0 %v4498, 8
  %v4646 = vpop.permute.xlu0 %4645
  %4647 = vrot.lane.b32.xlu0 %v4499, 8
  %v4648 = vpop.permute.xlu0 %4647
  %4649 = vrot.lane.b32.xlu0 %v4500, 8
  %v4650 = vpop.permute.xlu0 %4649
  %4651 = vrot.lane.b32.xlu0 %v4501, 8
  %v4652 = vpop.permute.xlu0 %4651
  %4653 = vrot.lane.b32.xlu0 %v4502, 8
  %v4654 = vpop.permute.xlu0 %4653
  %4655 = vrot.lane.b32.xlu0 %v4503, 8
  %v4656 = vpop.permute.xlu0 %4655
  %4657 = vrot.lane.b32.xlu0 %v4504, 8
  %v4658 = vpop.permute.xlu0 %4657
  %4659 = vrot.lane.b32.xlu0 %v4505, 8
  %v4660 = vpop.permute.xlu0 %4659
  %4661 = vrot.lane.b32.xlu0 %v4506, 8
  %v4662 = vpop.permute.xlu0 %4661
  %4663 = vrot.lane.b32.xlu0 %v4507, 8
  %v4664 = vpop.permute.xlu0 %4663
  %4665 = vrot.lane.b32.xlu0 %v4508, 8
  %v4666 = vpop.permute.xlu0 %4665
  %4667 = vrot.lane.b32.xlu0 %v4509, 8
  %v4668 = vpop.permute.xlu0 %4667
  %4669 = vrot.lane.b32.xlu0 %v4510, 8
  %v4670 = vpop.permute.xlu0 %4669
  %4671 = vrot.lane.b32.xlu0 %v4511, 8
  %v4672 = vpop.permute.xlu0 %4671
  %4673 = vrot.lane.b32.xlu0 %v4512, 8
  %v4674 = vpop.permute.xlu0 %4673
  %4675 = vrot.lane.b32.xlu0 %v4513, 8
  %v4676 = vpop.permute.xlu0 %4675
  %4677 = vrot.lane.b32.xlu0 %v4514, 8
  %v4678 = vpop.permute.xlu0 %4677
  %4679 = vrot.lane.b32.xlu0 %v4515, 8
  %v4680 = vpop.permute.xlu0 %4679
  %4681 = vrot.lane.b32.xlu0 %v4516, 8
  %v4682 = vpop.permute.xlu0 %4681
  %4683 = vrot.lane.b32.xlu0 %v4517, 8
  %v4684 = vpop.permute.xlu0 %4683
  %4685 = vrot.lane.b32.xlu0 %v4518, 8
  %v4686 = vpop.permute.xlu0 %4685
  %4687 = vrot.lane.b32.xlu0 %v4519, 8
  %v4688 = vpop.permute.xlu0 %4687
  %4689 = vrot.lane.b32.xlu0 %v4520, 8
  %v4690 = vpop.permute.xlu0 %4689
  %4691 = vrot.lane.b32.xlu0 %v4521, 8
  %v4692 = vpop.permute.xlu0 %4691
  %4693 = vrot.lane.b32.xlu0 %v4522, 8
  %v4694 = vpop.permute.xlu0 %4693
  %4695 = vrot.lane.b32.xlu0 %v4523, 8
  %v4696 = vpop.permute.xlu0 %4695
  %4697 = vrot.lane.b32.xlu0 %v4524, 8
  %v4698 = vpop.permute.xlu0 %4697
  %4699 = vrot.lane.b32.xlu0 %v4525, 8
  %v4700 = vpop.permute.xlu0 %4699
  %4701 = vrot.lane.b32.xlu0 %v4526, 8
  %v4702 = vpop.permute.xlu0 %4701
  %4703 = vrot.lane.b32.xlu0 %v4527, 8
  %v4704 = vpop.permute.xlu0 %4703
  %4705 = vrot.lane.b32.xlu0 %v4528, 8
  %v4706 = vpop.permute.xlu0 %4705
  %4707 = vrot.lane.b32.xlu0 %v4529, 8
  %v4708 = vpop.permute.xlu0 %4707
  %4709 = vrot.lane.b32.xlu0 %v4530, 8
  %v4710 = vpop.permute.xlu0 %4709
  %4771 = vst.msk [vmem:[%s316] sm:$0xff] %vm65, %v4592
  %4772 = vst.msk [vmem:[%s316 + $0x8] sm:$0xff] %vm65, %v4594
  %4773 = vst.msk [vmem:[%s316 + $0x10] sm:$0xff] %vm65, %v4596
  %4774 = vst.msk [vmem:[%s316 + $0x18] sm:$0xff] %vm65, %v4598
  %4775 = vst.msk [vmem:[%s316 + $0x20] sm:$0xff] %vm65, %v4600
  %4776 = vst.msk [vmem:[%s316 + $0x28] sm:$0xff] %vm65, %v4602
  %4777 = vst.msk [vmem:[%s316 + $0x30] sm:$0xff] %vm65, %v4604
  %4778 = vst.msk [vmem:[%s316 + $0x38] sm:$0xff] %vm65, %v4606
  %4779 = vst.msk [vmem:[%s316 + $0x40] sm:$0xff] %vm65, %v4608
  %4780 = vst.msk [vmem:[%s316 + $0x48] sm:$0xff] %vm65, %v4610
  %4781 = vst.msk [vmem:[%s316 + $0x50] sm:$0xff] %vm65, %v4612
  %4782 = vst.msk [vmem:[%s316 + $0x58] sm:$0xff] %vm65, %v4614
  %4783 = vst.msk [vmem:[%s316 + $0x60] sm:$0xff] %vm65, %v4616
  %4784 = vst.msk [vmem:[%s316 + $0x68] sm:$0xff] %vm65, %v4618
  %4785 = vst.msk [vmem:[%s316 + $0x70] sm:$0xff] %vm65, %v4620
  %4786 = vst.msk [vmem:[%s316 + $0x78] sm:$0xff] %vm65, %v4622
  %4787 = vst.msk [vmem:[%s316 + $0x80] sm:$0xff] %vm65, %v4624
  %4788 = vst.msk [vmem:[%s316 + $0x88] sm:$0xff] %vm65, %v4626
  %4789 = vst.msk [vmem:[%s316 + $0x90] sm:$0xff] %vm65, %v4628
  %4790 = vst.msk [vmem:[%s316 + $0x98] sm:$0xff] %vm65, %v4630
  %4791 = vst.msk [vmem:[%s316 + $0xa0] sm:$0xff] %vm65, %v4632
  %4792 = vst.msk [vmem:[%s316 + $0xa8] sm:$0xff] %vm65, %v4634
  %4793 = vst.msk [vmem:[%s316 + $0xb0] sm:$0xff] %vm65, %v4636
  %4794 = vst.msk [vmem:[%s316 + $0xb8] sm:$0xff] %vm65, %v4638
  %4795 = vst.msk [vmem:[%s316 + $0xc0] sm:$0xff] %vm65, %v4640
  %4796 = vst.msk [vmem:[%s316 + $0xc8] sm:$0xff] %vm65, %v4642
  %4797 = vst.msk [vmem:[%s316 + $0xd0] sm:$0xff] %vm65, %v4644
  %4798 = vst.msk [vmem:[%s316 + $0xd8] sm:$0xff] %vm65, %v4646
  %4799 = vst.msk [vmem:[%s316 + $0xe0] sm:$0xff] %vm65, %v4648
  %4800 = vst.msk [vmem:[%s316 + $0xe8] sm:$0xff] %vm65, %v4650
  %4801 = vst.msk [vmem:[%s316 + $0x100] sm:$0xff] %vm65, %v4652
  %4802 = vst.msk [vmem:[%s316 + $0x108] sm:$0xff] %vm65, %v4654
  %4803 = vst.msk [vmem:[%s316 + $0x110] sm:$0xff] %vm65, %v4656
  %4804 = vst.msk [vmem:[%s316 + $0x118] sm:$0xff] %vm65, %v4658
  %4805 = vst.msk [vmem:[%s316 + $0x120] sm:$0xff] %vm65, %v4660
  %4806 = vst.msk [vmem:[%s316 + $0x128] sm:$0xff] %vm65, %v4662
  %4807 = vst.msk [vmem:[%s316 + $0x130] sm:$0xff] %vm65, %v4664
  %4808 = vst.msk [vmem:[%s316 + $0x138] sm:$0xff] %vm65, %v4666
  %4809 = vst.msk [vmem:[%s316 + $0x140] sm:$0xff] %vm65, %v4668
  %4810 = vst.msk [vmem:[%s316 + $0x148] sm:$0xff] %vm65, %v4670
  %4811 = vst.msk [vmem:[%s316 + $0x150] sm:$0xff] %vm65, %v4672
  %4812 = vst.msk [vmem:[%s316 + $0x158] sm:$0xff] %vm65, %v4674
  %4813 = vst.msk [vmem:[%s316 + $0x160] sm:$0xff] %vm65, %v4676
  %4814 = vst.msk [vmem:[%s316 + $0x168] sm:$0xff] %vm65, %v4678
  %4815 = vst.msk [vmem:[%s316 + $0x170] sm:$0xff] %vm65, %v4680
  %4816 = vst.msk [vmem:[%s316 + $0x178] sm:$0xff] %vm65, %v4682
  %4817 = vst.msk [vmem:[%s316 + $0x180] sm:$0xff] %vm65, %v4684
  %4818 = vst.msk [vmem:[%s316 + $0x188] sm:$0xff] %vm65, %v4686
  %4819 = vst.msk [vmem:[%s316 + $0x190] sm:$0xff] %vm65, %v4688
  %4820 = vst.msk [vmem:[%s316 + $0x198] sm:$0xff] %vm65, %v4690
  %4821 = vst.msk [vmem:[%s316 + $0x1a0] sm:$0xff] %vm65, %v4692
  %4822 = vst.msk [vmem:[%s316 + $0x1a8] sm:$0xff] %vm65, %v4694
  %4823 = vst.msk [vmem:[%s316 + $0x1b0] sm:$0xff] %vm65, %v4696
  %4824 = vst.msk [vmem:[%s316 + $0x1b8] sm:$0xff] %vm65, %v4698
  %4825 = vst.msk [vmem:[%s316 + $0x1c0] sm:$0xff] %vm65, %v4700
  %4826 = vst.msk [vmem:[%s316 + $0x1c8] sm:$0xff] %vm65, %v4702
  %4827 = vst.msk [vmem:[%s316 + $0x1d0] sm:$0xff] %vm65, %v4704
  %4828 = vst.msk [vmem:[%s316 + $0x1d8] sm:$0xff] %vm65, %v4706
  %4829 = vst.msk [vmem:[%s316 + $0x1e0] sm:$0xff] %vm65, %v4708
  %4830 = vst.msk [vmem:[%s316 + $0x1e8] sm:$0xff] %vm65, %v4710
  %v4831 = vld [vmem:[#allocation3 + $0x1] sm:$0xff]
  %v4832 = vld [vmem:[#allocation3 + $0x9] sm:$0x7f]
  %v4833 = vld [vmem:[#allocation3 + $0x11] sm:$0xff]
  %v4834 = vld [vmem:[#allocation3 + $0x19] sm:$0x7f]
  %v4835 = vld [vmem:[#allocation3 + $0x21] sm:$0xff]
  %v4836 = vld [vmem:[#allocation3 + $0x29] sm:$0x7f]
  %v4837 = vld [vmem:[#allocation3 + $0x31] sm:$0xff]
  %v4838 = vld [vmem:[#allocation3 + $0x39] sm:$0x7f]
  %v4839 = vld [vmem:[#allocation3 + $0x41] sm:$0xff]
  %v4840 = vld [vmem:[#allocation3 + $0x49] sm:$0x7f]
  %v4841 = vld [vmem:[#allocation3 + $0x51] sm:$0xff]
  %v4842 = vld [vmem:[#allocation3 + $0x59] sm:$0x7f]
  %v4843 = vld [vmem:[#allocation3 + $0x61] sm:$0xff]
  %v4844 = vld [vmem:[#allocation3 + $0x69] sm:$0x7f]
  %v4845 = vld [vmem:[#allocation3 + $0x71] sm:$0xff]
  %v4846 = vld [vmem:[#allocation3 + $0x79] sm:$0x7f]
  %v4847 = vld [vmem:[#allocation3 + $0x81] sm:$0xff]
  %v4848 = vld [vmem:[#allocation3 + $0x89] sm:$0x7f]
  %v4849 = vld [vmem:[#allocation3 + $0x91] sm:$0xff]
  %v4850 = vld [vmem:[#allocation3 + $0x99] sm:$0x7f]
  %v4851 = vld [vmem:[#allocation3 + $0xa1] sm:$0xff]
  %v4852 = vld [vmem:[#allocation3 + $0xa9] sm:$0x7f]
  %v4853 = vld [vmem:[#allocation3 + $0xb1] sm:$0xff]
  %v4854 = vld [vmem:[#allocation3 + $0xb9] sm:$0x7f]
  %v4855 = vld [vmem:[#allocation3 + $0xc1] sm:$0xff]
  %v4856 = vld [vmem:[#allocation3 + $0xc9] sm:$0x7f]
  %v4857 = vld [vmem:[#allocation3 + $0xd1] sm:$0xff]
  %v4858 = vld [vmem:[#allocation3 + $0xd9] sm:$0x7f]
  %v4859 = vld [vmem:[#allocation3 + $0xe1] sm:$0xff]
  %v4860 = vld [vmem:[#allocation3 + $0xe9] sm:$0x7f]
  %v4861 = vld [vmem:[#allocation3 + $0x101] sm:$0xff]
  %v4862 = vld [vmem:[#allocation3 + $0x109] sm:$0x7f]
  %v4863 = vld [vmem:[#allocation3 + $0x111] sm:$0xff]
  %v4864 = vld [vmem:[#allocation3 + $0x119] sm:$0x7f]
  %v4865 = vld [vmem:[#allocation3 + $0x121] sm:$0xff]
  %v4866 = vld [vmem:[#allocation3 + $0x129] sm:$0x7f]
  %v4867 = vld [vmem:[#allocation3 + $0x131] sm:$0xff]
  %v4868 = vld [vmem:[#allocation3 + $0x139] sm:$0x7f]
  %v4869 = vld [vmem:[#allocation3 + $0x141] sm:$0xff]
  %v4870 = vld [vmem:[#allocation3 + $0x149] sm:$0x7f]
  %v4871 = vld [vmem:[#allocation3 + $0x151] sm:$0xff]
  %v4872 = vld [vmem:[#allocation3 + $0x159] sm:$0x7f]
  %v4873 = vld [vmem:[#allocation3 + $0x161] sm:$0xff]
  %v4874 = vld [vmem:[#allocation3 + $0x169] sm:$0x7f]
  %v4875 = vld [vmem:[#allocation3 + $0x171] sm:$0xff]
  %v4876 = vld [vmem:[#allocation3 + $0x179] sm:$0x7f]
  %v4877 = vld [vmem:[#allocation3 + $0x181] sm:$0xff]
  %v4878 = vld [vmem:[#allocation3 + $0x189] sm:$0x7f]
  %v4879 = vld [vmem:[#allocation3 + $0x191] sm:$0xff]
  %v4880 = vld [vmem:[#allocation3 + $0x199] sm:$0x7f]
  %v4881 = vld [vmem:[#allocation3 + $0x1a1] sm:$0xff]
  %v4882 = vld [vmem:[#allocation3 + $0x1a9] sm:$0x7f]
  %v4883 = vld [vmem:[#allocation3 + $0x1b1] sm:$0xff]
  %v4884 = vld [vmem:[#allocation3 + $0x1b9] sm:$0x7f]
  %v4885 = vld [vmem:[#allocation3 + $0x1c1] sm:$0xff]
  %v4886 = vld [vmem:[#allocation3 + $0x1c9] sm:$0x7f]
  %v4887 = vld [vmem:[#allocation3 + $0x1d1] sm:$0xff]
  %v4888 = vld [vmem:[#allocation3 + $0x1d9] sm:$0x7f]
  %v4889 = vld [vmem:[#allocation3 + $0x1e1] sm:$0xff]
  %v4890 = vld [vmem:[#allocation3 + $0x1e9] sm:$0x7f]
  %4951 = vrot.lane.b32.xlu0 %v4831, 16
  %v4952 = vpop.permute.xlu0 %4951
  %4953 = vrot.lane.b32.xlu0 %v4832, 16
  %v4954 = vpop.permute.xlu0 %4953
  %4955 = vrot.lane.b32.xlu0 %v4833, 16
  %v4956 = vpop.permute.xlu0 %4955
  %4957 = vrot.lane.b32.xlu0 %v4834, 16
  %v4958 = vpop.permute.xlu0 %4957
  %4959 = vrot.lane.b32.xlu0 %v4835, 16
  %v4960 = vpop.permute.xlu0 %4959
  %4961 = vrot.lane.b32.xlu0 %v4836, 16
  %v4962 = vpop.permute.xlu0 %4961
  %4963 = vrot.lane.b32.xlu0 %v4837, 16
  %v4964 = vpop.permute.xlu0 %4963
  %4965 = vrot.lane.b32.xlu0 %v4838, 16
  %v4966 = vpop.permute.xlu0 %4965
  %4967 = vrot.lane.b32.xlu0 %v4839, 16
  %v4968 = vpop.permute.xlu0 %4967
  %4969 = vrot.lane.b32.xlu0 %v4840, 16
  %v4970 = vpop.permute.xlu0 %4969
  %4971 = vrot.lane.b32.xlu0 %v4841, 16
  %v4972 = vpop.permute.xlu0 %4971
  %4973 = vrot.lane.b32.xlu0 %v4842, 16
  %v4974 = vpop.permute.xlu0 %4973
  %4975 = vrot.lane.b32.xlu0 %v4843, 16
  %v4976 = vpop.permute.xlu0 %4975
  %4977 = vrot.lane.b32.xlu0 %v4844, 16
  %v4978 = vpop.permute.xlu0 %4977
  %4979 = vrot.lane.b32.xlu0 %v4845, 16
  %v4980 = vpop.permute.xlu0 %4979
  %4981 = vrot.lane.b32.xlu0 %v4846, 16
  %v4982 = vpop.permute.xlu0 %4981
  %4983 = vrot.lane.b32.xlu0 %v4847, 16
  %v4984 = vpop.permute.xlu0 %4983
  %4985 = vrot.lane.b32.xlu0 %v4848, 16
  %v4986 = vpop.permute.xlu0 %4985
  %4987 = vrot.lane.b32.xlu0 %v4849, 16
  %v4988 = vpop.permute.xlu0 %4987
  %4989 = vrot.lane.b32.xlu0 %v4850, 16
  %v4990 = vpop.permute.xlu0 %4989
  %4991 = vrot.lane.b32.xlu0 %v4851, 16
  %v4992 = vpop.permute.xlu0 %4991
  %4993 = vrot.lane.b32.xlu0 %v4852, 16
  %v4994 = vpop.permute.xlu0 %4993
  %4995 = vrot.lane.b32.xlu0 %v4853, 16
  %v4996 = vpop.permute.xlu0 %4995
  %4997 = vrot.lane.b32.xlu0 %v4854, 16
  %v4998 = vpop.permute.xlu0 %4997
  %4999 = vrot.lane.b32.xlu0 %v4855, 16
  %v5000 = vpop.permute.xlu0 %4999
  %5001 = vrot.lane.b32.xlu0 %v4856, 16
  %v5002 = vpop.permute.xlu0 %5001
  %5003 = vrot.lane.b32.xlu0 %v4857, 16
  %v5004 = vpop.permute.xlu0 %5003
  %5005 = vrot.lane.b32.xlu0 %v4858, 16
  %v5006 = vpop.permute.xlu0 %5005
  %5007 = vrot.lane.b32.xlu0 %v4859, 16
  %v5008 = vpop.permute.xlu0 %5007
  %5009 = vrot.lane.b32.xlu0 %v4860, 16
  %v5010 = vpop.permute.xlu0 %5009
  %5011 = vrot.lane.b32.xlu0 %v4861, 16
  %v5012 = vpop.permute.xlu0 %5011
  %5013 = vrot.lane.b32.xlu0 %v4862, 16
  %v5014 = vpop.permute.xlu0 %5013
  %5015 = vrot.lane.b32.xlu0 %v4863, 16
  %v5016 = vpop.permute.xlu0 %5015
  %5017 = vrot.lane.b32.xlu0 %v4864, 16
  %v5018 = vpop.permute.xlu0 %5017
  %5019 = vrot.lane.b32.xlu0 %v4865, 16
  %v5020 = vpop.permute.xlu0 %5019
  %5021 = vrot.lane.b32.xlu0 %v4866, 16
  %v5022 = vpop.permute.xlu0 %5021
  %5023 = vrot.lane.b32.xlu0 %v4867, 16
  %v5024 = vpop.permute.xlu0 %5023
  %5025 = vrot.lane.b32.xlu0 %v4868, 16
  %v5026 = vpop.permute.xlu0 %5025
  %5027 = vrot.lane.b32.xlu0 %v4869, 16
  %v5028 = vpop.permute.xlu0 %5027
  %5029 = vrot.lane.b32.xlu0 %v4870, 16
  %v5030 = vpop.permute.xlu0 %5029
  %5031 = vrot.lane.b32.xlu0 %v4871, 16
  %v5032 = vpop.permute.xlu0 %5031
  %5033 = vrot.lane.b32.xlu0 %v4872, 16
  %v5034 = vpop.permute.xlu0 %5033
  %5035 = vrot.lane.b32.xlu0 %v4873, 16
  %v5036 = vpop.permute.xlu0 %5035
  %5037 = vrot.lane.b32.xlu0 %v4874, 16
  %v5038 = vpop.permute.xlu0 %5037
  %5039 = vrot.lane.b32.xlu0 %v4875, 16
  %v5040 = vpop.permute.xlu0 %5039
  %5041 = vrot.lane.b32.xlu0 %v4876, 16
  %v5042 = vpop.permute.xlu0 %5041
  %5043 = vrot.lane.b32.xlu0 %v4877, 16
  %v5044 = vpop.permute.xlu0 %5043
  %5045 = vrot.lane.b32.xlu0 %v4878, 16
  %v5046 = vpop.permute.xlu0 %5045
  %5047 = vrot.lane.b32.xlu0 %v4879, 16
  %v5048 = vpop.permute.xlu0 %5047
  %5049 = vrot.lane.b32.xlu0 %v4880, 16
  %v5050 = vpop.permute.xlu0 %5049
  %5051 = vrot.lane.b32.xlu0 %v4881, 16
  %v5052 = vpop.permute.xlu0 %5051
  %5053 = vrot.lane.b32.xlu0 %v4882, 16
  %v5054 = vpop.permute.xlu0 %5053
  %5055 = vrot.lane.b32.xlu0 %v4883, 16
  %v5056 = vpop.permute.xlu0 %5055
  %5057 = vrot.lane.b32.xlu0 %v4884, 16
  %v5058 = vpop.permute.xlu0 %5057
  %5059 = vrot.lane.b32.xlu0 %v4885, 16
  %v5060 = vpop.permute.xlu0 %5059
  %5061 = vrot.lane.b32.xlu0 %v4886, 16
  %v5062 = vpop.permute.xlu0 %5061
  %5063 = vrot.lane.b32.xlu0 %v4887, 16
  %v5064 = vpop.permute.xlu0 %5063
  %5065 = vrot.lane.b32.xlu0 %v4888, 16
  %v5066 = vpop.permute.xlu0 %5065
  %5067 = vrot.lane.b32.xlu0 %v4889, 16
  %v5068 = vpop.permute.xlu0 %5067
  %5069 = vrot.lane.b32.xlu0 %v4890, 16
  %v5070 = vpop.permute.xlu0 %5069
  %5131 = vst.msk [vmem:[%s316] sm:$0xff] %vm70, %v4952
  %5132 = vst.msk [vmem:[%s316 + $0x8] sm:$0x7f] %vm1039, %v4954
  %5133 = vst.msk [vmem:[%s316 + $0x10] sm:$0xff] %vm70, %v4956
  %5134 = vst.msk [vmem:[%s316 + $0x18] sm:$0x7f] %vm1039, %v4958
  %5135 = vst.msk [vmem:[%s316 + $0x20] sm:$0xff] %vm70, %v4960
  %5136 = vst.msk [vmem:[%s316 + $0x28] sm:$0x7f] %vm1039, %v4962
  %5137 = vst.msk [vmem:[%s316 + $0x30] sm:$0xff] %vm70, %v4964
  %5138 = vst.msk [vmem:[%s316 + $0x38] sm:$0x7f] %vm1039, %v4966
  %5139 = vst.msk [vmem:[%s316 + $0x40] sm:$0xff] %vm70, %v4968
  %5140 = vst.msk [vmem:[%s316 + $0x48] sm:$0x7f] %vm1039, %v4970
  %5141 = vst.msk [vmem:[%s316 + $0x50] sm:$0xff] %vm70, %v4972
  %5142 = vst.msk [vmem:[%s316 + $0x58] sm:$0x7f] %vm1039, %v4974
  %5143 = vst.msk [vmem:[%s316 + $0x60] sm:$0xff] %vm70, %v4976
  %5144 = vst.msk [vmem:[%s316 + $0x68] sm:$0x7f] %vm1039, %v4978
  %5145 = vst.msk [vmem:[%s316 + $0x70] sm:$0xff] %vm70, %v4980
  %5146 = vst.msk [vmem:[%s316 + $0x78] sm:$0x7f] %vm1039, %v4982
  %5147 = vst.msk [vmem:[%s316 + $0x80] sm:$0xff] %vm70, %v4984
  %5148 = vst.msk [vmem:[%s316 + $0x88] sm:$0x7f] %vm1039, %v4986
  %5149 = vst.msk [vmem:[%s316 + $0x90] sm:$0xff] %vm70, %v4988
  %5150 = vst.msk [vmem:[%s316 + $0x98] sm:$0x7f] %vm1039, %v4990
  %5151 = vst.msk [vmem:[%s316 + $0xa0] sm:$0xff] %vm70, %v4992
  %5152 = vst.msk [vmem:[%s316 + $0xa8] sm:$0x7f] %vm1039, %v4994
  %5153 = vst.msk [vmem:[%s316 + $0xb0] sm:$0xff] %vm70, %v4996
  %5154 = vst.msk [vmem:[%s316 + $0xb8] sm:$0x7f] %vm1039, %v4998
  %5155 = vst.msk [vmem:[%s316 + $0xc0] sm:$0xff] %vm70, %v5000
  %5156 = vst.msk [vmem:[%s316 + $0xc8] sm:$0x7f] %vm1039, %v5002
  %5157 = vst.msk [vmem:[%s316 + $0xd0] sm:$0xff] %vm70, %v5004
  %5158 = vst.msk [vmem:[%s316 + $0xd8] sm:$0x7f] %vm1039, %v5006
  %5159 = vst.msk [vmem:[%s316 + $0xe0] sm:$0xff] %vm70, %v5008
  %5160 = vst.msk [vmem:[%s316 + $0xe8] sm:$0x7f] %vm1039, %v5010
  %5161 = vst.msk [vmem:[%s316 + $0x100] sm:$0xff] %vm70, %v5012
  %5162 = vst.msk [vmem:[%s316 + $0x108] sm:$0x7f] %vm1039, %v5014
  %5163 = vst.msk [vmem:[%s316 + $0x110] sm:$0xff] %vm70, %v5016
  %5164 = vst.msk [vmem:[%s316 + $0x118] sm:$0x7f] %vm1039, %v5018
  %5165 = vst.msk [vmem:[%s316 + $0x120] sm:$0xff] %vm70, %v5020
  %5166 = vst.msk [vmem:[%s316 + $0x128] sm:$0x7f] %vm1039, %v5022
  %5167 = vst.msk [vmem:[%s316 + $0x130] sm:$0xff] %vm70, %v5024
  %5168 = vst.msk [vmem:[%s316 + $0x138] sm:$0x7f] %vm1039, %v5026
  %5169 = vst.msk [vmem:[%s316 + $0x140] sm:$0xff] %vm70, %v5028
  %5170 = vst.msk [vmem:[%s316 + $0x148] sm:$0x7f] %vm1039, %v5030
  %5171 = vst.msk [vmem:[%s316 + $0x150] sm:$0xff] %vm70, %v5032
  %5172 = vst.msk [vmem:[%s316 + $0x158] sm:$0x7f] %vm1039, %v5034
  %5173 = vst.msk [vmem:[%s316 + $0x160] sm:$0xff] %vm70, %v5036
  %5174 = vst.msk [vmem:[%s316 + $0x168] sm:$0x7f] %vm1039, %v5038
  %5175 = vst.msk [vmem:[%s316 + $0x170] sm:$0xff] %vm70, %v5040
  %5176 = vst.msk [vmem:[%s316 + $0x178] sm:$0x7f] %vm1039, %v5042
  %5177 = vst.msk [vmem:[%s316 + $0x180] sm:$0xff] %vm70, %v5044
  %5178 = vst.msk [vmem:[%s316 + $0x188] sm:$0x7f] %vm1039, %v5046
  %5179 = vst.msk [vmem:[%s316 + $0x190] sm:$0xff] %vm70, %v5048
  %5180 = vst.msk [vmem:[%s316 + $0x198] sm:$0x7f] %vm1039, %v5050
  %5181 = vst.msk [vmem:[%s316 + $0x1a0] sm:$0xff] %vm70, %v5052
  %5182 = vst.msk [vmem:[%s316 + $0x1a8] sm:$0x7f] %vm1039, %v5054
  %5183 = vst.msk [vmem:[%s316 + $0x1b0] sm:$0xff] %vm70, %v5056
  %5184 = vst.msk [vmem:[%s316 + $0x1b8] sm:$0x7f] %vm1039, %v5058
  %5185 = vst.msk [vmem:[%s316 + $0x1c0] sm:$0xff] %vm70, %v5060
  %5186 = vst.msk [vmem:[%s316 + $0x1c8] sm:$0x7f] %vm1039, %v5062
  %5187 = vst.msk [vmem:[%s316 + $0x1d0] sm:$0xff] %vm70, %v5064
  %5188 = vst.msk [vmem:[%s316 + $0x1d8] sm:$0x7f] %vm1039, %v5066
  %5189 = vst.msk [vmem:[%s316 + $0x1e0] sm:$0xff] %vm70, %v5068
  %5190 = vst.msk [vmem:[%s316 + $0x1e8] sm:$0x7f] %vm1039, %v5070
  %v5191 = vld [vmem:[#allocation3] sm:$0xff]
  %v5192 = vld [vmem:[#allocation3 + $0x8] sm:$0x7f]
  %v5193 = vld [vmem:[#allocation3 + $0x10] sm:$0xff]
  %v5194 = vld [vmem:[#allocation3 + $0x18] sm:$0x7f]
  %v5195 = vld [vmem:[#allocation3 + $0x20] sm:$0xff]
  %v5196 = vld [vmem:[#allocation3 + $0x28] sm:$0x7f]
  %v5197 = vld [vmem:[#allocation3 + $0x30] sm:$0xff]
  %v5198 = vld [vmem:[#allocation3 + $0x38] sm:$0x7f]
  %v5199 = vld [vmem:[#allocation3 + $0x40] sm:$0xff]
  %v5200 = vld [vmem:[#allocation3 + $0x48] sm:$0x7f]
  %v5201 = vld [vmem:[#allocation3 + $0x50] sm:$0xff]
  %v5202 = vld [vmem:[#allocation3 + $0x58] sm:$0x7f]
  %v5203 = vld [vmem:[#allocation3 + $0x60] sm:$0xff]
  %v5204 = vld [vmem:[#allocation3 + $0x68] sm:$0x7f]
  %v5205 = vld [vmem:[#allocation3 + $0x70] sm:$0xff]
  %v5206 = vld [vmem:[#allocation3 + $0x78] sm:$0x7f]
  %v5207 = vld [vmem:[#allocation3 + $0x80] sm:$0xff]
  %v5208 = vld [vmem:[#allocation3 + $0x88] sm:$0x7f]
  %v5209 = vld [vmem:[#allocation3 + $0x90] sm:$0xff]
  %v5210 = vld [vmem:[#allocation3 + $0x98] sm:$0x7f]
  %v5211 = vld [vmem:[#allocation3 + $0xa0] sm:$0xff]
  %v5212 = vld [vmem:[#allocation3 + $0xa8] sm:$0x7f]
  %v5213 = vld [vmem:[#allocation3 + $0xb0] sm:$0xff]
  %v5214 = vld [vmem:[#allocation3 + $0xb8] sm:$0x7f]
  %v5215 = vld [vmem:[#allocation3 + $0xc0] sm:$0xff]
  %v5216 = vld [vmem:[#allocation3 + $0xc8] sm:$0x7f]
  %v5217 = vld [vmem:[#allocation3 + $0xd0] sm:$0xff]
  %v5218 = vld [vmem:[#allocation3 + $0xd8] sm:$0x7f]
  %v5219 = vld [vmem:[#allocation3 + $0xe0] sm:$0xff]
  %v5220 = vld [vmem:[#allocation3 + $0xe8] sm:$0x7f]
  %v5221 = vld [vmem:[#allocation3 + $0xf0] sm:$0xff]
  %v5222 = vld [vmem:[#allocation3 + $0xf8] sm:$0x7f]
  %v5223 = vld [vmem:[#allocation3 + $0x100] sm:$0xff]
  %v5224 = vld [vmem:[#allocation3 + $0x108] sm:$0x7f]
  %v5225 = vld [vmem:[#allocation3 + $0x110] sm:$0xff]
  %v5226 = vld [vmem:[#allocation3 + $0x118] sm:$0x7f]
  %v5227 = vld [vmem:[#allocation3 + $0x120] sm:$0xff]
  %v5228 = vld [vmem:[#allocation3 + $0x128] sm:$0x7f]
  %v5229 = vld [vmem:[#allocation3 + $0x130] sm:$0xff]
  %v5230 = vld [vmem:[#allocation3 + $0x138] sm:$0x7f]
  %v5231 = vld [vmem:[#allocation3 + $0x140] sm:$0xff]
  %v5232 = vld [vmem:[#allocation3 + $0x148] sm:$0x7f]
  %v5233 = vld [vmem:[#allocation3 + $0x150] sm:$0xff]
  %v5234 = vld [vmem:[#allocation3 + $0x158] sm:$0x7f]
  %v5235 = vld [vmem:[#allocation3 + $0x160] sm:$0xff]
  %v5236 = vld [vmem:[#allocation3 + $0x168] sm:$0x7f]
  %v5237 = vld [vmem:[#allocation3 + $0x170] sm:$0xff]
  %v5238 = vld [vmem:[#allocation3 + $0x178] sm:$0x7f]
  %v5239 = vld [vmem:[#allocation3 + $0x180] sm:$0xff]
  %v5240 = vld [vmem:[#allocation3 + $0x188] sm:$0x7f]
  %v5241 = vld [vmem:[#allocation3 + $0x190] sm:$0xff]
  %v5242 = vld [vmem:[#allocation3 + $0x198] sm:$0x7f]
  %v5243 = vld [vmem:[#allocation3 + $0x1a0] sm:$0xff]
  %v5244 = vld [vmem:[#allocation3 + $0x1a8] sm:$0x7f]
  %v5245 = vld [vmem:[#allocation3 + $0x1b0] sm:$0xff]
  %v5246 = vld [vmem:[#allocation3 + $0x1b8] sm:$0x7f]
  %v5247 = vld [vmem:[#allocation3 + $0x1c0] sm:$0xff]
  %v5248 = vld [vmem:[#allocation3 + $0x1c8] sm:$0x7f]
  %v5249 = vld [vmem:[#allocation3 + $0x1d0] sm:$0xff]
  %v5250 = vld [vmem:[#allocation3 + $0x1d8] sm:$0x7f]
  %v5251 = vld [vmem:[#allocation3 + $0x1e0] sm:$0xff]
  %v5252 = vld [vmem:[#allocation3 + $0x1e8] sm:$0x7f]
  %v5253 = vld [vmem:[#allocation3 + $0x1f0] sm:$0xff]
  %v5254 = vld [vmem:[#allocation3 + $0x1f8] sm:$0x7f]
  %5319 = vrot.lane.b32.xlu0 %v5191, 24
  %v5320 = vpop.permute.xlu0 %5319
  %5321 = vrot.lane.b32.xlu0 %v5192, 24
  %v5322 = vpop.permute.xlu0 %5321
  %5323 = vrot.lane.b32.xlu0 %v5193, 24
  %v5324 = vpop.permute.xlu0 %5323
  %5325 = vrot.lane.b32.xlu0 %v5194, 24
  %v5326 = vpop.permute.xlu0 %5325
  %5327 = vrot.lane.b32.xlu0 %v5195, 24
  %v5328 = vpop.permute.xlu0 %5327
  %5329 = vrot.lane.b32.xlu0 %v5196, 24
  %v5330 = vpop.permute.xlu0 %5329
  %5331 = vrot.lane.b32.xlu0 %v5197, 24
  %v5332 = vpop.permute.xlu0 %5331
  %5333 = vrot.lane.b32.xlu0 %v5198, 24
  %v5334 = vpop.permute.xlu0 %5333
  %5335 = vrot.lane.b32.xlu0 %v5199, 24
  %v5336 = vpop.permute.xlu0 %5335
  %5337 = vrot.lane.b32.xlu0 %v5200, 24
  %v5338 = vpop.permute.xlu0 %5337
  %5339 = vrot.lane.b32.xlu0 %v5201, 24
  %v5340 = vpop.permute.xlu0 %5339
  %5341 = vrot.lane.b32.xlu0 %v5202, 24
  %v5342 = vpop.permute.xlu0 %5341
  %5343 = vrot.lane.b32.xlu0 %v5203, 24
  %v5344 = vpop.permute.xlu0 %5343
  %5345 = vrot.lane.b32.xlu0 %v5204, 24
  %v5346 = vpop.permute.xlu0 %5345
  %5347 = vrot.lane.b32.xlu0 %v5205, 24
  %v5348 = vpop.permute.xlu0 %5347
  %5349 = vrot.lane.b32.xlu0 %v5206, 24
  %v5350 = vpop.permute.xlu0 %5349
  %5351 = vrot.lane.b32.xlu0 %v5207, 24
  %v5352 = vpop.permute.xlu0 %5351
  %5353 = vrot.lane.b32.xlu0 %v5208, 24
  %v5354 = vpop.permute.xlu0 %5353
  %5355 = vrot.lane.b32.xlu0 %v5209, 24
  %v5356 = vpop.permute.xlu0 %5355
  %5357 = vrot.lane.b32.xlu0 %v5210, 24
  %v5358 = vpop.permute.xlu0 %5357
  %5359 = vrot.lane.b32.xlu0 %v5211, 24
  %v5360 = vpop.permute.xlu0 %5359
  %5361 = vrot.lane.b32.xlu0 %v5212, 24
  %v5362 = vpop.permute.xlu0 %5361
  %5363 = vrot.lane.b32.xlu0 %v5213, 24
  %v5364 = vpop.permute.xlu0 %5363
  %5365 = vrot.lane.b32.xlu0 %v5214, 24
  %v5366 = vpop.permute.xlu0 %5365
  %5367 = vrot.lane.b32.xlu0 %v5215, 24
  %v5368 = vpop.permute.xlu0 %5367
  %5369 = vrot.lane.b32.xlu0 %v5216, 24
  %v5370 = vpop.permute.xlu0 %5369
  %5371 = vrot.lane.b32.xlu0 %v5217, 24
  %v5372 = vpop.permute.xlu0 %5371
  %5373 = vrot.lane.b32.xlu0 %v5218, 24
  %v5374 = vpop.permute.xlu0 %5373
  %5375 = vrot.lane.b32.xlu0 %v5219, 24
  %v5376 = vpop.permute.xlu0 %5375
  %5377 = vrot.lane.b32.xlu0 %v5220, 24
  %v5378 = vpop.permute.xlu0 %5377
  %5379 = vrot.lane.b32.xlu0 %v5221, 24
  %v5380 = vpop.permute.xlu0 %5379
  %5381 = vrot.lane.b32.xlu0 %v5222, 24
  %v5382 = vpop.permute.xlu0 %5381
  %5383 = vrot.lane.b32.xlu0 %v5223, 24
  %v5384 = vpop.permute.xlu0 %5383
  %5385 = vrot.lane.b32.xlu0 %v5224, 24
  %v5386 = vpop.permute.xlu0 %5385
  %5387 = vrot.lane.b32.xlu0 %v5225, 24
  %v5388 = vpop.permute.xlu0 %5387
  %5389 = vrot.lane.b32.xlu0 %v5226, 24
  %v5390 = vpop.permute.xlu0 %5389
  %5391 = vrot.lane.b32.xlu0 %v5227, 24
  %v5392 = vpop.permute.xlu0 %5391
  %5393 = vrot.lane.b32.xlu0 %v5228, 24
  %v5394 = vpop.permute.xlu0 %5393
  %5395 = vrot.lane.b32.xlu0 %v5229, 24
  %v5396 = vpop.permute.xlu0 %5395
  %5397 = vrot.lane.b32.xlu0 %v5230, 24
  %v5398 = vpop.permute.xlu0 %5397
  %5399 = vrot.lane.b32.xlu0 %v5231, 24
  %v5400 = vpop.permute.xlu0 %5399
  %5401 = vrot.lane.b32.xlu0 %v5232, 24
  %v5402 = vpop.permute.xlu0 %5401
  %5403 = vrot.lane.b32.xlu0 %v5233, 24
  %v5404 = vpop.permute.xlu0 %5403
  %5405 = vrot.lane.b32.xlu0 %v5234, 24
  %v5406 = vpop.permute.xlu0 %5405
  %5407 = vrot.lane.b32.xlu0 %v5235, 24
  %v5408 = vpop.permute.xlu0 %5407
  %5409 = vrot.lane.b32.xlu0 %v5236, 24
  %v5410 = vpop.permute.xlu0 %5409
  %5411 = vrot.lane.b32.xlu0 %v5237, 24
  %v5412 = vpop.permute.xlu0 %5411
  %5413 = vrot.lane.b32.xlu0 %v5238, 24
  %v5414 = vpop.permute.xlu0 %5413
  %5415 = vrot.lane.b32.xlu0 %v5239, 24
  %v5416 = vpop.permute.xlu0 %5415
  %5417 = vrot.lane.b32.xlu0 %v5240, 24
  %v5418 = vpop.permute.xlu0 %5417
  %5419 = vrot.lane.b32.xlu0 %v5241, 24
  %v5420 = vpop.permute.xlu0 %5419
  %5421 = vrot.lane.b32.xlu0 %v5242, 24
  %v5422 = vpop.permute.xlu0 %5421
  %5423 = vrot.lane.b32.xlu0 %v5243, 24
  %v5424 = vpop.permute.xlu0 %5423
  %5425 = vrot.lane.b32.xlu0 %v5244, 24
  %v5426 = vpop.permute.xlu0 %5425
  %5427 = vrot.lane.b32.xlu0 %v5245, 24
  %v5428 = vpop.permute.xlu0 %5427
  %5429 = vrot.lane.b32.xlu0 %v5246, 24
  %v5430 = vpop.permute.xlu0 %5429
  %5431 = vrot.lane.b32.xlu0 %v5247, 24
  %v5432 = vpop.permute.xlu0 %5431
  %5433 = vrot.lane.b32.xlu0 %v5248, 24
  %v5434 = vpop.permute.xlu0 %5433
  %5435 = vrot.lane.b32.xlu0 %v5249, 24
  %v5436 = vpop.permute.xlu0 %5435
  %5437 = vrot.lane.b32.xlu0 %v5250, 24
  %v5438 = vpop.permute.xlu0 %5437
  %5439 = vrot.lane.b32.xlu0 %v5251, 24
  %v5440 = vpop.permute.xlu0 %5439
  %5441 = vrot.lane.b32.xlu0 %v5252, 24
  %v5442 = vpop.permute.xlu0 %5441
  %5443 = vrot.lane.b32.xlu0 %v5253, 24
  %v5444 = vpop.permute.xlu0 %5443
  %5445 = vrot.lane.b32.xlu0 %v5254, 24
  %v5446 = vpop.permute.xlu0 %5445
  %5511 = vst.msk [vmem:[#allocation2 + $0x1] sm:$0xff] %vm1419, %v5320
  %5512 = vst.msk [vmem:[#allocation2 + $0x9] sm:$0x7f] %vm1421, %v5322
  %5513 = vst.msk [vmem:[#allocation2 + $0x11] sm:$0xff] %vm1419, %v5324
  %5514 = vst.msk [vmem:[#allocation2 + $0x19] sm:$0x7f] %vm1421, %v5326
  %5515 = vst.msk [vmem:[#allocation2 + $0x21] sm:$0xff] %vm1419, %v5328
  %5516 = vst.msk [vmem:[#allocation2 + $0x29] sm:$0x7f] %vm1421, %v5330
  %5517 = vst.msk [vmem:[#allocation2 + $0x31] sm:$0xff] %vm1419, %v5332
  %5518 = vst.msk [vmem:[#allocation2 + $0x39] sm:$0x7f] %vm1421, %v5334
  %5519 = vst.msk [vmem:[#allocation2 + $0x41] sm:$0xff] %vm1419, %v5336
  %5520 = vst.msk [vmem:[#allocation2 + $0x49] sm:$0x7f] %vm1421, %v5338
  %5521 = vst.msk [vmem:[#allocation2 + $0x51] sm:$0xff] %vm1419, %v5340
  %5522 = vst.msk [vmem:[#allocation2 + $0x59] sm:$0x7f] %vm1421, %v5342
  %5523 = vst.msk [vmem:[#allocation2 + $0x61] sm:$0xff] %vm1419, %v5344
  %5524 = vst.msk [vmem:[#allocation2 + $0x69] sm:$0x7f] %vm1421, %v5346
  %5525 = vst.msk [vmem:[#allocation2 + $0x71] sm:$0xff] %vm1419, %v5348
  %5526 = vst.msk [vmem:[#allocation2 + $0x79] sm:$0x7f] %vm1421, %v5350
  %5527 = vst.msk [vmem:[#allocation2 + $0x81] sm:$0xff] %vm1419, %v5352
  %5528 = vst.msk [vmem:[#allocation2 + $0x89] sm:$0x7f] %vm1421, %v5354
  %5529 = vst.msk [vmem:[#allocation2 + $0x91] sm:$0xff] %vm1419, %v5356
  %5530 = vst.msk [vmem:[#allocation2 + $0x99] sm:$0x7f] %vm1421, %v5358
  %5531 = vst.msk [vmem:[#allocation2 + $0xa1] sm:$0xff] %vm1419, %v5360
  %5532 = vst.msk [vmem:[#allocation2 + $0xa9] sm:$0x7f] %vm1421, %v5362
  %5533 = vst.msk [vmem:[#allocation2 + $0xb1] sm:$0xff] %vm1419, %v5364
  %5534 = vst.msk [vmem:[#allocation2 + $0xb9] sm:$0x7f] %vm1421, %v5366
  %5535 = vst.msk [vmem:[#allocation2 + $0xc1] sm:$0xff] %vm1419, %v5368
  %5536 = vst.msk [vmem:[#allocation2 + $0xc9] sm:$0x7f] %vm1421, %v5370
  %5537 = vst.msk [vmem:[#allocation2 + $0xd1] sm:$0xff] %vm1419, %v5372
  %5538 = vst.msk [vmem:[#allocation2 + $0xd9] sm:$0x7f] %vm1421, %v5374
  %5539 = vst.msk [vmem:[#allocation2 + $0xe1] sm:$0xff] %vm1419, %v5376
  %5540 = vst.msk [vmem:[#allocation2 + $0xe9] sm:$0x7f] %vm1421, %v5378
  %5541 = vst.msk [vmem:[#allocation2 + $0xf1] sm:$0xff] %vm1419, %v5380
  %5542 = vst.msk [vmem:[#allocation2 + $0xf9] sm:$0x7f] %vm1421, %v5382
  %5543 = vst.msk [vmem:[#allocation2 + $0x101] sm:$0xff] %vm1419, %v5384
  %5544 = vst.msk [vmem:[#allocation2 + $0x109] sm:$0x7f] %vm1421, %v5386
  %5545 = vst.msk [vmem:[#allocation2 + $0x111] sm:$0xff] %vm1419, %v5388
  %5546 = vst.msk [vmem:[#allocation2 + $0x119] sm:$0x7f] %vm1421, %v5390
  %5547 = vst.msk [vmem:[#allocation2 + $0x121] sm:$0xff] %vm1419, %v5392
  %5548 = vst.msk [vmem:[#allocation2 + $0x129] sm:$0x7f] %vm1421, %v5394
  %5549 = vst.msk [vmem:[#allocation2 + $0x131] sm:$0xff] %vm1419, %v5396
  %5550 = vst.msk [vmem:[#allocation2 + $0x139] sm:$0x7f] %vm1421, %v5398
  %5551 = vst.msk [vmem:[#allocation2 + $0x141] sm:$0xff] %vm1419, %v5400
  %5552 = vst.msk [vmem:[#allocation2 + $0x149] sm:$0x7f] %vm1421, %v5402
  %5553 = vst.msk [vmem:[#allocation2 + $0x151] sm:$0xff] %vm1419, %v5404
  %5554 = vst.msk [vmem:[#allocation2 + $0x159] sm:$0x7f] %vm1421, %v5406
  %5555 = vst.msk [vmem:[#allocation2 + $0x161] sm:$0xff] %vm1419, %v5408
  %5556 = vst.msk [vmem:[#allocation2 + $0x169] sm:$0x7f] %vm1421, %v5410
  %5557 = vst.msk [vmem:[#allocation2 + $0x171] sm:$0xff] %vm1419, %v5412
  %5558 = vst.msk [vmem:[#allocation2 + $0x179] sm:$0x7f] %vm1421, %v5414
  %5559 = vst.msk [vmem:[#allocation2 + $0x181] sm:$0xff] %vm1419, %v5416
  %5560 = vst.msk [vmem:[#allocation2 + $0x189] sm:$0x7f] %vm1421, %v5418
  %5561 = vst.msk [vmem:[#allocation2 + $0x191] sm:$0xff] %vm1419, %v5420
  %5562 = vst.msk [vmem:[#allocation2 + $0x199] sm:$0x7f] %vm1421, %v5422
  %5563 = vst.msk [vmem:[#allocation2 + $0x1a1] sm:$0xff] %vm1419, %v5424
  %5564 = vst.msk [vmem:[#allocation2 + $0x1a9] sm:$0x7f] %vm1421, %v5426
  %5565 = vst.msk [vmem:[#allocation2 + $0x1b1] sm:$0xff] %vm1419, %v5428
  %5566 = vst.msk [vmem:[#allocation2 + $0x1b9] sm:$0x7f] %vm1421, %v5430
  %5567 = vst.msk [vmem:[#allocation2 + $0x1c1] sm:$0xff] %vm1419, %v5432
  %5568 = vst.msk [vmem:[#allocation2 + $0x1c9] sm:$0x7f] %vm1421, %v5434
  %5569 = vst.msk [vmem:[#allocation2 + $0x1d1] sm:$0xff] %vm1419, %v5436
  %5570 = vst.msk [vmem:[#allocation2 + $0x1d9] sm:$0x7f] %vm1421, %v5438
  %5571 = vst.msk [vmem:[#allocation2 + $0x1e1] sm:$0xff] %vm1419, %v5440
  %5572 = vst.msk [vmem:[#allocation2 + $0x1e9] sm:$0x7f] %vm1421, %v5442
  %5573 = vst.msk [vmem:[#allocation2 + $0x1f1] sm:$0xff] %vm1419, %v5444
  %5574 = vst.msk [vmem:[#allocation2 + $0x1f9] sm:$0x7f] %vm1421, %v5446
  %v5575 = vld [vmem:[#allocation3] sm:$0xff]
  %v5576 = vld [vmem:[#allocation3 + $0x8] sm:$0xff]
  %v5577 = vld [vmem:[#allocation3 + $0x10] sm:$0xff]
  %v5578 = vld [vmem:[#allocation3 + $0x18] sm:$0xff]
  %v5579 = vld [vmem:[#allocation3 + $0x20] sm:$0xff]
  %v5580 = vld [vmem:[#allocation3 + $0x28] sm:$0xff]
  %v5581 = vld [vmem:[#allocation3 + $0x30] sm:$0xff]
  %v5582 = vld [vmem:[#allocation3 + $0x38] sm:$0xff]
  %v5583 = vld [vmem:[#allocation3 + $0x40] sm:$0xff]
  %v5584 = vld [vmem:[#allocation3 + $0x48] sm:$0xff]
  %v5585 = vld [vmem:[#allocation3 + $0x50] sm:$0xff]
  %v5586 = vld [vmem:[#allocation3 + $0x58] sm:$0xff]
  %v5587 = vld [vmem:[#allocation3 + $0x60] sm:$0xff]
  %v5588 = vld [vmem:[#allocation3 + $0x68] sm:$0xff]
  %v5589 = vld [vmem:[#allocation3 + $0x70] sm:$0xff]
  %v5590 = vld [vmem:[#allocation3 + $0x78] sm:$0xff]
  %v5591 = vld [vmem:[#allocation3 + $0x80] sm:$0xff]
  %v5592 = vld [vmem:[#allocation3 + $0x88] sm:$0xff]
  %v5593 = vld [vmem:[#allocation3 + $0x90] sm:$0xff]
  %v5594 = vld [vmem:[#allocation3 + $0x98] sm:$0xff]
  %v5595 = vld [vmem:[#allocation3 + $0xa0] sm:$0xff]
  %v5596 = vld [vmem:[#allocation3 + $0xa8] sm:$0xff]
  %v5597 = vld [vmem:[#allocation3 + $0xb0] sm:$0xff]
  %v5598 = vld [vmem:[#allocation3 + $0xb8] sm:$0xff]
  %v5599 = vld [vmem:[#allocation3 + $0xc0] sm:$0xff]
  %v5600 = vld [vmem:[#allocation3 + $0xc8] sm:$0xff]
  %v5601 = vld [vmem:[#allocation3 + $0xd0] sm:$0xff]
  %v5602 = vld [vmem:[#allocation3 + $0xd8] sm:$0xff]
  %v5603 = vld [vmem:[#allocation3 + $0xe0] sm:$0xff]
  %v5604 = vld [vmem:[#allocation3 + $0xe8] sm:$0xff]
  %v5605 = vld [vmem:[#allocation3 + $0xf0] sm:$0xff]
  %v5606 = vld [vmem:[#allocation3 + $0xf8] sm:$0xff]
  %v5607 = vld [vmem:[#allocation3 + $0x100] sm:$0xff]
  %v5608 = vld [vmem:[#allocation3 + $0x108] sm:$0xff]
  %v5609 = vld [vmem:[#allocation3 + $0x110] sm:$0xff]
  %v5610 = vld [vmem:[#allocation3 + $0x118] sm:$0xff]
  %v5611 = vld [vmem:[#allocation3 + $0x120] sm:$0xff]
  %v5612 = vld [vmem:[#allocation3 + $0x128] sm:$0xff]
  %v5613 = vld [vmem:[#allocation3 + $0x130] sm:$0xff]
  %v5614 = vld [vmem:[#allocation3 + $0x138] sm:$0xff]
  %v5615 = vld [vmem:[#allocation3 + $0x140] sm:$0xff]
  %v5616 = vld [vmem:[#allocation3 + $0x148] sm:$0xff]
  %v5617 = vld [vmem:[#allocation3 + $0x150] sm:$0xff]
  %v5618 = vld [vmem:[#allocation3 + $0x158] sm:$0xff]
  %v5619 = vld [vmem:[#allocation3 + $0x160] sm:$0xff]
  %v5620 = vld [vmem:[#allocation3 + $0x168] sm:$0xff]
  %v5621 = vld [vmem:[#allocation3 + $0x170] sm:$0xff]
  %v5622 = vld [vmem:[#allocation3 + $0x178] sm:$0xff]
  %v5623 = vld [vmem:[#allocation3 + $0x180] sm:$0xff]
  %v5624 = vld [vmem:[#allocation3 + $0x188] sm:$0xff]
  %v5625 = vld [vmem:[#allocation3 + $0x190] sm:$0xff]
  %v5626 = vld [vmem:[#allocation3 + $0x198] sm:$0xff]
  %v5627 = vld [vmem:[#allocation3 + $0x1a0] sm:$0xff]
  %v5628 = vld [vmem:[#allocation3 + $0x1a8] sm:$0xff]
  %v5629 = vld [vmem:[#allocation3 + $0x1b0] sm:$0xff]
  %v5630 = vld [vmem:[#allocation3 + $0x1b8] sm:$0xff]
  %v5631 = vld [vmem:[#allocation3 + $0x1c0] sm:$0xff]
  %v5632 = vld [vmem:[#allocation3 + $0x1c8] sm:$0xff]
  %v5633 = vld [vmem:[#allocation3 + $0x1d0] sm:$0xff]
  %v5634 = vld [vmem:[#allocation3 + $0x1d8] sm:$0xff]
  %v5635 = vld [vmem:[#allocation3 + $0x1e0] sm:$0xff]
  %v5636 = vld [vmem:[#allocation3 + $0x1e8] sm:$0xff]
  %v5637 = vld [vmem:[#allocation3 + $0x1f0] sm:$0xff]
  %v5638 = vld [vmem:[#allocation3 + $0x1f8] sm:$0xff]
  %5703 = vrot.lane.b32.xlu0 %v5575, 32
  %v5704 = vpop.permute.xlu0 %5703
  %5705 = vrot.lane.b32.xlu0 %v5576, 32
  %v5706 = vpop.permute.xlu0 %5705
  %5707 = vrot.lane.b32.xlu0 %v5577, 32
  %v5708 = vpop.permute.xlu0 %5707
  %5709 = vrot.lane.b32.xlu0 %v5578, 32
  %v5710 = vpop.permute.xlu0 %5709
  %5711 = vrot.lane.b32.xlu0 %v5579, 32
  %v5712 = vpop.permute.xlu0 %5711
  %5713 = vrot.lane.b32.xlu0 %v5580, 32
  %v5714 = vpop.permute.xlu0 %5713
  %5715 = vrot.lane.b32.xlu0 %v5581, 32
  %v5716 = vpop.permute.xlu0 %5715
  %5717 = vrot.lane.b32.xlu0 %v5582, 32
  %v5718 = vpop.permute.xlu0 %5717
  %5719 = vrot.lane.b32.xlu0 %v5583, 32
  %v5720 = vpop.permute.xlu0 %5719
  %5721 = vrot.lane.b32.xlu0 %v5584, 32
  %v5722 = vpop.permute.xlu0 %5721
  %5723 = vrot.lane.b32.xlu0 %v5585, 32
  %v5724 = vpop.permute.xlu0 %5723
  %5725 = vrot.lane.b32.xlu0 %v5586, 32
  %v5726 = vpop.permute.xlu0 %5725
  %5727 = vrot.lane.b32.xlu0 %v5587, 32
  %v5728 = vpop.permute.xlu0 %5727
  %5729 = vrot.lane.b32.xlu0 %v5588, 32
  %v5730 = vpop.permute.xlu0 %5729
  %5731 = vrot.lane.b32.xlu0 %v5589, 32
  %v5732 = vpop.permute.xlu0 %5731
  %5733 = vrot.lane.b32.xlu0 %v5590, 32
  %v5734 = vpop.permute.xlu0 %5733
  %5735 = vrot.lane.b32.xlu0 %v5591, 32
  %v5736 = vpop.permute.xlu0 %5735
  %5737 = vrot.lane.b32.xlu0 %v5592, 32
  %v5738 = vpop.permute.xlu0 %5737
  %5739 = vrot.lane.b32.xlu0 %v5593, 32
  %v5740 = vpop.permute.xlu0 %5739
  %5741 = vrot.lane.b32.xlu0 %v5594, 32
  %v5742 = vpop.permute.xlu0 %5741
  %5743 = vrot.lane.b32.xlu0 %v5595, 32
  %v5744 = vpop.permute.xlu0 %5743
  %5745 = vrot.lane.b32.xlu0 %v5596, 32
  %v5746 = vpop.permute.xlu0 %5745
  %5747 = vrot.lane.b32.xlu0 %v5597, 32
  %v5748 = vpop.permute.xlu0 %5747
  %5749 = vrot.lane.b32.xlu0 %v5598, 32
  %v5750 = vpop.permute.xlu0 %5749
  %5751 = vrot.lane.b32.xlu0 %v5599, 32
  %v5752 = vpop.permute.xlu0 %5751
  %5753 = vrot.lane.b32.xlu0 %v5600, 32
  %v5754 = vpop.permute.xlu0 %5753
  %5755 = vrot.lane.b32.xlu0 %v5601, 32
  %v5756 = vpop.permute.xlu0 %5755
  %5757 = vrot.lane.b32.xlu0 %v5602, 32
  %v5758 = vpop.permute.xlu0 %5757
  %5759 = vrot.lane.b32.xlu0 %v5603, 32
  %v5760 = vpop.permute.xlu0 %5759
  %5761 = vrot.lane.b32.xlu0 %v5604, 32
  %v5762 = vpop.permute.xlu0 %5761
  %5763 = vrot.lane.b32.xlu0 %v5605, 32
  %v5764 = vpop.permute.xlu0 %5763
  %5765 = vrot.lane.b32.xlu0 %v5606, 32
  %v5766 = vpop.permute.xlu0 %5765
  %5767 = vrot.lane.b32.xlu0 %v5607, 32
  %v5768 = vpop.permute.xlu0 %5767
  %5769 = vrot.lane.b32.xlu0 %v5608, 32
  %v5770 = vpop.permute.xlu0 %5769
  %5771 = vrot.lane.b32.xlu0 %v5609, 32
  %v5772 = vpop.permute.xlu0 %5771
  %5773 = vrot.lane.b32.xlu0 %v5610, 32
  %v5774 = vpop.permute.xlu0 %5773
  %5775 = vrot.lane.b32.xlu0 %v5611, 32
  %v5776 = vpop.permute.xlu0 %5775
  %5777 = vrot.lane.b32.xlu0 %v5612, 32
  %v5778 = vpop.permute.xlu0 %5777
  %5779 = vrot.lane.b32.xlu0 %v5613, 32
  %v5780 = vpop.permute.xlu0 %5779
  %5781 = vrot.lane.b32.xlu0 %v5614, 32
  %v5782 = vpop.permute.xlu0 %5781
  %5783 = vrot.lane.b32.xlu0 %v5615, 32
  %v5784 = vpop.permute.xlu0 %5783
  %5785 = vrot.lane.b32.xlu0 %v5616, 32
  %v5786 = vpop.permute.xlu0 %5785
  %5787 = vrot.lane.b32.xlu0 %v5617, 32
  %v5788 = vpop.permute.xlu0 %5787
  %5789 = vrot.lane.b32.xlu0 %v5618, 32
  %v5790 = vpop.permute.xlu0 %5789
  %5791 = vrot.lane.b32.xlu0 %v5619, 32
  %v5792 = vpop.permute.xlu0 %5791
  %5793 = vrot.lane.b32.xlu0 %v5620, 32
  %v5794 = vpop.permute.xlu0 %5793
  %5795 = vrot.lane.b32.xlu0 %v5621, 32
  %v5796 = vpop.permute.xlu0 %5795
  %5797 = vrot.lane.b32.xlu0 %v5622, 32
  %v5798 = vpop.permute.xlu0 %5797
  %5799 = vrot.lane.b32.xlu0 %v5623, 32
  %v5800 = vpop.permute.xlu0 %5799
  %5801 = vrot.lane.b32.xlu0 %v5624, 32
  %v5802 = vpop.permute.xlu0 %5801
  %5803 = vrot.lane.b32.xlu0 %v5625, 32
  %v5804 = vpop.permute.xlu0 %5803
  %5805 = vrot.lane.b32.xlu0 %v5626, 32
  %v5806 = vpop.permute.xlu0 %5805
  %5807 = vrot.lane.b32.xlu0 %v5627, 32
  %v5808 = vpop.permute.xlu0 %5807
  %5809 = vrot.lane.b32.xlu0 %v5628, 32
  %v5810 = vpop.permute.xlu0 %5809
  %5811 = vrot.lane.b32.xlu0 %v5629, 32
  %v5812 = vpop.permute.xlu0 %5811
  %5813 = vrot.lane.b32.xlu0 %v5630, 32
  %v5814 = vpop.permute.xlu0 %5813
  %5815 = vrot.lane.b32.xlu0 %v5631, 32
  %v5816 = vpop.permute.xlu0 %5815
  %5817 = vrot.lane.b32.xlu0 %v5632, 32
  %v5818 = vpop.permute.xlu0 %5817
  %5819 = vrot.lane.b32.xlu0 %v5633, 32
  %v5820 = vpop.permute.xlu0 %5819
  %5821 = vrot.lane.b32.xlu0 %v5634, 32
  %v5822 = vpop.permute.xlu0 %5821
  %5823 = vrot.lane.b32.xlu0 %v5635, 32
  %v5824 = vpop.permute.xlu0 %5823
  %5825 = vrot.lane.b32.xlu0 %v5636, 32
  %v5826 = vpop.permute.xlu0 %5825
  %5827 = vrot.lane.b32.xlu0 %v5637, 32
  %v5828 = vpop.permute.xlu0 %5827
  %5829 = vrot.lane.b32.xlu0 %v5638, 32
  %v5830 = vpop.permute.xlu0 %5829
  %5895 = vst.msk [vmem:[#allocation2] sm:$0xff] %vm1805, %v5704
  %5896 = vst.msk [vmem:[#allocation2 + $0x8] sm:$0xff] %vm1805, %v5706
  %5897 = vst.msk [vmem:[#allocation2 + $0x10] sm:$0xff] %vm1805, %v5708
  %5898 = vst.msk [vmem:[#allocation2 + $0x18] sm:$0xff] %vm1805, %v5710
  %5899 = vst.msk [vmem:[#allocation2 + $0x20] sm:$0xff] %vm1805, %v5712
  %5900 = vst.msk [vmem:[#allocation2 + $0x28] sm:$0xff] %vm1805, %v5714
  %5901 = vst.msk [vmem:[#allocation2 + $0x30] sm:$0xff] %vm1805, %v5716
  %5902 = vst.msk [vmem:[#allocation2 + $0x38] sm:$0xff] %vm1805, %v5718
  %5903 = vst.msk [vmem:[#allocation2 + $0x40] sm:$0xff] %vm1805, %v5720
  %5904 = vst.msk [vmem:[#allocation2 + $0x48] sm:$0xff] %vm1805, %v5722
  %5905 = vst.msk [vmem:[#allocation2 + $0x50] sm:$0xff] %vm1805, %v5724
  %5906 = vst.msk [vmem:[#allocation2 + $0x58] sm:$0xff] %vm1805, %v5726
  %5907 = vst.msk [vmem:[#allocation2 + $0x60] sm:$0xff] %vm1805, %v5728
  %5908 = vst.msk [vmem:[#allocation2 + $0x68] sm:$0xff] %vm1805, %v5730
  %5909 = vst.msk [vmem:[#allocation2 + $0x70] sm:$0xff] %vm1805, %v5732
  %5910 = vst.msk [vmem:[#allocation2 + $0x78] sm:$0xff] %vm1805, %v5734
  %5911 = vst.msk [vmem:[#allocation2 + $0x80] sm:$0xff] %vm1805, %v5736
  %5912 = vst.msk [vmem:[#allocation2 + $0x88] sm:$0xff] %vm1805, %v5738
  %5913 = vst.msk [vmem:[#allocation2 + $0x90] sm:$0xff] %vm1805, %v5740
  %5914 = vst.msk [vmem:[#allocation2 + $0x98] sm:$0xff] %vm1805, %v5742
  %5915 = vst.msk [vmem:[#allocation2 + $0xa0] sm:$0xff] %vm1805, %v5744
  %5916 = vst.msk [vmem:[#allocation2 + $0xa8] sm:$0xff] %vm1805, %v5746
  %5917 = vst.msk [vmem:[#allocation2 + $0xb0] sm:$0xff] %vm1805, %v5748
  %5918 = vst.msk [vmem:[#allocation2 + $0xb8] sm:$0xff] %vm1805, %v5750
  %5919 = vst.msk [vmem:[#allocation2 + $0xc0] sm:$0xff] %vm1805, %v5752
  %5920 = vst.msk [vmem:[#allocation2 + $0xc8] sm:$0xff] %vm1805, %v5754
  %5921 = vst.msk [vmem:[#allocation2 + $0xd0] sm:$0xff] %vm1805, %v5756
  %5922 = vst.msk [vmem:[#allocation2 + $0xd8] sm:$0xff] %vm1805, %v5758
  %5923 = vst.msk [vmem:[#allocation2 + $0xe0] sm:$0xff] %vm1805, %v5760
  %5924 = vst.msk [vmem:[#allocation2 + $0xe8] sm:$0xff] %vm1805, %v5762
  %5925 = vst.msk [vmem:[#allocation2 + $0xf0] sm:$0xff] %vm1805, %v5764
  %5926 = vst.msk [vmem:[#allocation2 + $0xf8] sm:$0xff] %vm1805, %v5766
  %5927 = vst.msk [vmem:[#allocation2 + $0x100] sm:$0xff] %vm1805, %v5768
  %5928 = vst.msk [vmem:[#allocation2 + $0x108] sm:$0xff] %vm1805, %v5770
  %5929 = vst.msk [vmem:[#allocation2 + $0x110] sm:$0xff] %vm1805, %v5772
  %5930 = vst.msk [vmem:[#allocation2 + $0x118] sm:$0xff] %vm1805, %v5774
  %5931 = vst.msk [vmem:[#allocation2 + $0x120] sm:$0xff] %vm1805, %v5776
  %5932 = vst.msk [vmem:[#allocation2 + $0x128] sm:$0xff] %vm1805, %v5778
  %5933 = vst.msk [vmem:[#allocation2 + $0x130] sm:$0xff] %vm1805, %v5780
  %5934 = vst.msk [vmem:[#allocation2 + $0x138] sm:$0xff] %vm1805, %v5782
  %5935 = vst.msk [vmem:[#allocation2 + $0x140] sm:$0xff] %vm1805, %v5784
  %5936 = vst.msk [vmem:[#allocation2 + $0x148] sm:$0xff] %vm1805, %v5786
  %5937 = vst.msk [vmem:[#allocation2 + $0x150] sm:$0xff] %vm1805, %v5788
  %5938 = vst.msk [vmem:[#allocation2 + $0x158] sm:$0xff] %vm1805, %v5790
  %5939 = vst.msk [vmem:[#allocation2 + $0x160] sm:$0xff] %vm1805, %v5792
  %5940 = vst.msk [vmem:[#allocation2 + $0x168] sm:$0xff] %vm1805, %v5794
  %5941 = vst.msk [vmem:[#allocation2 + $0x170] sm:$0xff] %vm1805, %v5796
  %5942 = vst.msk [vmem:[#allocation2 + $0x178] sm:$0xff] %vm1805, %v5798
  %5943 = vst.msk [vmem:[#allocation2 + $0x180] sm:$0xff] %vm1805, %v5800
  %5944 = vst.msk [vmem:[#allocation2 + $0x188] sm:$0xff] %vm1805, %v5802
  %5945 = vst.msk [vmem:[#allocation2 + $0x190] sm:$0xff] %vm1805, %v5804
  %5946 = vst.msk [vmem:[#allocation2 + $0x198] sm:$0xff] %vm1805, %v5806
  %5947 = vst.msk [vmem:[#allocation2 + $0x1a0] sm:$0xff] %vm1805, %v5808
  %5948 = vst.msk [vmem:[#allocation2 + $0x1a8] sm:$0xff] %vm1805, %v5810
  %5949 = vst.msk [vmem:[#allocation2 + $0x1b0] sm:$0xff] %vm1805, %v5812
  %5950 = vst.msk [vmem:[#allocation2 + $0x1b8] sm:$0xff] %vm1805, %v5814
  %5951 = vst.msk [vmem:[#allocation2 + $0x1c0] sm:$0xff] %vm1805, %v5816
  %5952 = vst.msk [vmem:[#allocation2 + $0x1c8] sm:$0xff] %vm1805, %v5818
  %5953 = vst.msk [vmem:[#allocation2 + $0x1d0] sm:$0xff] %vm1805, %v5820
  %5954 = vst.msk [vmem:[#allocation2 + $0x1d8] sm:$0xff] %vm1805, %v5822
  %5955 = vst.msk [vmem:[#allocation2 + $0x1e0] sm:$0xff] %vm1805, %v5824
  %5956 = vst.msk [vmem:[#allocation2 + $0x1e8] sm:$0xff] %vm1805, %v5826
  %5957 = vst.msk [vmem:[#allocation2 + $0x1f0] sm:$0xff] %vm1805, %v5828
  %5958 = vst.msk [vmem:[#allocation2 + $0x1f8] sm:$0xff] %vm1805, %v5830
  %v5959 = vld [vmem:[#allocation3 + $0x1] sm:$0xff]
  %v5960 = vld [vmem:[#allocation3 + $0x9] sm:$0x7f]
  %v5961 = vld [vmem:[#allocation3 + $0x11] sm:$0xff]
  %v5962 = vld [vmem:[#allocation3 + $0x19] sm:$0x7f]
  %v5963 = vld [vmem:[#allocation3 + $0x21] sm:$0xff]
  %v5964 = vld [vmem:[#allocation3 + $0x29] sm:$0x7f]
  %v5965 = vld [vmem:[#allocation3 + $0x31] sm:$0xff]
  %v5966 = vld [vmem:[#allocation3 + $0x39] sm:$0x7f]
  %v5967 = vld [vmem:[#allocation3 + $0x41] sm:$0xff]
  %v5968 = vld [vmem:[#allocation3 + $0x49] sm:$0x7f]
  %v5969 = vld [vmem:[#allocation3 + $0x51] sm:$0xff]
  %v5970 = vld [vmem:[#allocation3 + $0x59] sm:$0x7f]
  %v5971 = vld [vmem:[#allocation3 + $0x61] sm:$0xff]
  %v5972 = vld [vmem:[#allocation3 + $0x69] sm:$0x7f]
  %v5973 = vld [vmem:[#allocation3 + $0x71] sm:$0xff]
  %v5974 = vld [vmem:[#allocation3 + $0x79] sm:$0x7f]
  %v5975 = vld [vmem:[#allocation3 + $0x81] sm:$0xff]
  %v5976 = vld [vmem:[#allocation3 + $0x89] sm:$0x7f]
  %v5977 = vld [vmem:[#allocation3 + $0x91] sm:$0xff]
  %v5978 = vld [vmem:[#allocation3 + $0x99] sm:$0x7f]
  %v5979 = vld [vmem:[#allocation3 + $0xa1] sm:$0xff]
  %v5980 = vld [vmem:[#allocation3 + $0xa9] sm:$0x7f]
  %v5981 = vld [vmem:[#allocation3 + $0xb1] sm:$0xff]
  %v5982 = vld [vmem:[#allocation3 + $0xb9] sm:$0x7f]
  %v5983 = vld [vmem:[#allocation3 + $0xc1] sm:$0xff]
  %v5984 = vld [vmem:[#allocation3 + $0xc9] sm:$0x7f]
  %v5985 = vld [vmem:[#allocation3 + $0xd1] sm:$0xff]
  %v5986 = vld [vmem:[#allocation3 + $0xd9] sm:$0x7f]
  %v5987 = vld [vmem:[#allocation3 + $0xe1] sm:$0xff]
  %v5988 = vld [vmem:[#allocation3 + $0xe9] sm:$0x7f]
  %v5989 = vld [vmem:[#allocation3 + $0xf1] sm:$0xff]
  %v5990 = vld [vmem:[#allocation3 + $0xf9] sm:$0x7f]
  %v5991 = vld [vmem:[#allocation3 + $0x101] sm:$0xff]
  %v5992 = vld [vmem:[#allocation3 + $0x109] sm:$0x7f]
  %v5993 = vld [vmem:[#allocation3 + $0x111] sm:$0xff]
  %v5994 = vld [vmem:[#allocation3 + $0x119] sm:$0x7f]
  %v5995 = vld [vmem:[#allocation3 + $0x121] sm:$0xff]
  %v5996 = vld [vmem:[#allocation3 + $0x129] sm:$0x7f]
  %v5997 = vld [vmem:[#allocation3 + $0x131] sm:$0xff]
  %v5998 = vld [vmem:[#allocation3 + $0x139] sm:$0x7f]
  %v5999 = vld [vmem:[#allocation3 + $0x141] sm:$0xff]
  %v6000 = vld [vmem:[#allocation3 + $0x149] sm:$0x7f]
  %v6001 = vld [vmem:[#allocation3 + $0x151] sm:$0xff]
  %v6002 = vld [vmem:[#allocation3 + $0x159] sm:$0x7f]
  %v6003 = vld [vmem:[#allocation3 + $0x161] sm:$0xff]
  %v6004 = vld [vmem:[#allocation3 + $0x169] sm:$0x7f]
  %v6005 = vld [vmem:[#allocation3 + $0x171] sm:$0xff]
  %v6006 = vld [vmem:[#allocation3 + $0x179] sm:$0x7f]
  %v6007 = vld [vmem:[#allocation3 + $0x181] sm:$0xff]
  %v6008 = vld [vmem:[#allocation3 + $0x189] sm:$0x7f]
  %v6009 = vld [vmem:[#allocation3 + $0x191] sm:$0xff]
  %v6010 = vld [vmem:[#allocation3 + $0x199] sm:$0x7f]
  %v6011 = vld [vmem:[#allocation3 + $0x1a1] sm:$0xff]
  %v6012 = vld [vmem:[#allocation3 + $0x1a9] sm:$0x7f]
  %v6013 = vld [vmem:[#allocation3 + $0x1b1] sm:$0xff]
  %v6014 = vld [vmem:[#allocation3 + $0x1b9] sm:$0x7f]
  %v6015 = vld [vmem:[#allocation3 + $0x1c1] sm:$0xff]
  %v6016 = vld [vmem:[#allocation3 + $0x1c9] sm:$0x7f]
  %v6017 = vld [vmem:[#allocation3 + $0x1d1] sm:$0xff]
  %v6018 = vld [vmem:[#allocation3 + $0x1d9] sm:$0x7f]
  %v6019 = vld [vmem:[#allocation3 + $0x1e1] sm:$0xff]
  %v6020 = vld [vmem:[#allocation3 + $0x1e9] sm:$0x7f]
  %v6021 = vld [vmem:[#allocation3 + $0x1f1] sm:$0xff]
  %v6022 = vld [vmem:[#allocation3 + $0x1f9] sm:$0x7f]
  %6087 = vrot.lane.b32.xlu0 %v5959, 40
  %v6088 = vpop.permute.xlu0 %6087
  %6089 = vrot.lane.b32.xlu0 %v5960, 40
  %v6090 = vpop.permute.xlu0 %6089
  %6091 = vrot.lane.b32.xlu0 %v5961, 40
  %v6092 = vpop.permute.xlu0 %6091
  %6093 = vrot.lane.b32.xlu0 %v5962, 40
  %v6094 = vpop.permute.xlu0 %6093
  %6095 = vrot.lane.b32.xlu0 %v5963, 40
  %v6096 = vpop.permute.xlu0 %6095
  %6097 = vrot.lane.b32.xlu0 %v5964, 40
  %v6098 = vpop.permute.xlu0 %6097
  %6099 = vrot.lane.b32.xlu0 %v5965, 40
  %v6100 = vpop.permute.xlu0 %6099
  %6101 = vrot.lane.b32.xlu0 %v5966, 40
  %v6102 = vpop.permute.xlu0 %6101
  %6103 = vrot.lane.b32.xlu0 %v5967, 40
  %v6104 = vpop.permute.xlu0 %6103
  %6105 = vrot.lane.b32.xlu0 %v5968, 40
  %v6106 = vpop.permute.xlu0 %6105
  %6107 = vrot.lane.b32.xlu0 %v5969, 40
  %v6108 = vpop.permute.xlu0 %6107
  %6109 = vrot.lane.b32.xlu0 %v5970, 40
  %v6110 = vpop.permute.xlu0 %6109
  %6111 = vrot.lane.b32.xlu0 %v5971, 40
  %v6112 = vpop.permute.xlu0 %6111
  %6113 = vrot.lane.b32.xlu0 %v5972, 40
  %v6114 = vpop.permute.xlu0 %6113
  %6115 = vrot.lane.b32.xlu0 %v5973, 40
  %v6116 = vpop.permute.xlu0 %6115
  %6117 = vrot.lane.b32.xlu0 %v5974, 40
  %v6118 = vpop.permute.xlu0 %6117
  %6119 = vrot.lane.b32.xlu0 %v5975, 40
  %v6120 = vpop.permute.xlu0 %6119
  %6121 = vrot.lane.b32.xlu0 %v5976, 40
  %v6122 = vpop.permute.xlu0 %6121
  %6123 = vrot.lane.b32.xlu0 %v5977, 40
  %v6124 = vpop.permute.xlu0 %6123
  %6125 = vrot.lane.b32.xlu0 %v5978, 40
  %v6126 = vpop.permute.xlu0 %6125
  %6127 = vrot.lane.b32.xlu0 %v5979, 40
  %v6128 = vpop.permute.xlu0 %6127
  %6129 = vrot.lane.b32.xlu0 %v5980, 40
  %v6130 = vpop.permute.xlu0 %6129
  %6131 = vrot.lane.b32.xlu0 %v5981, 40
  %v6132 = vpop.permute.xlu0 %6131
  %6133 = vrot.lane.b32.xlu0 %v5982, 40
  %v6134 = vpop.permute.xlu0 %6133
  %6135 = vrot.lane.b32.xlu0 %v5983, 40
  %v6136 = vpop.permute.xlu0 %6135
  %6137 = vrot.lane.b32.xlu0 %v5984, 40
  %v6138 = vpop.permute.xlu0 %6137
  %6139 = vrot.lane.b32.xlu0 %v5985, 40
  %v6140 = vpop.permute.xlu0 %6139
  %6141 = vrot.lane.b32.xlu0 %v5986, 40
  %v6142 = vpop.permute.xlu0 %6141
  %6143 = vrot.lane.b32.xlu0 %v5987, 40
  %v6144 = vpop.permute.xlu0 %6143
  %6145 = vrot.lane.b32.xlu0 %v5988, 40
  %v6146 = vpop.permute.xlu0 %6145
  %6147 = vrot.lane.b32.xlu0 %v5989, 40
  %v6148 = vpop.permute.xlu0 %6147
  %6149 = vrot.lane.b32.xlu0 %v5990, 40
  %v6150 = vpop.permute.xlu0 %6149
  %6151 = vrot.lane.b32.xlu0 %v5991, 40
  %v6152 = vpop.permute.xlu0 %6151
  %6153 = vrot.lane.b32.xlu0 %v5992, 40
  %v6154 = vpop.permute.xlu0 %6153
  %6155 = vrot.lane.b32.xlu0 %v5993, 40
  %v6156 = vpop.permute.xlu0 %6155
  %6157 = vrot.lane.b32.xlu0 %v5994, 40
  %v6158 = vpop.permute.xlu0 %6157
  %6159 = vrot.lane.b32.xlu0 %v5995, 40
  %v6160 = vpop.permute.xlu0 %6159
  %6161 = vrot.lane.b32.xlu0 %v5996, 40
  %v6162 = vpop.permute.xlu0 %6161
  %6163 = vrot.lane.b32.xlu0 %v5997, 40
  %v6164 = vpop.permute.xlu0 %6163
  %6165 = vrot.lane.b32.xlu0 %v5998, 40
  %v6166 = vpop.permute.xlu0 %6165
  %6167 = vrot.lane.b32.xlu0 %v5999, 40
  %v6168 = vpop.permute.xlu0 %6167
  %6169 = vrot.lane.b32.xlu0 %v6000, 40
  %v6170 = vpop.permute.xlu0 %6169
  %6171 = vrot.lane.b32.xlu0 %v6001, 40
  %v6172 = vpop.permute.xlu0 %6171
  %6173 = vrot.lane.b32.xlu0 %v6002, 40
  %v6174 = vpop.permute.xlu0 %6173
  %6175 = vrot.lane.b32.xlu0 %v6003, 40
  %v6176 = vpop.permute.xlu0 %6175
  %6177 = vrot.lane.b32.xlu0 %v6004, 40
  %v6178 = vpop.permute.xlu0 %6177
  %6179 = vrot.lane.b32.xlu0 %v6005, 40
  %v6180 = vpop.permute.xlu0 %6179
  %6181 = vrot.lane.b32.xlu0 %v6006, 40
  %v6182 = vpop.permute.xlu0 %6181
  %6183 = vrot.lane.b32.xlu0 %v6007, 40
  %v6184 = vpop.permute.xlu0 %6183
  %6185 = vrot.lane.b32.xlu0 %v6008, 40
  %v6186 = vpop.permute.xlu0 %6185
  %6187 = vrot.lane.b32.xlu0 %v6009, 40
  %v6188 = vpop.permute.xlu0 %6187
  %6189 = vrot.lane.b32.xlu0 %v6010, 40
  %v6190 = vpop.permute.xlu0 %6189
  %6191 = vrot.lane.b32.xlu0 %v6011, 40
  %v6192 = vpop.permute.xlu0 %6191
  %6193 = vrot.lane.b32.xlu0 %v6012, 40
  %v6194 = vpop.permute.xlu0 %6193
  %6195 = vrot.lane.b32.xlu0 %v6013, 40
  %v6196 = vpop.permute.xlu0 %6195
  %6197 = vrot.lane.b32.xlu0 %v6014, 40
  %v6198 = vpop.permute.xlu0 %6197
  %6199 = vrot.lane.b32.xlu0 %v6015, 40
  %v6200 = vpop.permute.xlu0 %6199
  %6201 = vrot.lane.b32.xlu0 %v6016, 40
  %v6202 = vpop.permute.xlu0 %6201
  %6203 = vrot.lane.b32.xlu0 %v6017, 40
  %v6204 = vpop.permute.xlu0 %6203
  %6205 = vrot.lane.b32.xlu0 %v6018, 40
  %v6206 = vpop.permute.xlu0 %6205
  %6207 = vrot.lane.b32.xlu0 %v6019, 40
  %v6208 = vpop.permute.xlu0 %6207
  %6209 = vrot.lane.b32.xlu0 %v6020, 40
  %v6210 = vpop.permute.xlu0 %6209
  %6211 = vrot.lane.b32.xlu0 %v6021, 40
  %v6212 = vpop.permute.xlu0 %6211
  %6213 = vrot.lane.b32.xlu0 %v6022, 40
  %v6214 = vpop.permute.xlu0 %6213
  %6279 = vst.msk [vmem:[#allocation2] sm:$0xff] %vm2190, %v6088
  %6280 = vst.msk [vmem:[#allocation2 + $0x8] sm:$0x7f] %vm2192, %v6090
  %6281 = vst.msk [vmem:[#allocation2 + $0x10] sm:$0xff] %vm2190, %v6092
  %6282 = vst.msk [vmem:[#allocation2 + $0x18] sm:$0x7f] %vm2192, %v6094
  %6283 = vst.msk [vmem:[#allocation2 + $0x20] sm:$0xff] %vm2190, %v6096
  %6284 = vst.msk [vmem:[#allocation2 + $0x28] sm:$0x7f] %vm2192, %v6098
  %6285 = vst.msk [vmem:[#allocation2 + $0x30] sm:$0xff] %vm2190, %v6100
  %6286 = vst.msk [vmem:[#allocation2 + $0x38] sm:$0x7f] %vm2192, %v6102
  %6287 = vst.msk [vmem:[#allocation2 + $0x40] sm:$0xff] %vm2190, %v6104
  %6288 = vst.msk [vmem:[#allocation2 + $0x48] sm:$0x7f] %vm2192, %v6106
  %6289 = vst.msk [vmem:[#allocation2 + $0x50] sm:$0xff] %vm2190, %v6108
  %6290 = vst.msk [vmem:[#allocation2 + $0x58] sm:$0x7f] %vm2192, %v6110
  %6291 = vst.msk [vmem:[#allocation2 + $0x60] sm:$0xff] %vm2190, %v6112
  %6292 = vst.msk [vmem:[#allocation2 + $0x68] sm:$0x7f] %vm2192, %v6114
  %6293 = vst.msk [vmem:[#allocation2 + $0x70] sm:$0xff] %vm2190, %v6116
  %6294 = vst.msk [vmem:[#allocation2 + $0x78] sm:$0x7f] %vm2192, %v6118
  %6295 = vst.msk [vmem:[#allocation2 + $0x80] sm:$0xff] %vm2190, %v6120
  %6296 = vst.msk [vmem:[#allocation2 + $0x88] sm:$0x7f] %vm2192, %v6122
  %6297 = vst.msk [vmem:[#allocation2 + $0x90] sm:$0xff] %vm2190, %v6124
  %6298 = vst.msk [vmem:[#allocation2 + $0x98] sm:$0x7f] %vm2192, %v6126
  %6299 = vst.msk [vmem:[#allocation2 + $0xa0] sm:$0xff] %vm2190, %v6128
  %6300 = vst.msk [vmem:[#allocation2 + $0xa8] sm:$0x7f] %vm2192, %v6130
  %6301 = vst.msk [vmem:[#allocation2 + $0xb0] sm:$0xff] %vm2190, %v6132
  %6302 = vst.msk [vmem:[#allocation2 + $0xb8] sm:$0x7f] %vm2192, %v6134
  %6303 = vst.msk [vmem:[#allocation2 + $0xc0] sm:$0xff] %vm2190, %v6136
  %6304 = vst.msk [vmem:[#allocation2 + $0xc8] sm:$0x7f] %vm2192, %v6138
  %6305 = vst.msk [vmem:[#allocation2 + $0xd0] sm:$0xff] %vm2190, %v6140
  %6306 = vst.msk [vmem:[#allocation2 + $0xd8] sm:$0x7f] %vm2192, %v6142
  %6307 = vst.msk [vmem:[#allocation2 + $0xe0] sm:$0xff] %vm2190, %v6144
  %6308 = vst.msk [vmem:[#allocation2 + $0xe8] sm:$0x7f] %vm2192, %v6146
  %6309 = vst.msk [vmem:[#allocation2 + $0xf0] sm:$0xff] %vm2190, %v6148
  %6310 = vst.msk [vmem:[#allocation2 + $0xf8] sm:$0x7f] %vm2192, %v6150
  %6311 = vst.msk [vmem:[#allocation2 + $0x100] sm:$0xff] %vm2190, %v6152
  %6312 = vst.msk [vmem:[#allocation2 + $0x108] sm:$0x7f] %vm2192, %v6154
  %6313 = vst.msk [vmem:[#allocation2 + $0x110] sm:$0xff] %vm2190, %v6156
  %6314 = vst.msk [vmem:[#allocation2 + $0x118] sm:$0x7f] %vm2192, %v6158
  %6315 = vst.msk [vmem:[#allocation2 + $0x120] sm:$0xff] %vm2190, %v6160
  %6316 = vst.msk [vmem:[#allocation2 + $0x128] sm:$0x7f] %vm2192, %v6162
  %6317 = vst.msk [vmem:[#allocation2 + $0x130] sm:$0xff] %vm2190, %v6164
  %6318 = vst.msk [vmem:[#allocation2 + $0x138] sm:$0x7f] %vm2192, %v6166
  %6319 = vst.msk [vmem:[#allocation2 + $0x140] sm:$0xff] %vm2190, %v6168
  %6320 = vst.msk [vmem:[#allocation2 + $0x148] sm:$0x7f] %vm2192, %v6170
  %6321 = vst.msk [vmem:[#allocation2 + $0x150] sm:$0xff] %vm2190, %v6172
  %6322 = vst.msk [vmem:[#allocation2 + $0x158] sm:$0x7f] %vm2192, %v6174
  %6323 = vst.msk [vmem:[#allocation2 + $0x160] sm:$0xff] %vm2190, %v6176
  %6324 = vst.msk [vmem:[#allocation2 + $0x168] sm:$0x7f] %vm2192, %v6178
  %6325 = vst.msk [vmem:[#allocation2 + $0x170] sm:$0xff] %vm2190, %v6180
  %6326 = vst.msk [vmem:[#allocation2 + $0x178] sm:$0x7f] %vm2192, %v6182
  %6327 = vst.msk [vmem:[#allocation2 + $0x180] sm:$0xff] %vm2190, %v6184
  %6328 = vst.msk [vmem:[#allocation2 + $0x188] sm:$0x7f] %vm2192, %v6186
  %6329 = vst.msk [vmem:[#allocation2 + $0x190] sm:$0xff] %vm2190, %v6188
  %6330 = vst.msk [vmem:[#allocation2 + $0x198] sm:$0x7f] %vm2192, %v6190
  %6331 = vst.msk [vmem:[#allocation2 + $0x1a0] sm:$0xff] %vm2190, %v6192
  %6332 = vst.msk [vmem:[#allocation2 + $0x1a8] sm:$0x7f] %vm2192, %v6194
  %6333 = vst.msk [vmem:[#allocation2 + $0x1b0] sm:$0xff] %vm2190, %v6196
  %6334 = vst.msk [vmem:[#allocation2 + $0x1b8] sm:$0x7f] %vm2192, %v6198
  %6335 = vst.msk [vmem:[#allocation2 + $0x1c0] sm:$0xff] %vm2190, %v6200
  %6336 = vst.msk [vmem:[#allocation2 + $0x1c8] sm:$0x7f] %vm2192, %v6202
  %6337 = vst.msk [vmem:[#allocation2 + $0x1d0] sm:$0xff] %vm2190, %v6204
  %6338 = vst.msk [vmem:[#allocation2 + $0x1d8] sm:$0x7f] %vm2192, %v6206
  %6339 = vst.msk [vmem:[#allocation2 + $0x1e0] sm:$0xff] %vm2190, %v6208
  %6340 = vst.msk [vmem:[#allocation2 + $0x1e8] sm:$0x7f] %vm2192, %v6210
  %6341 = vst.msk [vmem:[#allocation2 + $0x1f0] sm:$0xff] %vm2190, %v6212
  %6342 = vst.msk [vmem:[#allocation2 + $0x1f8] sm:$0x7f] %vm2192, %v6214
  %s6343 = scalar_lea.vmem [#allocation3], 16
  %v6344 = vld [vmem:[%s6343] sm:$0xff]
  %v6345 = vld [vmem:[%s6343 + $0x8] sm:$0x7f]
  %v6346 = vld [vmem:[%s6343 + $0x10] sm:$0xff]
  %v6347 = vld [vmem:[%s6343 + $0x18] sm:$0x7f]
  %v6348 = vld [vmem:[%s6343 + $0x20] sm:$0xff]
  %v6349 = vld [vmem:[%s6343 + $0x28] sm:$0x7f]
  %v6350 = vld [vmem:[%s6343 + $0x30] sm:$0xff]
  %v6351 = vld [vmem:[%s6343 + $0x38] sm:$0x7f]
  %v6352 = vld [vmem:[%s6343 + $0x40] sm:$0xff]
  %v6353 = vld [vmem:[%s6343 + $0x48] sm:$0x7f]
  %v6354 = vld [vmem:[%s6343 + $0x50] sm:$0xff]
  %v6355 = vld [vmem:[%s6343 + $0x58] sm:$0x7f]
  %v6356 = vld [vmem:[%s6343 + $0x60] sm:$0xff]
  %v6357 = vld [vmem:[%s6343 + $0x68] sm:$0x7f]
  %v6358 = vld [vmem:[%s6343 + $0x70] sm:$0xff]
  %v6359 = vld [vmem:[%s6343 + $0x78] sm:$0x7f]
  %v6360 = vld [vmem:[%s6343 + $0x80] sm:$0xff]
  %v6361 = vld [vmem:[%s6343 + $0x88] sm:$0x7f]
  %v6362 = vld [vmem:[%s6343 + $0x90] sm:$0xff]
  %v6363 = vld [vmem:[%s6343 + $0x98] sm:$0x7f]
  %v6364 = vld [vmem:[%s6343 + $0xa0] sm:$0xff]
  %v6365 = vld [vmem:[%s6343 + $0xa8] sm:$0x7f]
  %v6366 = vld [vmem:[%s6343 + $0xb0] sm:$0xff]
  %v6367 = vld [vmem:[%s6343 + $0xb8] sm:$0x7f]
  %v6368 = vld [vmem:[%s6343 + $0xc0] sm:$0xff]
  %v6369 = vld [vmem:[%s6343 + $0xc8] sm:$0x7f]
  %v6370 = vld [vmem:[%s6343 + $0xd0] sm:$0xff]
  %v6371 = vld [vmem:[%s6343 + $0xd8] sm:$0x7f]
  %v6372 = vld [vmem:[%s6343 + $0xe0] sm:$0xff]
  %v6373 = vld [vmem:[%s6343 + $0xe8] sm:$0x7f]
  %v6374 = vld [vmem:[%s6343 + $0x100] sm:$0xff]
  %v6375 = vld [vmem:[%s6343 + $0x108] sm:$0x7f]
  %v6376 = vld [vmem:[%s6343 + $0x110] sm:$0xff]
  %v6377 = vld [vmem:[%s6343 + $0x118] sm:$0x7f]
  %v6378 = vld [vmem:[%s6343 + $0x120] sm:$0xff]
  %v6379 = vld [vmem:[%s6343 + $0x128] sm:$0x7f]
  %v6380 = vld [vmem:[%s6343 + $0x130] sm:$0xff]
  %v6381 = vld [vmem:[%s6343 + $0x138] sm:$0x7f]
  %v6382 = vld [vmem:[%s6343 + $0x140] sm:$0xff]
  %v6383 = vld [vmem:[%s6343 + $0x148] sm:$0x7f]
  %v6384 = vld [vmem:[%s6343 + $0x150] sm:$0xff]
  %v6385 = vld [vmem:[%s6343 + $0x158] sm:$0x7f]
  %v6386 = vld [vmem:[%s6343 + $0x160] sm:$0xff]
  %v6387 = vld [vmem:[%s6343 + $0x168] sm:$0x7f]
  %v6388 = vld [vmem:[%s6343 + $0x170] sm:$0xff]
  %v6389 = vld [vmem:[%s6343 + $0x178] sm:$0x7f]
  %v6390 = vld [vmem:[%s6343 + $0x180] sm:$0xff]
  %v6391 = vld [vmem:[%s6343 + $0x188] sm:$0x7f]
  %v6392 = vld [vmem:[%s6343 + $0x190] sm:$0xff]
  %v6393 = vld [vmem:[%s6343 + $0x198] sm:$0x7f]
  %v6394 = vld [vmem:[%s6343 + $0x1a0] sm:$0xff]
  %v6395 = vld [vmem:[%s6343 + $0x1a8] sm:$0x7f]
  %v6396 = vld [vmem:[%s6343 + $0x1b0] sm:$0xff]
  %v6397 = vld [vmem:[%s6343 + $0x1b8] sm:$0x7f]
  %v6398 = vld [vmem:[%s6343 + $0x1c0] sm:$0xff]
  %v6399 = vld [vmem:[%s6343 + $0x1c8] sm:$0x7f]
  %v6400 = vld [vmem:[%s6343 + $0x1d0] sm:$0xff]
  %v6401 = vld [vmem:[%s6343 + $0x1d8] sm:$0x7f]
  %v6402 = vld [vmem:[%s6343 + $0x1e0] sm:$0xff]
  %v6403 = vld [vmem:[%s6343 + $0x1e8] sm:$0x7f]
  %6464 = vrot.lane.b32.xlu0 %v6344, 48
  %v6465 = vpop.permute.xlu0 %6464
  %6466 = vrot.lane.b32.xlu0 %v6345, 48
  %v6467 = vpop.permute.xlu0 %6466
  %6468 = vrot.lane.b32.xlu0 %v6346, 48
  %v6469 = vpop.permute.xlu0 %6468
  %6470 = vrot.lane.b32.xlu0 %v6347, 48
  %v6471 = vpop.permute.xlu0 %6470
  %6472 = vrot.lane.b32.xlu0 %v6348, 48
  %v6473 = vpop.permute.xlu0 %6472
  %6474 = vrot.lane.b32.xlu0 %v6349, 48
  %v6475 = vpop.permute.xlu0 %6474
  %6476 = vrot.lane.b32.xlu0 %v6350, 48
  %v6477 = vpop.permute.xlu0 %6476
  %6478 = vrot.lane.b32.xlu0 %v6351, 48
  %v6479 = vpop.permute.xlu0 %6478
  %6480 = vrot.lane.b32.xlu0 %v6352, 48
  %v6481 = vpop.permute.xlu0 %6480
  %6482 = vrot.lane.b32.xlu0 %v6353, 48
  %v6483 = vpop.permute.xlu0 %6482
  %6484 = vrot.lane.b32.xlu0 %v6354, 48
  %v6485 = vpop.permute.xlu0 %6484
  %6486 = vrot.lane.b32.xlu0 %v6355, 48
  %v6487 = vpop.permute.xlu0 %6486
  %6488 = vrot.lane.b32.xlu0 %v6356, 48
  %v6489 = vpop.permute.xlu0 %6488
  %6490 = vrot.lane.b32.xlu0 %v6357, 48
  %v6491 = vpop.permute.xlu0 %6490
  %6492 = vrot.lane.b32.xlu0 %v6358, 48
  %v6493 = vpop.permute.xlu0 %6492
  %6494 = vrot.lane.b32.xlu0 %v6359, 48
  %v6495 = vpop.permute.xlu0 %6494
  %6496 = vrot.lane.b32.xlu0 %v6360, 48
  %v6497 = vpop.permute.xlu0 %6496
  %6498 = vrot.lane.b32.xlu0 %v6361, 48
  %v6499 = vpop.permute.xlu0 %6498
  %6500 = vrot.lane.b32.xlu0 %v6362, 48
  %v6501 = vpop.permute.xlu0 %6500
  %6502 = vrot.lane.b32.xlu0 %v6363, 48
  %v6503 = vpop.permute.xlu0 %6502
  %6504 = vrot.lane.b32.xlu0 %v6364, 48
  %v6505 = vpop.permute.xlu0 %6504
  %6506 = vrot.lane.b32.xlu0 %v6365, 48
  %v6507 = vpop.permute.xlu0 %6506
  %6508 = vrot.lane.b32.xlu0 %v6366, 48
  %v6509 = vpop.permute.xlu0 %6508
  %6510 = vrot.lane.b32.xlu0 %v6367, 48
  %v6511 = vpop.permute.xlu0 %6510
  %6512 = vrot.lane.b32.xlu0 %v6368, 48
  %v6513 = vpop.permute.xlu0 %6512
  %6514 = vrot.lane.b32.xlu0 %v6369, 48
  %v6515 = vpop.permute.xlu0 %6514
  %6516 = vrot.lane.b32.xlu0 %v6370, 48
  %v6517 = vpop.permute.xlu0 %6516
  %6518 = vrot.lane.b32.xlu0 %v6371, 48
  %v6519 = vpop.permute.xlu0 %6518
  %6520 = vrot.lane.b32.xlu0 %v6372, 48
  %v6521 = vpop.permute.xlu0 %6520
  %6522 = vrot.lane.b32.xlu0 %v6373, 48
  %v6523 = vpop.permute.xlu0 %6522
  %6524 = vrot.lane.b32.xlu0 %v6374, 48
  %v6525 = vpop.permute.xlu0 %6524
  %6526 = vrot.lane.b32.xlu0 %v6375, 48
  %v6527 = vpop.permute.xlu0 %6526
  %6528 = vrot.lane.b32.xlu0 %v6376, 48
  %v6529 = vpop.permute.xlu0 %6528
  %6530 = vrot.lane.b32.xlu0 %v6377, 48
  %v6531 = vpop.permute.xlu0 %6530
  %6532 = vrot.lane.b32.xlu0 %v6378, 48
  %v6533 = vpop.permute.xlu0 %6532
  %6534 = vrot.lane.b32.xlu0 %v6379, 48
  %v6535 = vpop.permute.xlu0 %6534
  %6536 = vrot.lane.b32.xlu0 %v6380, 48
  %v6537 = vpop.permute.xlu0 %6536
  %6538 = vrot.lane.b32.xlu0 %v6381, 48
  %v6539 = vpop.permute.xlu0 %6538
  %6540 = vrot.lane.b32.xlu0 %v6382, 48
  %v6541 = vpop.permute.xlu0 %6540
  %6542 = vrot.lane.b32.xlu0 %v6383, 48
  %v6543 = vpop.permute.xlu0 %6542
  %6544 = vrot.lane.b32.xlu0 %v6384, 48
  %v6545 = vpop.permute.xlu0 %6544
  %6546 = vrot.lane.b32.xlu0 %v6385, 48
  %v6547 = vpop.permute.xlu0 %6546
  %6548 = vrot.lane.b32.xlu0 %v6386, 48
  %v6549 = vpop.permute.xlu0 %6548
  %6550 = vrot.lane.b32.xlu0 %v6387, 48
  %v6551 = vpop.permute.xlu0 %6550
  %6552 = vrot.lane.b32.xlu0 %v6388, 48
  %v6553 = vpop.permute.xlu0 %6552
  %6554 = vrot.lane.b32.xlu0 %v6389, 48
  %v6555 = vpop.permute.xlu0 %6554
  %6556 = vrot.lane.b32.xlu0 %v6390, 48
  %v6557 = vpop.permute.xlu0 %6556
  %6558 = vrot.lane.b32.xlu0 %v6391, 48
  %v6559 = vpop.permute.xlu0 %6558
  %6560 = vrot.lane.b32.xlu0 %v6392, 48
  %v6561 = vpop.permute.xlu0 %6560
  %6562 = vrot.lane.b32.xlu0 %v6393, 48
  %v6563 = vpop.permute.xlu0 %6562
  %6564 = vrot.lane.b32.xlu0 %v6394, 48
  %v6565 = vpop.permute.xlu0 %6564
  %6566 = vrot.lane.b32.xlu0 %v6395, 48
  %v6567 = vpop.permute.xlu0 %6566
  %6568 = vrot.lane.b32.xlu0 %v6396, 48
  %v6569 = vpop.permute.xlu0 %6568
  %6570 = vrot.lane.b32.xlu0 %v6397, 48
  %v6571 = vpop.permute.xlu0 %6570
  %6572 = vrot.lane.b32.xlu0 %v6398, 48
  %v6573 = vpop.permute.xlu0 %6572
  %6574 = vrot.lane.b32.xlu0 %v6399, 48
  %v6575 = vpop.permute.xlu0 %6574
  %6576 = vrot.lane.b32.xlu0 %v6400, 48
  %v6577 = vpop.permute.xlu0 %6576
  %6578 = vrot.lane.b32.xlu0 %v6401, 48
  %v6579 = vpop.permute.xlu0 %6578
  %6580 = vrot.lane.b32.xlu0 %v6402, 48
  %v6581 = vpop.permute.xlu0 %6580
  %6582 = vrot.lane.b32.xlu0 %v6403, 48
  %v6583 = vpop.permute.xlu0 %6582
  %6644 = vst.msk [vmem:[#allocation2 + $0x1] sm:$0xff] %vm175, %v6465
  %6645 = vst.msk [vmem:[#allocation2 + $0x9] sm:$0x7f] %vm2558, %v6467
  %6646 = vst.msk [vmem:[#allocation2 + $0x11] sm:$0xff] %vm175, %v6469
  %6647 = vst.msk [vmem:[#allocation2 + $0x19] sm:$0x7f] %vm2558, %v6471
  %6648 = vst.msk [vmem:[#allocation2 + $0x21] sm:$0xff] %vm175, %v6473
  %6649 = vst.msk [vmem:[#allocation2 + $0x29] sm:$0x7f] %vm2558, %v6475
  %6650 = vst.msk [vmem:[#allocation2 + $0x31] sm:$0xff] %vm175, %v6477
  %6651 = vst.msk [vmem:[#allocation2 + $0x39] sm:$0x7f] %vm2558, %v6479
  %6652 = vst.msk [vmem:[#allocation2 + $0x41] sm:$0xff] %vm175, %v6481
  %6653 = vst.msk [vmem:[#allocation2 + $0x49] sm:$0x7f] %vm2558, %v6483
  %6654 = vst.msk [vmem:[#allocation2 + $0x51] sm:$0xff] %vm175, %v6485
  %6655 = vst.msk [vmem:[#allocation2 + $0x59] sm:$0x7f] %vm2558, %v6487
  %6656 = vst.msk [vmem:[#allocation2 + $0x61] sm:$0xff] %vm175, %v6489
  %6657 = vst.msk [vmem:[#allocation2 + $0x69] sm:$0x7f] %vm2558, %v6491
  %6658 = vst.msk [vmem:[#allocation2 + $0x71] sm:$0xff] %vm175, %v6493
  %6659 = vst.msk [vmem:[#allocation2 + $0x79] sm:$0x7f] %vm2558, %v6495
  %6660 = vst.msk [vmem:[#allocation2 + $0x81] sm:$0xff] %vm175, %v6497
  %6661 = vst.msk [vmem:[#allocation2 + $0x89] sm:$0x7f] %vm2558, %v6499
  %6662 = vst.msk [vmem:[#allocation2 + $0x91] sm:$0xff] %vm175, %v6501
  %6663 = vst.msk [vmem:[#allocation2 + $0x99] sm:$0x7f] %vm2558, %v6503
  %6664 = vst.msk [vmem:[#allocation2 + $0xa1] sm:$0xff] %vm175, %v6505
  %6665 = vst.msk [vmem:[#allocation2 + $0xa9] sm:$0x7f] %vm2558, %v6507
  %6666 = vst.msk [vmem:[#allocation2 + $0xb1] sm:$0xff] %vm175, %v6509
  %6667 = vst.msk [vmem:[#allocation2 + $0xb9] sm:$0x7f] %vm2558, %v6511
  %6668 = vst.msk [vmem:[#allocation2 + $0xc1] sm:$0xff] %vm175, %v6513
  %6669 = vst.msk [vmem:[#allocation2 + $0xc9] sm:$0x7f] %vm2558, %v6515
  %6670 = vst.msk [vmem:[#allocation2 + $0xd1] sm:$0xff] %vm175, %v6517
  %6671 = vst.msk [vmem:[#allocation2 + $0xd9] sm:$0x7f] %vm2558, %v6519
  %6672 = vst.msk [vmem:[#allocation2 + $0xe1] sm:$0xff] %vm175, %v6521
  %6673 = vst.msk [vmem:[#allocation2 + $0xe9] sm:$0x7f] %vm2558, %v6523
  %6674 = vst.msk [vmem:[#allocation2 + $0x101] sm:$0xff] %vm175, %v6525
  %6675 = vst.msk [vmem:[#allocation2 + $0x109] sm:$0x7f] %vm2558, %v6527
  %6676 = vst.msk [vmem:[#allocation2 + $0x111] sm:$0xff] %vm175, %v6529
  %6677 = vst.msk [vmem:[#allocation2 + $0x119] sm:$0x7f] %vm2558, %v6531
  %6678 = vst.msk [vmem:[#allocation2 + $0x121] sm:$0xff] %vm175, %v6533
  %6679 = vst.msk [vmem:[#allocation2 + $0x129] sm:$0x7f] %vm2558, %v6535
  %6680 = vst.msk [vmem:[#allocation2 + $0x131] sm:$0xff] %vm175, %v6537
  %6681 = vst.msk [vmem:[#allocation2 + $0x139] sm:$0x7f] %vm2558, %v6539
  %6682 = vst.msk [vmem:[#allocation2 + $0x141] sm:$0xff] %vm175, %v6541
  %6683 = vst.msk [vmem:[#allocation2 + $0x149] sm:$0x7f] %vm2558, %v6543
  %6684 = vst.msk [vmem:[#allocation2 + $0x151] sm:$0xff] %vm175, %v6545
  %6685 = vst.msk [vmem:[#allocation2 + $0x159] sm:$0x7f] %vm2558, %v6547
  %6686 = vst.msk [vmem:[#allocation2 + $0x161] sm:$0xff] %vm175, %v6549
  %6687 = vst.msk [vmem:[#allocation2 + $0x169] sm:$0x7f] %vm2558, %v6551
  %6688 = vst.msk [vmem:[#allocation2 + $0x171] sm:$0xff] %vm175, %v6553
  %6689 = vst.msk [vmem:[#allocation2 + $0x179] sm:$0x7f] %vm2558, %v6555
  %6690 = vst.msk [vmem:[#allocation2 + $0x181] sm:$0xff] %vm175, %v6557
  %6691 = vst.msk [vmem:[#allocation2 + $0x189] sm:$0x7f] %vm2558, %v6559
  %6692 = vst.msk [vmem:[#allocation2 + $0x191] sm:$0xff] %vm175, %v6561
  %6693 = vst.msk [vmem:[#allocation2 + $0x199] sm:$0x7f] %vm2558, %v6563
  %6694 = vst.msk [vmem:[#allocation2 + $0x1a1] sm:$0xff] %vm175, %v6565
  %6695 = vst.msk [vmem:[#allocation2 + $0x1a9] sm:$0x7f] %vm2558, %v6567
  %6696 = vst.msk [vmem:[#allocation2 + $0x1b1] sm:$0xff] %vm175, %v6569
  %6697 = vst.msk [vmem:[#allocation2 + $0x1b9] sm:$0x7f] %vm2558, %v6571
  %6698 = vst.msk [vmem:[#allocation2 + $0x1c1] sm:$0xff] %vm175, %v6573
  %6699 = vst.msk [vmem:[#allocation2 + $0x1c9] sm:$0x7f] %vm2558, %v6575
  %6700 = vst.msk [vmem:[#allocation2 + $0x1d1] sm:$0xff] %vm175, %v6577
  %6701 = vst.msk [vmem:[#allocation2 + $0x1d9] sm:$0x7f] %vm2558, %v6579
  %6702 = vst.msk [vmem:[#allocation2 + $0x1e1] sm:$0xff] %vm175, %v6581
  %6703 = vst.msk [vmem:[#allocation2 + $0x1e9] sm:$0x7f] %vm2558, %v6583
  %v6704 = vld [vmem:[%s6343] sm:$0xff]
  %v6705 = vld [vmem:[%s6343 + $0x8] sm:$0xff]
  %v6706 = vld [vmem:[%s6343 + $0x10] sm:$0xff]
  %v6707 = vld [vmem:[%s6343 + $0x18] sm:$0xff]
  %v6708 = vld [vmem:[%s6343 + $0x20] sm:$0xff]
  %v6709 = vld [vmem:[%s6343 + $0x28] sm:$0xff]
  %v6710 = vld [vmem:[%s6343 + $0x30] sm:$0xff]
  %v6711 = vld [vmem:[%s6343 + $0x38] sm:$0xff]
  %v6712 = vld [vmem:[%s6343 + $0x40] sm:$0xff]
  %v6713 = vld [vmem:[%s6343 + $0x48] sm:$0xff]
  %v6714 = vld [vmem:[%s6343 + $0x50] sm:$0xff]
  %v6715 = vld [vmem:[%s6343 + $0x58] sm:$0xff]
  %v6716 = vld [vmem:[%s6343 + $0x60] sm:$0xff]
  %v6717 = vld [vmem:[%s6343 + $0x68] sm:$0xff]
  %v6718 = vld [vmem:[%s6343 + $0x70] sm:$0xff]
  %v6719 = vld [vmem:[%s6343 + $0x78] sm:$0xff]
  %v6720 = vld [vmem:[%s6343 + $0x80] sm:$0xff]
  %v6721 = vld [vmem:[%s6343 + $0x88] sm:$0xff]
  %v6722 = vld [vmem:[%s6343 + $0x90] sm:$0xff]
  %v6723 = vld [vmem:[%s6343 + $0x98] sm:$0xff]
  %v6724 = vld [vmem:[%s6343 + $0xa0] sm:$0xff]
  %v6725 = vld [vmem:[%s6343 + $0xa8] sm:$0xff]
  %v6726 = vld [vmem:[%s6343 + $0xb0] sm:$0xff]
  %v6727 = vld [vmem:[%s6343 + $0xb8] sm:$0xff]
  %v6728 = vld [vmem:[%s6343 + $0xc0] sm:$0xff]
  %v6729 = vld [vmem:[%s6343 + $0xc8] sm:$0xff]
  %v6730 = vld [vmem:[%s6343 + $0xd0] sm:$0xff]
  %v6731 = vld [vmem:[%s6343 + $0xd8] sm:$0xff]
  %v6732 = vld [vmem:[%s6343 + $0xe0] sm:$0xff]
  %v6733 = vld [vmem:[%s6343 + $0xe8] sm:$0xff]
  %v6734 = vld [vmem:[%s6343 + $0x100] sm:$0xff]
  %v6735 = vld [vmem:[%s6343 + $0x108] sm:$0xff]
  %v6736 = vld [vmem:[%s6343 + $0x110] sm:$0xff]
  %v6737 = vld [vmem:[%s6343 + $0x118] sm:$0xff]
  %v6738 = vld [vmem:[%s6343 + $0x120] sm:$0xff]
  %v6739 = vld [vmem:[%s6343 + $0x128] sm:$0xff]
  %v6740 = vld [vmem:[%s6343 + $0x130] sm:$0xff]
  %v6741 = vld [vmem:[%s6343 + $0x138] sm:$0xff]
  %v6742 = vld [vmem:[%s6343 + $0x140] sm:$0xff]
  %v6743 = vld [vmem:[%s6343 + $0x148] sm:$0xff]
  %v6744 = vld [vmem:[%s6343 + $0x150] sm:$0xff]
  %v6745 = vld [vmem:[%s6343 + $0x158] sm:$0xff]
  %v6746 = vld [vmem:[%s6343 + $0x160] sm:$0xff]
  %v6747 = vld [vmem:[%s6343 + $0x168] sm:$0xff]
  %v6748 = vld [vmem:[%s6343 + $0x170] sm:$0xff]
  %v6749 = vld [vmem:[%s6343 + $0x178] sm:$0xff]
  %v6750 = vld [vmem:[%s6343 + $0x180] sm:$0xff]
  %v6751 = vld [vmem:[%s6343 + $0x188] sm:$0xff]
  %v6752 = vld [vmem:[%s6343 + $0x190] sm:$0xff]
  %v6753 = vld [vmem:[%s6343 + $0x198] sm:$0xff]
  %v6754 = vld [vmem:[%s6343 + $0x1a0] sm:$0xff]
  %v6755 = vld [vmem:[%s6343 + $0x1a8] sm:$0xff]
  %v6756 = vld [vmem:[%s6343 + $0x1b0] sm:$0xff]
  %v6757 = vld [vmem:[%s6343 + $0x1b8] sm:$0xff]
  %v6758 = vld [vmem:[%s6343 + $0x1c0] sm:$0xff]
  %v6759 = vld [vmem:[%s6343 + $0x1c8] sm:$0xff]
  %v6760 = vld [vmem:[%s6343 + $0x1d0] sm:$0xff]
  %v6761 = vld [vmem:[%s6343 + $0x1d8] sm:$0xff]
  %v6762 = vld [vmem:[%s6343 + $0x1e0] sm:$0xff]
  %v6763 = vld [vmem:[%s6343 + $0x1e8] sm:$0xff]
  %6824 = vrot.lane.b32.xlu0 %v6704, 56
  %v6825 = vpop.permute.xlu0 %6824
  %6826 = vrot.lane.b32.xlu0 %v6705, 56
  %v6827 = vpop.permute.xlu0 %6826
  %6828 = vrot.lane.b32.xlu0 %v6706, 56
  %v6829 = vpop.permute.xlu0 %6828
  %6830 = vrot.lane.b32.xlu0 %v6707, 56
  %v6831 = vpop.permute.xlu0 %6830
  %6832 = vrot.lane.b32.xlu0 %v6708, 56
  %v6833 = vpop.permute.xlu0 %6832
  %6834 = vrot.lane.b32.xlu0 %v6709, 56
  %v6835 = vpop.permute.xlu0 %6834
  %6836 = vrot.lane.b32.xlu0 %v6710, 56
  %v6837 = vpop.permute.xlu0 %6836
  %6838 = vrot.lane.b32.xlu0 %v6711, 56
  %v6839 = vpop.permute.xlu0 %6838
  %6840 = vrot.lane.b32.xlu0 %v6712, 56
  %v6841 = vpop.permute.xlu0 %6840
  %6842 = vrot.lane.b32.xlu0 %v6713, 56
  %v6843 = vpop.permute.xlu0 %6842
  %6844 = vrot.lane.b32.xlu0 %v6714, 56
  %v6845 = vpop.permute.xlu0 %6844
  %6846 = vrot.lane.b32.xlu0 %v6715, 56
  %v6847 = vpop.permute.xlu0 %6846
  %6848 = vrot.lane.b32.xlu0 %v6716, 56
  %v6849 = vpop.permute.xlu0 %6848
  %6850 = vrot.lane.b32.xlu0 %v6717, 56
  %v6851 = vpop.permute.xlu0 %6850
  %6852 = vrot.lane.b32.xlu0 %v6718, 56
  %v6853 = vpop.permute.xlu0 %6852
  %6854 = vrot.lane.b32.xlu0 %v6719, 56
  %v6855 = vpop.permute.xlu0 %6854
  %6856 = vrot.lane.b32.xlu0 %v6720, 56
  %v6857 = vpop.permute.xlu0 %6856
  %6858 = vrot.lane.b32.xlu0 %v6721, 56
  %v6859 = vpop.permute.xlu0 %6858
  %6860 = vrot.lane.b32.xlu0 %v6722, 56
  %v6861 = vpop.permute.xlu0 %6860
  %6862 = vrot.lane.b32.xlu0 %v6723, 56
  %v6863 = vpop.permute.xlu0 %6862
  %6864 = vrot.lane.b32.xlu0 %v6724, 56
  %v6865 = vpop.permute.xlu0 %6864
  %6866 = vrot.lane.b32.xlu0 %v6725, 56
  %v6867 = vpop.permute.xlu0 %6866
  %6868 = vrot.lane.b32.xlu0 %v6726, 56
  %v6869 = vpop.permute.xlu0 %6868
  %6870 = vrot.lane.b32.xlu0 %v6727, 56
  %v6871 = vpop.permute.xlu0 %6870
  %6872 = vrot.lane.b32.xlu0 %v6728, 56
  %v6873 = vpop.permute.xlu0 %6872
  %6874 = vrot.lane.b32.xlu0 %v6729, 56
  %v6875 = vpop.permute.xlu0 %6874
  %6876 = vrot.lane.b32.xlu0 %v6730, 56
  %v6877 = vpop.permute.xlu0 %6876
  %6878 = vrot.lane.b32.xlu0 %v6731, 56
  %v6879 = vpop.permute.xlu0 %6878
  %6880 = vrot.lane.b32.xlu0 %v6732, 56
  %v6881 = vpop.permute.xlu0 %6880
  %6882 = vrot.lane.b32.xlu0 %v6733, 56
  %v6883 = vpop.permute.xlu0 %6882
  %6884 = vrot.lane.b32.xlu0 %v6734, 56
  %v6885 = vpop.permute.xlu0 %6884
  %6886 = vrot.lane.b32.xlu0 %v6735, 56
  %v6887 = vpop.permute.xlu0 %6886
  %6888 = vrot.lane.b32.xlu0 %v6736, 56
  %v6889 = vpop.permute.xlu0 %6888
  %6890 = vrot.lane.b32.xlu0 %v6737, 56
  %v6891 = vpop.permute.xlu0 %6890
  %6892 = vrot.lane.b32.xlu0 %v6738, 56
  %v6893 = vpop.permute.xlu0 %6892
  %6894 = vrot.lane.b32.xlu0 %v6739, 56
  %v6895 = vpop.permute.xlu0 %6894
  %6896 = vrot.lane.b32.xlu0 %v6740, 56
  %v6897 = vpop.permute.xlu0 %6896
  %6898 = vrot.lane.b32.xlu0 %v6741, 56
  %v6899 = vpop.permute.xlu0 %6898
  %6900 = vrot.lane.b32.xlu0 %v6742, 56
  %v6901 = vpop.permute.xlu0 %6900
  %6902 = vrot.lane.b32.xlu0 %v6743, 56
  %v6903 = vpop.permute.xlu0 %6902
  %6904 = vrot.lane.b32.xlu0 %v6744, 56
  %v6905 = vpop.permute.xlu0 %6904
  %6906 = vrot.lane.b32.xlu0 %v6745, 56
  %v6907 = vpop.permute.xlu0 %6906
  %6908 = vrot.lane.b32.xlu0 %v6746, 56
  %v6909 = vpop.permute.xlu0 %6908
  %6910 = vrot.lane.b32.xlu0 %v6747, 56
  %v6911 = vpop.permute.xlu0 %6910
  %6912 = vrot.lane.b32.xlu0 %v6748, 56
  %v6913 = vpop.permute.xlu0 %6912
  %6914 = vrot.lane.b32.xlu0 %v6749, 56
  %v6915 = vpop.permute.xlu0 %6914
  %6916 = vrot.lane.b32.xlu0 %v6750, 56
  %v6917 = vpop.permute.xlu0 %6916
  %6918 = vrot.lane.b32.xlu0 %v6751, 56
  %v6919 = vpop.permute.xlu0 %6918
  %6920 = vrot.lane.b32.xlu0 %v6752, 56
  %v6921 = vpop.permute.xlu0 %6920
  %6922 = vrot.lane.b32.xlu0 %v6753, 56
  %v6923 = vpop.permute.xlu0 %6922
  %6924 = vrot.lane.b32.xlu0 %v6754, 56
  %v6925 = vpop.permute.xlu0 %6924
  %6926 = vrot.lane.b32.xlu0 %v6755, 56
  %v6927 = vpop.permute.xlu0 %6926
  %6928 = vrot.lane.b32.xlu0 %v6756, 56
  %v6929 = vpop.permute.xlu0 %6928
  %6930 = vrot.lane.b32.xlu0 %v6757, 56
  %v6931 = vpop.permute.xlu0 %6930
  %6932 = vrot.lane.b32.xlu0 %v6758, 56
  %v6933 = vpop.permute.xlu0 %6932
  %6934 = vrot.lane.b32.xlu0 %v6759, 56
  %v6935 = vpop.permute.xlu0 %6934
  %6936 = vrot.lane.b32.xlu0 %v6760, 56
  %v6937 = vpop.permute.xlu0 %6936
  %6938 = vrot.lane.b32.xlu0 %v6761, 56
  %v6939 = vpop.permute.xlu0 %6938
  %6940 = vrot.lane.b32.xlu0 %v6762, 56
  %v6941 = vpop.permute.xlu0 %6940
  %6942 = vrot.lane.b32.xlu0 %v6763, 56
  %v6943 = vpop.permute.xlu0 %6942
  %7004 = vst.msk [vmem:[#allocation2] sm:$0xff] %vm213, %v6825
  %7005 = vst.msk [vmem:[#allocation2 + $0x8] sm:$0xff] %vm213, %v6827
  %7006 = vst.msk [vmem:[#allocation2 + $0x10] sm:$0xff] %vm213, %v6829
  %7007 = vst.msk [vmem:[#allocation2 + $0x18] sm:$0xff] %vm213, %v6831
  %7008 = vst.msk [vmem:[#allocation2 + $0x20] sm:$0xff] %vm213, %v6833
  %7009 = vst.msk [vmem:[#allocation2 + $0x28] sm:$0xff] %vm213, %v6835
  %7010 = vst.msk [vmem:[#allocation2 + $0x30] sm:$0xff] %vm213, %v6837
  %7011 = vst.msk [vmem:[#allocation2 + $0x38] sm:$0xff] %vm213, %v6839
  %7012 = vst.msk [vmem:[#allocation2 + $0x40] sm:$0xff] %vm213, %v6841
  %7013 = vst.msk [vmem:[#allocation2 + $0x48] sm:$0xff] %vm213, %v6843
  %7014 = vst.msk [vmem:[#allocation2 + $0x50] sm:$0xff] %vm213, %v6845
  %7015 = vst.msk [vmem:[#allocation2 + $0x58] sm:$0xff] %vm213, %v6847
  %7016 = vst.msk [vmem:[#allocation2 + $0x60] sm:$0xff] %vm213, %v6849
  %7017 = vst.msk [vmem:[#allocation2 + $0x68] sm:$0xff] %vm213, %v6851
  %7018 = vst.msk [vmem:[#allocation2 + $0x70] sm:$0xff] %vm213, %v6853
  %7019 = vst.msk [vmem:[#allocation2 + $0x78] sm:$0xff] %vm213, %v6855
  %7020 = vst.msk [vmem:[#allocation2 + $0x80] sm:$0xff] %vm213, %v6857
  %7021 = vst.msk [vmem:[#allocation2 + $0x88] sm:$0xff] %vm213, %v6859
  %7022 = vst.msk [vmem:[#allocation2 + $0x90] sm:$0xff] %vm213, %v6861
  %7023 = vst.msk [vmem:[#allocation2 + $0x98] sm:$0xff] %vm213, %v6863
  %7024 = vst.msk [vmem:[#allocation2 + $0xa0] sm:$0xff] %vm213, %v6865
  %7025 = vst.msk [vmem:[#allocation2 + $0xa8] sm:$0xff] %vm213, %v6867
  %7026 = vst.msk [vmem:[#allocation2 + $0xb0] sm:$0xff] %vm213, %v6869
  %7027 = vst.msk [vmem:[#allocation2 + $0xb8] sm:$0xff] %vm213, %v6871
  %7028 = vst.msk [vmem:[#allocation2 + $0xc0] sm:$0xff] %vm213, %v6873
  %7029 = vst.msk [vmem:[#allocation2 + $0xc8] sm:$0xff] %vm213, %v6875
  %7030 = vst.msk [vmem:[#allocation2 + $0xd0] sm:$0xff] %vm213, %v6877
  %7031 = vst.msk [vmem:[#allocation2 + $0xd8] sm:$0xff] %vm213, %v6879
  %7032 = vst.msk [vmem:[#allocation2 + $0xe0] sm:$0xff] %vm213, %v6881
  %7033 = vst.msk [vmem:[#allocation2 + $0xe8] sm:$0xff] %vm213, %v6883
  %7034 = vst.msk [vmem:[#allocation2 + $0x100] sm:$0xff] %vm213, %v6885
  %7035 = vst.msk [vmem:[#allocation2 + $0x108] sm:$0xff] %vm213, %v6887
  %7036 = vst.msk [vmem:[#allocation2 + $0x110] sm:$0xff] %vm213, %v6889
  %7037 = vst.msk [vmem:[#allocation2 + $0x118] sm:$0xff] %vm213, %v6891
  %7038 = vst.msk [vmem:[#allocation2 + $0x120] sm:$0xff] %vm213, %v6893
  %7039 = vst.msk [vmem:[#allocation2 + $0x128] sm:$0xff] %vm213, %v6895
  %7040 = vst.msk [vmem:[#allocation2 + $0x130] sm:$0xff] %vm213, %v6897
  %7041 = vst.msk [vmem:[#allocation2 + $0x138] sm:$0xff] %vm213, %v6899
  %7042 = vst.msk [vmem:[#allocation2 + $0x140] sm:$0xff] %vm213, %v6901
  %7043 = vst.msk [vmem:[#allocation2 + $0x148] sm:$0xff] %vm213, %v6903
  %7044 = vst.msk [vmem:[#allocation2 + $0x150] sm:$0xff] %vm213, %v6905
  %7045 = vst.msk [vmem:[#allocation2 + $0x158] sm:$0xff] %vm213, %v6907
  %7046 = vst.msk [vmem:[#allocation2 + $0x160] sm:$0xff] %vm213, %v6909
  %7047 = vst.msk [vmem:[#allocation2 + $0x168] sm:$0xff] %vm213, %v6911
  %7048 = vst.msk [vmem:[#allocation2 + $0x170] sm:$0xff] %vm213, %v6913
  %7049 = vst.msk [vmem:[#allocation2 + $0x178] sm:$0xff] %vm213, %v6915
  %7050 = vst.msk [vmem:[#allocation2 + $0x180] sm:$0xff] %vm213, %v6917
  %7051 = vst.msk [vmem:[#allocation2 + $0x188] sm:$0xff] %vm213, %v6919
  %7052 = vst.msk [vmem:[#allocation2 + $0x190] sm:$0xff] %vm213, %v6921
  %7053 = vst.msk [vmem:[#allocation2 + $0x198] sm:$0xff] %vm213, %v6923
  %7054 = vst.msk [vmem:[#allocation2 + $0x1a0] sm:$0xff] %vm213, %v6925
  %7055 = vst.msk [vmem:[#allocation2 + $0x1a8] sm:$0xff] %vm213, %v6927
  %7056 = vst.msk [vmem:[#allocation2 + $0x1b0] sm:$0xff] %vm213, %v6929
  %7057 = vst.msk [vmem:[#allocation2 + $0x1b8] sm:$0xff] %vm213, %v6931
  %7058 = vst.msk [vmem:[#allocation2 + $0x1c0] sm:$0xff] %vm213, %v6933
  %7059 = vst.msk [vmem:[#allocation2 + $0x1c8] sm:$0xff] %vm213, %v6935
  %7060 = vst.msk [vmem:[#allocation2 + $0x1d0] sm:$0xff] %vm213, %v6937
  %7061 = vst.msk [vmem:[#allocation2 + $0x1d8] sm:$0xff] %vm213, %v6939
  %7062 = vst.msk [vmem:[#allocation2 + $0x1e0] sm:$0xff] %vm213, %v6941
  %7063 = vst.msk [vmem:[#allocation2 + $0x1e8] sm:$0xff] %vm213, %v6943
  %v7064 = vld [vmem:[%s6343 + $0x1] sm:$0xff]
  %v7065 = vld [vmem:[%s6343 + $0x9] sm:$0x7f]
  %v7066 = vld [vmem:[%s6343 + $0x11] sm:$0xff]
  %v7067 = vld [vmem:[%s6343 + $0x19] sm:$0x7f]
  %v7068 = vld [vmem:[%s6343 + $0x21] sm:$0xff]
  %v7069 = vld [vmem:[%s6343 + $0x29] sm:$0x7f]
  %v7070 = vld [vmem:[%s6343 + $0x31] sm:$0xff]
  %v7071 = vld [vmem:[%s6343 + $0x39] sm:$0x7f]
  %v7072 = vld [vmem:[%s6343 + $0x41] sm:$0xff]
  %v7073 = vld [vmem:[%s6343 + $0x49] sm:$0x7f]
  %v7074 = vld [vmem:[%s6343 + $0x51] sm:$0xff]
  %v7075 = vld [vmem:[%s6343 + $0x59] sm:$0x7f]
  %v7076 = vld [vmem:[%s6343 + $0x61] sm:$0xff]
  %v7077 = vld [vmem:[%s6343 + $0x69] sm:$0x7f]
  %v7078 = vld [vmem:[%s6343 + $0x71] sm:$0xff]
  %v7079 = vld [vmem:[%s6343 + $0x79] sm:$0x7f]
  %v7080 = vld [vmem:[%s6343 + $0x81] sm:$0xff]
  %v7081 = vld [vmem:[%s6343 + $0x89] sm:$0x7f]
  %v7082 = vld [vmem:[%s6343 + $0x91] sm:$0xff]
  %v7083 = vld [vmem:[%s6343 + $0x99] sm:$0x7f]
  %v7084 = vld [vmem:[%s6343 + $0xa1] sm:$0xff]
  %v7085 = vld [vmem:[%s6343 + $0xa9] sm:$0x7f]
  %v7086 = vld [vmem:[%s6343 + $0xb1] sm:$0xff]
  %v7087 = vld [vmem:[%s6343 + $0xb9] sm:$0x7f]
  %v7088 = vld [vmem:[%s6343 + $0xc1] sm:$0xff]
  %v7089 = vld [vmem:[%s6343 + $0xc9] sm:$0x7f]
  %v7090 = vld [vmem:[%s6343 + $0xd1] sm:$0xff]
  %v7091 = vld [vmem:[%s6343 + $0xd9] sm:$0x7f]
  %v7092 = vld [vmem:[%s6343 + $0xe1] sm:$0xff]
  %v7093 = vld [vmem:[%s6343 + $0xe9] sm:$0x7f]
  %v7094 = vld [vmem:[%s6343 + $0x101] sm:$0xff]
  %v7095 = vld [vmem:[%s6343 + $0x109] sm:$0x7f]
  %v7096 = vld [vmem:[%s6343 + $0x111] sm:$0xff]
  %v7097 = vld [vmem:[%s6343 + $0x119] sm:$0x7f]
  %v7098 = vld [vmem:[%s6343 + $0x121] sm:$0xff]
  %v7099 = vld [vmem:[%s6343 + $0x129] sm:$0x7f]
  %v7100 = vld [vmem:[%s6343 + $0x131] sm:$0xff]
  %v7101 = vld [vmem:[%s6343 + $0x139] sm:$0x7f]
  %v7102 = vld [vmem:[%s6343 + $0x141] sm:$0xff]
  %v7103 = vld [vmem:[%s6343 + $0x149] sm:$0x7f]
  %v7104 = vld [vmem:[%s6343 + $0x151] sm:$0xff]
  %v7105 = vld [vmem:[%s6343 + $0x159] sm:$0x7f]
  %v7106 = vld [vmem:[%s6343 + $0x161] sm:$0xff]
  %v7107 = vld [vmem:[%s6343 + $0x169] sm:$0x7f]
  %v7108 = vld [vmem:[%s6343 + $0x171] sm:$0xff]
  %v7109 = vld [vmem:[%s6343 + $0x179] sm:$0x7f]
  %v7110 = vld [vmem:[%s6343 + $0x181] sm:$0xff]
  %v7111 = vld [vmem:[%s6343 + $0x189] sm:$0x7f]
  %v7112 = vld [vmem:[%s6343 + $0x191] sm:$0xff]
  %v7113 = vld [vmem:[%s6343 + $0x199] sm:$0x7f]
  %v7114 = vld [vmem:[%s6343 + $0x1a1] sm:$0xff]
  %v7115 = vld [vmem:[%s6343 + $0x1a9] sm:$0x7f]
  %v7116 = vld [vmem:[%s6343 + $0x1b1] sm:$0xff]
  %v7117 = vld [vmem:[%s6343 + $0x1b9] sm:$0x7f]
  %v7118 = vld [vmem:[%s6343 + $0x1c1] sm:$0xff]
  %v7119 = vld [vmem:[%s6343 + $0x1c9] sm:$0x7f]
  %v7120 = vld [vmem:[%s6343 + $0x1d1] sm:$0xff]
  %v7121 = vld [vmem:[%s6343 + $0x1d9] sm:$0x7f]
  %v7122 = vld [vmem:[%s6343 + $0x1e1] sm:$0xff]
  %v7123 = vld [vmem:[%s6343 + $0x1e9] sm:$0x7f]
  %7184 = vrot.lane.b32.xlu0 %v7064, 64
  %v7185 = vpop.permute.xlu0 %7184
  %7186 = vrot.lane.b32.xlu0 %v7065, 64
  %v7187 = vpop.permute.xlu0 %7186
  %7188 = vrot.lane.b32.xlu0 %v7066, 64
  %v7189 = vpop.permute.xlu0 %7188
  %7190 = vrot.lane.b32.xlu0 %v7067, 64
  %v7191 = vpop.permute.xlu0 %7190
  %7192 = vrot.lane.b32.xlu0 %v7068, 64
  %v7193 = vpop.permute.xlu0 %7192
  %7194 = vrot.lane.b32.xlu0 %v7069, 64
  %v7195 = vpop.permute.xlu0 %7194
  %7196 = vrot.lane.b32.xlu0 %v7070, 64
  %v7197 = vpop.permute.xlu0 %7196
  %7198 = vrot.lane.b32.xlu0 %v7071, 64
  %v7199 = vpop.permute.xlu0 %7198
  %7200 = vrot.lane.b32.xlu0 %v7072, 64
  %v7201 = vpop.permute.xlu0 %7200
  %7202 = vrot.lane.b32.xlu0 %v7073, 64
  %v7203 = vpop.permute.xlu0 %7202
  %7204 = vrot.lane.b32.xlu0 %v7074, 64
  %v7205 = vpop.permute.xlu0 %7204
  %7206 = vrot.lane.b32.xlu0 %v7075, 64
  %v7207 = vpop.permute.xlu0 %7206
  %7208 = vrot.lane.b32.xlu0 %v7076, 64
  %v7209 = vpop.permute.xlu0 %7208
  %7210 = vrot.lane.b32.xlu0 %v7077, 64
  %v7211 = vpop.permute.xlu0 %7210
  %7212 = vrot.lane.b32.xlu0 %v7078, 64
  %v7213 = vpop.permute.xlu0 %7212
  %7214 = vrot.lane.b32.xlu0 %v7079, 64
  %v7215 = vpop.permute.xlu0 %7214
  %7216 = vrot.lane.b32.xlu0 %v7080, 64
  %v7217 = vpop.permute.xlu0 %7216
  %7218 = vrot.lane.b32.xlu0 %v7081, 64
  %v7219 = vpop.permute.xlu0 %7218
  %7220 = vrot.lane.b32.xlu0 %v7082, 64
  %v7221 = vpop.permute.xlu0 %7220
  %7222 = vrot.lane.b32.xlu0 %v7083, 64
  %v7223 = vpop.permute.xlu0 %7222
  %7224 = vrot.lane.b32.xlu0 %v7084, 64
  %v7225 = vpop.permute.xlu0 %7224
  %7226 = vrot.lane.b32.xlu0 %v7085, 64
  %v7227 = vpop.permute.xlu0 %7226
  %7228 = vrot.lane.b32.xlu0 %v7086, 64
  %v7229 = vpop.permute.xlu0 %7228
  %7230 = vrot.lane.b32.xlu0 %v7087, 64
  %v7231 = vpop.permute.xlu0 %7230
  %7232 = vrot.lane.b32.xlu0 %v7088, 64
  %v7233 = vpop.permute.xlu0 %7232
  %7234 = vrot.lane.b32.xlu0 %v7089, 64
  %v7235 = vpop.permute.xlu0 %7234
  %7236 = vrot.lane.b32.xlu0 %v7090, 64
  %v7237 = vpop.permute.xlu0 %7236
  %7238 = vrot.lane.b32.xlu0 %v7091, 64
  %v7239 = vpop.permute.xlu0 %7238
  %7240 = vrot.lane.b32.xlu0 %v7092, 64
  %v7241 = vpop.permute.xlu0 %7240
  %7242 = vrot.lane.b32.xlu0 %v7093, 64
  %v7243 = vpop.permute.xlu0 %7242
  %7244 = vrot.lane.b32.xlu0 %v7094, 64
  %v7245 = vpop.permute.xlu0 %7244
  %7246 = vrot.lane.b32.xlu0 %v7095, 64
  %v7247 = vpop.permute.xlu0 %7246
  %7248 = vrot.lane.b32.xlu0 %v7096, 64
  %v7249 = vpop.permute.xlu0 %7248
  %7250 = vrot.lane.b32.xlu0 %v7097, 64
  %v7251 = vpop.permute.xlu0 %7250
  %7252 = vrot.lane.b32.xlu0 %v7098, 64
  %v7253 = vpop.permute.xlu0 %7252
  %7254 = vrot.lane.b32.xlu0 %v7099, 64
  %v7255 = vpop.permute.xlu0 %7254
  %7256 = vrot.lane.b32.xlu0 %v7100, 64
  %v7257 = vpop.permute.xlu0 %7256
  %7258 = vrot.lane.b32.xlu0 %v7101, 64
  %v7259 = vpop.permute.xlu0 %7258
  %7260 = vrot.lane.b32.xlu0 %v7102, 64
  %v7261 = vpop.permute.xlu0 %7260
  %7262 = vrot.lane.b32.xlu0 %v7103, 64
  %v7263 = vpop.permute.xlu0 %7262
  %7264 = vrot.lane.b32.xlu0 %v7104, 64
  %v7265 = vpop.permute.xlu0 %7264
  %7266 = vrot.lane.b32.xlu0 %v7105, 64
  %v7267 = vpop.permute.xlu0 %7266
  %7268 = vrot.lane.b32.xlu0 %v7106, 64
  %v7269 = vpop.permute.xlu0 %7268
  %7270 = vrot.lane.b32.xlu0 %v7107, 64
  %v7271 = vpop.permute.xlu0 %7270
  %7272 = vrot.lane.b32.xlu0 %v7108, 64
  %v7273 = vpop.permute.xlu0 %7272
  %7274 = vrot.lane.b32.xlu0 %v7109, 64
  %v7275 = vpop.permute.xlu0 %7274
  %7276 = vrot.lane.b32.xlu0 %v7110, 64
  %v7277 = vpop.permute.xlu0 %7276
  %7278 = vrot.lane.b32.xlu0 %v7111, 64
  %v7279 = vpop.permute.xlu0 %7278
  %7280 = vrot.lane.b32.xlu0 %v7112, 64
  %v7281 = vpop.permute.xlu0 %7280
  %7282 = vrot.lane.b32.xlu0 %v7113, 64
  %v7283 = vpop.permute.xlu0 %7282
  %7284 = vrot.lane.b32.xlu0 %v7114, 64
  %v7285 = vpop.permute.xlu0 %7284
  %7286 = vrot.lane.b32.xlu0 %v7115, 64
  %v7287 = vpop.permute.xlu0 %7286
  %7288 = vrot.lane.b32.xlu0 %v7116, 64
  %v7289 = vpop.permute.xlu0 %7288
  %7290 = vrot.lane.b32.xlu0 %v7117, 64
  %v7291 = vpop.permute.xlu0 %7290
  %7292 = vrot.lane.b32.xlu0 %v7118, 64
  %v7293 = vpop.permute.xlu0 %7292
  %7294 = vrot.lane.b32.xlu0 %v7119, 64
  %v7295 = vpop.permute.xlu0 %7294
  %7296 = vrot.lane.b32.xlu0 %v7120, 64
  %v7297 = vpop.permute.xlu0 %7296
  %7298 = vrot.lane.b32.xlu0 %v7121, 64
  %v7299 = vpop.permute.xlu0 %7298
  %7300 = vrot.lane.b32.xlu0 %v7122, 64
  %v7301 = vpop.permute.xlu0 %7300
  %7302 = vrot.lane.b32.xlu0 %v7123, 64
  %v7303 = vpop.permute.xlu0 %7302
  %7364 = vst.msk [vmem:[#allocation2] sm:$0xff] %vm218, %v7185
  %7365 = vst.msk [vmem:[#allocation2 + $0x8] sm:$0x7f] %vm3279, %v7187
  %7366 = vst.msk [vmem:[#allocation2 + $0x10] sm:$0xff] %vm218, %v7189
  %7367 = vst.msk [vmem:[#allocation2 + $0x18] sm:$0x7f] %vm3279, %v7191
  %7368 = vst.msk [vmem:[#allocation2 + $0x20] sm:$0xff] %vm218, %v7193
  %7369 = vst.msk [vmem:[#allocation2 + $0x28] sm:$0x7f] %vm3279, %v7195
  %7370 = vst.msk [vmem:[#allocation2 + $0x30] sm:$0xff] %vm218, %v7197
  %7371 = vst.msk [vmem:[#allocation2 + $0x38] sm:$0x7f] %vm3279, %v7199
  %7372 = vst.msk [vmem:[#allocation2 + $0x40] sm:$0xff] %vm218, %v7201
  %7373 = vst.msk [vmem:[#allocation2 + $0x48] sm:$0x7f] %vm3279, %v7203
  %7374 = vst.msk [vmem:[#allocation2 + $0x50] sm:$0xff] %vm218, %v7205
  %7375 = vst.msk [vmem:[#allocation2 + $0x58] sm:$0x7f] %vm3279, %v7207
  %7376 = vst.msk [vmem:[#allocation2 + $0x60] sm:$0xff] %vm218, %v7209
  %7377 = vst.msk [vmem:[#allocation2 + $0x68] sm:$0x7f] %vm3279, %v7211
  %7378 = vst.msk [vmem:[#allocation2 + $0x70] sm:$0xff] %vm218, %v7213
  %7379 = vst.msk [vmem:[#allocation2 + $0x78] sm:$0x7f] %vm3279, %v7215
  %7380 = vst.msk [vmem:[#allocation2 + $0x80] sm:$0xff] %vm218, %v7217
  %7381 = vst.msk [vmem:[#allocation2 + $0x88] sm:$0x7f] %vm3279, %v7219
  %7382 = vst.msk [vmem:[#allocation2 + $0x90] sm:$0xff] %vm218, %v7221
  %7383 = vst.msk [vmem:[#allocation2 + $0x98] sm:$0x7f] %vm3279, %v7223
  %7384 = vst.msk [vmem:[#allocation2 + $0xa0] sm:$0xff] %vm218, %v7225
  %7385 = vst.msk [vmem:[#allocation2 + $0xa8] sm:$0x7f] %vm3279, %v7227
  %7386 = vst.msk [vmem:[#allocation2 + $0xb0] sm:$0xff] %vm218, %v7229
  %7387 = vst.msk [vmem:[#allocation2 + $0xb8] sm:$0x7f] %vm3279, %v7231
  %7388 = vst.msk [vmem:[#allocation2 + $0xc0] sm:$0xff] %vm218, %v7233
  %7389 = vst.msk [vmem:[#allocation2 + $0xc8] sm:$0x7f] %vm3279, %v7235
  %7390 = vst.msk [vmem:[#allocation2 + $0xd0] sm:$0xff] %vm218, %v7237
  %7391 = vst.msk [vmem:[#allocation2 + $0xd8] sm:$0x7f] %vm3279, %v7239
  %7392 = vst.msk [vmem:[#allocation2 + $0xe0] sm:$0xff] %vm218, %v7241
  %7393 = vst.msk [vmem:[#allocation2 + $0xe8] sm:$0x7f] %vm3279, %v7243
  %7394 = vst.msk [vmem:[#allocation2 + $0x100] sm:$0xff] %vm218, %v7245
  %7395 = vst.msk [vmem:[#allocation2 + $0x108] sm:$0x7f] %vm3279, %v7247
  %7396 = vst.msk [vmem:[#allocation2 + $0x110] sm:$0xff] %vm218, %v7249
  %7397 = vst.msk [vmem:[#allocation2 + $0x118] sm:$0x7f] %vm3279, %v7251
  %7398 = vst.msk [vmem:[#allocation2 + $0x120] sm:$0xff] %vm218, %v7253
  %7399 = vst.msk [vmem:[#allocation2 + $0x128] sm:$0x7f] %vm3279, %v7255
  %7400 = vst.msk [vmem:[#allocation2 + $0x130] sm:$0xff] %vm218, %v7257
  %7401 = vst.msk [vmem:[#allocation2 + $0x138] sm:$0x7f] %vm3279, %v7259
  %7402 = vst.msk [vmem:[#allocation2 + $0x140] sm:$0xff] %vm218, %v7261
  %7403 = vst.msk [vmem:[#allocation2 + $0x148] sm:$0x7f] %vm3279, %v7263
  %7404 = vst.msk [vmem:[#allocation2 + $0x150] sm:$0xff] %vm218, %v7265
  %7405 = vst.msk [vmem:[#allocation2 + $0x158] sm:$0x7f] %vm3279, %v7267
  %7406 = vst.msk [vmem:[#allocation2 + $0x160] sm:$0xff] %vm218, %v7269
  %7407 = vst.msk [vmem:[#allocation2 + $0x168] sm:$0x7f] %vm3279, %v7271
  %7408 = vst.msk [vmem:[#allocation2 + $0x170] sm:$0xff] %vm218, %v7273
  %7409 = vst.msk [vmem:[#allocation2 + $0x178] sm:$0x7f] %vm3279, %v7275
  %7410 = vst.msk [vmem:[#allocation2 + $0x180] sm:$0xff] %vm218, %v7277
  %7411 = vst.msk [vmem:[#allocation2 + $0x188] sm:$0x7f] %vm3279, %v7279
  %7412 = vst.msk [vmem:[#allocation2 + $0x190] sm:$0xff] %vm218, %v7281
  %7413 = vst.msk [vmem:[#allocation2 + $0x198] sm:$0x7f] %vm3279, %v7283
  %7414 = vst.msk [vmem:[#allocation2 + $0x1a0] sm:$0xff] %vm218, %v7285
  %7415 = vst.msk [vmem:[#allocation2 + $0x1a8] sm:$0x7f] %vm3279, %v7287
  %7416 = vst.msk [vmem:[#allocation2 + $0x1b0] sm:$0xff] %vm218, %v7289
  %7417 = vst.msk [vmem:[#allocation2 + $0x1b8] sm:$0x7f] %vm3279, %v7291
  %7418 = vst.msk [vmem:[#allocation2 + $0x1c0] sm:$0xff] %vm218, %v7293
  %7419 = vst.msk [vmem:[#allocation2 + $0x1c8] sm:$0x7f] %vm3279, %v7295
  %7420 = vst.msk [vmem:[#allocation2 + $0x1d0] sm:$0xff] %vm218, %v7297
  %7421 = vst.msk [vmem:[#allocation2 + $0x1d8] sm:$0x7f] %vm3279, %v7299
  %7422 = vst.msk [vmem:[#allocation2 + $0x1e0] sm:$0xff] %vm218, %v7301
  %7423 = vst.msk [vmem:[#allocation2 + $0x1e8] sm:$0x7f] %vm3279, %v7303
  %v7424 = vld [vmem:[#allocation2] sm:$0xff]
  %v7425 = vld [vmem:[#allocation2 + $0x8] sm:$0xff]
  %v7426 = vld [vmem:[#allocation2 + $0x10] sm:$0xff]
  %v7427 = vld [vmem:[#allocation2 + $0x18] sm:$0xff]
  %v7428 = vld [vmem:[#allocation2 + $0x20] sm:$0xff]
  %v7429 = vld [vmem:[#allocation2 + $0x28] sm:$0xff]
  %v7430 = vld [vmem:[#allocation2 + $0x30] sm:$0xff]
  %v7431 = vld [vmem:[#allocation2 + $0x38] sm:$0xff]
  %v7432 = vld [vmem:[#allocation2 + $0x40] sm:$0xff]
  %v7433 = vld [vmem:[#allocation2 + $0x48] sm:$0xff]
  %v7434 = vld [vmem:[#allocation2 + $0x50] sm:$0xff]
  %v7435 = vld [vmem:[#allocation2 + $0x58] sm:$0xff]
  %v7436 = vld [vmem:[#allocation2 + $0x60] sm:$0xff]
  %v7437 = vld [vmem:[#allocation2 + $0x68] sm:$0xff]
  %v7438 = vld [vmem:[#allocation2 + $0x70] sm:$0xff]
  %v7439 = vld [vmem:[#allocation2 + $0x78] sm:$0xff]
  %v7440 = vld [vmem:[#allocation2 + $0x80] sm:$0xff]
  %v7441 = vld [vmem:[#allocation2 + $0x88] sm:$0xff]
  %v7442 = vld [vmem:[#allocation2 + $0x90] sm:$0xff]
  %v7443 = vld [vmem:[#allocation2 + $0x98] sm:$0xff]
  %v7444 = vld [vmem:[#allocation2 + $0xa0] sm:$0xff]
  %v7445 = vld [vmem:[#allocation2 + $0xa8] sm:$0xff]
  %v7446 = vld [vmem:[#allocation2 + $0xb0] sm:$0xff]
  %v7447 = vld [vmem:[#allocation2 + $0xb8] sm:$0xff]
  %v7448 = vld [vmem:[#allocation2 + $0xc0] sm:$0xff]
  %v7449 = vld [vmem:[#allocation2 + $0xc8] sm:$0xff]
  %v7450 = vld [vmem:[#allocation2 + $0xd0] sm:$0xff]
  %v7451 = vld [vmem:[#allocation2 + $0xd8] sm:$0xff]
  %v7452 = vld [vmem:[#allocation2 + $0xe0] sm:$0xff]
  %v7453 = vld [vmem:[#allocation2 + $0xe8] sm:$0xff]
  %v7454 = vld [vmem:[#allocation2 + $0xf0] sm:$0xff]
  %v7455 = vld [vmem:[#allocation2 + $0xf8] sm:$0xff]
  %v7456 = vld [vmem:[#allocation2 + $0x100] sm:$0xff]
  %v7457 = vld [vmem:[#allocation2 + $0x108] sm:$0xff]
  %v7458 = vld [vmem:[#allocation2 + $0x110] sm:$0xff]
  %v7459 = vld [vmem:[#allocation2 + $0x118] sm:$0xff]
  %v7460 = vld [vmem:[#allocation2 + $0x120] sm:$0xff]
  %v7461 = vld [vmem:[#allocation2 + $0x128] sm:$0xff]
  %v7462 = vld [vmem:[#allocation2 + $0x130] sm:$0xff]
  %v7463 = vld [vmem:[#allocation2 + $0x138] sm:$0xff]
  %v7464 = vld [vmem:[#allocation2 + $0x140] sm:$0xff]
  %v7465 = vld [vmem:[#allocation2 + $0x148] sm:$0xff]
  %v7466 = vld [vmem:[#allocation2 + $0x150] sm:$0xff]
  %v7467 = vld [vmem:[#allocation2 + $0x158] sm:$0xff]
  %v7468 = vld [vmem:[#allocation2 + $0x160] sm:$0xff]
  %v7469 = vld [vmem:[#allocation2 + $0x168] sm:$0xff]
  %v7470 = vld [vmem:[#allocation2 + $0x170] sm:$0xff]
  %v7471 = vld [vmem:[#allocation2 + $0x178] sm:$0xff]
  %v7472 = vld [vmem:[#allocation2 + $0x180] sm:$0xff]
  %v7473 = vld [vmem:[#allocation2 + $0x188] sm:$0xff]
  %v7474 = vld [vmem:[#allocation2 + $0x190] sm:$0xff]
  %v7475 = vld [vmem:[#allocation2 + $0x198] sm:$0xff]
  %v7476 = vld [vmem:[#allocation2 + $0x1a0] sm:$0xff]
  %v7477 = vld [vmem:[#allocation2 + $0x1a8] sm:$0xff]
  %v7478 = vld [vmem:[#allocation2 + $0x1b0] sm:$0xff]
  %v7479 = vld [vmem:[#allocation2 + $0x1b8] sm:$0xff]
  %v7480 = vld [vmem:[#allocation2 + $0x1c0] sm:$0xff]
  %v7481 = vld [vmem:[#allocation2 + $0x1c8] sm:$0xff]
  %v7482 = vld [vmem:[#allocation2 + $0x1d0] sm:$0xff]
  %v7483 = vld [vmem:[#allocation2 + $0x1d8] sm:$0xff]
  %v7484 = vld [vmem:[#allocation2 + $0x1e0] sm:$0xff]
  %v7485 = vld [vmem:[#allocation2 + $0x1e8] sm:$0xff]
  %v7486 = vld [vmem:[#allocation2 + $0x1f0] sm:$0xff]
  %v7487 = vld [vmem:[#allocation2 + $0x1f8] sm:$0xff]
  %v7488 = vpack.c.bf16 %v7425, %v7424
  %v7489 = vpack.c.bf16 %v7427, %v7426
  %v7490 = vpack.c.bf16 %v7429, %v7428
  %v7491 = vpack.c.bf16 %v7431, %v7430
  %v7492 = vpack.c.bf16 %v7433, %v7432
  %v7493 = vpack.c.bf16 %v7435, %v7434
  %v7494 = vpack.c.bf16 %v7437, %v7436
  %v7495 = vpack.c.bf16 %v7439, %v7438
  %v7496 = vpack.c.bf16 %v7441, %v7440
  %v7497 = vpack.c.bf16 %v7443, %v7442
  %v7498 = vpack.c.bf16 %v7445, %v7444
  %v7499 = vpack.c.bf16 %v7447, %v7446
  %v7500 = vpack.c.bf16 %v7449, %v7448
  %v7501 = vpack.c.bf16 %v7451, %v7450
  %v7502 = vpack.c.bf16 %v7453, %v7452
  %v7503 = vpack.c.bf16 %v7455, %v7454
  %v7504 = vpack.c.bf16 %v7457, %v7456
  %v7505 = vpack.c.bf16 %v7459, %v7458
  %v7506 = vpack.c.bf16 %v7461, %v7460
  %v7507 = vpack.c.bf16 %v7463, %v7462
  %v7508 = vpack.c.bf16 %v7465, %v7464
  %v7509 = vpack.c.bf16 %v7467, %v7466
  %v7510 = vpack.c.bf16 %v7469, %v7468
  %v7511 = vpack.c.bf16 %v7471, %v7470
  %v7512 = vpack.c.bf16 %v7473, %v7472
  %v7513 = vpack.c.bf16 %v7475, %v7474
  %v7514 = vpack.c.bf16 %v7477, %v7476
  %v7515 = vpack.c.bf16 %v7479, %v7478
  %v7516 = vpack.c.bf16 %v7481, %v7480
  %v7517 = vpack.c.bf16 %v7483, %v7482
  %v7518 = vpack.c.bf16 %v7485, %v7484
  %v7519 = vpack.c.bf16 %v7487, %v7486
  %v7520 = vld [vmem:[%s4] sm:$0xf]
  %v7521 = vld [vmem:[%s4 + $0x4] sm:$0xf]
  %v7522 = vld [vmem:[%s4 + $0x8] sm:$0xf]
  %v7523 = vld [vmem:[%s4 + $0xc] sm:$0xf]
  %v7524 = vld [vmem:[%s4 + $0x10] sm:$0xf]
  %v7525 = vld [vmem:[%s4 + $0x14] sm:$0xf]
  %v7526 = vld [vmem:[%s4 + $0x18] sm:$0xf]
  %v7527 = vld [vmem:[%s4 + $0x1c] sm:$0xf]
  %v7528 = vld [vmem:[%s4 + $0x20] sm:$0xf]
  %v7538 = vunpack.c.l.b16 %v7520
  %v7539 = vunpack.c.l.b16 %v7521
  %v7540 = vunpack.c.l.b16 %v7522
  %v7541 = vunpack.c.l.b16 %v7523
  %v7542 = vunpack.c.l.b16 %v7524
  %v7543 = vunpack.c.l.b16 %v7525
  %v7544 = vunpack.c.l.b16 %v7526
  %v7545 = vunpack.c.l.b16 %v7527
  %v7546 = vunpack.c.l.b16 %v7528
  %v7547 = vpack.c.b16 %v7539, %v7538
  %v7548 = vpack.c.b16 %v7541, %v7540
  %v7549 = vpack.c.b16 %v7543, %v7542
  %v7550 = vpack.c.b16 %v7545, %v7544
  %v7551 = vpack.c.b16 %v7546, %v7546
  %v7557 = vsel %vm3471, %v7488, 0
  %v7560 = vsel %vm3471, %v7489, 0
  %v7563 = vsel %vm3471, %v7490, 0
  %v7566 = vsel %vm3471, %v7491, 0
  %v7569 = vsel %vm3471, %v7492, 0
  %v7572 = vsel %vm3471, %v7493, 0
  %v7575 = vsel %vm3471, %v7494, 0
  %v7578 = vsel %vm3471, %v7495, 0
  %v7581 = vsel %vm3471, %v7496, 0
  %v7584 = vsel %vm3471, %v7497, 0
  %v7587 = vsel %vm3471, %v7498, 0
  %v7590 = vsel %vm3471, %v7499, 0
  %v7593 = vsel %vm3471, %v7500, 0
  %v7596 = vsel %vm3471, %v7501, 0
  %v7599 = vsel %vm3471, %v7502, 0
  %v7602 = vsel %vm3471, %v7503, 0
  %v7605 = vsel %vm3471, %v7504, 0
  %v7608 = vsel %vm3471, %v7505, 0
  %v7611 = vsel %vm3471, %v7506, 0
  %v7614 = vsel %vm3471, %v7507, 0
  %v7617 = vsel %vm3471, %v7508, 0
  %v7620 = vsel %vm3471, %v7509, 0
  %v7623 = vsel %vm3471, %v7510, 0
  %v7626 = vsel %vm3471, %v7511, 0
  %v7629 = vsel %vm3471, %v7512, 0
  %v7632 = vsel %vm3471, %v7513, 0
  %v7635 = vsel %vm3471, %v7514, 0
  %v7638 = vsel %vm3471, %v7515, 0
  %v7641 = vsel %vm3471, %v7516, 0
  %v7644 = vsel %vm3471, %v7517, 0
  %v7647 = vsel %vm3471, %v7518, 0
  %v7650 = vsel %vm3471, %v7519, 0
  %v7653 = vsel %vm3568, %v7551, 0
  %7655 = vmatpush.bf16.msra.mxu0 0
  %7656 = vmatpush.bf16.msra.mxu0 0
  %7657 = vmatpush.bf16.msra.mxu0 0
  %7658 = vmatpush.bf16.msra.mxu0 %v7653
  %7659 = vmatpush.bf16.msra.mxu0 %v7550
  %7660 = vmatpush.bf16.msra.mxu0 %v7549
  %7661 = vmatpush.bf16.msra.mxu0 %v7548
  %7662 = vmatpush.bf16.msra.mxu0 %v7547
  %7663 = vmatmul.bf16.gmra.mxu0 %v7557
  %v7664 = vpop.f32.mrf.mxu0
  %v7665 = vadd.f32 0.0, %v7664
  %v7666 = vpop.f32.mrf.mxu0
  %v7667 = vadd.f32 0.0, %v7666
  %7668 = vmatmul.bf16.gmra.mxu0 %v7560
  %v7669 = vpop.f32.mrf.mxu0
  %v7670 = vadd.f32 0.0, %v7669
  %v7671 = vpop.f32.mrf.mxu0
  %v7672 = vadd.f32 0.0, %v7671
  %7673 = vmatmul.bf16.gmra.mxu0 %v7563
  %v7674 = vpop.f32.mrf.mxu0
  %v7675 = vadd.f32 0.0, %v7674
  %v7676 = vpop.f32.mrf.mxu0
  %v7677 = vadd.f32 0.0, %v7676
  %7678 = vmatmul.bf16.gmra.mxu0 %v7566
  %v7679 = vpop.f32.mrf.mxu0
  %v7680 = vadd.f32 0.0, %v7679
  %v7681 = vpop.f32.mrf.mxu0
  %v7682 = vadd.f32 0.0, %v7681
  %7683 = vmatmul.bf16.gmra.mxu0 %v7569
  %v7684 = vpop.f32.mrf.mxu0
  %v7685 = vadd.f32 0.0, %v7684
  %v7686 = vpop.f32.mrf.mxu0
  %v7687 = vadd.f32 0.0, %v7686
  %7688 = vmatmul.bf16.gmra.mxu0 %v7572
  %v7689 = vpop.f32.mrf.mxu0
  %v7690 = vadd.f32 0.0, %v7689
  %v7691 = vpop.f32.mrf.mxu0
  %v7692 = vadd.f32 0.0, %v7691
  %7693 = vmatmul.bf16.gmra.mxu0 %v7575
  %v7694 = vpop.f32.mrf.mxu0
  %v7695 = vadd.f32 0.0, %v7694
  %v7696 = vpop.f32.mrf.mxu0
  %v7697 = vadd.f32 0.0, %v7696
  %7698 = vmatmul.bf16.gmra.mxu0 %v7578
  %v7699 = vpop.f32.mrf.mxu0
  %v7700 = vadd.f32 0.0, %v7699
  %v7701 = vpop.f32.mrf.mxu0
  %v7702 = vadd.f32 0.0, %v7701
  %7703 = vmatmul.bf16.gmra.mxu0 %v7581
  %v7704 = vpop.f32.mrf.mxu0
  %v7705 = vadd.f32 0.0, %v7704
  %v7706 = vpop.f32.mrf.mxu0
  %v7707 = vadd.f32 0.0, %v7706
  %7708 = vmatmul.bf16.gmra.mxu0 %v7584
  %v7709 = vpop.f32.mrf.mxu0
  %v7710 = vadd.f32 0.0, %v7709
  %v7711 = vpop.f32.mrf.mxu0
  %v7712 = vadd.f32 0.0, %v7711
  %7713 = vmatmul.bf16.gmra.mxu0 %v7587
  %v7714 = vpop.f32.mrf.mxu0
  %v7715 = vadd.f32 0.0, %v7714
  %v7716 = vpop.f32.mrf.mxu0
  %v7717 = vadd.f32 0.0, %v7716
  %7718 = vmatmul.bf16.gmra.mxu0 %v7590
  %v7719 = vpop.f32.mrf.mxu0
  %v7720 = vadd.f32 0.0, %v7719
  %v7721 = vpop.f32.mrf.mxu0
  %v7722 = vadd.f32 0.0, %v7721
  %7723 = vmatmul.bf16.gmra.mxu0 %v7593
  %v7724 = vpop.f32.mrf.mxu0
  %v7725 = vadd.f32 0.0, %v7724
  %v7726 = vpop.f32.mrf.mxu0
  %v7727 = vadd.f32 0.0, %v7726
  %7728 = vmatmul.bf16.gmra.mxu0 %v7596
  %v7729 = vpop.f32.mrf.mxu0
  %v7730 = vadd.f32 0.0, %v7729
  %v7731 = vpop.f32.mrf.mxu0
  %v7732 = vadd.f32 0.0, %v7731
  %7733 = vmatmul.bf16.gmra.mxu0 %v7599
  %v7734 = vpop.f32.mrf.mxu0
  %v7735 = vadd.f32 0.0, %v7734
  %v7736 = vpop.f32.mrf.mxu0
  %v7737 = vadd.f32 0.0, %v7736
  %7738 = vmatmul.bf16.gmra.mxu0 %v7602
  %v7739 = vpop.f32.mrf.mxu0
  %v7740 = vadd.f32 0.0, %v7739
  %v7741 = vpop.f32.mrf.mxu0
  %v7742 = vadd.f32 0.0, %v7741
  %7743 = vmatmul.bf16.gmra.mxu0 %v7605
  %v7744 = vpop.f32.mrf.mxu0
  %v7745 = vadd.f32 0.0, %v7744
  %v7746 = vpop.f32.mrf.mxu0
  %v7747 = vadd.f32 0.0, %v7746
  %7748 = vmatmul.bf16.gmra.mxu0 %v7608
  %v7749 = vpop.f32.mrf.mxu0
  %v7750 = vadd.f32 0.0, %v7749
  %v7751 = vpop.f32.mrf.mxu0
  %v7752 = vadd.f32 0.0, %v7751
  %7753 = vmatmul.bf16.gmra.mxu0 %v7611
  %v7754 = vpop.f32.mrf.mxu0
  %v7755 = vadd.f32 0.0, %v7754
  %v7756 = vpop.f32.mrf.mxu0
  %v7757 = vadd.f32 0.0, %v7756
  %7758 = vmatmul.bf16.gmra.mxu0 %v7614
  %v7759 = vpop.f32.mrf.mxu0
  %v7760 = vadd.f32 0.0, %v7759
  %v7761 = vpop.f32.mrf.mxu0
  %v7762 = vadd.f32 0.0, %v7761
  %7763 = vmatmul.bf16.gmra.mxu0 %v7617
  %v7764 = vpop.f32.mrf.mxu0
  %v7765 = vadd.f32 0.0, %v7764
  %v7766 = vpop.f32.mrf.mxu0
  %v7767 = vadd.f32 0.0, %v7766
  %7768 = vmatmul.bf16.gmra.mxu0 %v7620
  %v7769 = vpop.f32.mrf.mxu0
  %v7770 = vadd.f32 0.0, %v7769
  %v7771 = vpop.f32.mrf.mxu0
  %v7772 = vadd.f32 0.0, %v7771
  %7773 = vmatmul.bf16.gmra.mxu0 %v7623
  %v7774 = vpop.f32.mrf.mxu0
  %v7775 = vadd.f32 0.0, %v7774
  %v7776 = vpop.f32.mrf.mxu0
  %v7777 = vadd.f32 0.0, %v7776
  %7778 = vmatmul.bf16.gmra.mxu0 %v7626
  %v7779 = vpop.f32.mrf.mxu0
  %v7780 = vadd.f32 0.0, %v7779
  %v7781 = vpop.f32.mrf.mxu0
  %v7782 = vadd.f32 0.0, %v7781
  %7783 = vmatmul.bf16.gmra.mxu0 %v7629
  %v7784 = vpop.f32.mrf.mxu0
  %v7785 = vadd.f32 0.0, %v7784
  %v7786 = vpop.f32.mrf.mxu0
  %v7787 = vadd.f32 0.0, %v7786
  %7788 = vmatmul.bf16.gmra.mxu0 %v7632
  %v7789 = vpop.f32.mrf.mxu0
  %v7790 = vadd.f32 0.0, %v7789
  %v7791 = vpop.f32.mrf.mxu0
  %v7792 = vadd.f32 0.0, %v7791
  %7793 = vmatmul.bf16.gmra.mxu0 %v7635
  %v7794 = vpop.f32.mrf.mxu0
  %v7795 = vadd.f32 0.0, %v7794
  %v7796 = vpop.f32.mrf.mxu0
  %v7797 = vadd.f32 0.0, %v7796
  %7798 = vmatmul.bf16.gmra.mxu0 %v7638
  %v7799 = vpop.f32.mrf.mxu0
  %v7800 = vadd.f32 0.0, %v7799
  %v7801 = vpop.f32.mrf.mxu0
  %v7802 = vadd.f32 0.0, %v7801
  %7803 = vmatmul.bf16.gmra.mxu0 %v7641
  %v7804 = vpop.f32.mrf.mxu0
  %v7805 = vadd.f32 0.0, %v7804
  %v7806 = vpop.f32.mrf.mxu0
  %v7807 = vadd.f32 0.0, %v7806
  %7808 = vmatmul.bf16.gmra.mxu0 %v7644
  %v7809 = vpop.f32.mrf.mxu0
  %v7810 = vadd.f32 0.0, %v7809
  %v7811 = vpop.f32.mrf.mxu0
  %v7812 = vadd.f32 0.0, %v7811
  %7813 = vmatmul.bf16.gmra.mxu0 %v7647
  %v7814 = vpop.f32.mrf.mxu0
  %v7815 = vadd.f32 0.0, %v7814
  %v7816 = vpop.f32.mrf.mxu0
  %v7817 = vadd.f32 0.0, %v7816
  %7818 = vmatmul.bf16.gmra.mxu0 %v7650
  %v7819 = vpop.f32.mrf.mxu0
  %v7820 = vadd.f32 0.0, %v7819
  %v7821 = vpop.f32.mrf.mxu0
  %v7822 = vadd.f32 0.0, %v7821
  %7823 = vdwg.mxu0
  %v7824 = vsel %vm27, %v7665, 0.0
  %v7825 = vsel %vm27, %v7667, 0.0
  %v7826 = vadd.f32 %v7824, %v7825
  %v7827 = vsel %vm27, %v7670, 0.0
  %v7828 = vadd.f32 %v7826, %v7827
  %v7829 = vsel %vm27, %v7672, 0.0
  %v7830 = vadd.f32 %v7828, %v7829
  %v7831 = vsel %vm27, %v7675, 0.0
  %v7832 = vadd.f32 %v7830, %v7831
  %v7833 = vsel %vm27, %v7677, 0.0
  %v7834 = vadd.f32 %v7832, %v7833
  %v7835 = vsel %vm27, %v7680, 0.0
  %v7836 = vadd.f32 %v7834, %v7835
  %v7837 = vsel %vm27, %v7682, 0.0
  %v7838 = vadd.f32 %v7836, %v7837
  %v7839 = vsel %vm27, %v7685, 0.0
  %v7840 = vadd.f32 %v7838, %v7839
  %v7841 = vsel %vm27, %v7687, 0.0
  %v7842 = vadd.f32 %v7840, %v7841
  %v7843 = vsel %vm27, %v7690, 0.0
  %v7844 = vadd.f32 %v7842, %v7843
  %v7845 = vsel %vm27, %v7692, 0.0
  %v7846 = vadd.f32 %v7844, %v7845
  %v7847 = vsel %vm27, %v7695, 0.0
  %v7848 = vadd.f32 %v7846, %v7847
  %v7849 = vsel %vm27, %v7697, 0.0
  %v7850 = vadd.f32 %v7848, %v7849
  %v7851 = vsel %vm27, %v7700, 0.0
  %v7852 = vadd.f32 %v7850, %v7851
  %v7853 = vsel %vm27, %v7702, 0.0
  %v7854 = vadd.f32 %v7852, %v7853
  %v7855 = vsel %vm27, %v7705, 0.0
  %v7856 = vadd.f32 %v7854, %v7855
  %v7857 = vsel %vm27, %v7707, 0.0
  %v7858 = vadd.f32 %v7856, %v7857
  %v7859 = vsel %vm27, %v7710, 0.0
  %v7860 = vadd.f32 %v7858, %v7859
  %v7861 = vsel %vm27, %v7712, 0.0
  %v7862 = vadd.f32 %v7860, %v7861
  %v7863 = vsel %vm27, %v7715, 0.0
  %v7864 = vadd.f32 %v7862, %v7863
  %v7865 = vsel %vm27, %v7717, 0.0
  %v7866 = vadd.f32 %v7864, %v7865
  %v7867 = vsel %vm27, %v7720, 0.0
  %v7868 = vadd.f32 %v7866, %v7867
  %v7869 = vsel %vm27, %v7722, 0.0
  %v7870 = vadd.f32 %v7868, %v7869
  %v7871 = vsel %vm27, %v7725, 0.0
  %v7872 = vadd.f32 %v7870, %v7871
  %v7873 = vsel %vm27, %v7727, 0.0
  %v7874 = vadd.f32 %v7872, %v7873
  %v7875 = vsel %vm27, %v7730, 0.0
  %v7876 = vadd.f32 %v7874, %v7875
  %v7877 = vsel %vm27, %v7732, 0.0
  %v7878 = vadd.f32 %v7876, %v7877
  %v7879 = vsel %vm27, %v7735, 0.0
  %v7880 = vadd.f32 %v7878, %v7879
  %v7881 = vsel %vm27, %v7737, 0.0
  %v7882 = vadd.f32 %v7880, %v7881
  %v7883 = vsel %vm27, %v7740, 0.0
  %v7884 = vadd.f32 %v7882, %v7883
  %v7885 = vsel %vm27, %v7742, 0.0
  %v7886 = vadd.f32 %v7884, %v7885
  %v7887 = vsel %vm27, %v7745, 0.0
  %v7888 = vadd.f32 %v7886, %v7887
  %v7889 = vsel %vm27, %v7747, 0.0
  %v7890 = vadd.f32 %v7888, %v7889
  %v7891 = vsel %vm27, %v7750, 0.0
  %v7892 = vadd.f32 %v7890, %v7891
  %v7893 = vsel %vm27, %v7752, 0.0
  %v7894 = vadd.f32 %v7892, %v7893
  %v7895 = vsel %vm27, %v7755, 0.0
  %v7896 = vadd.f32 %v7894, %v7895
  %v7897 = vsel %vm27, %v7757, 0.0
  %v7898 = vadd.f32 %v7896, %v7897
  %v7899 = vsel %vm27, %v7760, 0.0
  %v7900 = vadd.f32 %v7898, %v7899
  %v7901 = vsel %vm27, %v7762, 0.0
  %v7902 = vadd.f32 %v7900, %v7901
  %v7903 = vsel %vm27, %v7765, 0.0
  %v7904 = vadd.f32 %v7902, %v7903
  %v7905 = vsel %vm27, %v7767, 0.0
  %v7906 = vadd.f32 %v7904, %v7905
  %v7907 = vsel %vm27, %v7770, 0.0
  %v7908 = vadd.f32 %v7906, %v7907
  %v7909 = vsel %vm27, %v7772, 0.0
  %v7910 = vadd.f32 %v7908, %v7909
  %v7911 = vsel %vm27, %v7775, 0.0
  %v7912 = vadd.f32 %v7910, %v7911
  %v7913 = vsel %vm27, %v7777, 0.0
  %v7914 = vadd.f32 %v7912, %v7913
  %v7915 = vsel %vm27, %v7780, 0.0
  %v7916 = vadd.f32 %v7914, %v7915
  %v7917 = vsel %vm27, %v7782, 0.0
  %v7918 = vadd.f32 %v7916, %v7917
  %v7919 = vsel %vm27, %v7785, 0.0
  %v7920 = vadd.f32 %v7918, %v7919
  %v7921 = vsel %vm27, %v7787, 0.0
  %v7922 = vadd.f32 %v7920, %v7921
  %v7923 = vsel %vm27, %v7790, 0.0
  %v7924 = vadd.f32 %v7922, %v7923
  %v7925 = vsel %vm27, %v7792, 0.0
  %v7926 = vadd.f32 %v7924, %v7925
  %v7927 = vsel %vm27, %v7795, 0.0
  %v7928 = vadd.f32 %v7926, %v7927
  %v7929 = vsel %vm27, %v7797, 0.0
  %v7930 = vadd.f32 %v7928, %v7929
  %v7931 = vsel %vm27, %v7800, 0.0
  %v7932 = vadd.f32 %v7930, %v7931
  %v7933 = vsel %vm27, %v7802, 0.0
  %v7934 = vadd.f32 %v7932, %v7933
  %v7935 = vsel %vm27, %v7805, 0.0
  %v7936 = vadd.f32 %v7934, %v7935
  %v7937 = vsel %vm27, %v7807, 0.0
  %v7938 = vadd.f32 %v7936, %v7937
  %v7939 = vsel %vm27, %v7810, 0.0
  %v7940 = vadd.f32 %v7938, %v7939
  %v7941 = vsel %vm27, %v7812, 0.0
  %v7942 = vadd.f32 %v7940, %v7941
  %v7943 = vsel %vm27, %v7815, 0.0
  %v7944 = vadd.f32 %v7942, %v7943
  %v7945 = vsel %vm27, %v7817, 0.0
  %v7946 = vadd.f32 %v7944, %v7945
  %v7947 = vsel %vm27, %v7820, 0.0
  %v7948 = vadd.f32 %v7946, %v7947
  %v7949 = vsel %vm27, %v7822, 0.0
  %v7950 = vadd.f32 %v7948, %v7949
  %v7951 = vrot.slane %v7950, 4
  %v7952 = vadd.f32 %v7950, %v7951
  %v7953 = vrot.slane %v7952, 2
  %v7954 = vadd.f32 %v7952, %v7953
  %v7955 = vrot.slane %v7954, 1
  %v7956 = vadd.f32 %v7954, %v7955
  %v7957 = vmul.f32 %v7665, %v7665
  %v7958 = vmul.f32 %v7667, %v7667
  %v7959 = vmul.f32 %v7670, %v7670
  %v7960 = vmul.f32 %v7672, %v7672
  %v7961 = vmul.f32 %v7675, %v7675
  %v7962 = vmul.f32 %v7677, %v7677
  %v7963 = vmul.f32 %v7680, %v7680
  %v7964 = vmul.f32 %v7682, %v7682
  %v7965 = vmul.f32 %v7685, %v7685
  %v7966 = vmul.f32 %v7687, %v7687
  %v7967 = vmul.f32 %v7690, %v7690
  %v7968 = vmul.f32 %v7692, %v7692
  %v7969 = vmul.f32 %v7695, %v7695
  %v7970 = vmul.f32 %v7697, %v7697
  %v7971 = vmul.f32 %v7700, %v7700
  %v7972 = vmul.f32 %v7702, %v7702
  %v7973 = vmul.f32 %v7705, %v7705
  %v7974 = vmul.f32 %v7707, %v7707
  %v7975 = vmul.f32 %v7710, %v7710
  %v7976 = vmul.f32 %v7712, %v7712
  %v7977 = vmul.f32 %v7715, %v7715
  %v7978 = vmul.f32 %v7717, %v7717
  %v7979 = vmul.f32 %v7720, %v7720
  %v7980 = vmul.f32 %v7722, %v7722
  %v7981 = vmul.f32 %v7725, %v7725
  %v7982 = vmul.f32 %v7727, %v7727
  %v7983 = vmul.f32 %v7730, %v7730
  %v7984 = vmul.f32 %v7732, %v7732
  %v7985 = vmul.f32 %v7735, %v7735
  %v7986 = vmul.f32 %v7737, %v7737
  %v7987 = vmul.f32 %v7740, %v7740
  %v7988 = vmul.f32 %v7742, %v7742
  %v7989 = vmul.f32 %v7745, %v7745
  %v7990 = vmul.f32 %v7747, %v7747
  %v7991 = vmul.f32 %v7750, %v7750
  %v7992 = vmul.f32 %v7752, %v7752
  %v7993 = vmul.f32 %v7755, %v7755
  %v7994 = vmul.f32 %v7757, %v7757
  %v7995 = vmul.f32 %v7760, %v7760
  %v7996 = vmul.f32 %v7762, %v7762
  %v7997 = vmul.f32 %v7765, %v7765
  %v7998 = vmul.f32 %v7767, %v7767
  %v7999 = vmul.f32 %v7770, %v7770
  %v8000 = vmul.f32 %v7772, %v7772
  %v8001 = vmul.f32 %v7775, %v7775
  %v8002 = vmul.f32 %v7777, %v7777
  %v8003 = vmul.f32 %v7780, %v7780
  %v8004 = vmul.f32 %v7782, %v7782
  %v8005 = vmul.f32 %v7785, %v7785
  %v8006 = vmul.f32 %v7787, %v7787
  %v8007 = vmul.f32 %v7790, %v7790
  %v8008 = vmul.f32 %v7792, %v7792
  %v8009 = vmul.f32 %v7795, %v7795
  %v8010 = vmul.f32 %v7797, %v7797
  %v8011 = vmul.f32 %v7800, %v7800
  %v8012 = vmul.f32 %v7802, %v7802
  %v8013 = vmul.f32 %v7805, %v7805
  %v8014 = vmul.f32 %v7807, %v7807
  %v8015 = vmul.f32 %v7810, %v7810
  %v8016 = vmul.f32 %v7812, %v7812
  %v8017 = vmul.f32 %v7815, %v7815
  %v8018 = vmul.f32 %v7817, %v7817
  %v8019 = vmul.f32 %v7820, %v7820
  %v8020 = vmul.f32 %v7822, %v7822
  %v8021 = vsel %vm27, %v7957, 0.0
  %v8022 = vsel %vm27, %v7958, 0.0
  %v8023 = vadd.f32 %v8021, %v8022
  %v8024 = vsel %vm27, %v7959, 0.0
  %v8025 = vadd.f32 %v8023, %v8024
  %v8026 = vsel %vm27, %v7960, 0.0
  %v8027 = vadd.f32 %v8025, %v8026
  %v8028 = vsel %vm27, %v7961, 0.0
  %v8029 = vadd.f32 %v8027, %v8028
  %v8030 = vsel %vm27, %v7962, 0.0
  %v8031 = vadd.f32 %v8029, %v8030
  %v8032 = vsel %vm27, %v7963, 0.0
  %v8033 = vadd.f32 %v8031, %v8032
  %v8034 = vsel %vm27, %v7964, 0.0
  %v8035 = vadd.f32 %v8033, %v8034
  %v8036 = vsel %vm27, %v7965, 0.0
  %v8037 = vadd.f32 %v8035, %v8036
  %v8038 = vsel %vm27, %v7966, 0.0
  %v8039 = vadd.f32 %v8037, %v8038
  %v8040 = vsel %vm27, %v7967, 0.0
  %v8041 = vadd.f32 %v8039, %v8040
  %v8042 = vsel %vm27, %v7968, 0.0
  %v8043 = vadd.f32 %v8041, %v8042
  %v8044 = vsel %vm27, %v7969, 0.0
  %v8045 = vadd.f32 %v8043, %v8044
  %v8046 = vsel %vm27, %v7970, 0.0
  %v8047 = vadd.f32 %v8045, %v8046
  %v8048 = vsel %vm27, %v7971, 0.0
  %v8049 = vadd.f32 %v8047, %v8048
  %v8050 = vsel %vm27, %v7972, 0.0
  %v8051 = vadd.f32 %v8049, %v8050
  %v8052 = vsel %vm27, %v7973, 0.0
  %v8053 = vadd.f32 %v8051, %v8052
  %v8054 = vsel %vm27, %v7974, 0.0
  %v8055 = vadd.f32 %v8053, %v8054
  %v8056 = vsel %vm27, %v7975, 0.0
  %v8057 = vadd.f32 %v8055, %v8056
  %v8058 = vsel %vm27, %v7976, 0.0
  %v8059 = vadd.f32 %v8057, %v8058
  %v8060 = vsel %vm27, %v7977, 0.0
  %v8061 = vadd.f32 %v8059, %v8060
  %v8062 = vsel %vm27, %v7978, 0.0
  %v8063 = vadd.f32 %v8061, %v8062
  %v8064 = vsel %vm27, %v7979, 0.0
  %v8065 = vadd.f32 %v8063, %v8064
  %v8066 = vsel %vm27, %v7980, 0.0
  %v8067 = vadd.f32 %v8065, %v8066
  %v8068 = vsel %vm27, %v7981, 0.0
  %v8069 = vadd.f32 %v8067, %v8068
  %v8070 = vsel %vm27, %v7982, 0.0
  %v8071 = vadd.f32 %v8069, %v8070
  %v8072 = vsel %vm27, %v7983, 0.0
  %v8073 = vadd.f32 %v8071, %v8072
  %v8074 = vsel %vm27, %v7984, 0.0
  %v8075 = vadd.f32 %v8073, %v8074
  %v8076 = vsel %vm27, %v7985, 0.0
  %v8077 = vadd.f32 %v8075, %v8076
  %v8078 = vsel %vm27, %v7986, 0.0
  %v8079 = vadd.f32 %v8077, %v8078
  %v8080 = vsel %vm27, %v7987, 0.0
  %v8081 = vadd.f32 %v8079, %v8080
  %v8082 = vsel %vm27, %v7988, 0.0
  %v8083 = vadd.f32 %v8081, %v8082
  %v8084 = vsel %vm27, %v7989, 0.0
  %v8085 = vadd.f32 %v8083, %v8084
  %v8086 = vsel %vm27, %v7990, 0.0
  %v8087 = vadd.f32 %v8085, %v8086
  %v8088 = vsel %vm27, %v7991, 0.0
  %v8089 = vadd.f32 %v8087, %v8088
  %v8090 = vsel %vm27, %v7992, 0.0
  %v8091 = vadd.f32 %v8089, %v8090
  %v8092 = vsel %vm27, %v7993, 0.0
  %v8093 = vadd.f32 %v8091, %v8092
  %v8094 = vsel %vm27, %v7994, 0.0
  %v8095 = vadd.f32 %v8093, %v8094
  %v8096 = vsel %vm27, %v7995, 0.0
  %v8097 = vadd.f32 %v8095, %v8096
  %v8098 = vsel %vm27, %v7996, 0.0
  %v8099 = vadd.f32 %v8097, %v8098
  %v8100 = vsel %vm27, %v7997, 0.0
  %v8101 = vadd.f32 %v8099, %v8100
  %v8102 = vsel %vm27, %v7998, 0.0
  %v8103 = vadd.f32 %v8101, %v8102
  %v8104 = vsel %vm27, %v7999, 0.0
  %v8105 = vadd.f32 %v8103, %v8104
  %v8106 = vsel %vm27, %v8000, 0.0
  %v8107 = vadd.f32 %v8105, %v8106
  %v8108 = vsel %vm27, %v8001, 0.0
  %v8109 = vadd.f32 %v8107, %v8108
  %v8110 = vsel %vm27, %v8002, 0.0
  %v8111 = vadd.f32 %v8109, %v8110
  %v8112 = vsel %vm27, %v8003, 0.0
  %v8113 = vadd.f32 %v8111, %v8112
  %v8114 = vsel %vm27, %v8004, 0.0
  %v8115 = vadd.f32 %v8113, %v8114
  %v8116 = vsel %vm27, %v8005, 0.0
  %v8117 = vadd.f32 %v8115, %v8116
  %v8118 = vsel %vm27, %v8006, 0.0
  %v8119 = vadd.f32 %v8117, %v8118
  %v8120 = vsel %vm27, %v8007, 0.0
  %v8121 = vadd.f32 %v8119, %v8120
  %v8122 = vsel %vm27, %v8008, 0.0
  %v8123 = vadd.f32 %v8121, %v8122
  %v8124 = vsel %vm27, %v8009, 0.0
  %v8125 = vadd.f32 %v8123, %v8124
  %v8126 = vsel %vm27, %v8010, 0.0
  %v8127 = vadd.f32 %v8125, %v8126
  %v8128 = vsel %vm27, %v8011, 0.0
  %v8129 = vadd.f32 %v8127, %v8128
  %v8130 = vsel %vm27, %v8012, 0.0
  %v8131 = vadd.f32 %v8129, %v8130
  %v8132 = vsel %vm27, %v8013, 0.0
  %v8133 = vadd.f32 %v8131, %v8132
  %v8134 = vsel %vm27, %v8014, 0.0
  %v8135 = vadd.f32 %v8133, %v8134
  %v8136 = vsel %vm27, %v8015, 0.0
  %v8137 = vadd.f32 %v8135, %v8136
  %v8138 = vsel %vm27, %v8016, 0.0
  %v8139 = vadd.f32 %v8137, %v8138
  %v8140 = vsel %vm27, %v8017, 0.0
  %v8141 = vadd.f32 %v8139, %v8140
  %v8142 = vsel %vm27, %v8018, 0.0
  %v8143 = vadd.f32 %v8141, %v8142
  %v8144 = vsel %vm27, %v8019, 0.0
  %v8145 = vadd.f32 %v8143, %v8144
  %v8146 = vsel %vm27, %v8020, 0.0
  %v8147 = vadd.f32 %v8145, %v8146
  %v8148 = vrot.slane %v8147, 4
  %v8149 = vadd.f32 %v8147, %v8148
  %v8150 = vrot.slane %v8149, 2
  %v8151 = vadd.f32 %v8149, %v8150
  %v8152 = vrot.slane %v8151, 1
  %v8153 = vadd.f32 %v8151, %v8152
  %v8154 = vmul.f32 %v7956, 0.001953125
  %v8155 = vmul.f32 %v8153, 0.001953125
  %v8156 = vmul.f32 %v8154, %v8154
  %v8157 = vsub.f32 %v8155, %v8156
  %v8158 = vadd.f32 %v8157, 1e-05
  %v8159 = vrsqrt.pop %v8158
  %v8160 = vmul.f32 %v8159, %v8158
  %v8161 = vmul.f32 %v8160, %v8159
  %v8162 = vmul.f32 0.5, %v8161
  %v8163 = vsub.f32 1.5, %v8162
  %v8164 = vmul.f32 %v8159, %v8163
  %vm8165 = vweird.f32 %v8158
  %vm8166 = vweird.f32 %v8159
  %vm8167 = vmor %vm8165, %vm8166
  %v8168 = vsel %vm8167, %v8159, %v8164
  %v8169 = vld [vmem:[%s5] sm:$0x1]
  %v8170 = vmul.f32 %v8168, %v8169
  %v8171 = vld [vmem:[%s6] sm:$0x1]
  %v8172 = vmul.f32 %v8154, %v8170
  %v8173 = vsub.f32 %v8171, %v8172
  %v8174 = vperm.slane %v8170, 0
  %v8175 = vmul.f32 %v7665, %v8174
  %v8176 = vmul.f32 %v7667, %v8174
  %v8177 = vmul.f32 %v7670, %v8174
  %v8178 = vmul.f32 %v7672, %v8174
  %v8179 = vmul.f32 %v7675, %v8174
  %v8180 = vmul.f32 %v7677, %v8174
  %v8181 = vmul.f32 %v7680, %v8174
  %v8182 = vmul.f32 %v7682, %v8174
  %v8183 = vmul.f32 %v7685, %v8174
  %v8184 = vmul.f32 %v7687, %v8174
  %v8185 = vmul.f32 %v7690, %v8174
  %v8186 = vmul.f32 %v7692, %v8174
  %v8187 = vmul.f32 %v7695, %v8174
  %v8188 = vmul.f32 %v7697, %v8174
  %v8189 = vmul.f32 %v7700, %v8174
  %v8190 = vmul.f32 %v7702, %v8174
  %v8191 = vmul.f32 %v7705, %v8174
  %v8192 = vmul.f32 %v7707, %v8174
  %v8193 = vmul.f32 %v7710, %v8174
  %v8194 = vmul.f32 %v7712, %v8174
  %v8195 = vmul.f32 %v7715, %v8174
  %v8196 = vmul.f32 %v7717, %v8174
  %v8197 = vmul.f32 %v7720, %v8174
  %v8198 = vmul.f32 %v7722, %v8174
  %v8199 = vmul.f32 %v7725, %v8174
  %v8200 = vmul.f32 %v7727, %v8174
  %v8201 = vmul.f32 %v7730, %v8174
  %v8202 = vmul.f32 %v7732, %v8174
  %v8203 = vmul.f32 %v7735, %v8174
  %v8204 = vmul.f32 %v7737, %v8174
  %v8205 = vmul.f32 %v7740, %v8174
  %v8206 = vmul.f32 %v7742, %v8174
  %v8207 = vmul.f32 %v7745, %v8174
  %v8208 = vmul.f32 %v7747, %v8174
  %v8209 = vmul.f32 %v7750, %v8174
  %v8210 = vmul.f32 %v7752, %v8174
  %v8211 = vmul.f32 %v7755, %v8174
  %v8212 = vmul.f32 %v7757, %v8174
  %v8213 = vmul.f32 %v7760, %v8174
  %v8214 = vmul.f32 %v7762, %v8174
  %v8215 = vmul.f32 %v7765, %v8174
  %v8216 = vmul.f32 %v7767, %v8174
  %v8217 = vmul.f32 %v7770, %v8174
  %v8218 = vmul.f32 %v7772, %v8174
  %v8219 = vmul.f32 %v7775, %v8174
  %v8220 = vmul.f32 %v7777, %v8174
  %v8221 = vmul.f32 %v7780, %v8174
  %v8222 = vmul.f32 %v7782, %v8174
  %v8223 = vmul.f32 %v7785, %v8174
  %v8224 = vmul.f32 %v7787, %v8174
  %v8225 = vmul.f32 %v7790, %v8174
  %v8226 = vmul.f32 %v7792, %v8174
  %v8227 = vmul.f32 %v7795, %v8174
  %v8228 = vmul.f32 %v7797, %v8174
  %v8229 = vmul.f32 %v7800, %v8174
  %v8230 = vmul.f32 %v7802, %v8174
  %v8231 = vmul.f32 %v7805, %v8174
  %v8232 = vmul.f32 %v7807, %v8174
  %v8233 = vmul.f32 %v7810, %v8174
  %v8234 = vmul.f32 %v7812, %v8174
  %v8235 = vmul.f32 %v7815, %v8174
  %v8236 = vmul.f32 %v7817, %v8174
  %v8237 = vmul.f32 %v7820, %v8174
  %v8238 = vmul.f32 %v7822, %v8174
  %v8240 = vperm.slane %v8173, 0
  %v8242 = vadd.f32 %v8175, %v8240
  %v8243 = vadd.f32 %v8176, %v8240
  %v8244 = vadd.f32 %v8177, %v8240
  %v8245 = vadd.f32 %v8178, %v8240
  %v8246 = vadd.f32 %v8179, %v8240
  %v8247 = vadd.f32 %v8180, %v8240
  %v8248 = vadd.f32 %v8181, %v8240
  %v8249 = vadd.f32 %v8182, %v8240
  %v8250 = vadd.f32 %v8183, %v8240
  %v8251 = vadd.f32 %v8184, %v8240
  %v8252 = vadd.f32 %v8185, %v8240
  %v8253 = vadd.f32 %v8186, %v8240
  %v8254 = vadd.f32 %v8187, %v8240
  %v8255 = vadd.f32 %v8188, %v8240
  %v8256 = vadd.f32 %v8189, %v8240
  %v8257 = vadd.f32 %v8190, %v8240
  %v8258 = vadd.f32 %v8191, %v8240
  %v8259 = vadd.f32 %v8192, %v8240
  %v8260 = vadd.f32 %v8193, %v8240
  %v8261 = vadd.f32 %v8194, %v8240
  %v8262 = vadd.f32 %v8195, %v8240
  %v8263 = vadd.f32 %v8196, %v8240
  %v8264 = vadd.f32 %v8197, %v8240
  %v8265 = vadd.f32 %v8198, %v8240
  %v8266 = vadd.f32 %v8199, %v8240
  %v8267 = vadd.f32 %v8200, %v8240
  %v8268 = vadd.f32 %v8201, %v8240
  %v8269 = vadd.f32 %v8202, %v8240
  %v8270 = vadd.f32 %v8203, %v8240
  %v8271 = vadd.f32 %v8204, %v8240
  %v8272 = vadd.f32 %v8205, %v8240
  %v8273 = vadd.f32 %v8206, %v8240
  %v8274 = vadd.f32 %v8207, %v8240
  %v8275 = vadd.f32 %v8208, %v8240
  %v8276 = vadd.f32 %v8209, %v8240
  %v8277 = vadd.f32 %v8210, %v8240
  %v8278 = vadd.f32 %v8211, %v8240
  %v8279 = vadd.f32 %v8212, %v8240
  %v8280 = vadd.f32 %v8213, %v8240
  %v8281 = vadd.f32 %v8214, %v8240
  %v8282 = vadd.f32 %v8215, %v8240
  %v8283 = vadd.f32 %v8216, %v8240
  %v8284 = vadd.f32 %v8217, %v8240
  %v8285 = vadd.f32 %v8218, %v8240
  %v8286 = vadd.f32 %v8219, %v8240
  %v8287 = vadd.f32 %v8220, %v8240
  %v8288 = vadd.f32 %v8221, %v8240
  %v8289 = vadd.f32 %v8222, %v8240
  %v8290 = vadd.f32 %v8223, %v8240
  %v8291 = vadd.f32 %v8224, %v8240
  %v8292 = vadd.f32 %v8225, %v8240
  %v8293 = vadd.f32 %v8226, %v8240
  %v8294 = vadd.f32 %v8227, %v8240
  %v8295 = vadd.f32 %v8228, %v8240
  %v8296 = vadd.f32 %v8229, %v8240
  %v8297 = vadd.f32 %v8230, %v8240
  %v8298 = vadd.f32 %v8231, %v8240
  %v8299 = vadd.f32 %v8232, %v8240
  %v8300 = vadd.f32 %v8233, %v8240
  %v8301 = vadd.f32 %v8234, %v8240
  %v8302 = vadd.f32 %v8235, %v8240
  %v8303 = vadd.f32 %v8236, %v8240
  %v8304 = vadd.f32 %v8237, %v8240
  %v8305 = vadd.f32 %v8238, %v8240
  %v8306 = vld [vmem:[%s0] sm:$0xff]
  %v8307 = vld [vmem:[%s0 + $0x8] sm:$0xff]
  %v8308 = vld [vmem:[%s0 + $0x10] sm:$0xff]
  %v8309 = vld [vmem:[%s0 + $0x18] sm:$0xff]
  %v8310 = vld [vmem:[%s0 + $0x20] sm:$0xff]
  %v8311 = vld [vmem:[%s0 + $0x28] sm:$0xff]
  %v8312 = vld [vmem:[%s0 + $0x30] sm:$0xff]
  %v8313 = vld [vmem:[%s0 + $0x38] sm:$0xff]
  %v8314 = vld [vmem:[%s0 + $0x40] sm:$0xff]
  %v8315 = vld [vmem:[%s0 + $0x48] sm:$0xff]
  %v8316 = vld [vmem:[%s0 + $0x50] sm:$0xff]
  %v8317 = vld [vmem:[%s0 + $0x58] sm:$0xff]
  %v8318 = vld [vmem:[%s0 + $0x60] sm:$0xff]
  %v8319 = vld [vmem:[%s0 + $0x68] sm:$0xff]
  %v8320 = vld [vmem:[%s0 + $0x70] sm:$0xff]
  %v8321 = vld [vmem:[%s0 + $0x78] sm:$0xff]
  %v8322 = vld [vmem:[%s0 + $0x80] sm:$0xff]
  %v8323 = vld [vmem:[%s0 + $0x88] sm:$0xff]
  %v8324 = vld [vmem:[%s0 + $0x90] sm:$0xff]
  %v8325 = vld [vmem:[%s0 + $0x98] sm:$0xff]
  %v8326 = vld [vmem:[%s0 + $0xa0] sm:$0xff]
  %v8327 = vld [vmem:[%s0 + $0xa8] sm:$0xff]
  %v8328 = vld [vmem:[%s0 + $0xb0] sm:$0xff]
  %v8329 = vld [vmem:[%s0 + $0xb8] sm:$0xff]
  %v8330 = vld [vmem:[%s0 + $0xc0] sm:$0xff]
  %v8331 = vld [vmem:[%s0 + $0xc8] sm:$0xff]
  %v8332 = vld [vmem:[%s0 + $0xd0] sm:$0xff]
  %v8333 = vld [vmem:[%s0 + $0xd8] sm:$0xff]
  %v8334 = vld [vmem:[%s0 + $0xe0] sm:$0xff]
  %v8335 = vld [vmem:[%s0 + $0xe8] sm:$0xff]
  %v8336 = vld [vmem:[%s0 + $0xf0] sm:$0xff]
  %v8337 = vld [vmem:[%s0 + $0xf8] sm:$0xff]
  %v8338 = vld [vmem:[%s0 + $0x100] sm:$0xff]
  %v8339 = vld [vmem:[%s0 + $0x108] sm:$0xff]
  %v8340 = vld [vmem:[%s0 + $0x110] sm:$0xff]
  %v8341 = vld [vmem:[%s0 + $0x118] sm:$0xff]
  %v8342 = vld [vmem:[%s0 + $0x120] sm:$0xff]
  %v8343 = vld [vmem:[%s0 + $0x128] sm:$0xff]
  %v8344 = vld [vmem:[%s0 + $0x130] sm:$0xff]
  %v8345 = vld [vmem:[%s0 + $0x138] sm:$0xff]
  %v8346 = vld [vmem:[%s0 + $0x140] sm:$0xff]
  %v8347 = vld [vmem:[%s0 + $0x148] sm:$0xff]
  %v8348 = vld [vmem:[%s0 + $0x150] sm:$0xff]
  %v8349 = vld [vmem:[%s0 + $0x158] sm:$0xff]
  %v8350 = vld [vmem:[%s0 + $0x160] sm:$0xff]
  %v8351 = vld [vmem:[%s0 + $0x168] sm:$0xff]
  %v8352 = vld [vmem:[%s0 + $0x170] sm:$0xff]
  %v8353 = vld [vmem:[%s0 + $0x178] sm:$0xff]
  %v8354 = vld [vmem:[%s0 + $0x180] sm:$0xff]
  %v8355 = vld [vmem:[%s0 + $0x188] sm:$0xff]
  %v8356 = vld [vmem:[%s0 + $0x190] sm:$0xff]
  %v8357 = vld [vmem:[%s0 + $0x198] sm:$0xff]
  %v8358 = vld [vmem:[%s0 + $0x1a0] sm:$0xff]
  %v8359 = vld [vmem:[%s0 + $0x1a8] sm:$0xff]
  %v8360 = vld [vmem:[%s0 + $0x1b0] sm:$0xff]
  %v8361 = vld [vmem:[%s0 + $0x1b8] sm:$0xff]
  %v8362 = vld [vmem:[%s0 + $0x1c0] sm:$0xff]
  %v8363 = vld [vmem:[%s0 + $0x1c8] sm:$0xff]
  %v8364 = vld [vmem:[%s0 + $0x1d0] sm:$0xff]
  %v8365 = vld [vmem:[%s0 + $0x1d8] sm:$0xff]
  %v8366 = vld [vmem:[%s0 + $0x1e0] sm:$0xff]
  %v8367 = vld [vmem:[%s0 + $0x1e8] sm:$0xff]
  %v8368 = vld [vmem:[%s0 + $0x1f0] sm:$0xff]
  %v8369 = vld [vmem:[%s0 + $0x1f8] sm:$0xff]
  %v8370 = vadd.f32 %v8242, %v8306
  %v8371 = vadd.f32 %v8243, %v8307
  %v8372 = vadd.f32 %v8244, %v8308
  %v8373 = vadd.f32 %v8245, %v8309
  %v8374 = vadd.f32 %v8246, %v8310
  %v8375 = vadd.f32 %v8247, %v8311
  %v8376 = vadd.f32 %v8248, %v8312
  %v8377 = vadd.f32 %v8249, %v8313
  %v8378 = vadd.f32 %v8250, %v8314
  %v8379 = vadd.f32 %v8251, %v8315
  %v8380 = vadd.f32 %v8252, %v8316
  %v8381 = vadd.f32 %v8253, %v8317
  %v8382 = vadd.f32 %v8254, %v8318
  %v8383 = vadd.f32 %v8255, %v8319
  %v8384 = vadd.f32 %v8256, %v8320
  %v8385 = vadd.f32 %v8257, %v8321
  %v8386 = vadd.f32 %v8258, %v8322
  %v8387 = vadd.f32 %v8259, %v8323
  %v8388 = vadd.f32 %v8260, %v8324
  %v8389 = vadd.f32 %v8261, %v8325
  %v8390 = vadd.f32 %v8262, %v8326
  %v8391 = vadd.f32 %v8263, %v8327
  %v8392 = vadd.f32 %v8264, %v8328
  %v8393 = vadd.f32 %v8265, %v8329
  %v8394 = vadd.f32 %v8266, %v8330
  %v8395 = vadd.f32 %v8267, %v8331
  %v8396 = vadd.f32 %v8268, %v8332
  %v8397 = vadd.f32 %v8269, %v8333
  %v8398 = vadd.f32 %v8270, %v8334
  %v8399 = vadd.f32 %v8271, %v8335
  %v8400 = vadd.f32 %v8272, %v8336
  %v8401 = vadd.f32 %v8273, %v8337
  %v8402 = vadd.f32 %v8274, %v8338
  %v8403 = vadd.f32 %v8275, %v8339
  %v8404 = vadd.f32 %v8276, %v8340
  %v8405 = vadd.f32 %v8277, %v8341
  %v8406 = vadd.f32 %v8278, %v8342
  %v8407 = vadd.f32 %v8279, %v8343
  %v8408 = vadd.f32 %v8280, %v8344
  %v8409 = vadd.f32 %v8281, %v8345
  %v8410 = vadd.f32 %v8282, %v8346
  %v8411 = vadd.f32 %v8283, %v8347
  %v8412 = vadd.f32 %v8284, %v8348
  %v8413 = vadd.f32 %v8285, %v8349
  %v8414 = vadd.f32 %v8286, %v8350
  %v8415 = vadd.f32 %v8287, %v8351
  %v8416 = vadd.f32 %v8288, %v8352
  %v8417 = vadd.f32 %v8289, %v8353
  %v8418 = vadd.f32 %v8290, %v8354
  %v8419 = vadd.f32 %v8291, %v8355
  %v8420 = vadd.f32 %v8292, %v8356
  %v8421 = vadd.f32 %v8293, %v8357
  %v8422 = vadd.f32 %v8294, %v8358
  %v8423 = vadd.f32 %v8295, %v8359
  %v8424 = vadd.f32 %v8296, %v8360
  %v8425 = vadd.f32 %v8297, %v8361
  %v8426 = vadd.f32 %v8298, %v8362
  %v8427 = vadd.f32 %v8299, %v8363
  %v8428 = vadd.f32 %v8300, %v8364
  %v8429 = vadd.f32 %v8301, %v8365
  %v8430 = vadd.f32 %v8302, %v8366
  %v8431 = vadd.f32 %v8303, %v8367
  %v8432 = vadd.f32 %v8304, %v8368
  %v8433 = vadd.f32 %v8305, %v8369
  %v8434 = vmax.f32 %v8370, 0.0
  %v8435 = vmax.f32 %v8371, 0.0
  %v8436 = vmax.f32 %v8372, 0.0
  %v8437 = vmax.f32 %v8373, 0.0
  %v8438 = vmax.f32 %v8374, 0.0
  %v8439 = vmax.f32 %v8375, 0.0
  %v8440 = vmax.f32 %v8376, 0.0
  %v8441 = vmax.f32 %v8377, 0.0
  %v8442 = vmax.f32 %v8378, 0.0
  %v8443 = vmax.f32 %v8379, 0.0
  %v8444 = vmax.f32 %v8380, 0.0
  %v8445 = vmax.f32 %v8381, 0.0
  %v8446 = vmax.f32 %v8382, 0.0
  %v8447 = vmax.f32 %v8383, 0.0
  %v8448 = vmax.f32 %v8384, 0.0
  %v8449 = vmax.f32 %v8385, 0.0
  %v8450 = vmax.f32 %v8386, 0.0
  %v8451 = vmax.f32 %v8387, 0.0
  %v8452 = vmax.f32 %v8388, 0.0
  %v8453 = vmax.f32 %v8389, 0.0
  %v8454 = vmax.f32 %v8390, 0.0
  %v8455 = vmax.f32 %v8391, 0.0
  %v8456 = vmax.f32 %v8392, 0.0
  %v8457 = vmax.f32 %v8393, 0.0
  %v8458 = vmax.f32 %v8394, 0.0
  %v8459 = vmax.f32 %v8395, 0.0
  %v8460 = vmax.f32 %v8396, 0.0
  %v8461 = vmax.f32 %v8397, 0.0
  %v8462 = vmax.f32 %v8398, 0.0
  %v8463 = vmax.f32 %v8399, 0.0
  %v8464 = vmax.f32 %v8400, 0.0
  %v8465 = vmax.f32 %v8401, 0.0
  %v8466 = vmax.f32 %v8402, 0.0
  %v8467 = vmax.f32 %v8403, 0.0
  %v8468 = vmax.f32 %v8404, 0.0
  %v8469 = vmax.f32 %v8405, 0.0
  %v8470 = vmax.f32 %v8406, 0.0
  %v8471 = vmax.f32 %v8407, 0.0
  %v8472 = vmax.f32 %v8408, 0.0
  %v8473 = vmax.f32 %v8409, 0.0
  %v8474 = vmax.f32 %v8410, 0.0
  %v8475 = vmax.f32 %v8411, 0.0
  %v8476 = vmax.f32 %v8412, 0.0
  %v8477 = vmax.f32 %v8413, 0.0
  %v8478 = vmax.f32 %v8414, 0.0
  %v8479 = vmax.f32 %v8415, 0.0
  %v8480 = vmax.f32 %v8416, 0.0
  %v8481 = vmax.f32 %v8417, 0.0
  %v8482 = vmax.f32 %v8418, 0.0
  %v8483 = vmax.f32 %v8419, 0.0
  %v8484 = vmax.f32 %v8420, 0.0
  %v8485 = vmax.f32 %v8421, 0.0
  %v8486 = vmax.f32 %v8422, 0.0
  %v8487 = vmax.f32 %v8423, 0.0
  %v8488 = vmax.f32 %v8424, 0.0
  %v8489 = vmax.f32 %v8425, 0.0
  %v8490 = vmax.f32 %v8426, 0.0
  %v8491 = vmax.f32 %v8427, 0.0
  %v8492 = vmax.f32 %v8428, 0.0
  %v8493 = vmax.f32 %v8429, 0.0
  %v8494 = vmax.f32 %v8430, 0.0
  %v8495 = vmax.f32 %v8431, 0.0
  %v8496 = vmax.f32 %v8432, 0.0
  %v8497 = vmax.f32 %v8433, 0.0
  %8498 = vst.msk [vmem:[%s7] sm:$0xff] %vm27, %v8434
  %8499 = vst.msk [vmem:[%s7 + $0x8] sm:$0xff] %vm27, %v8435
  %8500 = vst.msk [vmem:[%s7 + $0x10] sm:$0xff] %vm27, %v8436
  %8501 = vst.msk [vmem:[%s7 + $0x18] sm:$0xff] %vm27, %v8437
  %8502 = vst.msk [vmem:[%s7 + $0x20] sm:$0xff] %vm27, %v8438
  %8503 = vst.msk [vmem:[%s7 + $0x28] sm:$0xff] %vm27, %v8439
  %8504 = vst.msk [vmem:[%s7 + $0x30] sm:$0xff] %vm27, %v8440
  %8505 = vst.msk [vmem:[%s7 + $0x38] sm:$0xff] %vm27, %v8441
  %8506 = vst.msk [vmem:[%s7 + $0x40] sm:$0xff] %vm27, %v8442
  %8507 = vst.msk [vmem:[%s7 + $0x48] sm:$0xff] %vm27, %v8443
  %8508 = vst.msk [vmem:[%s7 + $0x50] sm:$0xff] %vm27, %v8444
  %8509 = vst.msk [vmem:[%s7 + $0x58] sm:$0xff] %vm27, %v8445
  %8510 = vst.msk [vmem:[%s7 + $0x60] sm:$0xff] %vm27, %v8446
  %8511 = vst.msk [vmem:[%s7 + $0x68] sm:$0xff] %vm27, %v8447
  %8512 = vst.msk [vmem:[%s7 + $0x70] sm:$0xff] %vm27, %v8448
  %8513 = vst.msk [vmem:[%s7 + $0x78] sm:$0xff] %vm27, %v8449
  %8514 = vst.msk [vmem:[%s7 + $0x80] sm:$0xff] %vm27, %v8450
  %8515 = vst.msk [vmem:[%s7 + $0x88] sm:$0xff] %vm27, %v8451
  %8516 = vst.msk [vmem:[%s7 + $0x90] sm:$0xff] %vm27, %v8452
  %8517 = vst.msk [vmem:[%s7 + $0x98] sm:$0xff] %vm27, %v8453
  %8518 = vst.msk [vmem:[%s7 + $0xa0] sm:$0xff] %vm27, %v8454
  %8519 = vst.msk [vmem:[%s7 + $0xa8] sm:$0xff] %vm27, %v8455
  %8520 = vst.msk [vmem:[%s7 + $0xb0] sm:$0xff] %vm27, %v8456
  %8521 = vst.msk [vmem:[%s7 + $0xb8] sm:$0xff] %vm27, %v8457
  %8522 = vst.msk [vmem:[%s7 + $0xc0] sm:$0xff] %vm27, %v8458
  %8523 = vst.msk [vmem:[%s7 + $0xc8] sm:$0xff] %vm27, %v8459
  %8524 = vst.msk [vmem:[%s7 + $0xd0] sm:$0xff] %vm27, %v8460
  %8525 = vst.msk [vmem:[%s7 + $0xd8] sm:$0xff] %vm27, %v8461
  %8526 = vst.msk [vmem:[%s7 + $0xe0] sm:$0xff] %vm27, %v8462
  %8527 = vst.msk [vmem:[%s7 + $0xe8] sm:$0xff] %vm27, %v8463
  %8528 = vst.msk [vmem:[%s7 + $0xf0] sm:$0xff] %vm27, %v8464
  %8529 = vst.msk [vmem:[%s7 + $0xf8] sm:$0xff] %vm27, %v8465
  %8530 = vst.msk [vmem:[%s7 + $0x100] sm:$0xff] %vm27, %v8466
  %8531 = vst.msk [vmem:[%s7 + $0x108] sm:$0xff] %vm27, %v8467
  %8532 = vst.msk [vmem:[%s7 + $0x110] sm:$0xff] %vm27, %v8468
  %8533 = vst.msk [vmem:[%s7 + $0x118] sm:$0xff] %vm27, %v8469
  %8534 = vst.msk [vmem:[%s7 + $0x120] sm:$0xff] %vm27, %v8470
  %8535 = vst.msk [vmem:[%s7 + $0x128] sm:$0xff] %vm27, %v8471
  %8536 = vst.msk [vmem:[%s7 + $0x130] sm:$0xff] %vm27, %v8472
  %8537 = vst.msk [vmem:[%s7 + $0x138] sm:$0xff] %vm27, %v8473
  %8538 = vst.msk [vmem:[%s7 + $0x140] sm:$0xff] %vm27, %v8474
  %8539 = vst.msk [vmem:[%s7 + $0x148] sm:$0xff] %vm27, %v8475
  %8540 = vst.msk [vmem:[%s7 + $0x150] sm:$0xff] %vm27, %v8476
  %8541 = vst.msk [vmem:[%s7 + $0x158] sm:$0xff] %vm27, %v8477
  %8542 = vst.msk [vmem:[%s7 + $0x160] sm:$0xff] %vm27, %v8478
  %8543 = vst.msk [vmem:[%s7 + $0x168] sm:$0xff] %vm27, %v8479
  %8544 = vst.msk [vmem:[%s7 + $0x170] sm:$0xff] %vm27, %v8480
  %8545 = vst.msk [vmem:[%s7 + $0x178] sm:$0xff] %vm27, %v8481
  %8546 = vst.msk [vmem:[%s7 + $0x180] sm:$0xff] %vm27, %v8482
  %8547 = vst.msk [vmem:[%s7 + $0x188] sm:$0xff] %vm27, %v8483
  %8548 = vst.msk [vmem:[%s7 + $0x190] sm:$0xff] %vm27, %v8484
  %8549 = vst.msk [vmem:[%s7 + $0x198] sm:$0xff] %vm27, %v8485
  %8550 = vst.msk [vmem:[%s7 + $0x1a0] sm:$0xff] %vm27, %v8486
  %8551 = vst.msk [vmem:[%s7 + $0x1a8] sm:$0xff] %vm27, %v8487
  %8552 = vst.msk [vmem:[%s7 + $0x1b0] sm:$0xff] %vm27, %v8488
  %8553 = vst.msk [vmem:[%s7 + $0x1b8] sm:$0xff] %vm27, %v8489
  %8554 = vst.msk [vmem:[%s7 + $0x1c0] sm:$0xff] %vm27, %v8490
  %8555 = vst.msk [vmem:[%s7 + $0x1c8] sm:$0xff] %vm27, %v8491
  %8556 = vst.msk [vmem:[%s7 + $0x1d0] sm:$0xff] %vm27, %v8492
  %8557 = vst.msk [vmem:[%s7 + $0x1d8] sm:$0xff] %vm27, %v8493
  %8558 = vst.msk [vmem:[%s7 + $0x1e0] sm:$0xff] %vm27, %v8494
  %8559 = vst.msk [vmem:[%s7 + $0x1e8] sm:$0xff] %vm27, %v8495
  %8560 = vst.msk [vmem:[%s7 + $0x1f0] sm:$0xff] %vm27, %v8496
  %8561 = vst.msk [vmem:[%s7 + $0x1f8] sm:$0xff] %vm27, %v8497
  // Predicated region
  $region30: #{basic_block_forward_nchw.1} parent=0 // pred_check
    _
  $region31: #{basic_block_forward_nchw.1} parent=0 // pred_check_branch
    %8563 = sbr.rel (0) target = $region33
  $region32: #{basic_block_forward_nchw.1} parent=0 // pred_region
    _
  $region33: #{basic_block_forward_nchw.1} parent=0 // pred_fallthru
    _
  // Predicated region
  $region34: #{basic_block_forward_nchw.1} parent=0 // pred_check
    _
  $region35: #{basic_block_forward_nchw.1} parent=0 // pred_check_branch
    %8565 = sbr.rel (0) target = $region37
  $region36: #{basic_block_forward_nchw.1} parent=0 // pred_region
    _
  $region37: #{basic_block_forward_nchw.1} parent=0 // pred_fallthru
    _

</llo_original>
